<compile_context>
chip_gen: v6e
topology: v6e:2x2x1
jax: 0.10.0
libtpu: 0.0.40
codegen_flags: <defaults>
</compile_context>

<pallas_src>
import jax
import jax.numpy as jnp
from jax.experimental import pallas as pl
from jax.experimental.pallas import tpu as pltpu


def rcu_kernel(x_ref, w1_ref, b1_ref, w2_ref, b2_ref, out_ref,
               pad_ref, acc_ref):
    """Fused ResidualConvUnit for one block of Bb images.

    x_ref   : (Bb, H, W, C)       f32   unpadded input block
    w1_ref  : (9, C, C)           bf16  conv1 weights, tap-major (dy*3+dx, Cin, Cout)
    b1_ref  : (1, C)              f32
    w2_ref  : (9, C, C)           bf16
    b2_ref  : (1, C)              f32
    out_ref : (Bb, H, W, C)
    pad_ref : (Bb, H+2, W+2, C)   bf16  zero-halo padded activation scratch
    acc_ref : (Bb*H*W, C)         f32   matmul accumulator (reused for both convs)
    """
    Bb, Hp, Wp, C = pad_ref.shape
    H, W = Hp - 2, Wp - 2
    M = Bb * H * W

    # ---- zero only the 1-px halo (interior is fully overwritten below).
    # Re-done every grid step: under a 'parallel' axis each TensorCore owns a
    # private, uninitialized copy of the scratch, so a program_id==0 guard
    # would leave stale halo data on the second core (v7x).
    zrow = jnp.zeros((Bb, 1, Wp, C), jnp.bfloat16)
    zcol = jnp.zeros((Bb, Hp, 1, C), jnp.bfloat16)
    pad_ref[:, 0:1, :, :] = zrow
    pad_ref[:, Hp - 1:Hp, :, :] = zrow
    pad_ref[:, :, 0:1, :] = zcol
    pad_ref[:, :, Wp - 1:Wp, :] = zcol

    x = x_ref[...]                                        # (Bb, H, W, C) f32

    def conv3x3(w_ref):
        # 3x3 conv as 9 tap matmuls (M,C)x(C,C), bf16 operands, f32 accumulate.
        # No im2col buffer: each bf16 tap slice of the padded scratch feeds the
        # MXU directly; accumulation lives in the f32 VMEM scratch.
        for dy in range(3):
            for dx in range(3):
                t = dy * 3 + dx
                tap = pad_ref[:, dy:dy + H, dx:dx + W, :].reshape(M, C)
                prod = jnp.dot(tap, w_ref[t],
                               preferred_element_type=jnp.float32)
                if t == 0:
                    acc_ref[...] = prod          # tap 0 initializes (no zero-fill)
                else:
                    acc_ref[...] += prod

    # ---- conv1 input: relu(x), cast to bf16 ONCE into the padded interior.
    pad_ref[:, 1:H + 1, 1:W + 1, :] = jnp.maximum(x, 0.0).astype(jnp.bfloat16)
    conv3x3(w1_ref)
    h1 = acc_ref[...] + b1_ref[...]                       # (M, C) f32, + bias

    # ---- relu, re-pad intermediate for conv2 (halo already zero).
    pad_ref[:, 1:H + 1, 1:W + 1, :] = (
        jnp.maximum(h1, 0.0).reshape(Bb, H, W, C).astype(jnp.bfloat16))
    conv3x3(w2_ref)
    h2 = acc_ref[...] + b2_ref[...]

    # ---- residual add with the original (pre-activation), aligned x.
    out_ref[...] = (h2.reshape(Bb, H, W, C) + x).astype(out_ref.dtype)


def _choose_block_b(B, H, W, C, vmem_budget_bytes=20 << 20):
    """Pick how many images to fold into one grid step (the matmul M dim)."""
    per_img = (4 * H * W * C * 4                # x + out blocks, f32, double-buffered
               + 2 * (H + 2) * (W + 2) * C      # bf16 padded-activation scratch
               + 4 * H * W * C)                 # f32 accumulator scratch
    cap = max(1, vmem_budget_bytes // per_img)
    feasible = [d for d in range(1, B + 1) if B % d == 0 and d <= cap]
    if not feasible:
        feasible = [1]
    # Prefer the smallest block that (a) fills the 256-row MXU (M >= 256) and
    # (b) still leaves >= 2 grid steps for v7x megacore; otherwise take the
    # largest feasible block (one big, well-fed step).
    good = [d for d in feasible if d * H * W >= 256 and d <= B // 2]
    return min(good) if good else feasible[-1]


def residual_conv_unit(x_nchw, w1, b1, w2, b2):
    """x_nchw: (B, C, H, W) float32; w: (Cout, Cin, 3, 3); b: (C,)."""
    B, C, H, W = x_nchw.shape
    assert C % 128 == 0, "kernel assumes channels fill whole 128-lane tiles"
    assert (H * W) % 8 == 0, "kernel assumes H*W a multiple of 8 (sublane tile)"

    Bb = _choose_block_b(B, H, W, C)
    n_blocks = B // Bb
    M = Bb * H * W

    # NCHW -> NHWC (channels on lanes).  No wrapper spatial pad: the +1
    # zero-pad is fused into the kernel's scratch.
    x_nhwc = jnp.transpose(x_nchw, (0, 2, 3, 1))

    # PyTorch (Cout, Cin, kh, kw) -> (kh, kw, Cin, Cout) -> (9, Cin, Cout),
    # cast to bf16 in the wrapper so only half the weight bytes are DMA'd.
    w1_taps = jnp.transpose(w1, (2, 3, 1, 0)).reshape(9, C, C).astype(jnp.bfloat16)
    w2_taps = jnp.transpose(w2, (2, 3, 1, 0)).reshape(9, C, C).astype(jnp.bfloat16)
    b1_2d = b1.reshape(1, C).astype(jnp.float32)
    b2_2d = b2.reshape(1, C).astype(jnp.float32)

    out_nhwc = pl.pallas_call(
        rcu_kernel,
        out_shape=jax.ShapeDtypeStruct((B, H, W, C), x_nchw.dtype),
        grid_spec=pltpu.PrefetchScalarGridSpec(
            num_scalar_prefetch=0,
            grid=(n_blocks,),
            in_specs=[
                pl.BlockSpec((Bb, H, W, C), lambda i: (i, 0, 0, 0)),
                pl.BlockSpec((9, C, C), lambda i: (0, 0, 0)),
                pl.BlockSpec((1, C), lambda i: (0, 0)),
                pl.BlockSpec((9, C, C), lambda i: (0, 0, 0)),
                pl.BlockSpec((1, C), lambda i: (0, 0)),
            ],
            out_specs=pl.BlockSpec((Bb, H, W, C), lambda i: (i, 0, 0, 0)),
            scratch_shapes=[
                pltpu.VMEM((Bb, H + 2, W + 2, C), jnp.bfloat16),  # padded acts
                pltpu.VMEM((M, C), jnp.float32),                  # f32 accumulator
            ],
        ),
        compiler_params=pltpu.CompilerParams(
            dimension_semantics=("parallel",)),
    )(x_nhwc, w1_taps, b1_2d, w2_taps, b2_2d)

    # NHWC -> NCHW for the PyTorch-style interface.
    return jnp.transpose(out_nhwc, (0, 3, 1, 2))


def reference_forward(x, w1, b1, w2, b2):
    """Pure-JAX reference matching the PyTorch module (NCHW)."""
    def conv(y, w, b):
        out = jax.lax.conv_general_dilated(
            y, w, window_strides=(1, 1), padding=((1, 1), (1, 1)),
            dimension_numbers=("NCHW", "OIHW", "NCHW"),
            precision=jax.lax.Precision.HIGHEST)
        return out + b.reshape(1, -1, 1, 1)

    out = jax.nn.relu(x)
    out = conv(out, w1, b1)
    out = jax.nn.relu(out)
    out = conv(out, w2, b2)
    return out + x


if __name__ == "__main__":
    # Channel count is fixed at 256 by the module; keep batch / spatial small.
    B, C, H, W = 2, 256, 8, 8

    key = jax.random.PRNGKey(0)
    kx, kw1, kb1, kw2, kb2 = jax.random.split(key, 5)

    x = jax.random.normal(kx, (B, C, H, W), dtype=jnp.float32)
    w1 = jax.random.normal(kw1, (C, C, 3, 3), dtype=jnp.float32) * 0.02
    b1 = jax.random.normal(kb1, (C,), dtype=jnp.float32) * 0.02
    w2 = jax.random.normal(kw2, (C, C, 3, 3), dtype=jnp.float32) * 0.02
    b2 = jax.random.normal(kb2, (C,), dtype=jnp.float32) * 0.02

    out = residual_conv_unit(x, w1, b1, w2, b2)
    out = jax.block_until_ready(out)

    ref = jax.block_until_ready(reference_forward(x, w1, b1, w2, b2))
    assert out.shape == (B, C, H, W)
    # NOTE: kernel uses bf16 operands with f32 accumulation; reference uses
    # f32 Precision.HIGHEST.  Differences are well inside the 1e-2 tolerance.
    assert jnp.allclose(out, ref, atol=1e-2, rtol=1e-2), (
        float(jnp.max(jnp.abs(out - ref))))

    print("KERNEL_OK")
</pallas_src>

<mosaic_0001>
module attributes {stable_mosaic.version = 11 : i64} {
  func.func @rcu_kernel(%arg0: i32, %arg1: memref<2x8x8x256xf32, #tpu.memory_space<vmem>>, %arg2: memref<9x256x256xbf16, #tpu.memory_space<vmem>>, %arg3: memref<1x256xf32, #tpu.memory_space<vmem>>, %arg4: memref<9x256x256xbf16, #tpu.memory_space<vmem>>, %arg5: memref<1x256xf32, #tpu.memory_space<vmem>>, %arg6: memref<2x8x8x256xf32, #tpu.memory_space<vmem>>, %arg7: memref<2x10x10x256xbf16, #tpu.memory_space<vmem>>, %arg8: memref<128x256xf32, #tpu.memory_space<vmem>>) attributes {dimension_semantics = [#tpu.dimension_semantics<parallel>], iteration_bounds = array<i64: 1>, scalar_prefetch = 0 : i64, scratch_operands = 2 : i64, tpu.core_type = #tpu.core_type<tc>, window_params = [{transform_indices = @transform_0, window_bounds = array<i64: 2, 8, 8, 256>}, {pipeline_mode = #tpu.pipeline_mode<synchronous>, transform_indices = @transform_1, window_bounds = array<i64: 9, 256, 256>}, {pipeline_mode = #tpu.pipeline_mode<synchronous>, transform_indices = @transform_2, window_bounds = array<i64: 1, 256>}, {pipeline_mode = #tpu.pipeline_mode<synchronous>, transform_indices = @transform_3, window_bounds = array<i64: 9, 256, 256>}, {pipeline_mode = #tpu.pipeline_mode<synchronous>, transform_indices = @transform_4, window_bounds = array<i64: 1, 256>}, {transform_indices = @transform_5, window_bounds = array<i64: 2, 8, 8, 256>}]} {
    %cst = arith.constant 0.000000e+00 : bf16
    %0 = vector.broadcast %cst : bf16 to vector<2x1x10x256xbf16>
    %cst_0 = arith.constant 0.000000e+00 : bf16
    %1 = vector.broadcast %cst_0 : bf16 to vector<2x10x1x256xbf16>
    %c0 = arith.constant 0 : index
    %c0_1 = arith.constant 0 : index
    %c0_2 = arith.constant 0 : index
    %c0_3 = arith.constant 0 : index
    %2 = vector.load %arg7[%c0, %c0_1, %c0_2, %c0_3] : memref<2x10x10x256xbf16, #tpu.memory_space<vmem>>, vector<2x1x10x256xbf16>
    tpu.vector_store %arg7[%c0, %c0_1, %c0_2, %c0_3], %0 {strides = array<i32>} : memref<2x10x10x256xbf16, #tpu.memory_space<vmem>>, vector<2x1x10x256xbf16>,
    %c0_4 = arith.constant 0 : index
    %c9 = arith.constant 9 : index
    %c0_5 = arith.constant 0 : index
    %c0_6 = arith.constant 0 : index
    %3 = vector.load %arg7[%c0_4, %c9, %c0_5, %c0_6] : memref<2x10x10x256xbf16, #tpu.memory_space<vmem>>, vector<2x1x10x256xbf16>
    tpu.vector_store %arg7[%c0_4, %c9, %c0_5, %c0_6], %0 {strides = array<i32>} : memref<2x10x10x256xbf16, #tpu.memory_space<vmem>>, vector<2x1x10x256xbf16>,
    %c0_7 = arith.constant 0 : index
    %c0_8 = arith.constant 0 : index
    %c0_9 = arith.constant 0 : index
    %c0_10 = arith.constant 0 : index
    %4 = vector.load %arg7[%c0_7, %c0_8, %c0_9, %c0_10] : memref<2x10x10x256xbf16, #tpu.memory_space<vmem>>, vector<2x10x1x256xbf16>
    tpu.vector_store %arg7[%c0_7, %c0_8, %c0_9, %c0_10], %1 {strides = array<i32>} : memref<2x10x10x256xbf16, #tpu.memory_space<vmem>>, vector<2x10x1x256xbf16>,
    %c0_11 = arith.constant 0 : index
    %c0_12 = arith.constant 0 : index
    %c9_13 = arith.constant 9 : index
    %c0_14 = arith.constant 0 : index
    %5 = vector.load %arg7[%c0_11, %c0_12, %c9_13, %c0_14] : memref<2x10x10x256xbf16, #tpu.memory_space<vmem>>, vector<2x10x1x256xbf16>
    tpu.vector_store %arg7[%c0_11, %c0_12, %c9_13, %c0_14], %1 {strides = array<i32>} : memref<2x10x10x256xbf16, #tpu.memory_space<vmem>>, vector<2x10x1x256xbf16>,
    %c0_15 = arith.constant 0 : index
    %c0_16 = arith.constant 0 : index
    %c0_17 = arith.constant 0 : index
    %c0_18 = arith.constant 0 : index
    %6 = vector.load %arg1[%c0_15, %c0_16, %c0_17, %c0_18] : memref<2x8x8x256xf32, #tpu.memory_space<vmem>>, vector<2x8x8x256xf32>
    %cst_19 = arith.constant 0.000000e+00 : f32
    %7 = vector.broadcast %cst_19 : f32 to vector<2x8x8x256xf32>
    %8 = arith.maximumf %6, %7 : vector<2x8x8x256xf32>
    %9 = arith.truncf %8 : vector<2x8x8x256xf32> to vector<2x8x8x256xbf16>
    %c0_20 = arith.constant 0 : index
    %c1 = arith.constant 1 : index
    %c1_21 = arith.constant 1 : index
    %c0_22 = arith.constant 0 : index
    %10 = vector.load %arg7[%c0_20, %c1, %c1_21, %c0_22] : memref<2x10x10x256xbf16, #tpu.memory_space<vmem>>, vector<2x8x8x256xbf16>
    tpu.vector_store %arg7[%c0_20, %c1, %c1_21, %c0_22], %9 {strides = array<i32>} : memref<2x10x10x256xbf16, #tpu.memory_space<vmem>>, vector<2x8x8x256xbf16>,
    %c0_23 = arith.constant 0 : index
    %c0_24 = arith.constant 0 : index
    %c0_25 = arith.constant 0 : index
    %c0_26 = arith.constant 0 : index
    %11 = vector.load %arg7[%c0_23, %c0_24, %c0_25, %c0_26] : memref<2x10x10x256xbf16, #tpu.memory_space<vmem>>, vector<2x8x8x256xbf16>
    %12 = vector.shape_cast %11 : vector<2x8x8x256xbf16> to vector<128x256xbf16>
    %c0_27 = arith.constant 0 : index
    %c0_28 = arith.constant 0 : index
    %c0_29 = arith.constant 0 : index
    %13 = vector.load %arg2[%c0_27, %c0_28, %c0_29] : memref<9x256x256xbf16, #tpu.memory_space<vmem>>, vector<1x256x256xbf16>
    %14 = vector.shape_cast %13 : vector<1x256x256xbf16> to vector<256x256xbf16>
    %cst_30 = arith.constant dense<0.000000e+00> : vector<128x256xf32>
    %15 = tpu.matmul %12, %14, %cst_30 {dimension_numbers = #tpu.dot_dimension_numbers<[1], [0], [0], [1], [0, 0, 1, 1], [], []>} : vector<128x256xbf16>, vector<256x256xbf16>, vector<128x256xf32> -> vector<128x256xf32>
    %c0_31 = arith.constant 0 : index
    %c0_32 = arith.constant 0 : index
    %16 = vector.load %arg8[%c0_31, %c0_32] : memref<128x256xf32, #tpu.memory_space<vmem>>, vector<128x256xf32>
    tpu.vector_store %arg8[%c0_31, %c0_32], %15 {strides = array<i32>} : memref<128x256xf32, #tpu.memory_space<vmem>>, vector<128x256xf32>,
    %c0_33 = arith.constant 0 : index
    %c0_34 = arith.constant 0 : index
    %c1_35 = arith.constant 1 : index
    %c0_36 = arith.constant 0 : index
    %17 = vector.load %arg7[%c0_33, %c0_34, %c1_35, %c0_36] : memref<2x10x10x256xbf16, #tpu.memory_space<vmem>>, vector<2x8x8x256xbf16>
    %18 = vector.shape_cast %17 : vector<2x8x8x256xbf16> to vector<128x256xbf16>
    %c1_37 = arith.constant 1 : index
    %c0_38 = arith.constant 0 : index
    %c0_39 = arith.constant 0 : index
    %19 = vector.load %arg2[%c1_37, %c0_38, %c0_39] : memref<9x256x256xbf16, #tpu.memory_space<vmem>>, vector<1x256x256xbf16>
    %20 = vector.shape_cast %19 : vector<1x256x256xbf16> to vector<256x256xbf16>
    %cst_40 = arith.constant dense<0.000000e+00> : vector<128x256xf32>
    %21 = tpu.matmul %18, %20, %cst_40 {dimension_numbers = #tpu.dot_dimension_numbers<[1], [0], [0], [1], [0, 0, 1, 1], [], []>} : vector<128x256xbf16>, vector<256x256xbf16>, vector<128x256xf32> -> vector<128x256xf32>
    %c0_41 = arith.constant 0 : index
    %c0_42 = arith.constant 0 : index
    %22 = vector.load %arg8[%c0_41, %c0_42] : memref<128x256xf32, #tpu.memory_space<vmem>>, vector<128x256xf32>
    %23 = arith.addf %22, %21 : vector<128x256xf32>
    %c0_43 = arith.constant 0 : index
    %c0_44 = arith.constant 0 : index
    %24 = vector.load %arg8[%c0_43, %c0_44] : memref<128x256xf32, #tpu.memory_space<vmem>>, vector<128x256xf32>
    tpu.vector_store %arg8[%c0_43, %c0_44], %23 {strides = array<i32>} : memref<128x256xf32, #tpu.memory_space<vmem>>, vector<128x256xf32>,
    %c0_45 = arith.constant 0 : index
    %c0_46 = arith.constant 0 : index
    %c2 = arith.constant 2 : index
    %c0_47 = arith.constant 0 : index
    %25 = vector.load %arg7[%c0_45, %c0_46, %c2, %c0_47] : memref<2x10x10x256xbf16, #tpu.memory_space<vmem>>, vector<2x8x8x256xbf16>
    %26 = vector.shape_cast %25 : vector<2x8x8x256xbf16> to vector<128x256xbf16>
    %c2_48 = arith.constant 2 : index
    %c0_49 = arith.constant 0 : index
    %c0_50 = arith.constant 0 : index
    %27 = vector.load %arg2[%c2_48, %c0_49, %c0_50] : memref<9x256x256xbf16, #tpu.memory_space<vmem>>, vector<1x256x256xbf16>
    %28 = vector.shape_cast %27 : vector<1x256x256xbf16> to vector<256x256xbf16>
    %cst_51 = arith.constant dense<0.000000e+00> : vector<128x256xf32>
    %29 = tpu.matmul %26, %28, %cst_51 {dimension_numbers = #tpu.dot_dimension_numbers<[1], [0], [0], [1], [0, 0, 1, 1], [], []>} : vector<128x256xbf16>, vector<256x256xbf16>, vector<128x256xf32> -> vector<128x256xf32>
    %c0_52 = arith.constant 0 : index
    %c0_53 = arith.constant 0 : index
    %30 = vector.load %arg8[%c0_52, %c0_53] : memref<128x256xf32, #tpu.memory_space<vmem>>, vector<128x256xf32>
    %31 = arith.addf %30, %29 : vector<128x256xf32>
    %c0_54 = arith.constant 0 : index
    %c0_55 = arith.constant 0 : index
    %32 = vector.load %arg8[%c0_54, %c0_55] : memref<128x256xf32, #tpu.memory_space<vmem>>, vector<128x256xf32>
    tpu.vector_store %arg8[%c0_54, %c0_55], %31 {strides = array<i32>} : memref<128x256xf32, #tpu.memory_space<vmem>>, vector<128x256xf32>,
    %c0_56 = arith.constant 0 : index
    %c1_57 = arith.constant 1 : index
    %c0_58 = arith.constant 0 : index
    %c0_59 = arith.constant 0 : index
    %33 = vector.load %arg7[%c0_56, %c1_57, %c0_58, %c0_59] : memref<2x10x10x256xbf16, #tpu.memory_space<vmem>>, vector<2x8x8x256xbf16>
    %34 = vector.shape_cast %33 : vector<2x8x8x256xbf16> to vector<128x256xbf16>
    %c3 = arith.constant 3 : index
    %c0_60 = arith.constant 0 : index
    %c0_61 = arith.constant 0 : index
    %35 = vector.load %arg2[%c3, %c0_60, %c0_61] : memref<9x256x256xbf16, #tpu.memory_space<vmem>>, vector<1x256x256xbf16>
    %36 = vector.shape_cast %35 : vector<1x256x256xbf16> to vector<256x256xbf16>
    %cst_62 = arith.constant dense<0.000000e+00> : vector<128x256xf32>
    %37 = tpu.matmul %34, %36, %cst_62 {dimension_numbers = #tpu.dot_dimension_numbers<[1], [0], [0], [1], [0, 0, 1, 1], [], []>} : vector<128x256xbf16>, vector<256x256xbf16>, vector<128x256xf32> -> vector<128x256xf32>
    %c0_63 = arith.constant 0 : index
    %c0_64 = arith.constant 0 : index
    %38 = vector.load %arg8[%c0_63, %c0_64] : memref<128x256xf32, #tpu.memory_space<vmem>>, vector<128x256xf32>
    %39 = arith.addf %38, %37 : vector<128x256xf32>
    %c0_65 = arith.constant 0 : index
    %c0_66 = arith.constant 0 : index
    %40 = vector.load %arg8[%c0_65, %c0_66] : memref<128x256xf32, #tpu.memory_space<vmem>>, vector<128x256xf32>
    tpu.vector_store %arg8[%c0_65, %c0_66], %39 {strides = array<i32>} : memref<128x256xf32, #tpu.memory_space<vmem>>, vector<128x256xf32>,
    %c0_67 = arith.constant 0 : index
    %c1_68 = arith.constant 1 : index
    %c1_69 = arith.constant 1 : index
    %c0_70 = arith.constant 0 : index
    %41 = vector.load %arg7[%c0_67, %c1_68, %c1_69, %c0_70] : memref<2x10x10x256xbf16, #tpu.memory_space<vmem>>, vector<2x8x8x256xbf16>
    %42 = vector.shape_cast %41 : vector<2x8x8x256xbf16> to vector<128x256xbf16>
    %c4 = arith.constant 4 : index
    %c0_71 = arith.constant 0 : index
    %c0_72 = arith.constant 0 : index
    %43 = vector.load %arg2[%c4, %c0_71, %c0_72] : memref<9x256x256xbf16, #tpu.memory_space<vmem>>, vector<1x256x256xbf16>
    %44 = vector.shape_cast %43 : vector<1x256x256xbf16> to vector<256x256xbf16>
    %cst_73 = arith.constant dense<0.000000e+00> : vector<128x256xf32>
    %45 = tpu.matmul %42, %44, %cst_73 {dimension_numbers = #tpu.dot_dimension_numbers<[1], [0], [0], [1], [0, 0, 1, 1], [], []>} : vector<128x256xbf16>, vector<256x256xbf16>, vector<128x256xf32> -> vector<128x256xf32>
    %c0_74 = arith.constant 0 : index
    %c0_75 = arith.constant 0 : index
    %46 = vector.load %arg8[%c0_74, %c0_75] : memref<128x256xf32, #tpu.memory_space<vmem>>, vector<128x256xf32>
    %47 = arith.addf %46, %45 : vector<128x256xf32>
    %c0_76 = arith.constant 0 : index
    %c0_77 = arith.constant 0 : index
    %48 = vector.load %arg8[%c0_76, %c0_77] : memref<128x256xf32, #tpu.memory_space<vmem>>, vector<128x256xf32>
    tpu.vector_store %arg8[%c0_76, %c0_77], %47 {strides = array<i32>} : memref<128x256xf32, #tpu.memory_space<vmem>>, vector<128x256xf32>,
    %c0_78 = arith.constant 0 : index
    %c1_79 = arith.constant 1 : index
    %c2_80 = arith.constant 2 : index
    %c0_81 = arith.constant 0 : index
    %49 = vector.load %arg7[%c0_78, %c1_79, %c2_80, %c0_81] : memref<2x10x10x256xbf16, #tpu.memory_space<vmem>>, vector<2x8x8x256xbf16>
    %50 = vector.shape_cast %49 : vector<2x8x8x256xbf16> to vector<128x256xbf16>
    %c5 = arith.constant 5 : index
    %c0_82 = arith.constant 0 : index
    %c0_83 = arith.constant 0 : index
    %51 = vector.load %arg2[%c5, %c0_82, %c0_83] : memref<9x256x256xbf16, #tpu.memory_space<vmem>>, vector<1x256x256xbf16>
    %52 = vector.shape_cast %51 : vector<1x256x256xbf16> to vector<256x256xbf16>
    %cst_84 = arith.constant dense<0.000000e+00> : vector<128x256xf32>
    %53 = tpu.matmul %50, %52, %cst_84 {dimension_numbers = #tpu.dot_dimension_numbers<[1], [0], [0], [1], [0, 0, 1, 1], [], []>} : vector<128x256xbf16>, vector<256x256xbf16>, vector<128x256xf32> -> vector<128x256xf32>
    %c0_85 = arith.constant 0 : index
    %c0_86 = arith.constant 0 : index
    %54 = vector.load %arg8[%c0_85, %c0_86] : memref<128x256xf32, #tpu.memory_space<vmem>>, vector<128x256xf32>
    %55 = arith.addf %54, %53 : vector<128x256xf32>
    %c0_87 = arith.constant 0 : index
    %c0_88 = arith.constant 0 : index
    %56 = vector.load %arg8[%c0_87, %c0_88] : memref<128x256xf32, #tpu.memory_space<vmem>>, vector<128x256xf32>
    tpu.vector_store %arg8[%c0_87, %c0_88], %55 {strides = array<i32>} : memref<128x256xf32, #tpu.memory_space<vmem>>, vector<128x256xf32>,
    %c0_89 = arith.constant 0 : index
    %c2_90 = arith.constant 2 : index
    %c0_91 = arith.constant 0 : index
    %c0_92 = arith.constant 0 : index
    %57 = vector.load %arg7[%c0_89, %c2_90, %c0_91, %c0_92] : memref<2x10x10x256xbf16, #tpu.memory_space<vmem>>, vector<2x8x8x256xbf16>
    %58 = vector.shape_cast %57 : vector<2x8x8x256xbf16> to vector<128x256xbf16>
    %c6 = arith.constant 6 : index
    %c0_93 = arith.constant 0 : index
    %c0_94 = arith.constant 0 : index
    %59 = vector.load %arg2[%c6, %c0_93, %c0_94] : memref<9x256x256xbf16, #tpu.memory_space<vmem>>, vector<1x256x256xbf16>
    %60 = vector.shape_cast %59 : vector<1x256x256xbf16> to vector<256x256xbf16>
    %cst_95 = arith.constant dense<0.000000e+00> : vector<128x256xf32>
    %61 = tpu.matmul %58, %60, %cst_95 {dimension_numbers = #tpu.dot_dimension_numbers<[1], [0], [0], [1], [0, 0, 1, 1], [], []>} : vector<128x256xbf16>, vector<256x256xbf16>, vector<128x256xf32> -> vector<128x256xf32>
    %c0_96 = arith.constant 0 : index
    %c0_97 = arith.constant 0 : index
    %62 = vector.load %arg8[%c0_96, %c0_97] : memref<128x256xf32, #tpu.memory_space<vmem>>, vector<128x256xf32>
    %63 = arith.addf %62, %61 : vector<128x256xf32>
    %c0_98 = arith.constant 0 : index
    %c0_99 = arith.constant 0 : index
    %64 = vector.load %arg8[%c0_98, %c0_99] : memref<128x256xf32, #tpu.memory_space<vmem>>, vector<128x256xf32>
    tpu.vector_store %arg8[%c0_98, %c0_99], %63 {strides = array<i32>} : memref<128x256xf32, #tpu.memory_space<vmem>>, vector<128x256xf32>,
    %c0_100 = arith.constant 0 : index
    %c2_101 = arith.constant 2 : index
    %c1_102 = arith.constant 1 : index
    %c0_103 = arith.constant 0 : index
    %65 = vector.load %arg7[%c0_100, %c2_101, %c1_102, %c0_103] : memref<2x10x10x256xbf16, #tpu.memory_space<vmem>>, vector<2x8x8x256xbf16>
    %66 = vector.shape_cast %65 : vector<2x8x8x256xbf16> to vector<128x256xbf16>
    %c7 = arith.constant 7 : index
    %c0_104 = arith.constant 0 : index
    %c0_105 = arith.constant 0 : index
    %67 = vector.load %arg2[%c7, %c0_104, %c0_105] : memref<9x256x256xbf16, #tpu.memory_space<vmem>>, vector<1x256x256xbf16>
    %68 = vector.shape_cast %67 : vector<1x256x256xbf16> to vector<256x256xbf16>
    %cst_106 = arith.constant dense<0.000000e+00> : vector<128x256xf32>
    %69 = tpu.matmul %66, %68, %cst_106 {dimension_numbers = #tpu.dot_dimension_numbers<[1], [0], [0], [1], [0, 0, 1, 1], [], []>} : vector<128x256xbf16>, vector<256x256xbf16>, vector<128x256xf32> -> vector<128x256xf32>
    %c0_107 = arith.constant 0 : index
    %c0_108 = arith.constant 0 : index
    %70 = vector.load %arg8[%c0_107, %c0_108] : memref<128x256xf32, #tpu.memory_space<vmem>>, vector<128x256xf32>
    %71 = arith.addf %70, %69 : vector<128x256xf32>
    %c0_109 = arith.constant 0 : index
    %c0_110 = arith.constant 0 : index
    %72 = vector.load %arg8[%c0_109, %c0_110] : memref<128x256xf32, #tpu.memory_space<vmem>>, vector<128x256xf32>
    tpu.vector_store %arg8[%c0_109, %c0_110], %71 {strides = array<i32>} : memref<128x256xf32, #tpu.memory_space<vmem>>, vector<128x256xf32>,
    %c0_111 = arith.constant 0 : index
    %c2_112 = arith.constant 2 : index
    %c2_113 = arith.constant 2 : index
    %c0_114 = arith.constant 0 : index
    %73 = vector.load %arg7[%c0_111, %c2_112, %c2_113, %c0_114] : memref<2x10x10x256xbf16, #tpu.memory_space<vmem>>, vector<2x8x8x256xbf16>
    %74 = vector.shape_cast %73 : vector<2x8x8x256xbf16> to vector<128x256xbf16>
    %c8 = arith.constant 8 : index
    %c0_115 = arith.constant 0 : index
    %c0_116 = arith.constant 0 : index
    %75 = vector.load %arg2[%c8, %c0_115, %c0_116] : memref<9x256x256xbf16, #tpu.memory_space<vmem>>, vector<1x256x256xbf16>
    %76 = vector.shape_cast %75 : vector<1x256x256xbf16> to vector<256x256xbf16>
    %cst_117 = arith.constant dense<0.000000e+00> : vector<128x256xf32>
    %77 = tpu.matmul %74, %76, %cst_117 {dimension_numbers = #tpu.dot_dimension_numbers<[1], [0], [0], [1], [0, 0, 1, 1], [], []>} : vector<128x256xbf16>, vector<256x256xbf16>, vector<128x256xf32> -> vector<128x256xf32>
    %c0_118 = arith.constant 0 : index
    %c0_119 = arith.constant 0 : index
    %78 = vector.load %arg8[%c0_118, %c0_119] : memref<128x256xf32, #tpu.memory_space<vmem>>, vector<128x256xf32>
    %79 = arith.addf %78, %77 : vector<128x256xf32>
    %c0_120 = arith.constant 0 : index
    %c0_121 = arith.constant 0 : index
    %80 = vector.load %arg8[%c0_120, %c0_121] : memref<128x256xf32, #tpu.memory_space<vmem>>, vector<128x256xf32>
    tpu.vector_store %arg8[%c0_120, %c0_121], %79 {strides = array<i32>} : memref<128x256xf32, #tpu.memory_space<vmem>>, vector<128x256xf32>,
    %c0_122 = arith.constant 0 : index
    %c0_123 = arith.constant 0 : index
    %81 = vector.load %arg8[%c0_122, %c0_123] : memref<128x256xf32, #tpu.memory_space<vmem>>, vector<128x256xf32>
    %c0_124 = arith.constant 0 : index
    %c0_125 = arith.constant 0 : index
    %82 = vector.load %arg3[%c0_124, %c0_125] : memref<1x256xf32, #tpu.memory_space<vmem>>, vector<1x256xf32>
    %83 = vector.broadcast %82 : vector<1x256xf32> to vector<128x256xf32>
    %84 = arith.addf %81, %83 : vector<128x256xf32>
    %cst_126 = arith.constant 0.000000e+00 : f32
    %85 = vector.broadcast %cst_126 : f32 to vector<128x256xf32>
    %86 = arith.maximumf %84, %85 : vector<128x256xf32>
    %87 = vector.shape_cast %86 : vector<128x256xf32> to vector<2x8x8x256xf32>
    %88 = arith.truncf %87 : vector<2x8x8x256xf32> to vector<2x8x8x256xbf16>
    %c0_127 = arith.constant 0 : index
    %c1_128 = arith.constant 1 : index
    %c1_129 = arith.constant 1 : index
    %c0_130 = arith.constant 0 : index
    %89 = vector.load %arg7[%c0_127, %c1_128, %c1_129, %c0_130] : memref<2x10x10x256xbf16, #tpu.memory_space<vmem>>, vector<2x8x8x256xbf16>
    tpu.vector_store %arg7[%c0_127, %c1_128, %c1_129, %c0_130], %88 {strides = array<i32>} : memref<2x10x10x256xbf16, #tpu.memory_space<vmem>>, vector<2x8x8x256xbf16>,
    %c0_131 = arith.constant 0 : index
    %c0_132 = arith.constant 0 : index
    %c0_133 = arith.constant 0 : index
    %c0_134 = arith.constant 0 : index
    %90 = vector.load %arg7[%c0_131, %c0_132, %c0_133, %c0_134] : memref<2x10x10x256xbf16, #tpu.memory_space<vmem>>, vector<2x8x8x256xbf16>
    %91 = vector.shape_cast %90 : vector<2x8x8x256xbf16> to vector<128x256xbf16>
    %c0_135 = arith.constant 0 : index
    %c0_136 = arith.constant 0 : index
    %c0_137 = arith.constant 0 : index
    %92 = vector.load %arg4[%c0_135, %c0_136, %c0_137] : memref<9x256x256xbf16, #tpu.memory_space<vmem>>, vector<1x256x256xbf16>
    %93 = vector.shape_cast %92 : vector<1x256x256xbf16> to vector<256x256xbf16>
    %cst_138 = arith.constant dense<0.000000e+00> : vector<128x256xf32>
    %94 = tpu.matmul %91, %93, %cst_138 {dimension_numbers = #tpu.dot_dimension_numbers<[1], [0], [0], [1], [0, 0, 1, 1], [], []>} : vector<128x256xbf16>, vector<256x256xbf16>, vector<128x256xf32> -> vector<128x256xf32>
    %c0_139 = arith.constant 0 : index
    %c0_140 = arith.constant 0 : index
    %95 = vector.load %arg8[%c0_139, %c0_140] : memref<128x256xf32, #tpu.memory_space<vmem>>, vector<128x256xf32>
    tpu.vector_store %arg8[%c0_139, %c0_140], %94 {strides = array<i32>} : memref<128x256xf32, #tpu.memory_space<vmem>>, vector<128x256xf32>,
    %c0_141 = arith.constant 0 : index
    %c0_142 = arith.constant 0 : index
    %c1_143 = arith.constant 1 : index
    %c0_144 = arith.constant 0 : index
    %96 = vector.load %arg7[%c0_141, %c0_142, %c1_143, %c0_144] : memref<2x10x10x256xbf16, #tpu.memory_space<vmem>>, vector<2x8x8x256xbf16>
    %97 = vector.shape_cast %96 : vector<2x8x8x256xbf16> to vector<128x256xbf16>
    %c1_145 = arith.constant 1 : index
    %c0_146 = arith.constant 0 : index
    %c0_147 = arith.constant 0 : index
    %98 = vector.load %arg4[%c1_145, %c0_146, %c0_147] : memref<9x256x256xbf16, #tpu.memory_space<vmem>>, vector<1x256x256xbf16>
    %99 = vector.shape_cast %98 : vector<1x256x256xbf16> to vector<256x256xbf16>
    %cst_148 = arith.constant dense<0.000000e+00> : vector<128x256xf32>
    %100 = tpu.matmul %97, %99, %cst_148 {dimension_numbers = #tpu.dot_dimension_numbers<[1], [0], [0], [1], [0, 0, 1, 1], [], []>} : vector<128x256xbf16>, vector<256x256xbf16>, vector<128x256xf32> -> vector<128x256xf32>
    %c0_149 = arith.constant 0 : index
    %c0_150 = arith.constant 0 : index
    %101 = vector.load %arg8[%c0_149, %c0_150] : memref<128x256xf32, #tpu.memory_space<vmem>>, vector<128x256xf32>
    %102 = arith.addf %101, %100 : vector<128x256xf32>
    %c0_151 = arith.constant 0 : index
    %c0_152 = arith.constant 0 : index
    %103 = vector.load %arg8[%c0_151, %c0_152] : memref<128x256xf32, #tpu.memory_space<vmem>>, vector<128x256xf32>
    tpu.vector_store %arg8[%c0_151, %c0_152], %102 {strides = array<i32>} : memref<128x256xf32, #tpu.memory_space<vmem>>, vector<128x256xf32>,
    %c0_153 = arith.constant 0 : index
    %c0_154 = arith.constant 0 : index
    %c2_155 = arith.constant 2 : index
    %c0_156 = arith.constant 0 : index
    %104 = vector.load %arg7[%c0_153, %c0_154, %c2_155, %c0_156] : memref<2x10x10x256xbf16, #tpu.memory_space<vmem>>, vector<2x8x8x256xbf16>
    %105 = vector.shape_cast %104 : vector<2x8x8x256xbf16> to vector<128x256xbf16>
    %c2_157 = arith.constant 2 : index
    %c0_158 = arith.constant 0 : index
    %c0_159 = arith.constant 0 : index
    %106 = vector.load %arg4[%c2_157, %c0_158, %c0_159] : memref<9x256x256xbf16, #tpu.memory_space<vmem>>, vector<1x256x256xbf16>
    %107 = vector.shape_cast %106 : vector<1x256x256xbf16> to vector<256x256xbf16>
    %cst_160 = arith.constant dense<0.000000e+00> : vector<128x256xf32>
    %108 = tpu.matmul %105, %107, %cst_160 {dimension_numbers = #tpu.dot_dimension_numbers<[1], [0], [0], [1], [0, 0, 1, 1], [], []>} : vector<128x256xbf16>, vector<256x256xbf16>, vector<128x256xf32> -> vector<128x256xf32>
    %c0_161 = arith.constant 0 : index
    %c0_162 = arith.constant 0 : index
    %109 = vector.load %arg8[%c0_161, %c0_162] : memref<128x256xf32, #tpu.memory_space<vmem>>, vector<128x256xf32>
    %110 = arith.addf %109, %108 : vector<128x256xf32>
    %c0_163 = arith.constant 0 : index
    %c0_164 = arith.constant 0 : index
    %111 = vector.load %arg8[%c0_163, %c0_164] : memref<128x256xf32, #tpu.memory_space<vmem>>, vector<128x256xf32>
    tpu.vector_store %arg8[%c0_163, %c0_164], %110 {strides = array<i32>} : memref<128x256xf32, #tpu.memory_space<vmem>>, vector<128x256xf32>,
    %c0_165 = arith.constant 0 : index
    %c1_166 = arith.constant 1 : index
    %c0_167 = arith.constant 0 : index
    %c0_168 = arith.constant 0 : index
    %112 = vector.load %arg7[%c0_165, %c1_166, %c0_167, %c0_168] : memref<2x10x10x256xbf16, #tpu.memory_space<vmem>>, vector<2x8x8x256xbf16>
    %113 = vector.shape_cast %112 : vector<2x8x8x256xbf16> to vector<128x256xbf16>
    %c3_169 = arith.constant 3 : index
    %c0_170 = arith.constant 0 : index
    %c0_171 = arith.constant 0 : index
    %114 = vector.load %arg4[%c3_169, %c0_170, %c0_171] : memref<9x256x256xbf16, #tpu.memory_space<vmem>>, vector<1x256x256xbf16>
    %115 = vector.shape_cast %114 : vector<1x256x256xbf16> to vector<256x256xbf16>
    %cst_172 = arith.constant dense<0.000000e+00> : vector<128x256xf32>
    %116 = tpu.matmul %113, %115, %cst_172 {dimension_numbers = #tpu.dot_dimension_numbers<[1], [0], [0], [1], [0, 0, 1, 1], [], []>} : vector<128x256xbf16>, vector<256x256xbf16>, vector<128x256xf32> -> vector<128x256xf32>
    %c0_173 = arith.constant 0 : index
    %c0_174 = arith.constant 0 : index
    %117 = vector.load %arg8[%c0_173, %c0_174] : memref<128x256xf32, #tpu.memory_space<vmem>>, vector<128x256xf32>
    %118 = arith.addf %117, %116 : vector<128x256xf32>
    %c0_175 = arith.constant 0 : index
    %c0_176 = arith.constant 0 : index
    %119 = vector.load %arg8[%c0_175, %c0_176] : memref<128x256xf32, #tpu.memory_space<vmem>>, vector<128x256xf32>
    tpu.vector_store %arg8[%c0_175, %c0_176], %118 {strides = array<i32>} : memref<128x256xf32, #tpu.memory_space<vmem>>, vector<128x256xf32>,
    %c0_177 = arith.constant 0 : index
    %c1_178 = arith.constant 1 : index
    %c1_179 = arith.constant 1 : index
    %c0_180 = arith.constant 0 : index
    %120 = vector.load %arg7[%c0_177, %c1_178, %c1_179, %c0_180] : memref<2x10x10x256xbf16, #tpu.memory_space<vmem>>, vector<2x8x8x256xbf16>
    %121 = vector.shape_cast %120 : vector<2x8x8x256xbf16> to vector<128x256xbf16>
    %c4_181 = arith.constant 4 : index
    %c0_182 = arith.constant 0 : index
    %c0_183 = arith.constant 0 : index
    %122 = vector.load %arg4[%c4_181, %c0_182, %c0_183] : memref<9x256x256xbf16, #tpu.memory_space<vmem>>, vector<1x256x256xbf16>
    %123 = vector.shape_cast %122 : vector<1x256x256xbf16> to vector<256x256xbf16>
    %cst_184 = arith.constant dense<0.000000e+00> : vector<128x256xf32>
    %124 = tpu.matmul %121, %123, %cst_184 {dimension_numbers = #tpu.dot_dimension_numbers<[1], [0], [0], [1], [0, 0, 1, 1], [], []>} : vector<128x256xbf16>, vector<256x256xbf16>, vector<128x256xf32> -> vector<128x256xf32>
    %c0_185 = arith.constant 0 : index
    %c0_186 = arith.constant 0 : index
    %125 = vector.load %arg8[%c0_185, %c0_186] : memref<128x256xf32, #tpu.memory_space<vmem>>, vector<128x256xf32>
    %126 = arith.addf %125, %124 : vector<128x256xf32>
    %c0_187 = arith.constant 0 : index
    %c0_188 = arith.constant 0 : index
    %127 = vector.load %arg8[%c0_187, %c0_188] : memref<128x256xf32, #tpu.memory_space<vmem>>, vector<128x256xf32>
    tpu.vector_store %arg8[%c0_187, %c0_188], %126 {strides = array<i32>} : memref<128x256xf32, #tpu.memory_space<vmem>>, vector<128x256xf32>,
    %c0_189 = arith.constant 0 : index
    %c1_190 = arith.constant 1 : index
    %c2_191 = arith.constant 2 : index
    %c0_192 = arith.constant 0 : index
    %128 = vector.load %arg7[%c0_189, %c1_190, %c2_191, %c0_192] : memref<2x10x10x256xbf16, #tpu.memory_space<vmem>>, vector<2x8x8x256xbf16>
    %129 = vector.shape_cast %128 : vector<2x8x8x256xbf16> to vector<128x256xbf16>
    %c5_193 = arith.constant 5 : index
    %c0_194 = arith.constant 0 : index
    %c0_195 = arith.constant 0 : index
    %130 = vector.load %arg4[%c5_193, %c0_194, %c0_195] : memref<9x256x256xbf16, #tpu.memory_space<vmem>>, vector<1x256x256xbf16>
    %131 = vector.shape_cast %130 : vector<1x256x256xbf16> to vector<256x256xbf16>
    %cst_196 = arith.constant dense<0.000000e+00> : vector<128x256xf32>
    %132 = tpu.matmul %129, %131, %cst_196 {dimension_numbers = #tpu.dot_dimension_numbers<[1], [0], [0], [1], [0, 0, 1, 1], [], []>} : vector<128x256xbf16>, vector<256x256xbf16>, vector<128x256xf32> -> vector<128x256xf32>
    %c0_197 = arith.constant 0 : index
    %c0_198 = arith.constant 0 : index
    %133 = vector.load %arg8[%c0_197, %c0_198] : memref<128x256xf32, #tpu.memory_space<vmem>>, vector<128x256xf32>
    %134 = arith.addf %133, %132 : vector<128x256xf32>
    %c0_199 = arith.constant 0 : index
    %c0_200 = arith.constant 0 : index
    %135 = vector.load %arg8[%c0_199, %c0_200] : memref<128x256xf32, #tpu.memory_space<vmem>>, vector<128x256xf32>
    tpu.vector_store %arg8[%c0_199, %c0_200], %134 {strides = array<i32>} : memref<128x256xf32, #tpu.memory_space<vmem>>, vector<128x256xf32>,
    %c0_201 = arith.constant 0 : index
    %c2_202 = arith.constant 2 : index
    %c0_203 = arith.constant 0 : index
    %c0_204 = arith.constant 0 : index
    %136 = vector.load %arg7[%c0_201, %c2_202, %c0_203, %c0_204] : memref<2x10x10x256xbf16, #tpu.memory_space<vmem>>, vector<2x8x8x256xbf16>
    %137 = vector.shape_cast %136 : vector<2x8x8x256xbf16> to vector<128x256xbf16>
    %c6_205 = arith.constant 6 : index
    %c0_206 = arith.constant 0 : index
    %c0_207 = arith.constant 0 : index
    %138 = vector.load %arg4[%c6_205, %c0_206, %c0_207] : memref<9x256x256xbf16, #tpu.memory_space<vmem>>, vector<1x256x256xbf16>
    %139 = vector.shape_cast %138 : vector<1x256x256xbf16> to vector<256x256xbf16>
    %cst_208 = arith.constant dense<0.000000e+00> : vector<128x256xf32>
    %140 = tpu.matmul %137, %139, %cst_208 {dimension_numbers = #tpu.dot_dimension_numbers<[1], [0], [0], [1], [0, 0, 1, 1], [], []>} : vector<128x256xbf16>, vector<256x256xbf16>, vector<128x256xf32> -> vector<128x256xf32>
    %c0_209 = arith.constant 0 : index
    %c0_210 = arith.constant 0 : index
    %141 = vector.load %arg8[%c0_209, %c0_210] : memref<128x256xf32, #tpu.memory_space<vmem>>, vector<128x256xf32>
    %142 = arith.addf %141, %140 : vector<128x256xf32>
    %c0_211 = arith.constant 0 : index
    %c0_212 = arith.constant 0 : index
    %143 = vector.load %arg8[%c0_211, %c0_212] : memref<128x256xf32, #tpu.memory_space<vmem>>, vector<128x256xf32>
    tpu.vector_store %arg8[%c0_211, %c0_212], %142 {strides = array<i32>} : memref<128x256xf32, #tpu.memory_space<vmem>>, vector<128x256xf32>,
    %c0_213 = arith.constant 0 : index
    %c2_214 = arith.constant 2 : index
    %c1_215 = arith.constant 1 : index
    %c0_216 = arith.constant 0 : index
    %144 = vector.load %arg7[%c0_213, %c2_214, %c1_215, %c0_216] : memref<2x10x10x256xbf16, #tpu.memory_space<vmem>>, vector<2x8x8x256xbf16>
    %145 = vector.shape_cast %144 : vector<2x8x8x256xbf16> to vector<128x256xbf16>
    %c7_217 = arith.constant 7 : index
    %c0_218 = arith.constant 0 : index
    %c0_219 = arith.constant 0 : index
    %146 = vector.load %arg4[%c7_217, %c0_218, %c0_219] : memref<9x256x256xbf16, #tpu.memory_space<vmem>>, vector<1x256x256xbf16>
    %147 = vector.shape_cast %146 : vector<1x256x256xbf16> to vector<256x256xbf16>
    %cst_220 = arith.constant dense<0.000000e+00> : vector<128x256xf32>
    %148 = tpu.matmul %145, %147, %cst_220 {dimension_numbers = #tpu.dot_dimension_numbers<[1], [0], [0], [1], [0, 0, 1, 1], [], []>} : vector<128x256xbf16>, vector<256x256xbf16>, vector<128x256xf32> -> vector<128x256xf32>
    %c0_221 = arith.constant 0 : index
    %c0_222 = arith.constant 0 : index
    %149 = vector.load %arg8[%c0_221, %c0_222] : memref<128x256xf32, #tpu.memory_space<vmem>>, vector<128x256xf32>
    %150 = arith.addf %149, %148 : vector<128x256xf32>
    %c0_223 = arith.constant 0 : index
    %c0_224 = arith.constant 0 : index
    %151 = vector.load %arg8[%c0_223, %c0_224] : memref<128x256xf32, #tpu.memory_space<vmem>>, vector<128x256xf32>
    tpu.vector_store %arg8[%c0_223, %c0_224], %150 {strides = array<i32>} : memref<128x256xf32, #tpu.memory_space<vmem>>, vector<128x256xf32>,
    %c0_225 = arith.constant 0 : index
    %c2_226 = arith.constant 2 : index
    %c2_227 = arith.constant 2 : index
    %c0_228 = arith.constant 0 : index
    %152 = vector.load %arg7[%c0_225, %c2_226, %c2_227, %c0_228] : memref<2x10x10x256xbf16, #tpu.memory_space<vmem>>, vector<2x8x8x256xbf16>
    %153 = vector.shape_cast %152 : vector<2x8x8x256xbf16> to vector<128x256xbf16>
    %c8_229 = arith.constant 8 : index
    %c0_230 = arith.constant 0 : index
    %c0_231 = arith.constant 0 : index
    %154 = vector.load %arg4[%c8_229, %c0_230, %c0_231] : memref<9x256x256xbf16, #tpu.memory_space<vmem>>, vector<1x256x256xbf16>
    %155 = vector.shape_cast %154 : vector<1x256x256xbf16> to vector<256x256xbf16>
    %cst_232 = arith.constant dense<0.000000e+00> : vector<128x256xf32>
    %156 = tpu.matmul %153, %155, %cst_232 {dimension_numbers = #tpu.dot_dimension_numbers<[1], [0], [0], [1], [0, 0, 1, 1], [], []>} : vector<128x256xbf16>, vector<256x256xbf16>, vector<128x256xf32> -> vector<128x256xf32>
    %c0_233 = arith.constant 0 : index
    %c0_234 = arith.constant 0 : index
    %157 = vector.load %arg8[%c0_233, %c0_234] : memref<128x256xf32, #tpu.memory_space<vmem>>, vector<128x256xf32>
    %158 = arith.addf %157, %156 : vector<128x256xf32>
    %c0_235 = arith.constant 0 : index
    %c0_236 = arith.constant 0 : index
    %159 = vector.load %arg8[%c0_235, %c0_236] : memref<128x256xf32, #tpu.memory_space<vmem>>, vector<128x256xf32>
    tpu.vector_store %arg8[%c0_235, %c0_236], %158 {strides = array<i32>} : memref<128x256xf32, #tpu.memory_space<vmem>>, vector<128x256xf32>,
    %c0_237 = arith.constant 0 : index
    %c0_238 = arith.constant 0 : index
    %160 = vector.load %arg8[%c0_237, %c0_238] : memref<128x256xf32, #tpu.memory_space<vmem>>, vector<128x256xf32>
    %c0_239 = arith.constant 0 : index
    %c0_240 = arith.constant 0 : index
    %161 = vector.load %arg5[%c0_239, %c0_240] : memref<1x256xf32, #tpu.memory_space<vmem>>, vector<1x256xf32>
    %162 = vector.broadcast %161 : vector<1x256xf32> to vector<128x256xf32>
    %163 = arith.addf %160, %162 : vector<128x256xf32>
    %164 = vector.shape_cast %163 : vector<128x256xf32> to vector<2x8x8x256xf32>
    %165 = arith.addf %164, %6 : vector<2x8x8x256xf32>
    %c0_241 = arith.constant 0 : index
    %c0_242 = arith.constant 0 : index
    %c0_243 = arith.constant 0 : index
    %c0_244 = arith.constant 0 : index
    %166 = vector.load %arg6[%c0_241, %c0_242, %c0_243, %c0_244] : memref<2x8x8x256xf32, #tpu.memory_space<vmem>>, vector<2x8x8x256xf32>
    tpu.vector_store %arg6[%c0_241, %c0_242, %c0_243, %c0_244], %165 {strides = array<i32>} : memref<2x8x8x256xf32, #tpu.memory_space<vmem>>, vector<2x8x8x256xf32>,
    return
  }
  func.func @transform_0(%arg0: i32) -> (i32, i32, i32, i32) {
    %c0_i32 = arith.constant 0 : i32
    %c0_i32_0 = arith.constant 0 : i32
    %c0_i32_1 = arith.constant 0 : i32
    %c0_i32_2 = arith.constant 0 : i32
    return %arg0, %c0_i32, %c0_i32_0, %c0_i32_1 : i32, i32, i32, i32
  }
  func.func @transform_1(%arg0: i32) -> (i32, i32, i32) {
    %c0_i32 = arith.constant 0 : i32
    %c0_i32_0 = arith.constant 0 : i32
    %c0_i32_1 = arith.constant 0 : i32
    %c0_i32_2 = arith.constant 0 : i32
    return %c0_i32, %c0_i32_0, %c0_i32_1 : i32, i32, i32
  }
  func.func @transform_2(%arg0: i32) -> (i32, i32) {
    %c0_i32 = arith.constant 0 : i32
    %c0_i32_0 = arith.constant 0 : i32
    %c0_i32_1 = arith.constant 0 : i32
    return %c0_i32, %c0_i32_0 : i32, i32
  }
  func.func @transform_3(%arg0: i32) -> (i32, i32, i32) {
    %c0_i32 = arith.constant 0 : i32
    %c0_i32_0 = arith.constant 0 : i32
    %c0_i32_1 = arith.constant 0 : i32
    %c0_i32_2 = arith.constant 0 : i32
    return %c0_i32, %c0_i32_0, %c0_i32_1 : i32, i32, i32
  }
  func.func @transform_4(%arg0: i32) -> (i32, i32) {
    %c0_i32 = arith.constant 0 : i32
    %c0_i32_0 = arith.constant 0 : i32
    %c0_i32_1 = arith.constant 0 : i32
    return %c0_i32, %c0_i32_0 : i32, i32
  }
  func.func @transform_5(%arg0: i32) -> (i32, i32, i32, i32) {
    %c0_i32 = arith.constant 0 : i32
    %c0_i32_0 = arith.constant 0 : i32
    %c0_i32_1 = arith.constant 0 : i32
    %c0_i32_2 = arith.constant 0 : i32
    return %arg0, %c0_i32, %c0_i32_0, %c0_i32_1 : i32, i32, i32, i32
  }
}

</mosaic_0001>

<llo_original>
// kernel: tpu_custom_call.1
$region0: #{tpu_custom_call.1}
  #allocation0 [shape = 'u32[]', space=smem, size = 0x4, offset = 0x4, fixed_abs, tag = 'smem constant byte address 0x4 - core index']
  #allocation1 [shape = 'u32[144,128]{1,0:T(1,128)}', space=vmem, size = 0x12000, scoped, tag = 'internal scratch']
  #allocation2 [shape = 'bf16[2,10,10,256]{3,2,1,0:T(8,128)(2,1)}', space=vmem, size = 0x28000, scoped, tag = 'scratch operand']
  #allocation3 [shape = 'f32[128,256]{1,0:T(8,128)}', space=vmem, size = 0x20000, scoped, tag = 'scratch operand']
  %s0 = inlined_call_operand.hbm [shape: f32[2,8,8,256], index: 0, kind: input, shape index: {}]
  %s1 = inlined_call_operand.hbm [shape: bf16[9,256,256], index: 1, kind: input, shape index: {}]
  %s2 = inlined_call_operand.hbm [shape: f32[1,256], index: 2, kind: input, shape index: {}]
  %s3 = inlined_call_operand.hbm [shape: bf16[9,256,256], index: 3, kind: input, shape index: {}]
  %s4 = inlined_call_operand.hbm [shape: f32[1,256], index: 4, kind: input, shape index: {}]
  %s5 = inlined_call_operand.hbm [shape: f32[2,8,8,256], index: 5, kind: output, shape index: {}]
  %s6 = sld [smem:[#allocation0]]
  $region50: #{tpu_custom_call.1} parent=0
    _
  %s8 = ssub.s32 1, %s6
  %s9 = scalar_select 0, %s8, %s6
  $region1: #{tpu_custom_call.1} parent=0
    #allocation4 [shape = 'u8[131072]{0}', space=vmem, size = 0x20000, scoped, tag = 'input window, operand 0, single buffered']
    #allocation5 [shape = 's32[1]{0}', space=sflag, size = 0x4, scoped, tag = 'scoped memory for tpu_custom_call.1']
    #allocation6 [shape = 's32[1]{0}', space=sflag, size = 0x4, scoped, tag = 'scoped memory for tpu_custom_call.1']
    #allocation7 [shape = 'u8[1179648]{0}', space=vmem, size = 0x120000, scoped, tag = 'input window, operand 1, single buffered']
    #allocation8 [shape = 's32[1]{0}', space=sflag, size = 0x4, scoped, tag = 'scoped memory for tpu_custom_call.1']
    #allocation9 [shape = 'u8[1024]{0}', space=vmem, size = 0x400, scoped, tag = 'input window, operand 2, single buffered']
    #allocation10 [shape = 'u8[1179648]{0}', space=vmem, size = 0x120000, scoped, tag = 'input window, operand 3, single buffered']
    #allocation11 [shape = 's32[1]{0}', space=sflag, size = 0x4, scoped, tag = 'scoped memory for tpu_custom_call.1']
    #allocation12 [shape = 'u8[1024]{0}', space=vmem, size = 0x400, scoped, tag = 'input window, operand 4, single buffered']
    #allocation13 [shape = 'u8[131072]{0}', space=vmem, size = 0x20000, scoped, tag = 'output window, operand 0, single buffered']
    %10 = vsyncpa [#allocation5], 0
    %11 = vsyncpa [#allocation8], 0
    %12 = vsyncpa [#allocation11], 0
    %13 = vsyncpa [#allocation6], 0
    // Predicated region
    $region2: #{tpu_custom_call.1} parent=1 // pred_check
      _
    $region3: #{tpu_custom_call.1} parent=1 // pred_check_branch
      %15 = sbr.rel (0) target = $region5
    $region4: #{tpu_custom_call.1} parent=1 // pred_region
      %s17 = ssub.s32 4096, 4096
      %18 = vsyncadd [#allocation5], %s17
      %s19 = sshll.u32 [#allocation4], 4
      %s20 = int_to_ptr.vmem [resolvable:$true] %s19
      %25 = dma.hbm_to_vmem [thread:$0]  %s0, 4096, %s20, [#allocation5], 256, 256, 16
    $region5: #{tpu_custom_call.1} parent=1 // pred_fallthru
      _
    // Predicated region
    $region6: #{tpu_custom_call.1} parent=1 // pred_check
      _
    $region7: #{tpu_custom_call.1} parent=1 // pred_check_branch
      %27 = sbr.rel (0) target = $region9
    $region8: #{tpu_custom_call.1} parent=1 // pred_region
      %s29 = ssub.s32 36864, 36864
      %30 = vsyncadd [#allocation8], %s29
      %s31 = sshll.u32 [#allocation7], 4
      %s32 = int_to_ptr.vmem [resolvable:$true] %s31
      %37 = dma.hbm_to_vmem [thread:$0]  %s1, 36864, %s32, [#allocation8], 128, 128, 8
    $region9: #{tpu_custom_call.1} parent=1 // pred_fallthru
      _
    // Predicated region
    $region10: #{tpu_custom_call.1} parent=1 // pred_check
      _
    $region11: #{tpu_custom_call.1} parent=1 // pred_check_branch
      %39 = sbr.rel (0) target = $region13
    $region12: #{tpu_custom_call.1} parent=1 // pred_region
      %s41 = ssub.s32 32, 32
      %42 = vsyncadd [#allocation8], %s41
      %s44 = sshll.u32 [#allocation9], 4
      %s45 = int_to_ptr.vmem [resolvable:$true] %s44
      %47 = dma.hbm_to_vmem [thread:$0]  %s2, 32, %s45, [#allocation8]
    $region13: #{tpu_custom_call.1} parent=1 // pred_fallthru
      _
    // Predicated region
    $region14: #{tpu_custom_call.1} parent=1 // pred_check
      _
    $region15: #{tpu_custom_call.1} parent=1 // pred_check_branch
      %49 = sbr.rel (0) target = $region17
    $region16: #{tpu_custom_call.1} parent=1 // pred_region
      %s51 = ssub.s32 36864, 36864
      %52 = vsyncadd [#allocation11], %s51
      %s53 = sshll.u32 [#allocation10], 4
      %s54 = int_to_ptr.vmem [resolvable:$true] %s53
      %59 = dma.hbm_to_vmem [thread:$0]  %s3, 36864, %s54, [#allocation11], 128, 128, 8
    $region17: #{tpu_custom_call.1} parent=1 // pred_fallthru
      _
    // Predicated region
    $region18: #{tpu_custom_call.1} parent=1 // pred_check
      _
    $region19: #{tpu_custom_call.1} parent=1 // pred_check_branch
      %61 = sbr.rel (0) target = $region21
    $region20: #{tpu_custom_call.1} parent=1 // pred_region
      %s63 = ssub.s32 32, 32
      %64 = vsyncadd [#allocation11], %s63
      %s66 = sshll.u32 [#allocation12], 4
      %s67 = int_to_ptr.vmem [resolvable:$true] %s66
      %69 = dma.hbm_to_vmem [thread:$0]  %s4, 32, %s67, [#allocation11]
    $region21: #{tpu_custom_call.1} parent=1 // pred_fallthru
      _
    // Predicated region
    $region22: #{tpu_custom_call.1} parent=1 // pred_check
      _
    $region23: #{tpu_custom_call.1} parent=1 // pred_check_branch
      %71 = sbr.rel (0) target = $region25
    $region24: #{tpu_custom_call.1} parent=1 // pred_region
      %72 = dma.done [#allocation5], 4096
    $region25: #{tpu_custom_call.1} parent=1 // pred_fallthru
      _
    // Predicated region
    $region26: #{tpu_custom_call.1} parent=1 // pred_check
      _
    $region27: #{tpu_custom_call.1} parent=1 // pred_check_branch
      %74 = sbr.rel (0) target = $region29
    $region28: #{tpu_custom_call.1} parent=1 // pred_region
      %75 = dma.done [#allocation8], 36864
    $region29: #{tpu_custom_call.1} parent=1 // pred_fallthru
      _
    // Predicated region
    $region30: #{tpu_custom_call.1} parent=1 // pred_check
      _
    $region31: #{tpu_custom_call.1} parent=1 // pred_check_branch
      %77 = sbr.rel (0) target = $region33
    $region32: #{tpu_custom_call.1} parent=1 // pred_region
      %78 = dma.done [#allocation8], 32
    $region33: #{tpu_custom_call.1} parent=1 // pred_fallthru
      _
    // Predicated region
    $region34: #{tpu_custom_call.1} parent=1 // pred_check
      _
    $region35: #{tpu_custom_call.1} parent=1 // pred_check_branch
      %80 = sbr.rel (0) target = $region37
    $region36: #{tpu_custom_call.1} parent=1 // pred_region
      %81 = dma.done [#allocation11], 36864
    $region37: #{tpu_custom_call.1} parent=1 // pred_fallthru
      _
    // Predicated region
    $region38: #{tpu_custom_call.1} parent=1 // pred_check
      _
    $region39: #{tpu_custom_call.1} parent=1 // pred_check_branch
      %83 = sbr.rel (0) target = $region41
    $region40: #{tpu_custom_call.1} parent=1 // pred_region
      %84 = dma.done [#allocation11], 32
    $region41: #{tpu_custom_call.1} parent=1 // pred_fallthru
      _
    %86 = vst [vmem:[#allocation2] sm:$0xff] 0
    %87 = vst [vmem:[#allocation2 + $0x8] sm:$0x11] 0
    %88 = vst [vmem:[#allocation2 + $0xa0] sm:$0xff] 0
    %89 = vst [vmem:[#allocation2 + $0xa8] sm:$0x11] 0
    %s90 = scalar_lea.vmem [#allocation2], 144
    %91 = vst [vmem:[%s90] sm:$0xff] 0
    %92 = vst [vmem:[%s90 + $0x8] sm:$0x11] 0
    %93 = vst [vmem:[%s90 + $0xa0] sm:$0xff] 0
    %94 = vst [vmem:[%s90 + $0xa8] sm:$0x11] 0
    %vm95 = vcmask 1040384
    %vm96 = vsmask.f32 256
    %vm97 = vmand %vm95, %vm96
    %vm98 = vcmask 1044484
    %vm99 = vsmask.f32 4352
    %vm100 = vmand %vm98, %vm99
    %vm101 = vmor %vm100, %vm97
    %v102 = vld [vmem:[#allocation2] sm:$0x11]
    %v103 = vsel %vm101, 0, %v102
    %104 = vst [vmem:[#allocation2] sm:$0x11] %v103
    %v105 = vld [vmem:[#allocation2 + $0x10] sm:$0x11]
    %v106 = vsel %vm101, 0, %v105
    %107 = vst [vmem:[#allocation2 + $0x10] sm:$0x11] %v106
    %v108 = vld [vmem:[#allocation2 + $0x20] sm:$0x11]
    %v109 = vsel %vm101, 0, %v108
    %110 = vst [vmem:[#allocation2 + $0x20] sm:$0x11] %v109
    %v111 = vld [vmem:[#allocation2 + $0x30] sm:$0x11]
    %v112 = vsel %vm101, 0, %v111
    %113 = vst [vmem:[#allocation2 + $0x30] sm:$0x11] %v112
    %v114 = vld [vmem:[#allocation2 + $0x40] sm:$0x11]
    %v115 = vsel %vm101, 0, %v114
    %116 = vst [vmem:[#allocation2 + $0x40] sm:$0x11] %v115
    %v117 = vld [vmem:[#allocation2 + $0x50] sm:$0x11]
    %v118 = vsel %vm101, 0, %v117
    %119 = vst [vmem:[#allocation2 + $0x50] sm:$0x11] %v118
    %v120 = vld [vmem:[#allocation2 + $0x60] sm:$0x11]
    %v121 = vsel %vm101, 0, %v120
    %122 = vst [vmem:[#allocation2 + $0x60] sm:$0x11] %v121
    %v123 = vld [vmem:[#allocation2 + $0x70] sm:$0x11]
    %v124 = vsel %vm101, 0, %v123
    %125 = vst [vmem:[#allocation2 + $0x70] sm:$0x11] %v124
    %v126 = vld [vmem:[#allocation2 + $0x80] sm:$0x11]
    %v127 = vsel %vm101, 0, %v126
    %128 = vst [vmem:[#allocation2 + $0x80] sm:$0x11] %v127
    %v129 = vld [vmem:[#allocation2 + $0x90] sm:$0x11]
    %v130 = vsel %vm101, 0, %v129
    %131 = vst [vmem:[#allocation2 + $0x90] sm:$0x11] %v130
    %v132 = vld [vmem:[#allocation2 + $0xa0] sm:$0x11]
    %v133 = vsel %vm101, 0, %v132
    %134 = vst [vmem:[#allocation2 + $0xa0] sm:$0x11] %v133
    %v135 = vld [vmem:[#allocation2 + $0xb0] sm:$0x11]
    %v136 = vsel %vm101, 0, %v135
    %137 = vst [vmem:[#allocation2 + $0xb0] sm:$0x11] %v136
    %v138 = vld [vmem:[#allocation2 + $0xc0] sm:$0x11]
    %v139 = vsel %vm101, 0, %v138
    %140 = vst [vmem:[#allocation2 + $0xc0] sm:$0x11] %v139
    %v141 = vld [vmem:[#allocation2 + $0xd0] sm:$0x11]
    %v142 = vsel %vm101, 0, %v141
    %143 = vst [vmem:[#allocation2 + $0xd0] sm:$0x11] %v142
    %v144 = vld [vmem:[#allocation2 + $0xe0] sm:$0x11]
    %v145 = vsel %vm101, 0, %v144
    %146 = vst [vmem:[#allocation2 + $0xe0] sm:$0x11] %v145
    %v147 = vld [vmem:[#allocation2 + $0xf0] sm:$0x11]
    %v148 = vsel %vm101, 0, %v147
    %149 = vst [vmem:[#allocation2 + $0xf0] sm:$0x11] %v148
    %v150 = vld [vmem:[#allocation2 + $0x100] sm:$0x11]
    %v151 = vsel %vm101, 0, %v150
    %152 = vst [vmem:[#allocation2 + $0x100] sm:$0x11] %v151
    %v153 = vld [vmem:[#allocation2 + $0x110] sm:$0x11]
    %v154 = vsel %vm101, 0, %v153
    %155 = vst [vmem:[#allocation2 + $0x110] sm:$0x11] %v154
    %v156 = vld [vmem:[#allocation2 + $0x120] sm:$0x11]
    %v157 = vsel %vm101, 0, %v156
    %158 = vst [vmem:[#allocation2 + $0x120] sm:$0x11] %v157
    %v159 = vld [vmem:[#allocation2 + $0x130] sm:$0x11]
    %v160 = vsel %vm101, 0, %v159
    %161 = vst [vmem:[#allocation2 + $0x130] sm:$0x11] %v160
    %vm162 = vsmask.f32 7938
    %vm163 = vmand %vm95, %vm162
    %vm164 = vsmask.f32 7954
    %vm165 = vmand %vm98, %vm164
    %vm166 = vmor %vm165, %vm163
    %v167 = vld [vmem:[#allocation2 + $0x8] sm:$0x11]
    %v168 = vsel %vm166, 0, %v167
    %169 = vst [vmem:[#allocation2 + $0x8] sm:$0x11] %v168
    %v170 = vld [vmem:[#allocation2 + $0x18] sm:$0x11]
    %v171 = vsel %vm166, 0, %v170
    %172 = vst [vmem:[#allocation2 + $0x18] sm:$0x11] %v171
    %v173 = vld [vmem:[#allocation2 + $0x28] sm:$0x11]
    %v174 = vsel %vm166, 0, %v173
    %175 = vst [vmem:[#allocation2 + $0x28] sm:$0x11] %v174
    %v176 = vld [vmem:[#allocation2 + $0x38] sm:$0x11]
    %v177 = vsel %vm166, 0, %v176
    %178 = vst [vmem:[#allocation2 + $0x38] sm:$0x11] %v177
    %v179 = vld [vmem:[#allocation2 + $0x48] sm:$0x11]
    %v180 = vsel %vm166, 0, %v179
    %181 = vst [vmem:[#allocation2 + $0x48] sm:$0x11] %v180
    %v182 = vld [vmem:[#allocation2 + $0x58] sm:$0x11]
    %v183 = vsel %vm166, 0, %v182
    %184 = vst [vmem:[#allocation2 + $0x58] sm:$0x11] %v183
    %v185 = vld [vmem:[#allocation2 + $0x68] sm:$0x11]
    %v186 = vsel %vm166, 0, %v185
    %187 = vst [vmem:[#allocation2 + $0x68] sm:$0x11] %v186
    %v188 = vld [vmem:[#allocation2 + $0x78] sm:$0x11]
    %v189 = vsel %vm166, 0, %v188
    %190 = vst [vmem:[#allocation2 + $0x78] sm:$0x11] %v189
    %v191 = vld [vmem:[#allocation2 + $0x88] sm:$0x11]
    %v192 = vsel %vm166, 0, %v191
    %193 = vst [vmem:[#allocation2 + $0x88] sm:$0x11] %v192
    %v194 = vld [vmem:[#allocation2 + $0x98] sm:$0x11]
    %v195 = vsel %vm166, 0, %v194
    %196 = vst [vmem:[#allocation2 + $0x98] sm:$0x11] %v195
    %v197 = vld [vmem:[#allocation2 + $0xa8] sm:$0x11]
    %v198 = vsel %vm166, 0, %v197
    %199 = vst [vmem:[#allocation2 + $0xa8] sm:$0x11] %v198
    %v200 = vld [vmem:[#allocation2 + $0xb8] sm:$0x11]
    %v201 = vsel %vm166, 0, %v200
    %202 = vst [vmem:[#allocation2 + $0xb8] sm:$0x11] %v201
    %v203 = vld [vmem:[#allocation2 + $0xc8] sm:$0x11]
    %v204 = vsel %vm166, 0, %v203
    %205 = vst [vmem:[#allocation2 + $0xc8] sm:$0x11] %v204
    %v206 = vld [vmem:[#allocation2 + $0xd8] sm:$0x11]
    %v207 = vsel %vm166, 0, %v206
    %208 = vst [vmem:[#allocation2 + $0xd8] sm:$0x11] %v207
    %v209 = vld [vmem:[#allocation2 + $0xe8] sm:$0x11]
    %v210 = vsel %vm166, 0, %v209
    %211 = vst [vmem:[#allocation2 + $0xe8] sm:$0x11] %v210
    %v212 = vld [vmem:[#allocation2 + $0xf8] sm:$0x11]
    %v213 = vsel %vm166, 0, %v212
    %214 = vst [vmem:[#allocation2 + $0xf8] sm:$0x11] %v213
    %v215 = vld [vmem:[#allocation2 + $0x108] sm:$0x11]
    %v216 = vsel %vm166, 0, %v215
    %217 = vst [vmem:[#allocation2 + $0x108] sm:$0x11] %v216
    %v218 = vld [vmem:[#allocation2 + $0x118] sm:$0x11]
    %v219 = vsel %vm166, 0, %v218
    %220 = vst [vmem:[#allocation2 + $0x118] sm:$0x11] %v219
    %v221 = vld [vmem:[#allocation2 + $0x128] sm:$0x11]
    %v222 = vsel %vm166, 0, %v221
    %223 = vst [vmem:[#allocation2 + $0x128] sm:$0x11] %v222
    %v224 = vld [vmem:[#allocation2 + $0x138] sm:$0x11]
    %v225 = vsel %vm166, 0, %v224
    %226 = vst [vmem:[#allocation2 + $0x138] sm:$0x11] %v225
    %v227 = vld [vmem:[#allocation4] sm:$0xff]
    %v228 = vld [vmem:[#allocation4 + $0x8] sm:$0xff]
    %v229 = vld [vmem:[#allocation4 + $0x10] sm:$0xff]
    %v230 = vld [vmem:[#allocation4 + $0x18] sm:$0xff]
    %v231 = vld [vmem:[#allocation4 + $0x20] sm:$0xff]
    %v232 = vld [vmem:[#allocation4 + $0x28] sm:$0xff]
    %v233 = vld [vmem:[#allocation4 + $0x30] sm:$0xff]
    %v234 = vld [vmem:[#allocation4 + $0x38] sm:$0xff]
    %v235 = vld [vmem:[#allocation4 + $0x40] sm:$0xff]
    %v236 = vld [vmem:[#allocation4 + $0x48] sm:$0xff]
    %v237 = vld [vmem:[#allocation4 + $0x50] sm:$0xff]
    %v238 = vld [vmem:[#allocation4 + $0x58] sm:$0xff]
    %v239 = vld [vmem:[#allocation4 + $0x60] sm:$0xff]
    %v240 = vld [vmem:[#allocation4 + $0x68] sm:$0xff]
    %v241 = vld [vmem:[#allocation4 + $0x70] sm:$0xff]
    %v242 = vld [vmem:[#allocation4 + $0x78] sm:$0xff]
    %v243 = vld [vmem:[#allocation4 + $0x80] sm:$0xff]
    %v244 = vld [vmem:[#allocation4 + $0x88] sm:$0xff]
    %v245 = vld [vmem:[#allocation4 + $0x90] sm:$0xff]
    %v246 = vld [vmem:[#allocation4 + $0x98] sm:$0xff]
    %v247 = vld [vmem:[#allocation4 + $0xa0] sm:$0xff]
    %v248 = vld [vmem:[#allocation4 + $0xa8] sm:$0xff]
    %v249 = vld [vmem:[#allocation4 + $0xb0] sm:$0xff]
    %v250 = vld [vmem:[#allocation4 + $0xb8] sm:$0xff]
    %v251 = vld [vmem:[#allocation4 + $0xc0] sm:$0xff]
    %v252 = vld [vmem:[#allocation4 + $0xc8] sm:$0xff]
    %v253 = vld [vmem:[#allocation4 + $0xd0] sm:$0xff]
    %v254 = vld [vmem:[#allocation4 + $0xd8] sm:$0xff]
    %v255 = vld [vmem:[#allocation4 + $0xe0] sm:$0xff]
    %v256 = vld [vmem:[#allocation4 + $0xe8] sm:$0xff]
    %v257 = vld [vmem:[#allocation4 + $0xf0] sm:$0xff]
    %v258 = vld [vmem:[#allocation4 + $0xf8] sm:$0xff]
    %v259 = vmax.f32 %v227, 0.0
    %v260 = vmax.f32 %v228, 0.0
    %v261 = vmax.f32 %v229, 0.0
    %v262 = vmax.f32 %v230, 0.0
    %v263 = vmax.f32 %v231, 0.0
    %v264 = vmax.f32 %v232, 0.0
    %v265 = vmax.f32 %v233, 0.0
    %v266 = vmax.f32 %v234, 0.0
    %v267 = vmax.f32 %v235, 0.0
    %v268 = vmax.f32 %v236, 0.0
    %v269 = vmax.f32 %v237, 0.0
    %v270 = vmax.f32 %v238, 0.0
    %v271 = vmax.f32 %v239, 0.0
    %v272 = vmax.f32 %v240, 0.0
    %v273 = vmax.f32 %v241, 0.0
    %v274 = vmax.f32 %v242, 0.0
    %v275 = vmax.f32 %v243, 0.0
    %v276 = vmax.f32 %v244, 0.0
    %v277 = vmax.f32 %v245, 0.0
    %v278 = vmax.f32 %v246, 0.0
    %v279 = vmax.f32 %v247, 0.0
    %v280 = vmax.f32 %v248, 0.0
    %v281 = vmax.f32 %v249, 0.0
    %v282 = vmax.f32 %v250, 0.0
    %v283 = vmax.f32 %v251, 0.0
    %v284 = vmax.f32 %v252, 0.0
    %v285 = vmax.f32 %v253, 0.0
    %v286 = vmax.f32 %v254, 0.0
    %v287 = vmax.f32 %v255, 0.0
    %v288 = vmax.f32 %v256, 0.0
    %v289 = vmax.f32 %v257, 0.0
    %v290 = vmax.f32 %v258, 0.0
    %v291 = vpack.c.bf16 %v259, %v259
    %v292 = vpack.c.bf16 %v260, %v260
    %v293 = vpack.c.bf16 %v261, %v261
    %v294 = vpack.c.bf16 %v262, %v262
    %v295 = vpack.c.bf16 %v263, %v263
    %v296 = vpack.c.bf16 %v264, %v264
    %v297 = vpack.c.bf16 %v265, %v265
    %v298 = vpack.c.bf16 %v266, %v266
    %v299 = vpack.c.bf16 %v267, %v267
    %v300 = vpack.c.bf16 %v268, %v268
    %v301 = vpack.c.bf16 %v269, %v269
    %v302 = vpack.c.bf16 %v270, %v270
    %v303 = vpack.c.bf16 %v271, %v271
    %v304 = vpack.c.bf16 %v272, %v272
    %v305 = vpack.c.bf16 %v273, %v273
    %v306 = vpack.c.bf16 %v274, %v274
    %v307 = vpack.c.bf16 %v275, %v275
    %v308 = vpack.c.bf16 %v276, %v276
    %v309 = vpack.c.bf16 %v277, %v277
    %v310 = vpack.c.bf16 %v278, %v278
    %v311 = vpack.c.bf16 %v279, %v279
    %v312 = vpack.c.bf16 %v280, %v280
    %v313 = vpack.c.bf16 %v281, %v281
    %v314 = vpack.c.bf16 %v282, %v282
    %v315 = vpack.c.bf16 %v283, %v283
    %v316 = vpack.c.bf16 %v284, %v284
    %v317 = vpack.c.bf16 %v285, %v285
    %v318 = vpack.c.bf16 %v286, %v286
    %v319 = vpack.c.bf16 %v287, %v287
    %v320 = vpack.c.bf16 %v288, %v288
    %v321 = vpack.c.bf16 %v289, %v289
    %v322 = vpack.c.bf16 %v290, %v290
    %v355 = vunpack.c.l.b16 %v291
    %v356 = vunpack.c.l.b16 %v292
    %v357 = vunpack.c.l.b16 %v293
    %v358 = vunpack.c.l.b16 %v294
    %v359 = vunpack.c.l.b16 %v295
    %v360 = vunpack.c.l.b16 %v296
    %v361 = vunpack.c.l.b16 %v297
    %v362 = vunpack.c.l.b16 %v298
    %v363 = vunpack.c.l.b16 %v299
    %v364 = vunpack.c.l.b16 %v300
    %v365 = vunpack.c.l.b16 %v301
    %v366 = vunpack.c.l.b16 %v302
    %v367 = vunpack.c.l.b16 %v303
    %v368 = vunpack.c.l.b16 %v304
    %v369 = vunpack.c.l.b16 %v305
    %v370 = vunpack.c.l.b16 %v306
    %v371 = vunpack.c.l.b16 %v307
    %v372 = vunpack.c.l.b16 %v308
    %v373 = vunpack.c.l.b16 %v309
    %v374 = vunpack.c.l.b16 %v310
    %v375 = vunpack.c.l.b16 %v311
    %v376 = vunpack.c.l.b16 %v312
    %v377 = vunpack.c.l.b16 %v313
    %v378 = vunpack.c.l.b16 %v314
    %v379 = vunpack.c.l.b16 %v315
    %v380 = vunpack.c.l.b16 %v316
    %v381 = vunpack.c.l.b16 %v317
    %v382 = vunpack.c.l.b16 %v318
    %v383 = vunpack.c.l.b16 %v319
    %v384 = vunpack.c.l.b16 %v320
    %v385 = vunpack.c.l.b16 %v321
    %v386 = vunpack.c.l.b16 %v322
    %v387 = vpack.c.b16 %v356, %v355
    %v388 = vpack.c.b16 %v358, %v357
    %v389 = vpack.c.b16 %v360, %v359
    %v390 = vpack.c.b16 %v362, %v361
    %v391 = vpack.c.b16 %v364, %v363
    %v392 = vpack.c.b16 %v366, %v365
    %v393 = vpack.c.b16 %v368, %v367
    %v394 = vpack.c.b16 %v370, %v369
    %v395 = vpack.c.b16 %v372, %v371
    %v396 = vpack.c.b16 %v374, %v373
    %v397 = vpack.c.b16 %v376, %v375
    %v398 = vpack.c.b16 %v378, %v377
    %v399 = vpack.c.b16 %v380, %v379
    %v400 = vpack.c.b16 %v382, %v381
    %v401 = vpack.c.b16 %v384, %v383
    %v402 = vpack.c.b16 %v386, %v385
    %v404 = vshrl.u32 %v387, 16
    %v406 = vrot.slane %v404, 7
    %v407 = vshll.u32 %v387, 16
    %v409 = vor.u32 %v406, %v407
    %v410 = vrot.slane %v406, 4
    %v412 = vshrl.u32 %v388, 16
    %v414 = vrot.slane %v412, 7
    %v415 = vshll.u32 %v388, 16
    %v417 = vor.u32 %v414, %v415
    %v418 = vrot.slane %v414, 4
    %v420 = vshrl.u32 %v389, 16
    %v422 = vrot.slane %v420, 7
    %v423 = vshll.u32 %v389, 16
    %v425 = vor.u32 %v422, %v423
    %v426 = vrot.slane %v422, 4
    %v428 = vshrl.u32 %v390, 16
    %v430 = vrot.slane %v428, 7
    %v431 = vshll.u32 %v390, 16
    %v433 = vor.u32 %v430, %v431
    %v434 = vrot.slane %v430, 4
    %v436 = vshrl.u32 %v391, 16
    %v438 = vrot.slane %v436, 7
    %v439 = vshll.u32 %v391, 16
    %v441 = vor.u32 %v438, %v439
    %v442 = vrot.slane %v438, 4
    %v444 = vshrl.u32 %v392, 16
    %v446 = vrot.slane %v444, 7
    %v447 = vshll.u32 %v392, 16
    %v449 = vor.u32 %v446, %v447
    %v450 = vrot.slane %v446, 4
    %v452 = vshrl.u32 %v393, 16
    %v454 = vrot.slane %v452, 7
    %v455 = vshll.u32 %v393, 16
    %v457 = vor.u32 %v454, %v455
    %v458 = vrot.slane %v454, 4
    %v460 = vshrl.u32 %v394, 16
    %v462 = vrot.slane %v460, 7
    %v463 = vshll.u32 %v394, 16
    %v465 = vor.u32 %v462, %v463
    %v466 = vrot.slane %v462, 4
    %v468 = vshrl.u32 %v395, 16
    %v470 = vrot.slane %v468, 7
    %v471 = vshll.u32 %v395, 16
    %v473 = vor.u32 %v470, %v471
    %v474 = vrot.slane %v470, 4
    %v476 = vshrl.u32 %v396, 16
    %v478 = vrot.slane %v476, 7
    %v479 = vshll.u32 %v396, 16
    %v481 = vor.u32 %v478, %v479
    %v482 = vrot.slane %v478, 4
    %v484 = vshrl.u32 %v397, 16
    %v486 = vrot.slane %v484, 7
    %v487 = vshll.u32 %v397, 16
    %v489 = vor.u32 %v486, %v487
    %v490 = vrot.slane %v486, 4
    %v492 = vshrl.u32 %v398, 16
    %v494 = vrot.slane %v492, 7
    %v495 = vshll.u32 %v398, 16
    %v497 = vor.u32 %v494, %v495
    %v498 = vrot.slane %v494, 4
    %v500 = vshrl.u32 %v399, 16
    %v502 = vrot.slane %v500, 7
    %v503 = vshll.u32 %v399, 16
    %v505 = vor.u32 %v502, %v503
    %v506 = vrot.slane %v502, 4
    %v508 = vshrl.u32 %v400, 16
    %v510 = vrot.slane %v508, 7
    %v511 = vshll.u32 %v400, 16
    %v513 = vor.u32 %v510, %v511
    %v514 = vrot.slane %v510, 4
    %v516 = vshrl.u32 %v401, 16
    %v518 = vrot.slane %v516, 7
    %v519 = vshll.u32 %v401, 16
    %v521 = vor.u32 %v518, %v519
    %v522 = vrot.slane %v518, 4
    %v524 = vshrl.u32 %v402, 16
    %v526 = vrot.slane %v524, 7
    %v527 = vshll.u32 %v402, 16
    %v529 = vor.u32 %v526, %v527
    %v530 = vrot.slane %v526, 4
    %s563 = scalar_lea.vmem [#allocation2], 16
    %vm564 = vcmask 1043456
    %vm565 = vmand %vm564, %vm162
    %vm566 = vcmask 1047556
    %vm567 = vmand %vm566, %vm164
    %vm568 = vmor %vm567, %vm565
    %v569 = vld [vmem:[%s563] sm:$0xff]
    %v570 = vsel %vm568, %v409, %v569
    %571 = vst [vmem:[%s563] sm:$0xff] %v570
    %v572 = vld [vmem:[%s563 + $0x8] sm:$0x11]
    %v573 = vsel %vm101, %v410, %v572
    %574 = vst [vmem:[%s563 + $0x8] sm:$0x11] %v573
    %v575 = vld [vmem:[%s563 + $0x10] sm:$0xff]
    %v576 = vsel %vm568, %v417, %v575
    %577 = vst [vmem:[%s563 + $0x10] sm:$0xff] %v576
    %v578 = vld [vmem:[%s563 + $0x18] sm:$0x11]
    %v579 = vsel %vm101, %v418, %v578
    %580 = vst [vmem:[%s563 + $0x18] sm:$0x11] %v579
    %v581 = vld [vmem:[%s563 + $0x20] sm:$0xff]
    %v582 = vsel %vm568, %v425, %v581
    %583 = vst [vmem:[%s563 + $0x20] sm:$0xff] %v582
    %v584 = vld [vmem:[%s563 + $0x28] sm:$0x11]
    %v585 = vsel %vm101, %v426, %v584
    %586 = vst [vmem:[%s563 + $0x28] sm:$0x11] %v585
    %v587 = vld [vmem:[%s563 + $0x30] sm:$0xff]
    %v588 = vsel %vm568, %v433, %v587
    %589 = vst [vmem:[%s563 + $0x30] sm:$0xff] %v588
    %v590 = vld [vmem:[%s563 + $0x38] sm:$0x11]
    %v591 = vsel %vm101, %v434, %v590
    %592 = vst [vmem:[%s563 + $0x38] sm:$0x11] %v591
    %v593 = vld [vmem:[%s563 + $0x40] sm:$0xff]
    %v594 = vsel %vm568, %v441, %v593
    %595 = vst [vmem:[%s563 + $0x40] sm:$0xff] %v594
    %v596 = vld [vmem:[%s563 + $0x48] sm:$0x11]
    %v597 = vsel %vm101, %v442, %v596
    %598 = vst [vmem:[%s563 + $0x48] sm:$0x11] %v597
    %v599 = vld [vmem:[%s563 + $0x50] sm:$0xff]
    %v600 = vsel %vm568, %v449, %v599
    %601 = vst [vmem:[%s563 + $0x50] sm:$0xff] %v600
    %v602 = vld [vmem:[%s563 + $0x58] sm:$0x11]
    %v603 = vsel %vm101, %v450, %v602
    %604 = vst [vmem:[%s563 + $0x58] sm:$0x11] %v603
    %v605 = vld [vmem:[%s563 + $0x60] sm:$0xff]
    %v606 = vsel %vm568, %v457, %v605
    %607 = vst [vmem:[%s563 + $0x60] sm:$0xff] %v606
    %v608 = vld [vmem:[%s563 + $0x68] sm:$0x11]
    %v609 = vsel %vm101, %v458, %v608
    %610 = vst [vmem:[%s563 + $0x68] sm:$0x11] %v609
    %v611 = vld [vmem:[%s563 + $0x70] sm:$0xff]
    %v612 = vsel %vm568, %v465, %v611
    %613 = vst [vmem:[%s563 + $0x70] sm:$0xff] %v612
    %v614 = vld [vmem:[%s563 + $0x78] sm:$0x11]
    %v615 = vsel %vm101, %v466, %v614
    %616 = vst [vmem:[%s563 + $0x78] sm:$0x11] %v615
    %v617 = vld [vmem:[%s563 + $0xa0] sm:$0xff]
    %v618 = vsel %vm568, %v473, %v617
    %619 = vst [vmem:[%s563 + $0xa0] sm:$0xff] %v618
    %v620 = vld [vmem:[%s563 + $0xa8] sm:$0x11]
    %v621 = vsel %vm101, %v474, %v620
    %622 = vst [vmem:[%s563 + $0xa8] sm:$0x11] %v621
    %v623 = vld [vmem:[%s563 + $0xb0] sm:$0xff]
    %v624 = vsel %vm568, %v481, %v623
    %625 = vst [vmem:[%s563 + $0xb0] sm:$0xff] %v624
    %v626 = vld [vmem:[%s563 + $0xb8] sm:$0x11]
    %v627 = vsel %vm101, %v482, %v626
    %628 = vst [vmem:[%s563 + $0xb8] sm:$0x11] %v627
    %v629 = vld [vmem:[%s563 + $0xc0] sm:$0xff]
    %v630 = vsel %vm568, %v489, %v629
    %631 = vst [vmem:[%s563 + $0xc0] sm:$0xff] %v630
    %v632 = vld [vmem:[%s563 + $0xc8] sm:$0x11]
    %v633 = vsel %vm101, %v490, %v632
    %634 = vst [vmem:[%s563 + $0xc8] sm:$0x11] %v633
    %v635 = vld [vmem:[%s563 + $0xd0] sm:$0xff]
    %v636 = vsel %vm568, %v497, %v635
    %637 = vst [vmem:[%s563 + $0xd0] sm:$0xff] %v636
    %v638 = vld [vmem:[%s563 + $0xd8] sm:$0x11]
    %v639 = vsel %vm101, %v498, %v638
    %640 = vst [vmem:[%s563 + $0xd8] sm:$0x11] %v639
    %v641 = vld [vmem:[%s563 + $0xe0] sm:$0xff]
    %v642 = vsel %vm568, %v505, %v641
    %643 = vst [vmem:[%s563 + $0xe0] sm:$0xff] %v642
    %v644 = vld [vmem:[%s563 + $0xe8] sm:$0x11]
    %v645 = vsel %vm101, %v506, %v644
    %646 = vst [vmem:[%s563 + $0xe8] sm:$0x11] %v645
    %v647 = vld [vmem:[%s563 + $0xf0] sm:$0xff]
    %v648 = vsel %vm568, %v513, %v647
    %649 = vst [vmem:[%s563 + $0xf0] sm:$0xff] %v648
    %v650 = vld [vmem:[%s563 + $0xf8] sm:$0x11]
    %v651 = vsel %vm101, %v514, %v650
    %652 = vst [vmem:[%s563 + $0xf8] sm:$0x11] %v651
    %v653 = vld [vmem:[%s563 + $0x100] sm:$0xff]
    %v654 = vsel %vm568, %v521, %v653
    %655 = vst [vmem:[%s563 + $0x100] sm:$0xff] %v654
    %v656 = vld [vmem:[%s563 + $0x108] sm:$0x11]
    %v657 = vsel %vm101, %v522, %v656
    %658 = vst [vmem:[%s563 + $0x108] sm:$0x11] %v657
    %v659 = vld [vmem:[%s563 + $0x110] sm:$0xff]
    %v660 = vsel %vm568, %v529, %v659
    %661 = vst [vmem:[%s563 + $0x110] sm:$0xff] %v660
    %v662 = vld [vmem:[%s563 + $0x118] sm:$0x11]
    %v663 = vsel %vm101, %v530, %v662
    %664 = vst [vmem:[%s563 + $0x118] sm:$0x11] %v663
    %v665 = vld [vmem:[#allocation2] sm:$0xff]
    %v666 = vld [vmem:[#allocation2 + $0x10] sm:$0xff]
    %v667 = vld [vmem:[#allocation2 + $0x20] sm:$0xff]
    %v668 = vld [vmem:[#allocation2 + $0x30] sm:$0xff]
    %v669 = vld [vmem:[#allocation2 + $0x40] sm:$0xff]
    %v670 = vld [vmem:[#allocation2 + $0x50] sm:$0xff]
    %v671 = vld [vmem:[#allocation2 + $0x60] sm:$0xff]
    %v672 = vld [vmem:[#allocation2 + $0x70] sm:$0xff]
    %v673 = vld [vmem:[#allocation2 + $0xa0] sm:$0xff]
    %v674 = vld [vmem:[#allocation2 + $0xb0] sm:$0xff]
    %v675 = vld [vmem:[#allocation2 + $0xc0] sm:$0xff]
    %v676 = vld [vmem:[#allocation2 + $0xd0] sm:$0xff]
    %v677 = vld [vmem:[#allocation2 + $0xe0] sm:$0xff]
    %v678 = vld [vmem:[#allocation2 + $0xf0] sm:$0xff]
    %v679 = vld [vmem:[#allocation2 + $0x100] sm:$0xff]
    %v680 = vld [vmem:[#allocation2 + $0x110] sm:$0xff]
    %v681 = vld [vmem:[#allocation7] sm:$0xff]
    %v682 = vld [vmem:[#allocation7 + $0x8] sm:$0xff]
    %v683 = vld [vmem:[#allocation7 + $0x10] sm:$0xff]
    %v684 = vld [vmem:[#allocation7 + $0x18] sm:$0xff]
    %v685 = vld [vmem:[#allocation7 + $0x20] sm:$0xff]
    %v686 = vld [vmem:[#allocation7 + $0x28] sm:$0xff]
    %v687 = vld [vmem:[#allocation7 + $0x30] sm:$0xff]
    %v688 = vld [vmem:[#allocation7 + $0x38] sm:$0xff]
    %v689 = vld [vmem:[#allocation7 + $0x40] sm:$0xff]
    %v690 = vld [vmem:[#allocation7 + $0x48] sm:$0xff]
    %v691 = vld [vmem:[#allocation7 + $0x50] sm:$0xff]
    %v692 = vld [vmem:[#allocation7 + $0x58] sm:$0xff]
    %v693 = vld [vmem:[#allocation7 + $0x60] sm:$0xff]
    %v694 = vld [vmem:[#allocation7 + $0x68] sm:$0xff]
    %v695 = vld [vmem:[#allocation7 + $0x70] sm:$0xff]
    %v696 = vld [vmem:[#allocation7 + $0x78] sm:$0xff]
    %v697 = vld [vmem:[#allocation7 + $0x80] sm:$0xff]
    %v698 = vld [vmem:[#allocation7 + $0x88] sm:$0xff]
    %v699 = vld [vmem:[#allocation7 + $0x90] sm:$0xff]
    %v700 = vld [vmem:[#allocation7 + $0x98] sm:$0xff]
    %v701 = vld [vmem:[#allocation7 + $0xa0] sm:$0xff]
    %v702 = vld [vmem:[#allocation7 + $0xa8] sm:$0xff]
    %v703 = vld [vmem:[#allocation7 + $0xb0] sm:$0xff]
    %v704 = vld [vmem:[#allocation7 + $0xb8] sm:$0xff]
    %v705 = vld [vmem:[#allocation7 + $0xc0] sm:$0xff]
    %v706 = vld [vmem:[#allocation7 + $0xc8] sm:$0xff]
    %v707 = vld [vmem:[#allocation7 + $0xd0] sm:$0xff]
    %v708 = vld [vmem:[#allocation7 + $0xd8] sm:$0xff]
    %v709 = vld [vmem:[#allocation7 + $0xe0] sm:$0xff]
    %v710 = vld [vmem:[#allocation7 + $0xe8] sm:$0xff]
    %v711 = vld [vmem:[#allocation7 + $0xf0] sm:$0xff]
    %v712 = vld [vmem:[#allocation7 + $0xf8] sm:$0xff]
    %v729 = vunpack.c.l.b16 %v665
    %v730 = vunpack.c.h.b16 %v665
    %v731 = vunpack.c.l.b16 %v666
    %v732 = vunpack.c.h.b16 %v666
    %v733 = vunpack.c.l.b16 %v667
    %v734 = vunpack.c.h.b16 %v667
    %v735 = vunpack.c.l.b16 %v668
    %v736 = vunpack.c.h.b16 %v668
    %v737 = vunpack.c.l.b16 %v669
    %v738 = vunpack.c.h.b16 %v669
    %v739 = vunpack.c.l.b16 %v670
    %v740 = vunpack.c.h.b16 %v670
    %v741 = vunpack.c.l.b16 %v671
    %v742 = vunpack.c.h.b16 %v671
    %v743 = vunpack.c.l.b16 %v672
    %v744 = vunpack.c.h.b16 %v672
    %v745 = vunpack.c.l.b16 %v673
    %v746 = vunpack.c.h.b16 %v673
    %v747 = vunpack.c.l.b16 %v674
    %v748 = vunpack.c.h.b16 %v674
    %v749 = vunpack.c.l.b16 %v675
    %v750 = vunpack.c.h.b16 %v675
    %v751 = vunpack.c.l.b16 %v676
    %v752 = vunpack.c.h.b16 %v676
    %v753 = vunpack.c.l.b16 %v677
    %v754 = vunpack.c.h.b16 %v677
    %v755 = vunpack.c.l.b16 %v678
    %v756 = vunpack.c.h.b16 %v678
    %v757 = vunpack.c.l.b16 %v679
    %v758 = vunpack.c.h.b16 %v679
    %v759 = vunpack.c.l.b16 %v680
    %v760 = vunpack.c.h.b16 %v680
    %v761 = vpack.c.b16 %v731, %v729
    %v762 = vpack.c.b16 %v732, %v730
    %v763 = vpack.c.b16 %v735, %v733
    %v764 = vpack.c.b16 %v736, %v734
    %v765 = vpack.c.b16 %v739, %v737
    %v766 = vpack.c.b16 %v740, %v738
    %v767 = vpack.c.b16 %v743, %v741
    %v768 = vpack.c.b16 %v744, %v742
    %v769 = vpack.c.b16 %v747, %v745
    %v770 = vpack.c.b16 %v748, %v746
    %v771 = vpack.c.b16 %v751, %v749
    %v772 = vpack.c.b16 %v752, %v750
    %v773 = vpack.c.b16 %v755, %v753
    %v774 = vpack.c.b16 %v756, %v754
    %v775 = vpack.c.b16 %v759, %v757
    %v776 = vpack.c.b16 %v760, %v758
    %v825 = vunpack.c.l.b16 %v681
    %v826 = vunpack.c.h.b16 %v681
    %v827 = vunpack.c.l.b16 %v682
    %v828 = vunpack.c.h.b16 %v682
    %v829 = vunpack.c.l.b16 %v683
    %v830 = vunpack.c.h.b16 %v683
    %v831 = vunpack.c.l.b16 %v684
    %v832 = vunpack.c.h.b16 %v684
    %v833 = vunpack.c.l.b16 %v685
    %v834 = vunpack.c.h.b16 %v685
    %v835 = vunpack.c.l.b16 %v686
    %v836 = vunpack.c.h.b16 %v686
    %v837 = vunpack.c.l.b16 %v687
    %v838 = vunpack.c.h.b16 %v687
    %v839 = vunpack.c.l.b16 %v688
    %v840 = vunpack.c.h.b16 %v688
    %v841 = vunpack.c.l.b16 %v689
    %v842 = vunpack.c.h.b16 %v689
    %v843 = vunpack.c.l.b16 %v690
    %v844 = vunpack.c.h.b16 %v690
    %v845 = vunpack.c.l.b16 %v691
    %v846 = vunpack.c.h.b16 %v691
    %v847 = vunpack.c.l.b16 %v692
    %v848 = vunpack.c.h.b16 %v692
    %v849 = vunpack.c.l.b16 %v693
    %v850 = vunpack.c.h.b16 %v693
    %v851 = vunpack.c.l.b16 %v694
    %v852 = vunpack.c.h.b16 %v694
    %v853 = vunpack.c.l.b16 %v695
    %v854 = vunpack.c.h.b16 %v695
    %v855 = vunpack.c.l.b16 %v696
    %v856 = vunpack.c.h.b16 %v696
    %v857 = vunpack.c.l.b16 %v697
    %v858 = vunpack.c.h.b16 %v697
    %v859 = vunpack.c.l.b16 %v698
    %v860 = vunpack.c.h.b16 %v698
    %v861 = vunpack.c.l.b16 %v699
    %v862 = vunpack.c.h.b16 %v699
    %v863 = vunpack.c.l.b16 %v700
    %v864 = vunpack.c.h.b16 %v700
    %v865 = vunpack.c.l.b16 %v701
    %v866 = vunpack.c.h.b16 %v701
    %v867 = vunpack.c.l.b16 %v702
    %v868 = vunpack.c.h.b16 %v702
    %v869 = vunpack.c.l.b16 %v703
    %v870 = vunpack.c.h.b16 %v703
    %v871 = vunpack.c.l.b16 %v704
    %v872 = vunpack.c.h.b16 %v704
    %v873 = vunpack.c.l.b16 %v705
    %v874 = vunpack.c.h.b16 %v705
    %v875 = vunpack.c.l.b16 %v706
    %v876 = vunpack.c.h.b16 %v706
    %v877 = vunpack.c.l.b16 %v707
    %v878 = vunpack.c.h.b16 %v707
    %v879 = vunpack.c.l.b16 %v708
    %v880 = vunpack.c.h.b16 %v708
    %v881 = vunpack.c.l.b16 %v709
    %v882 = vunpack.c.h.b16 %v709
    %v883 = vunpack.c.l.b16 %v710
    %v884 = vunpack.c.h.b16 %v710
    %v885 = vunpack.c.l.b16 %v711
    %v886 = vunpack.c.h.b16 %v711
    %v887 = vunpack.c.l.b16 %v712
    %v888 = vunpack.c.h.b16 %v712
    %v889 = vpack.c.b16 %v827, %v825
    %v890 = vpack.c.b16 %v828, %v826
    %v891 = vpack.c.b16 %v831, %v829
    %v892 = vpack.c.b16 %v832, %v830
    %v893 = vpack.c.b16 %v835, %v833
    %v894 = vpack.c.b16 %v836, %v834
    %v895 = vpack.c.b16 %v839, %v837
    %v896 = vpack.c.b16 %v840, %v838
    %v897 = vpack.c.b16 %v843, %v841
    %v898 = vpack.c.b16 %v844, %v842
    %v899 = vpack.c.b16 %v847, %v845
    %v900 = vpack.c.b16 %v848, %v846
    %v901 = vpack.c.b16 %v851, %v849
    %v902 = vpack.c.b16 %v852, %v850
    %v903 = vpack.c.b16 %v855, %v853
    %v904 = vpack.c.b16 %v856, %v854
    %v905 = vpack.c.b16 %v859, %v857
    %v906 = vpack.c.b16 %v860, %v858
    %v907 = vpack.c.b16 %v863, %v861
    %v908 = vpack.c.b16 %v864, %v862
    %v909 = vpack.c.b16 %v867, %v865
    %v910 = vpack.c.b16 %v868, %v866
    %v911 = vpack.c.b16 %v871, %v869
    %v912 = vpack.c.b16 %v872, %v870
    %v913 = vpack.c.b16 %v875, %v873
    %v914 = vpack.c.b16 %v876, %v874
    %v915 = vpack.c.b16 %v879, %v877
    %v916 = vpack.c.b16 %v880, %v878
    %v917 = vpack.c.b16 %v883, %v881
    %v918 = vpack.c.b16 %v884, %v882
    %v919 = vpack.c.b16 %v887, %v885
    %v920 = vpack.c.b16 %v888, %v886
    %953 = vmatprep.subr.bf16.mxu0 %v904
    %954 = vmatpush1.bf16.msra.mxu0 %v903
    %955 = vmatprep.subr.bf16.mxu0 %v902
    %956 = vmatpush1.bf16.msra.mxu0 %v901
    %957 = vmatprep.subr.bf16.mxu0 %v900
    %958 = vmatpush1.bf16.msra.mxu0 %v899
    %959 = vmatprep.subr.bf16.mxu0 %v898
    %960 = vmatpush1.bf16.msra.mxu0 %v897
    %961 = vmatprep.subr.bf16.mxu0 %v896
    %962 = vmatpush1.bf16.msra.mxu0 %v895
    %963 = vmatprep.subr.bf16.mxu0 %v894
    %964 = vmatpush1.bf16.msra.mxu0 %v893
    %965 = vmatprep.subr.bf16.mxu0 %v892
    %966 = vmatpush1.bf16.msra.mxu0 %v891
    %967 = vmatprep.subr.bf16.mxu0 %v890
    %968 = vmatpush1.bf16.msra.mxu0 %v889
    %969 = vmatprep.subr.bf16.mxu0 %v920
    %970 = vmatpush2.bf16.msra.mxu0 %v919
    %971 = vmatprep.subr.bf16.mxu0 %v918
    %972 = vmatpush2.bf16.msra.mxu0 %v917
    %973 = vmatprep.subr.bf16.mxu0 %v916
    %974 = vmatpush2.bf16.msra.mxu0 %v915
    %975 = vmatprep.subr.bf16.mxu0 %v914
    %976 = vmatpush2.bf16.msra.mxu0 %v913
    %977 = vmatprep.subr.bf16.mxu0 %v912
    %978 = vmatpush2.bf16.msra.mxu0 %v911
    %979 = vmatprep.subr.bf16.mxu0 %v910
    %980 = vmatpush2.bf16.msra.mxu0 %v909
    %981 = vmatprep.subr.bf16.mxu0 %v908
    %982 = vmatpush2.bf16.msra.mxu0 %v907
    %983 = vmatprep.subr.bf16.mxu0 %v906
    %984 = vmatpush2.bf16.msra.mxu0 %v905
    %985 = vmatprep.mubr.bf16.mxu0 %v762
    %986 = vmatmul.mubr.bf16.gmra.mxu0 %v761
    %v987 = vpop.f32.mrf.mxu0
    %v988 = vadd.f32 0.0, %v987
    %v989 = vpop.f32.mrf.mxu0
    %v990 = vadd.f32 0.0, %v989
    %v991 = vpop.f32.mrf.mxu0
    %v992 = vadd.f32 0.0, %v991
    %v993 = vpop.f32.mrf.mxu0
    %v994 = vadd.f32 0.0, %v993
    %995 = vmatprep.mubr.bf16.mxu0 %v764
    %996 = vmatmul.mubr.bf16.gmra.mxu0 %v763
    %v997 = vpop.f32.mrf.mxu0
    %v998 = vadd.f32 0.0, %v997
    %v999 = vpop.f32.mrf.mxu0
    %v1000 = vadd.f32 0.0, %v999
    %v1001 = vpop.f32.mrf.mxu0
    %v1002 = vadd.f32 0.0, %v1001
    %v1003 = vpop.f32.mrf.mxu0
    %v1004 = vadd.f32 0.0, %v1003
    %1005 = vmatprep.mubr.bf16.mxu0 %v766
    %1006 = vmatmul.mubr.bf16.gmra.mxu0 %v765
    %v1007 = vpop.f32.mrf.mxu0
    %v1008 = vadd.f32 0.0, %v1007
    %v1009 = vpop.f32.mrf.mxu0
    %v1010 = vadd.f32 0.0, %v1009
    %v1011 = vpop.f32.mrf.mxu0
    %v1012 = vadd.f32 0.0, %v1011
    %v1013 = vpop.f32.mrf.mxu0
    %v1014 = vadd.f32 0.0, %v1013
    %1015 = vmatprep.mubr.bf16.mxu0 %v768
    %1016 = vmatmul.mubr.bf16.gmra.mxu0 %v767
    %v1017 = vpop.f32.mrf.mxu0
    %v1018 = vadd.f32 0.0, %v1017
    %v1019 = vpop.f32.mrf.mxu0
    %v1020 = vadd.f32 0.0, %v1019
    %v1021 = vpop.f32.mrf.mxu0
    %v1022 = vadd.f32 0.0, %v1021
    %v1023 = vpop.f32.mrf.mxu0
    %v1024 = vadd.f32 0.0, %v1023
    %1025 = vmatprep.mubr.bf16.mxu0 %v770
    %1026 = vmatmul.mubr.bf16.gmra.mxu0 %v769
    %v1027 = vpop.f32.mrf.mxu0
    %v1028 = vadd.f32 0.0, %v1027
    %v1029 = vpop.f32.mrf.mxu0
    %v1030 = vadd.f32 0.0, %v1029
    %v1031 = vpop.f32.mrf.mxu0
    %v1032 = vadd.f32 0.0, %v1031
    %v1033 = vpop.f32.mrf.mxu0
    %v1034 = vadd.f32 0.0, %v1033
    %1035 = vmatprep.mubr.bf16.mxu0 %v772
    %1036 = vmatmul.mubr.bf16.gmra.mxu0 %v771
    %v1037 = vpop.f32.mrf.mxu0
    %v1038 = vadd.f32 0.0, %v1037
    %v1039 = vpop.f32.mrf.mxu0
    %v1040 = vadd.f32 0.0, %v1039
    %v1041 = vpop.f32.mrf.mxu0
    %v1042 = vadd.f32 0.0, %v1041
    %v1043 = vpop.f32.mrf.mxu0
    %v1044 = vadd.f32 0.0, %v1043
    %1045 = vmatprep.mubr.bf16.mxu0 %v774
    %1046 = vmatmul.mubr.bf16.gmra.mxu0 %v773
    %v1047 = vpop.f32.mrf.mxu0
    %v1048 = vadd.f32 0.0, %v1047
    %v1049 = vpop.f32.mrf.mxu0
    %v1050 = vadd.f32 0.0, %v1049
    %v1051 = vpop.f32.mrf.mxu0
    %v1052 = vadd.f32 0.0, %v1051
    %v1053 = vpop.f32.mrf.mxu0
    %v1054 = vadd.f32 0.0, %v1053
    %1055 = vmatprep.mubr.bf16.mxu0 %v776
    %1056 = vmatmul.mubr.bf16.gmra.mxu0 %v775
    %v1057 = vpop.f32.mrf.mxu0
    %v1058 = vadd.f32 0.0, %v1057
    %v1059 = vpop.f32.mrf.mxu0
    %v1060 = vadd.f32 0.0, %v1059
    %v1061 = vpop.f32.mrf.mxu0
    %v1062 = vadd.f32 0.0, %v1061
    %v1063 = vpop.f32.mrf.mxu0
    %v1064 = vadd.f32 0.0, %v1063
    %1065 = vdwg.mxu0
    %1066 = vst [vmem:[#allocation3] sm:$0xff] %v988
    %1067 = vst [vmem:[#allocation3 + $0x8] sm:$0xff] %v990
    %1068 = vst [vmem:[#allocation3 + $0x10] sm:$0xff] %v992
    %1069 = vst [vmem:[#allocation3 + $0x18] sm:$0xff] %v994
    %1070 = vst [vmem:[#allocation3 + $0x20] sm:$0xff] %v998
    %1071 = vst [vmem:[#allocation3 + $0x28] sm:$0xff] %v1000
    %1072 = vst [vmem:[#allocation3 + $0x30] sm:$0xff] %v1002
    %1073 = vst [vmem:[#allocation3 + $0x38] sm:$0xff] %v1004
    %1074 = vst [vmem:[#allocation3 + $0x40] sm:$0xff] %v1008
    %1075 = vst [vmem:[#allocation3 + $0x48] sm:$0xff] %v1010
    %1076 = vst [vmem:[#allocation3 + $0x50] sm:$0xff] %v1012
    %1077 = vst [vmem:[#allocation3 + $0x58] sm:$0xff] %v1014
    %1078 = vst [vmem:[#allocation3 + $0x60] sm:$0xff] %v1018
    %1079 = vst [vmem:[#allocation3 + $0x68] sm:$0xff] %v1020
    %1080 = vst [vmem:[#allocation3 + $0x70] sm:$0xff] %v1022
    %1081 = vst [vmem:[#allocation3 + $0x78] sm:$0xff] %v1024
    %1082 = vst [vmem:[#allocation3 + $0x80] sm:$0xff] %v1028
    %1083 = vst [vmem:[#allocation3 + $0x88] sm:$0xff] %v1030
    %1084 = vst [vmem:[#allocation3 + $0x90] sm:$0xff] %v1032
    %1085 = vst [vmem:[#allocation3 + $0x98] sm:$0xff] %v1034
    %1086 = vst [vmem:[#allocation3 + $0xa0] sm:$0xff] %v1038
    %1087 = vst [vmem:[#allocation3 + $0xa8] sm:$0xff] %v1040
    %1088 = vst [vmem:[#allocation3 + $0xb0] sm:$0xff] %v1042
    %1089 = vst [vmem:[#allocation3 + $0xb8] sm:$0xff] %v1044
    %1090 = vst [vmem:[#allocation3 + $0xc0] sm:$0xff] %v1048
    %1091 = vst [vmem:[#allocation3 + $0xc8] sm:$0xff] %v1050
    %1092 = vst [vmem:[#allocation3 + $0xd0] sm:$0xff] %v1052
    %1093 = vst [vmem:[#allocation3 + $0xd8] sm:$0xff] %v1054
    %1094 = vst [vmem:[#allocation3 + $0xe0] sm:$0xff] %v1058
    %1095 = vst [vmem:[#allocation3 + $0xe8] sm:$0xff] %v1060
    %1096 = vst [vmem:[#allocation3 + $0xf0] sm:$0xff] %v1062
    %1097 = vst [vmem:[#allocation3 + $0xf8] sm:$0xff] %v1064
    %v1098 = vld [vmem:[#allocation2] sm:$0xff]
    %v1099 = vld [vmem:[#allocation2 + $0x8] sm:$0x11]
    %v1100 = vld [vmem:[#allocation2 + $0x10] sm:$0xff]
    %v1101 = vld [vmem:[#allocation2 + $0x18] sm:$0x11]
    %v1102 = vld [vmem:[#allocation2 + $0x20] sm:$0xff]
    %v1103 = vld [vmem:[#allocation2 + $0x28] sm:$0x11]
    %v1104 = vld [vmem:[#allocation2 + $0x30] sm:$0xff]
    %v1105 = vld [vmem:[#allocation2 + $0x38] sm:$0x11]
    %v1106 = vld [vmem:[#allocation2 + $0x40] sm:$0xff]
    %v1107 = vld [vmem:[#allocation2 + $0x48] sm:$0x11]
    %v1108 = vld [vmem:[#allocation2 + $0x50] sm:$0xff]
    %v1109 = vld [vmem:[#allocation2 + $0x58] sm:$0x11]
    %v1110 = vld [vmem:[#allocation2 + $0x60] sm:$0xff]
    %v1111 = vld [vmem:[#allocation2 + $0x68] sm:$0x11]
    %v1112 = vld [vmem:[#allocation2 + $0x70] sm:$0xff]
    %v1113 = vld [vmem:[#allocation2 + $0x78] sm:$0x11]
    %v1114 = vld [vmem:[#allocation2 + $0xa0] sm:$0xff]
    %v1115 = vld [vmem:[#allocation2 + $0xa8] sm:$0x11]
    %v1116 = vld [vmem:[#allocation2 + $0xb0] sm:$0xff]
    %v1117 = vld [vmem:[#allocation2 + $0xb8] sm:$0x11]
    %v1118 = vld [vmem:[#allocation2 + $0xc0] sm:$0xff]
    %v1119 = vld [vmem:[#allocation2 + $0xc8] sm:$0x11]
    %v1120 = vld [vmem:[#allocation2 + $0xd0] sm:$0xff]
    %v1121 = vld [vmem:[#allocation2 + $0xd8] sm:$0x11]
    %v1122 = vld [vmem:[#allocation2 + $0xe0] sm:$0xff]
    %v1123 = vld [vmem:[#allocation2 + $0xe8] sm:$0x11]
    %v1124 = vld [vmem:[#allocation2 + $0xf0] sm:$0xff]
    %v1125 = vld [vmem:[#allocation2 + $0xf8] sm:$0x11]
    %v1126 = vld [vmem:[#allocation2 + $0x100] sm:$0xff]
    %v1127 = vld [vmem:[#allocation2 + $0x108] sm:$0x11]
    %v1128 = vld [vmem:[#allocation2 + $0x110] sm:$0xff]
    %v1129 = vld [vmem:[#allocation2 + $0x118] sm:$0x11]
    %vm1130 = vsmask.f32 3328
    %vm1131 = vsmask.f32 7440
    %vm1132 = vmor %vm1130, %vm1131
    %v1134 = vshrl.u32 %v1098, 16
    %v1136 = vrot.slane %v1134, 4
    %v1137 = vshll.u32 %v1098, 16
    %v1139 = vrot.slane %v1137, 5
    %v1140 = vor.u32 %v1136, %v1139
    %v1141 = vrot.slane %v1140, 4
    %v1143 = vshll.u32 %v1099, 16
    %v1145 = vrot.slane %v1143, 5
    %v1146 = vsel %vm1132, %v1141, %v1145
    %v1148 = vshrl.u32 %v1100, 16
    %v1150 = vrot.slane %v1148, 4
    %v1151 = vshll.u32 %v1100, 16
    %v1153 = vrot.slane %v1151, 5
    %v1154 = vor.u32 %v1150, %v1153
    %v1155 = vrot.slane %v1154, 4
    %v1157 = vshll.u32 %v1101, 16
    %v1159 = vrot.slane %v1157, 5
    %v1160 = vsel %vm1132, %v1155, %v1159
    %v1162 = vshrl.u32 %v1102, 16
    %v1164 = vrot.slane %v1162, 4
    %v1165 = vshll.u32 %v1102, 16
    %v1167 = vrot.slane %v1165, 5
    %v1168 = vor.u32 %v1164, %v1167
    %v1169 = vrot.slane %v1168, 4
    %v1171 = vshll.u32 %v1103, 16
    %v1173 = vrot.slane %v1171, 5
    %v1174 = vsel %vm1132, %v1169, %v1173
    %v1176 = vshrl.u32 %v1104, 16
    %v1178 = vrot.slane %v1176, 4
    %v1179 = vshll.u32 %v1104, 16
    %v1181 = vrot.slane %v1179, 5
    %v1182 = vor.u32 %v1178, %v1181
    %v1183 = vrot.slane %v1182, 4
    %v1185 = vshll.u32 %v1105, 16
    %v1187 = vrot.slane %v1185, 5
    %v1188 = vsel %vm1132, %v1183, %v1187
    %v1190 = vshrl.u32 %v1106, 16
    %v1192 = vrot.slane %v1190, 4
    %v1193 = vshll.u32 %v1106, 16
    %v1195 = vrot.slane %v1193, 5
    %v1196 = vor.u32 %v1192, %v1195
    %v1197 = vrot.slane %v1196, 4
    %v1199 = vshll.u32 %v1107, 16
    %v1201 = vrot.slane %v1199, 5
    %v1202 = vsel %vm1132, %v1197, %v1201
    %v1204 = vshrl.u32 %v1108, 16
    %v1206 = vrot.slane %v1204, 4
    %v1207 = vshll.u32 %v1108, 16
    %v1209 = vrot.slane %v1207, 5
    %v1210 = vor.u32 %v1206, %v1209
    %v1211 = vrot.slane %v1210, 4
    %v1213 = vshll.u32 %v1109, 16
    %v1215 = vrot.slane %v1213, 5
    %v1216 = vsel %vm1132, %v1211, %v1215
    %v1218 = vshrl.u32 %v1110, 16
    %v1220 = vrot.slane %v1218, 4
    %v1221 = vshll.u32 %v1110, 16
    %v1223 = vrot.slane %v1221, 5
    %v1224 = vor.u32 %v1220, %v1223
    %v1225 = vrot.slane %v1224, 4
    %v1227 = vshll.u32 %v1111, 16
    %v1229 = vrot.slane %v1227, 5
    %v1230 = vsel %vm1132, %v1225, %v1229
    %v1232 = vshrl.u32 %v1112, 16
    %v1234 = vrot.slane %v1232, 4
    %v1235 = vshll.u32 %v1112, 16
    %v1237 = vrot.slane %v1235, 5
    %v1238 = vor.u32 %v1234, %v1237
    %v1239 = vrot.slane %v1238, 4
    %v1241 = vshll.u32 %v1113, 16
    %v1243 = vrot.slane %v1241, 5
    %v1244 = vsel %vm1132, %v1239, %v1243
    %v1246 = vshrl.u32 %v1114, 16
    %v1248 = vrot.slane %v1246, 4
    %v1249 = vshll.u32 %v1114, 16
    %v1251 = vrot.slane %v1249, 5
    %v1252 = vor.u32 %v1248, %v1251
    %v1253 = vrot.slane %v1252, 4
    %v1255 = vshll.u32 %v1115, 16
    %v1257 = vrot.slane %v1255, 5
    %v1258 = vsel %vm1132, %v1253, %v1257
    %v1260 = vshrl.u32 %v1116, 16
    %v1262 = vrot.slane %v1260, 4
    %v1263 = vshll.u32 %v1116, 16
    %v1265 = vrot.slane %v1263, 5
    %v1266 = vor.u32 %v1262, %v1265
    %v1267 = vrot.slane %v1266, 4
    %v1269 = vshll.u32 %v1117, 16
    %v1271 = vrot.slane %v1269, 5
    %v1272 = vsel %vm1132, %v1267, %v1271
    %v1274 = vshrl.u32 %v1118, 16
    %v1276 = vrot.slane %v1274, 4
    %v1277 = vshll.u32 %v1118, 16
    %v1279 = vrot.slane %v1277, 5
    %v1280 = vor.u32 %v1276, %v1279
    %v1281 = vrot.slane %v1280, 4
    %v1283 = vshll.u32 %v1119, 16
    %v1285 = vrot.slane %v1283, 5
    %v1286 = vsel %vm1132, %v1281, %v1285
    %v1288 = vshrl.u32 %v1120, 16
    %v1290 = vrot.slane %v1288, 4
    %v1291 = vshll.u32 %v1120, 16
    %v1293 = vrot.slane %v1291, 5
    %v1294 = vor.u32 %v1290, %v1293
    %v1295 = vrot.slane %v1294, 4
    %v1297 = vshll.u32 %v1121, 16
    %v1299 = vrot.slane %v1297, 5
    %v1300 = vsel %vm1132, %v1295, %v1299
    %v1302 = vshrl.u32 %v1122, 16
    %v1304 = vrot.slane %v1302, 4
    %v1305 = vshll.u32 %v1122, 16
    %v1307 = vrot.slane %v1305, 5
    %v1308 = vor.u32 %v1304, %v1307
    %v1309 = vrot.slane %v1308, 4
    %v1311 = vshll.u32 %v1123, 16
    %v1313 = vrot.slane %v1311, 5
    %v1314 = vsel %vm1132, %v1309, %v1313
    %v1316 = vshrl.u32 %v1124, 16
    %v1318 = vrot.slane %v1316, 4
    %v1319 = vshll.u32 %v1124, 16
    %v1321 = vrot.slane %v1319, 5
    %v1322 = vor.u32 %v1318, %v1321
    %v1323 = vrot.slane %v1322, 4
    %v1325 = vshll.u32 %v1125, 16
    %v1327 = vrot.slane %v1325, 5
    %v1328 = vsel %vm1132, %v1323, %v1327
    %v1330 = vshrl.u32 %v1126, 16
    %v1332 = vrot.slane %v1330, 4
    %v1333 = vshll.u32 %v1126, 16
    %v1335 = vrot.slane %v1333, 5
    %v1336 = vor.u32 %v1332, %v1335
    %v1337 = vrot.slane %v1336, 4
    %v1339 = vshll.u32 %v1127, 16
    %v1341 = vrot.slane %v1339, 5
    %v1342 = vsel %vm1132, %v1337, %v1341
    %v1344 = vshrl.u32 %v1128, 16
    %v1346 = vrot.slane %v1344, 4
    %v1347 = vshll.u32 %v1128, 16
    %v1349 = vrot.slane %v1347, 5
    %v1350 = vor.u32 %v1346, %v1349
    %v1351 = vrot.slane %v1350, 4
    %v1353 = vshll.u32 %v1129, 16
    %v1355 = vrot.slane %v1353, 5
    %v1356 = vsel %vm1132, %v1351, %v1355
    %s1357 = scalar_lea.vmem [#allocation7], 256
    %v1358 = vld [vmem:[%s1357] sm:$0xff]
    %v1359 = vld [vmem:[%s1357 + $0x8] sm:$0xff]
    %v1360 = vld [vmem:[%s1357 + $0x10] sm:$0xff]
    %v1361 = vld [vmem:[%s1357 + $0x18] sm:$0xff]
    %v1362 = vld [vmem:[%s1357 + $0x20] sm:$0xff]
    %v1363 = vld [vmem:[%s1357 + $0x28] sm:$0xff]
    %v1364 = vld [vmem:[%s1357 + $0x30] sm:$0xff]
    %v1365 = vld [vmem:[%s1357 + $0x38] sm:$0xff]
    %v1366 = vld [vmem:[%s1357 + $0x40] sm:$0xff]
    %v1367 = vld [vmem:[%s1357 + $0x48] sm:$0xff]
    %v1368 = vld [vmem:[%s1357 + $0x50] sm:$0xff]
    %v1369 = vld [vmem:[%s1357 + $0x58] sm:$0xff]
    %v1370 = vld [vmem:[%s1357 + $0x60] sm:$0xff]
    %v1371 = vld [vmem:[%s1357 + $0x68] sm:$0xff]
    %v1372 = vld [vmem:[%s1357 + $0x70] sm:$0xff]
    %v1373 = vld [vmem:[%s1357 + $0x78] sm:$0xff]
    %v1374 = vld [vmem:[%s1357 + $0x80] sm:$0xff]
    %v1375 = vld [vmem:[%s1357 + $0x88] sm:$0xff]
    %v1376 = vld [vmem:[%s1357 + $0x90] sm:$0xff]
    %v1377 = vld [vmem:[%s1357 + $0x98] sm:$0xff]
    %v1378 = vld [vmem:[%s1357 + $0xa0] sm:$0xff]
    %v1379 = vld [vmem:[%s1357 + $0xa8] sm:$0xff]
    %v1380 = vld [vmem:[%s1357 + $0xb0] sm:$0xff]
    %v1381 = vld [vmem:[%s1357 + $0xb8] sm:$0xff]
    %v1382 = vld [vmem:[%s1357 + $0xc0] sm:$0xff]
    %v1383 = vld [vmem:[%s1357 + $0xc8] sm:$0xff]
    %v1384 = vld [vmem:[%s1357 + $0xd0] sm:$0xff]
    %v1385 = vld [vmem:[%s1357 + $0xd8] sm:$0xff]
    %v1386 = vld [vmem:[%s1357 + $0xe0] sm:$0xff]
    %v1387 = vld [vmem:[%s1357 + $0xe8] sm:$0xff]
    %v1388 = vld [vmem:[%s1357 + $0xf0] sm:$0xff]
    %v1389 = vld [vmem:[%s1357 + $0xf8] sm:$0xff]
    %v1390 = vunpack.c.l.b16 %v1146
    %v1391 = vunpack.c.h.b16 %v1146
    %v1392 = vunpack.c.l.b16 %v1160
    %v1393 = vunpack.c.h.b16 %v1160
    %v1394 = vunpack.c.l.b16 %v1174
    %v1395 = vunpack.c.h.b16 %v1174
    %v1396 = vunpack.c.l.b16 %v1188
    %v1397 = vunpack.c.h.b16 %v1188
    %v1398 = vunpack.c.l.b16 %v1202
    %v1399 = vunpack.c.h.b16 %v1202
    %v1400 = vunpack.c.l.b16 %v1216
    %v1401 = vunpack.c.h.b16 %v1216
    %v1402 = vunpack.c.l.b16 %v1230
    %v1403 = vunpack.c.h.b16 %v1230
    %v1404 = vunpack.c.l.b16 %v1244
    %v1405 = vunpack.c.h.b16 %v1244
    %v1406 = vunpack.c.l.b16 %v1258
    %v1407 = vunpack.c.h.b16 %v1258
    %v1408 = vunpack.c.l.b16 %v1272
    %v1409 = vunpack.c.h.b16 %v1272
    %v1410 = vunpack.c.l.b16 %v1286
    %v1411 = vunpack.c.h.b16 %v1286
    %v1412 = vunpack.c.l.b16 %v1300
    %v1413 = vunpack.c.h.b16 %v1300
    %v1414 = vunpack.c.l.b16 %v1314
    %v1415 = vunpack.c.h.b16 %v1314
    %v1416 = vunpack.c.l.b16 %v1328
    %v1417 = vunpack.c.h.b16 %v1328
    %v1418 = vunpack.c.l.b16 %v1342
    %v1419 = vunpack.c.h.b16 %v1342
    %v1420 = vunpack.c.l.b16 %v1356
    %v1421 = vunpack.c.h.b16 %v1356
    %v1422 = vpack.c.b16 %v1392, %v1390
    %v1423 = vpack.c.b16 %v1393, %v1391
    %v1424 = vpack.c.b16 %v1396, %v1394
    %v1425 = vpack.c.b16 %v1397, %v1395
    %v1426 = vpack.c.b16 %v1400, %v1398
    %v1427 = vpack.c.b16 %v1401, %v1399
    %v1428 = vpack.c.b16 %v1404, %v1402
    %v1429 = vpack.c.b16 %v1405, %v1403
    %v1430 = vpack.c.b16 %v1408, %v1406
    %v1431 = vpack.c.b16 %v1409, %v1407
    %v1432 = vpack.c.b16 %v1412, %v1410
    %v1433 = vpack.c.b16 %v1413, %v1411
    %v1434 = vpack.c.b16 %v1416, %v1414
    %v1435 = vpack.c.b16 %v1417, %v1415
    %v1436 = vpack.c.b16 %v1420, %v1418
    %v1437 = vpack.c.b16 %v1421, %v1419
    %v1486 = vunpack.c.l.b16 %v1358
    %v1487 = vunpack.c.h.b16 %v1358
    %v1488 = vunpack.c.l.b16 %v1359
    %v1489 = vunpack.c.h.b16 %v1359
    %v1490 = vunpack.c.l.b16 %v1360
    %v1491 = vunpack.c.h.b16 %v1360
    %v1492 = vunpack.c.l.b16 %v1361
    %v1493 = vunpack.c.h.b16 %v1361
    %v1494 = vunpack.c.l.b16 %v1362
    %v1495 = vunpack.c.h.b16 %v1362
    %v1496 = vunpack.c.l.b16 %v1363
    %v1497 = vunpack.c.h.b16 %v1363
    %v1498 = vunpack.c.l.b16 %v1364
    %v1499 = vunpack.c.h.b16 %v1364
    %v1500 = vunpack.c.l.b16 %v1365
    %v1501 = vunpack.c.h.b16 %v1365
    %v1502 = vunpack.c.l.b16 %v1366
    %v1503 = vunpack.c.h.b16 %v1366
    %v1504 = vunpack.c.l.b16 %v1367
    %v1505 = vunpack.c.h.b16 %v1367
    %v1506 = vunpack.c.l.b16 %v1368
    %v1507 = vunpack.c.h.b16 %v1368
    %v1508 = vunpack.c.l.b16 %v1369
    %v1509 = vunpack.c.h.b16 %v1369
    %v1510 = vunpack.c.l.b16 %v1370
    %v1511 = vunpack.c.h.b16 %v1370
    %v1512 = vunpack.c.l.b16 %v1371
    %v1513 = vunpack.c.h.b16 %v1371
    %v1514 = vunpack.c.l.b16 %v1372
    %v1515 = vunpack.c.h.b16 %v1372
    %v1516 = vunpack.c.l.b16 %v1373
    %v1517 = vunpack.c.h.b16 %v1373
    %v1518 = vunpack.c.l.b16 %v1374
    %v1519 = vunpack.c.h.b16 %v1374
    %v1520 = vunpack.c.l.b16 %v1375
    %v1521 = vunpack.c.h.b16 %v1375
    %v1522 = vunpack.c.l.b16 %v1376
    %v1523 = vunpack.c.h.b16 %v1376
    %v1524 = vunpack.c.l.b16 %v1377
    %v1525 = vunpack.c.h.b16 %v1377
    %v1526 = vunpack.c.l.b16 %v1378
    %v1527 = vunpack.c.h.b16 %v1378
    %v1528 = vunpack.c.l.b16 %v1379
    %v1529 = vunpack.c.h.b16 %v1379
    %v1530 = vunpack.c.l.b16 %v1380
    %v1531 = vunpack.c.h.b16 %v1380
    %v1532 = vunpack.c.l.b16 %v1381
    %v1533 = vunpack.c.h.b16 %v1381
    %v1534 = vunpack.c.l.b16 %v1382
    %v1535 = vunpack.c.h.b16 %v1382
    %v1536 = vunpack.c.l.b16 %v1383
    %v1537 = vunpack.c.h.b16 %v1383
    %v1538 = vunpack.c.l.b16 %v1384
    %v1539 = vunpack.c.h.b16 %v1384
    %v1540 = vunpack.c.l.b16 %v1385
    %v1541 = vunpack.c.h.b16 %v1385
    %v1542 = vunpack.c.l.b16 %v1386
    %v1543 = vunpack.c.h.b16 %v1386
    %v1544 = vunpack.c.l.b16 %v1387
    %v1545 = vunpack.c.h.b16 %v1387
    %v1546 = vunpack.c.l.b16 %v1388
    %v1547 = vunpack.c.h.b16 %v1388
    %v1548 = vunpack.c.l.b16 %v1389
    %v1549 = vunpack.c.h.b16 %v1389
    %v1550 = vpack.c.b16 %v1488, %v1486
    %v1551 = vpack.c.b16 %v1489, %v1487
    %v1552 = vpack.c.b16 %v1492, %v1490
    %v1553 = vpack.c.b16 %v1493, %v1491
    %v1554 = vpack.c.b16 %v1496, %v1494
    %v1555 = vpack.c.b16 %v1497, %v1495
    %v1556 = vpack.c.b16 %v1500, %v1498
    %v1557 = vpack.c.b16 %v1501, %v1499
    %v1558 = vpack.c.b16 %v1504, %v1502
    %v1559 = vpack.c.b16 %v1505, %v1503
    %v1560 = vpack.c.b16 %v1508, %v1506
    %v1561 = vpack.c.b16 %v1509, %v1507
    %v1562 = vpack.c.b16 %v1512, %v1510
    %v1563 = vpack.c.b16 %v1513, %v1511
    %v1564 = vpack.c.b16 %v1516, %v1514
    %v1565 = vpack.c.b16 %v1517, %v1515
    %v1566 = vpack.c.b16 %v1520, %v1518
    %v1567 = vpack.c.b16 %v1521, %v1519
    %v1568 = vpack.c.b16 %v1524, %v1522
    %v1569 = vpack.c.b16 %v1525, %v1523
    %v1570 = vpack.c.b16 %v1528, %v1526
    %v1571 = vpack.c.b16 %v1529, %v1527
    %v1572 = vpack.c.b16 %v1532, %v1530
    %v1573 = vpack.c.b16 %v1533, %v1531
    %v1574 = vpack.c.b16 %v1536, %v1534
    %v1575 = vpack.c.b16 %v1537, %v1535
    %v1576 = vpack.c.b16 %v1540, %v1538
    %v1577 = vpack.c.b16 %v1541, %v1539
    %v1578 = vpack.c.b16 %v1544, %v1542
    %v1579 = vpack.c.b16 %v1545, %v1543
    %v1580 = vpack.c.b16 %v1548, %v1546
    %v1581 = vpack.c.b16 %v1549, %v1547
    %1614 = vmatprep.subr.bf16.mxu0 %v1565
    %1615 = vmatpush1.bf16.msra.mxu0 %v1564
    %1616 = vmatprep.subr.bf16.mxu0 %v1563
    %1617 = vmatpush1.bf16.msra.mxu0 %v1562
    %1618 = vmatprep.subr.bf16.mxu0 %v1561
    %1619 = vmatpush1.bf16.msra.mxu0 %v1560
    %1620 = vmatprep.subr.bf16.mxu0 %v1559
    %1621 = vmatpush1.bf16.msra.mxu0 %v1558
    %1622 = vmatprep.subr.bf16.mxu0 %v1557
    %1623 = vmatpush1.bf16.msra.mxu0 %v1556
    %1624 = vmatprep.subr.bf16.mxu0 %v1555
    %1625 = vmatpush1.bf16.msra.mxu0 %v1554
    %1626 = vmatprep.subr.bf16.mxu0 %v1553
    %1627 = vmatpush1.bf16.msra.mxu0 %v1552
    %1628 = vmatprep.subr.bf16.mxu0 %v1551
    %1629 = vmatpush1.bf16.msra.mxu0 %v1550
    %1630 = vmatprep.subr.bf16.mxu0 %v1581
    %1631 = vmatpush2.bf16.msra.mxu0 %v1580
    %1632 = vmatprep.subr.bf16.mxu0 %v1579
    %1633 = vmatpush2.bf16.msra.mxu0 %v1578
    %1634 = vmatprep.subr.bf16.mxu0 %v1577
    %1635 = vmatpush2.bf16.msra.mxu0 %v1576
    %1636 = vmatprep.subr.bf16.mxu0 %v1575
    %1637 = vmatpush2.bf16.msra.mxu0 %v1574
    %1638 = vmatprep.subr.bf16.mxu0 %v1573
    %1639 = vmatpush2.bf16.msra.mxu0 %v1572
    %1640 = vmatprep.subr.bf16.mxu0 %v1571
    %1641 = vmatpush2.bf16.msra.mxu0 %v1570
    %1642 = vmatprep.subr.bf16.mxu0 %v1569
    %1643 = vmatpush2.bf16.msra.mxu0 %v1568
    %1644 = vmatprep.subr.bf16.mxu0 %v1567
    %1645 = vmatpush2.bf16.msra.mxu0 %v1566
    %1646 = vmatprep.mubr.bf16.mxu0 %v1423
    %1647 = vmatmul.mubr.bf16.gmra.mxu0 %v1422
    %v1648 = vpop.f32.mrf.mxu0
    %v1649 = vadd.f32 0.0, %v1648
    %v1650 = vpop.f32.mrf.mxu0
    %v1651 = vadd.f32 0.0, %v1650
    %v1652 = vpop.f32.mrf.mxu0
    %v1653 = vadd.f32 0.0, %v1652
    %v1654 = vpop.f32.mrf.mxu0
    %v1655 = vadd.f32 0.0, %v1654
    %1656 = vmatprep.mubr.bf16.mxu0 %v1425
    %1657 = vmatmul.mubr.bf16.gmra.mxu0 %v1424
    %v1658 = vpop.f32.mrf.mxu0
    %v1659 = vadd.f32 0.0, %v1658
    %v1660 = vpop.f32.mrf.mxu0
    %v1661 = vadd.f32 0.0, %v1660
    %v1662 = vpop.f32.mrf.mxu0
    %v1663 = vadd.f32 0.0, %v1662
    %v1664 = vpop.f32.mrf.mxu0
    %v1665 = vadd.f32 0.0, %v1664
    %1666 = vmatprep.mubr.bf16.mxu0 %v1427
    %1667 = vmatmul.mubr.bf16.gmra.mxu0 %v1426
    %v1668 = vpop.f32.mrf.mxu0
    %v1669 = vadd.f32 0.0, %v1668
    %v1670 = vpop.f32.mrf.mxu0
    %v1671 = vadd.f32 0.0, %v1670
    %v1672 = vpop.f32.mrf.mxu0
    %v1673 = vadd.f32 0.0, %v1672
    %v1674 = vpop.f32.mrf.mxu0
    %v1675 = vadd.f32 0.0, %v1674
    %1676 = vmatprep.mubr.bf16.mxu0 %v1429
    %1677 = vmatmul.mubr.bf16.gmra.mxu0 %v1428
    %v1678 = vpop.f32.mrf.mxu0
    %v1679 = vadd.f32 0.0, %v1678
    %v1680 = vpop.f32.mrf.mxu0
    %v1681 = vadd.f32 0.0, %v1680
    %v1682 = vpop.f32.mrf.mxu0
    %v1683 = vadd.f32 0.0, %v1682
    %v1684 = vpop.f32.mrf.mxu0
    %v1685 = vadd.f32 0.0, %v1684
    %1686 = vmatprep.mubr.bf16.mxu0 %v1431
    %1687 = vmatmul.mubr.bf16.gmra.mxu0 %v1430
    %v1688 = vpop.f32.mrf.mxu0
    %v1689 = vadd.f32 0.0, %v1688
    %v1690 = vpop.f32.mrf.mxu0
    %v1691 = vadd.f32 0.0, %v1690
    %v1692 = vpop.f32.mrf.mxu0
    %v1693 = vadd.f32 0.0, %v1692
    %v1694 = vpop.f32.mrf.mxu0
    %v1695 = vadd.f32 0.0, %v1694
    %1696 = vmatprep.mubr.bf16.mxu0 %v1433
    %1697 = vmatmul.mubr.bf16.gmra.mxu0 %v1432
    %v1698 = vpop.f32.mrf.mxu0
    %v1699 = vadd.f32 0.0, %v1698
    %v1700 = vpop.f32.mrf.mxu0
    %v1701 = vadd.f32 0.0, %v1700
    %v1702 = vpop.f32.mrf.mxu0
    %v1703 = vadd.f32 0.0, %v1702
    %v1704 = vpop.f32.mrf.mxu0
    %v1705 = vadd.f32 0.0, %v1704
    %1706 = vmatprep.mubr.bf16.mxu0 %v1435
    %1707 = vmatmul.mubr.bf16.gmra.mxu0 %v1434
    %v1708 = vpop.f32.mrf.mxu0
    %v1709 = vadd.f32 0.0, %v1708
    %v1710 = vpop.f32.mrf.mxu0
    %v1711 = vadd.f32 0.0, %v1710
    %v1712 = vpop.f32.mrf.mxu0
    %v1713 = vadd.f32 0.0, %v1712
    %v1714 = vpop.f32.mrf.mxu0
    %v1715 = vadd.f32 0.0, %v1714
    %1716 = vmatprep.mubr.bf16.mxu0 %v1437
    %1717 = vmatmul.mubr.bf16.gmra.mxu0 %v1436
    %v1718 = vpop.f32.mrf.mxu0
    %v1719 = vadd.f32 0.0, %v1718
    %v1720 = vpop.f32.mrf.mxu0
    %v1721 = vadd.f32 0.0, %v1720
    %v1722 = vpop.f32.mrf.mxu0
    %v1723 = vadd.f32 0.0, %v1722
    %v1724 = vpop.f32.mrf.mxu0
    %v1725 = vadd.f32 0.0, %v1724
    %1726 = vdwg.mxu0
    %v1727 = vld [vmem:[#allocation3] sm:$0xff]
    %v1728 = vld [vmem:[#allocation3 + $0x8] sm:$0xff]
    %v1729 = vld [vmem:[#allocation3 + $0x10] sm:$0xff]
    %v1730 = vld [vmem:[#allocation3 + $0x18] sm:$0xff]
    %v1731 = vld [vmem:[#allocation3 + $0x20] sm:$0xff]
    %v1732 = vld [vmem:[#allocation3 + $0x28] sm:$0xff]
    %v1733 = vld [vmem:[#allocation3 + $0x30] sm:$0xff]
    %v1734 = vld [vmem:[#allocation3 + $0x38] sm:$0xff]
    %v1735 = vld [vmem:[#allocation3 + $0x40] sm:$0xff]
    %v1736 = vld [vmem:[#allocation3 + $0x48] sm:$0xff]
    %v1737 = vld [vmem:[#allocation3 + $0x50] sm:$0xff]
    %v1738 = vld [vmem:[#allocation3 + $0x58] sm:$0xff]
    %v1739 = vld [vmem:[#allocation3 + $0x60] sm:$0xff]
    %v1740 = vld [vmem:[#allocation3 + $0x68] sm:$0xff]
    %v1741 = vld [vmem:[#allocation3 + $0x70] sm:$0xff]
    %v1742 = vld [vmem:[#allocation3 + $0x78] sm:$0xff]
    %v1743 = vld [vmem:[#allocation3 + $0x80] sm:$0xff]
    %v1744 = vld [vmem:[#allocation3 + $0x88] sm:$0xff]
    %v1745 = vld [vmem:[#allocation3 + $0x90] sm:$0xff]
    %v1746 = vld [vmem:[#allocation3 + $0x98] sm:$0xff]
    %v1747 = vld [vmem:[#allocation3 + $0xa0] sm:$0xff]
    %v1748 = vld [vmem:[#allocation3 + $0xa8] sm:$0xff]
    %v1749 = vld [vmem:[#allocation3 + $0xb0] sm:$0xff]
    %v1750 = vld [vmem:[#allocation3 + $0xb8] sm:$0xff]
    %v1751 = vld [vmem:[#allocation3 + $0xc0] sm:$0xff]
    %v1752 = vld [vmem:[#allocation3 + $0xc8] sm:$0xff]
    %v1753 = vld [vmem:[#allocation3 + $0xd0] sm:$0xff]
    %v1754 = vld [vmem:[#allocation3 + $0xd8] sm:$0xff]
    %v1755 = vld [vmem:[#allocation3 + $0xe0] sm:$0xff]
    %v1756 = vld [vmem:[#allocation3 + $0xe8] sm:$0xff]
    %v1757 = vld [vmem:[#allocation3 + $0xf0] sm:$0xff]
    %v1758 = vld [vmem:[#allocation3 + $0xf8] sm:$0xff]
    %v1759 = vadd.f32 %v1727, %v1649
    %v1760 = vadd.f32 %v1728, %v1651
    %v1761 = vadd.f32 %v1729, %v1653
    %v1762 = vadd.f32 %v1730, %v1655
    %v1763 = vadd.f32 %v1731, %v1659
    %v1764 = vadd.f32 %v1732, %v1661
    %v1765 = vadd.f32 %v1733, %v1663
    %v1766 = vadd.f32 %v1734, %v1665
    %v1767 = vadd.f32 %v1735, %v1669
    %v1768 = vadd.f32 %v1736, %v1671
    %v1769 = vadd.f32 %v1737, %v1673
    %v1770 = vadd.f32 %v1738, %v1675
    %v1771 = vadd.f32 %v1739, %v1679
    %v1772 = vadd.f32 %v1740, %v1681
    %v1773 = vadd.f32 %v1741, %v1683
    %v1774 = vadd.f32 %v1742, %v1685
    %v1775 = vadd.f32 %v1743, %v1689
    %v1776 = vadd.f32 %v1744, %v1691
    %v1777 = vadd.f32 %v1745, %v1693
    %v1778 = vadd.f32 %v1746, %v1695
    %v1779 = vadd.f32 %v1747, %v1699
    %v1780 = vadd.f32 %v1748, %v1701
    %v1781 = vadd.f32 %v1749, %v1703
    %v1782 = vadd.f32 %v1750, %v1705
    %v1783 = vadd.f32 %v1751, %v1709
    %v1784 = vadd.f32 %v1752, %v1711
    %v1785 = vadd.f32 %v1753, %v1713
    %v1786 = vadd.f32 %v1754, %v1715
    %v1787 = vadd.f32 %v1755, %v1719
    %v1788 = vadd.f32 %v1756, %v1721
    %v1789 = vadd.f32 %v1757, %v1723
    %v1790 = vadd.f32 %v1758, %v1725
    %1791 = vst [vmem:[#allocation3] sm:$0xff] %v1759
    %1792 = vst [vmem:[#allocation3 + $0x8] sm:$0xff] %v1760
    %1793 = vst [vmem:[#allocation3 + $0x10] sm:$0xff] %v1761
    %1794 = vst [vmem:[#allocation3 + $0x18] sm:$0xff] %v1762
    %1795 = vst [vmem:[#allocation3 + $0x20] sm:$0xff] %v1763
    %1796 = vst [vmem:[#allocation3 + $0x28] sm:$0xff] %v1764
    %1797 = vst [vmem:[#allocation3 + $0x30] sm:$0xff] %v1765
    %1798 = vst [vmem:[#allocation3 + $0x38] sm:$0xff] %v1766
    %1799 = vst [vmem:[#allocation3 + $0x40] sm:$0xff] %v1767
    %1800 = vst [vmem:[#allocation3 + $0x48] sm:$0xff] %v1768
    %1801 = vst [vmem:[#allocation3 + $0x50] sm:$0xff] %v1769
    %1802 = vst [vmem:[#allocation3 + $0x58] sm:$0xff] %v1770
    %1803 = vst [vmem:[#allocation3 + $0x60] sm:$0xff] %v1771
    %1804 = vst [vmem:[#allocation3 + $0x68] sm:$0xff] %v1772
    %1805 = vst [vmem:[#allocation3 + $0x70] sm:$0xff] %v1773
    %1806 = vst [vmem:[#allocation3 + $0x78] sm:$0xff] %v1774
    %1807 = vst [vmem:[#allocation3 + $0x80] sm:$0xff] %v1775
    %1808 = vst [vmem:[#allocation3 + $0x88] sm:$0xff] %v1776
    %1809 = vst [vmem:[#allocation3 + $0x90] sm:$0xff] %v1777
    %1810 = vst [vmem:[#allocation3 + $0x98] sm:$0xff] %v1778
    %1811 = vst [vmem:[#allocation3 + $0xa0] sm:$0xff] %v1779
    %1812 = vst [vmem:[#allocation3 + $0xa8] sm:$0xff] %v1780
    %1813 = vst [vmem:[#allocation3 + $0xb0] sm:$0xff] %v1781
    %1814 = vst [vmem:[#allocation3 + $0xb8] sm:$0xff] %v1782
    %1815 = vst [vmem:[#allocation3 + $0xc0] sm:$0xff] %v1783
    %1816 = vst [vmem:[#allocation3 + $0xc8] sm:$0xff] %v1784
    %1817 = vst [vmem:[#allocation3 + $0xd0] sm:$0xff] %v1785
    %1818 = vst [vmem:[#allocation3 + $0xd8] sm:$0xff] %v1786
    %1819 = vst [vmem:[#allocation3 + $0xe0] sm:$0xff] %v1787
    %1820 = vst [vmem:[#allocation3 + $0xe8] sm:$0xff] %v1788
    %1821 = vst [vmem:[#allocation3 + $0xf0] sm:$0xff] %v1789
    %1822 = vst [vmem:[#allocation3 + $0xf8] sm:$0xff] %v1790
    %v1823 = vld [vmem:[#allocation2] sm:$0xee]
    %v1824 = vld [vmem:[#allocation2 + $0x8] sm:$0x11]
    %v1825 = vld [vmem:[#allocation2 + $0x10] sm:$0xee]
    %v1826 = vld [vmem:[#allocation2 + $0x18] sm:$0x11]
    %v1827 = vld [vmem:[#allocation2 + $0x20] sm:$0xee]
    %v1828 = vld [vmem:[#allocation2 + $0x28] sm:$0x11]
    %v1829 = vld [vmem:[#allocation2 + $0x30] sm:$0xee]
    %v1830 = vld [vmem:[#allocation2 + $0x38] sm:$0x11]
    %v1831 = vld [vmem:[#allocation2 + $0x40] sm:$0xee]
    %v1832 = vld [vmem:[#allocation2 + $0x48] sm:$0x11]
    %v1833 = vld [vmem:[#allocation2 + $0x50] sm:$0xee]
    %v1834 = vld [vmem:[#allocation2 + $0x58] sm:$0x11]
    %v1835 = vld [vmem:[#allocation2 + $0x60] sm:$0xee]
    %v1836 = vld [vmem:[#allocation2 + $0x68] sm:$0x11]
    %v1837 = vld [vmem:[#allocation2 + $0x70] sm:$0xee]
    %v1838 = vld [vmem:[#allocation2 + $0x78] sm:$0x11]
    %v1839 = vld [vmem:[#allocation2 + $0xa0] sm:$0xee]
    %v1840 = vld [vmem:[#allocation2 + $0xa8] sm:$0x11]
    %v1841 = vld [vmem:[#allocation2 + $0xb0] sm:$0xee]
    %v1842 = vld [vmem:[#allocation2 + $0xb8] sm:$0x11]
    %v1843 = vld [vmem:[#allocation2 + $0xc0] sm:$0xee]
    %v1844 = vld [vmem:[#allocation2 + $0xc8] sm:$0x11]
    %v1845 = vld [vmem:[#allocation2 + $0xd0] sm:$0xee]
    %v1846 = vld [vmem:[#allocation2 + $0xd8] sm:$0x11]
    %v1847 = vld [vmem:[#allocation2 + $0xe0] sm:$0xee]
    %v1848 = vld [vmem:[#allocation2 + $0xe8] sm:$0x11]
    %v1849 = vld [vmem:[#allocation2 + $0xf0] sm:$0xee]
    %v1850 = vld [vmem:[#allocation2 + $0xf8] sm:$0x11]
    %v1851 = vld [vmem:[#allocation2 + $0x100] sm:$0xee]
    %v1852 = vld [vmem:[#allocation2 + $0x108] sm:$0x11]
    %v1853 = vld [vmem:[#allocation2 + $0x110] sm:$0xee]
    %v1854 = vld [vmem:[#allocation2 + $0x118] sm:$0x11]
    %vm1887 = vcmask 1042432
    %vm1888 = vcmask 1046532
    %vm1889 = vmor %vm1887, %vm1888
    %v1890 = vrot.slane %v1823, 5
    %v1891 = vrot.slane %v1890, 4
    %v1892 = vrot.slane %v1824, 5
    %v1893 = vsel %vm1889, %v1891, %v1892
    %v1894 = vrot.slane %v1825, 5
    %v1895 = vrot.slane %v1894, 4
    %v1896 = vrot.slane %v1826, 5
    %v1897 = vsel %vm1889, %v1895, %v1896
    %v1898 = vrot.slane %v1827, 5
    %v1899 = vrot.slane %v1898, 4
    %v1900 = vrot.slane %v1828, 5
    %v1901 = vsel %vm1889, %v1899, %v1900
    %v1902 = vrot.slane %v1829, 5
    %v1903 = vrot.slane %v1902, 4
    %v1904 = vrot.slane %v1830, 5
    %v1905 = vsel %vm1889, %v1903, %v1904
    %v1906 = vrot.slane %v1831, 5
    %v1907 = vrot.slane %v1906, 4
    %v1908 = vrot.slane %v1832, 5
    %v1909 = vsel %vm1889, %v1907, %v1908
    %v1910 = vrot.slane %v1833, 5
    %v1911 = vrot.slane %v1910, 4
    %v1912 = vrot.slane %v1834, 5
    %v1913 = vsel %vm1889, %v1911, %v1912
    %v1914 = vrot.slane %v1835, 5
    %v1915 = vrot.slane %v1914, 4
    %v1916 = vrot.slane %v1836, 5
    %v1917 = vsel %vm1889, %v1915, %v1916
    %v1918 = vrot.slane %v1837, 5
    %v1919 = vrot.slane %v1918, 4
    %v1920 = vrot.slane %v1838, 5
    %v1921 = vsel %vm1889, %v1919, %v1920
    %v1922 = vrot.slane %v1839, 5
    %v1923 = vrot.slane %v1922, 4
    %v1924 = vrot.slane %v1840, 5
    %v1925 = vsel %vm1889, %v1923, %v1924
    %v1926 = vrot.slane %v1841, 5
    %v1927 = vrot.slane %v1926, 4
    %v1928 = vrot.slane %v1842, 5
    %v1929 = vsel %vm1889, %v1927, %v1928
    %v1930 = vrot.slane %v1843, 5
    %v1931 = vrot.slane %v1930, 4
    %v1932 = vrot.slane %v1844, 5
    %v1933 = vsel %vm1889, %v1931, %v1932
    %v1934 = vrot.slane %v1845, 5
    %v1935 = vrot.slane %v1934, 4
    %v1936 = vrot.slane %v1846, 5
    %v1937 = vsel %vm1889, %v1935, %v1936
    %v1938 = vrot.slane %v1847, 5
    %v1939 = vrot.slane %v1938, 4
    %v1940 = vrot.slane %v1848, 5
    %v1941 = vsel %vm1889, %v1939, %v1940
    %v1942 = vrot.slane %v1849, 5
    %v1943 = vrot.slane %v1942, 4
    %v1944 = vrot.slane %v1850, 5
    %v1945 = vsel %vm1889, %v1943, %v1944
    %v1946 = vrot.slane %v1851, 5
    %v1947 = vrot.slane %v1946, 4
    %v1948 = vrot.slane %v1852, 5
    %v1949 = vsel %vm1889, %v1947, %v1948
    %v1950 = vrot.slane %v1853, 5
    %v1951 = vrot.slane %v1950, 4
    %v1952 = vrot.slane %v1854, 5
    %v1953 = vsel %vm1889, %v1951, %v1952
    %s1954 = scalar_lea.vmem [#allocation7], 512
    %v1955 = vld [vmem:[%s1954] sm:$0xff]
    %v1956 = vld [vmem:[%s1954 + $0x8] sm:$0xff]
    %v1957 = vld [vmem:[%s1954 + $0x10] sm:$0xff]
    %v1958 = vld [vmem:[%s1954 + $0x18] sm:$0xff]
    %v1959 = vld [vmem:[%s1954 + $0x20] sm:$0xff]
    %v1960 = vld [vmem:[%s1954 + $0x28] sm:$0xff]
    %v1961 = vld [vmem:[%s1954 + $0x30] sm:$0xff]
    %v1962 = vld [vmem:[%s1954 + $0x38] sm:$0xff]
    %v1963 = vld [vmem:[%s1954 + $0x40] sm:$0xff]
    %v1964 = vld [vmem:[%s1954 + $0x48] sm:$0xff]
    %v1965 = vld [vmem:[%s1954 + $0x50] sm:$0xff]
    %v1966 = vld [vmem:[%s1954 + $0x58] sm:$0xff]
    %v1967 = vld [vmem:[%s1954 + $0x60] sm:$0xff]
    %v1968 = vld [vmem:[%s1954 + $0x68] sm:$0xff]
    %v1969 = vld [vmem:[%s1954 + $0x70] sm:$0xff]
    %v1970 = vld [vmem:[%s1954 + $0x78] sm:$0xff]
    %v1971 = vld [vmem:[%s1954 + $0x80] sm:$0xff]
    %v1972 = vld [vmem:[%s1954 + $0x88] sm:$0xff]
    %v1973 = vld [vmem:[%s1954 + $0x90] sm:$0xff]
    %v1974 = vld [vmem:[%s1954 + $0x98] sm:$0xff]
    %v1975 = vld [vmem:[%s1954 + $0xa0] sm:$0xff]
    %v1976 = vld [vmem:[%s1954 + $0xa8] sm:$0xff]
    %v1977 = vld [vmem:[%s1954 + $0xb0] sm:$0xff]
    %v1978 = vld [vmem:[%s1954 + $0xb8] sm:$0xff]
    %v1979 = vld [vmem:[%s1954 + $0xc0] sm:$0xff]
    %v1980 = vld [vmem:[%s1954 + $0xc8] sm:$0xff]
    %v1981 = vld [vmem:[%s1954 + $0xd0] sm:$0xff]
    %v1982 = vld [vmem:[%s1954 + $0xd8] sm:$0xff]
    %v1983 = vld [vmem:[%s1954 + $0xe0] sm:$0xff]
    %v1984 = vld [vmem:[%s1954 + $0xe8] sm:$0xff]
    %v1985 = vld [vmem:[%s1954 + $0xf0] sm:$0xff]
    %v1986 = vld [vmem:[%s1954 + $0xf8] sm:$0xff]
    %v1987 = vunpack.c.l.b16 %v1893
    %v1988 = vunpack.c.h.b16 %v1893
    %v1989 = vunpack.c.l.b16 %v1897
    %v1990 = vunpack.c.h.b16 %v1897
    %v1991 = vunpack.c.l.b16 %v1901
    %v1992 = vunpack.c.h.b16 %v1901
    %v1993 = vunpack.c.l.b16 %v1905
    %v1994 = vunpack.c.h.b16 %v1905
    %v1995 = vunpack.c.l.b16 %v1909
    %v1996 = vunpack.c.h.b16 %v1909
    %v1997 = vunpack.c.l.b16 %v1913
    %v1998 = vunpack.c.h.b16 %v1913
    %v1999 = vunpack.c.l.b16 %v1917
    %v2000 = vunpack.c.h.b16 %v1917
    %v2001 = vunpack.c.l.b16 %v1921
    %v2002 = vunpack.c.h.b16 %v1921
    %v2003 = vunpack.c.l.b16 %v1925
    %v2004 = vunpack.c.h.b16 %v1925
    %v2005 = vunpack.c.l.b16 %v1929
    %v2006 = vunpack.c.h.b16 %v1929
    %v2007 = vunpack.c.l.b16 %v1933
    %v2008 = vunpack.c.h.b16 %v1933
    %v2009 = vunpack.c.l.b16 %v1937
    %v2010 = vunpack.c.h.b16 %v1937
    %v2011 = vunpack.c.l.b16 %v1941
    %v2012 = vunpack.c.h.b16 %v1941
    %v2013 = vunpack.c.l.b16 %v1945
    %v2014 = vunpack.c.h.b16 %v1945
    %v2015 = vunpack.c.l.b16 %v1949
    %v2016 = vunpack.c.h.b16 %v1949
    %v2017 = vunpack.c.l.b16 %v1953
    %v2018 = vunpack.c.h.b16 %v1953
    %v2019 = vpack.c.b16 %v1989, %v1987
    %v2020 = vpack.c.b16 %v1990, %v1988
    %v2021 = vpack.c.b16 %v1993, %v1991
    %v2022 = vpack.c.b16 %v1994, %v1992
    %v2023 = vpack.c.b16 %v1997, %v1995
    %v2024 = vpack.c.b16 %v1998, %v1996
    %v2025 = vpack.c.b16 %v2001, %v1999
    %v2026 = vpack.c.b16 %v2002, %v2000
    %v2027 = vpack.c.b16 %v2005, %v2003
    %v2028 = vpack.c.b16 %v2006, %v2004
    %v2029 = vpack.c.b16 %v2009, %v2007
    %v2030 = vpack.c.b16 %v2010, %v2008
    %v2031 = vpack.c.b16 %v2013, %v2011
    %v2032 = vpack.c.b16 %v2014, %v2012
    %v2033 = vpack.c.b16 %v2017, %v2015
    %v2034 = vpack.c.b16 %v2018, %v2016
    %v2083 = vunpack.c.l.b16 %v1955
    %v2084 = vunpack.c.h.b16 %v1955
    %v2085 = vunpack.c.l.b16 %v1956
    %v2086 = vunpack.c.h.b16 %v1956
    %v2087 = vunpack.c.l.b16 %v1957
    %v2088 = vunpack.c.h.b16 %v1957
    %v2089 = vunpack.c.l.b16 %v1958
    %v2090 = vunpack.c.h.b16 %v1958
    %v2091 = vunpack.c.l.b16 %v1959
    %v2092 = vunpack.c.h.b16 %v1959
    %v2093 = vunpack.c.l.b16 %v1960
    %v2094 = vunpack.c.h.b16 %v1960
    %v2095 = vunpack.c.l.b16 %v1961
    %v2096 = vunpack.c.h.b16 %v1961
    %v2097 = vunpack.c.l.b16 %v1962
    %v2098 = vunpack.c.h.b16 %v1962
    %v2099 = vunpack.c.l.b16 %v1963
    %v2100 = vunpack.c.h.b16 %v1963
    %v2101 = vunpack.c.l.b16 %v1964
    %v2102 = vunpack.c.h.b16 %v1964
    %v2103 = vunpack.c.l.b16 %v1965
    %v2104 = vunpack.c.h.b16 %v1965
    %v2105 = vunpack.c.l.b16 %v1966
    %v2106 = vunpack.c.h.b16 %v1966
    %v2107 = vunpack.c.l.b16 %v1967
    %v2108 = vunpack.c.h.b16 %v1967
    %v2109 = vunpack.c.l.b16 %v1968
    %v2110 = vunpack.c.h.b16 %v1968
    %v2111 = vunpack.c.l.b16 %v1969
    %v2112 = vunpack.c.h.b16 %v1969
    %v2113 = vunpack.c.l.b16 %v1970
    %v2114 = vunpack.c.h.b16 %v1970
    %v2115 = vunpack.c.l.b16 %v1971
    %v2116 = vunpack.c.h.b16 %v1971
    %v2117 = vunpack.c.l.b16 %v1972
    %v2118 = vunpack.c.h.b16 %v1972
    %v2119 = vunpack.c.l.b16 %v1973
    %v2120 = vunpack.c.h.b16 %v1973
    %v2121 = vunpack.c.l.b16 %v1974
    %v2122 = vunpack.c.h.b16 %v1974
    %v2123 = vunpack.c.l.b16 %v1975
    %v2124 = vunpack.c.h.b16 %v1975
    %v2125 = vunpack.c.l.b16 %v1976
    %v2126 = vunpack.c.h.b16 %v1976
    %v2127 = vunpack.c.l.b16 %v1977
    %v2128 = vunpack.c.h.b16 %v1977
    %v2129 = vunpack.c.l.b16 %v1978
    %v2130 = vunpack.c.h.b16 %v1978
    %v2131 = vunpack.c.l.b16 %v1979
    %v2132 = vunpack.c.h.b16 %v1979
    %v2133 = vunpack.c.l.b16 %v1980
    %v2134 = vunpack.c.h.b16 %v1980
    %v2135 = vunpack.c.l.b16 %v1981
    %v2136 = vunpack.c.h.b16 %v1981
    %v2137 = vunpack.c.l.b16 %v1982
    %v2138 = vunpack.c.h.b16 %v1982
    %v2139 = vunpack.c.l.b16 %v1983
    %v2140 = vunpack.c.h.b16 %v1983
    %v2141 = vunpack.c.l.b16 %v1984
    %v2142 = vunpack.c.h.b16 %v1984
    %v2143 = vunpack.c.l.b16 %v1985
    %v2144 = vunpack.c.h.b16 %v1985
    %v2145 = vunpack.c.l.b16 %v1986
    %v2146 = vunpack.c.h.b16 %v1986
    %v2147 = vpack.c.b16 %v2085, %v2083
    %v2148 = vpack.c.b16 %v2086, %v2084
    %v2149 = vpack.c.b16 %v2089, %v2087
    %v2150 = vpack.c.b16 %v2090, %v2088
    %v2151 = vpack.c.b16 %v2093, %v2091
    %v2152 = vpack.c.b16 %v2094, %v2092
    %v2153 = vpack.c.b16 %v2097, %v2095
    %v2154 = vpack.c.b16 %v2098, %v2096
    %v2155 = vpack.c.b16 %v2101, %v2099
    %v2156 = vpack.c.b16 %v2102, %v2100
    %v2157 = vpack.c.b16 %v2105, %v2103
    %v2158 = vpack.c.b16 %v2106, %v2104
    %v2159 = vpack.c.b16 %v2109, %v2107
    %v2160 = vpack.c.b16 %v2110, %v2108
    %v2161 = vpack.c.b16 %v2113, %v2111
    %v2162 = vpack.c.b16 %v2114, %v2112
    %v2163 = vpack.c.b16 %v2117, %v2115
    %v2164 = vpack.c.b16 %v2118, %v2116
    %v2165 = vpack.c.b16 %v2121, %v2119
    %v2166 = vpack.c.b16 %v2122, %v2120
    %v2167 = vpack.c.b16 %v2125, %v2123
    %v2168 = vpack.c.b16 %v2126, %v2124
    %v2169 = vpack.c.b16 %v2129, %v2127
    %v2170 = vpack.c.b16 %v2130, %v2128
    %v2171 = vpack.c.b16 %v2133, %v2131
    %v2172 = vpack.c.b16 %v2134, %v2132
    %v2173 = vpack.c.b16 %v2137, %v2135
    %v2174 = vpack.c.b16 %v2138, %v2136
    %v2175 = vpack.c.b16 %v2141, %v2139
    %v2176 = vpack.c.b16 %v2142, %v2140
    %v2177 = vpack.c.b16 %v2145, %v2143
    %v2178 = vpack.c.b16 %v2146, %v2144
    %2211 = vmatprep.subr.bf16.mxu0 %v2162
    %2212 = vmatpush1.bf16.msra.mxu0 %v2161
    %2213 = vmatprep.subr.bf16.mxu0 %v2160
    %2214 = vmatpush1.bf16.msra.mxu0 %v2159
    %2215 = vmatprep.subr.bf16.mxu0 %v2158
    %2216 = vmatpush1.bf16.msra.mxu0 %v2157
    %2217 = vmatprep.subr.bf16.mxu0 %v2156
    %2218 = vmatpush1.bf16.msra.mxu0 %v2155
    %2219 = vmatprep.subr.bf16.mxu0 %v2154
    %2220 = vmatpush1.bf16.msra.mxu0 %v2153
    %2221 = vmatprep.subr.bf16.mxu0 %v2152
    %2222 = vmatpush1.bf16.msra.mxu0 %v2151
    %2223 = vmatprep.subr.bf16.mxu0 %v2150
    %2224 = vmatpush1.bf16.msra.mxu0 %v2149
    %2225 = vmatprep.subr.bf16.mxu0 %v2148
    %2226 = vmatpush1.bf16.msra.mxu0 %v2147
    %2227 = vmatprep.subr.bf16.mxu0 %v2178
    %2228 = vmatpush2.bf16.msra.mxu0 %v2177
    %2229 = vmatprep.subr.bf16.mxu0 %v2176
    %2230 = vmatpush2.bf16.msra.mxu0 %v2175
    %2231 = vmatprep.subr.bf16.mxu0 %v2174
    %2232 = vmatpush2.bf16.msra.mxu0 %v2173
    %2233 = vmatprep.subr.bf16.mxu0 %v2172
    %2234 = vmatpush2.bf16.msra.mxu0 %v2171
    %2235 = vmatprep.subr.bf16.mxu0 %v2170
    %2236 = vmatpush2.bf16.msra.mxu0 %v2169
    %2237 = vmatprep.subr.bf16.mxu0 %v2168
    %2238 = vmatpush2.bf16.msra.mxu0 %v2167
    %2239 = vmatprep.subr.bf16.mxu0 %v2166
    %2240 = vmatpush2.bf16.msra.mxu0 %v2165
    %2241 = vmatprep.subr.bf16.mxu0 %v2164
    %2242 = vmatpush2.bf16.msra.mxu0 %v2163
    %2243 = vmatprep.mubr.bf16.mxu0 %v2020
    %2244 = vmatmul.mubr.bf16.gmra.mxu0 %v2019
    %v2245 = vpop.f32.mrf.mxu0
    %v2246 = vadd.f32 0.0, %v2245
    %v2247 = vpop.f32.mrf.mxu0
    %v2248 = vadd.f32 0.0, %v2247
    %v2249 = vpop.f32.mrf.mxu0
    %v2250 = vadd.f32 0.0, %v2249
    %v2251 = vpop.f32.mrf.mxu0
    %v2252 = vadd.f32 0.0, %v2251
    %2253 = vmatprep.mubr.bf16.mxu0 %v2022
    %2254 = vmatmul.mubr.bf16.gmra.mxu0 %v2021
    %v2255 = vpop.f32.mrf.mxu0
    %v2256 = vadd.f32 0.0, %v2255
    %v2257 = vpop.f32.mrf.mxu0
    %v2258 = vadd.f32 0.0, %v2257
    %v2259 = vpop.f32.mrf.mxu0
    %v2260 = vadd.f32 0.0, %v2259
    %v2261 = vpop.f32.mrf.mxu0
    %v2262 = vadd.f32 0.0, %v2261
    %2263 = vmatprep.mubr.bf16.mxu0 %v2024
    %2264 = vmatmul.mubr.bf16.gmra.mxu0 %v2023
    %v2265 = vpop.f32.mrf.mxu0
    %v2266 = vadd.f32 0.0, %v2265
    %v2267 = vpop.f32.mrf.mxu0
    %v2268 = vadd.f32 0.0, %v2267
    %v2269 = vpop.f32.mrf.mxu0
    %v2270 = vadd.f32 0.0, %v2269
    %v2271 = vpop.f32.mrf.mxu0
    %v2272 = vadd.f32 0.0, %v2271
    %2273 = vmatprep.mubr.bf16.mxu0 %v2026
    %2274 = vmatmul.mubr.bf16.gmra.mxu0 %v2025
    %v2275 = vpop.f32.mrf.mxu0
    %v2276 = vadd.f32 0.0, %v2275
    %v2277 = vpop.f32.mrf.mxu0
    %v2278 = vadd.f32 0.0, %v2277
    %v2279 = vpop.f32.mrf.mxu0
    %v2280 = vadd.f32 0.0, %v2279
    %v2281 = vpop.f32.mrf.mxu0
    %v2282 = vadd.f32 0.0, %v2281
    %2283 = vmatprep.mubr.bf16.mxu0 %v2028
    %2284 = vmatmul.mubr.bf16.gmra.mxu0 %v2027
    %v2285 = vpop.f32.mrf.mxu0
    %v2286 = vadd.f32 0.0, %v2285
    %v2287 = vpop.f32.mrf.mxu0
    %v2288 = vadd.f32 0.0, %v2287
    %v2289 = vpop.f32.mrf.mxu0
    %v2290 = vadd.f32 0.0, %v2289
    %v2291 = vpop.f32.mrf.mxu0
    %v2292 = vadd.f32 0.0, %v2291
    %2293 = vmatprep.mubr.bf16.mxu0 %v2030
    %2294 = vmatmul.mubr.bf16.gmra.mxu0 %v2029
    %v2295 = vpop.f32.mrf.mxu0
    %v2296 = vadd.f32 0.0, %v2295
    %v2297 = vpop.f32.mrf.mxu0
    %v2298 = vadd.f32 0.0, %v2297
    %v2299 = vpop.f32.mrf.mxu0
    %v2300 = vadd.f32 0.0, %v2299
    %v2301 = vpop.f32.mrf.mxu0
    %v2302 = vadd.f32 0.0, %v2301
    %2303 = vmatprep.mubr.bf16.mxu0 %v2032
    %2304 = vmatmul.mubr.bf16.gmra.mxu0 %v2031
    %v2305 = vpop.f32.mrf.mxu0
    %v2306 = vadd.f32 0.0, %v2305
    %v2307 = vpop.f32.mrf.mxu0
    %v2308 = vadd.f32 0.0, %v2307
    %v2309 = vpop.f32.mrf.mxu0
    %v2310 = vadd.f32 0.0, %v2309
    %v2311 = vpop.f32.mrf.mxu0
    %v2312 = vadd.f32 0.0, %v2311
    %2313 = vmatprep.mubr.bf16.mxu0 %v2034
    %2314 = vmatmul.mubr.bf16.gmra.mxu0 %v2033
    %v2315 = vpop.f32.mrf.mxu0
    %v2316 = vadd.f32 0.0, %v2315
    %v2317 = vpop.f32.mrf.mxu0
    %v2318 = vadd.f32 0.0, %v2317
    %v2319 = vpop.f32.mrf.mxu0
    %v2320 = vadd.f32 0.0, %v2319
    %v2321 = vpop.f32.mrf.mxu0
    %v2322 = vadd.f32 0.0, %v2321
    %2323 = vdwg.mxu0
    %v2324 = vld [vmem:[#allocation3] sm:$0xff]
    %v2325 = vld [vmem:[#allocation3 + $0x8] sm:$0xff]
    %v2326 = vld [vmem:[#allocation3 + $0x10] sm:$0xff]
    %v2327 = vld [vmem:[#allocation3 + $0x18] sm:$0xff]
    %v2328 = vld [vmem:[#allocation3 + $0x20] sm:$0xff]
    %v2329 = vld [vmem:[#allocation3 + $0x28] sm:$0xff]
    %v2330 = vld [vmem:[#allocation3 + $0x30] sm:$0xff]
    %v2331 = vld [vmem:[#allocation3 + $0x38] sm:$0xff]
    %v2332 = vld [vmem:[#allocation3 + $0x40] sm:$0xff]
    %v2333 = vld [vmem:[#allocation3 + $0x48] sm:$0xff]
    %v2334 = vld [vmem:[#allocation3 + $0x50] sm:$0xff]
    %v2335 = vld [vmem:[#allocation3 + $0x58] sm:$0xff]
    %v2336 = vld [vmem:[#allocation3 + $0x60] sm:$0xff]
    %v2337 = vld [vmem:[#allocation3 + $0x68] sm:$0xff]
    %v2338 = vld [vmem:[#allocation3 + $0x70] sm:$0xff]
    %v2339 = vld [vmem:[#allocation3 + $0x78] sm:$0xff]
    %v2340 = vld [vmem:[#allocation3 + $0x80] sm:$0xff]
    %v2341 = vld [vmem:[#allocation3 + $0x88] sm:$0xff]
    %v2342 = vld [vmem:[#allocation3 + $0x90] sm:$0xff]
    %v2343 = vld [vmem:[#allocation3 + $0x98] sm:$0xff]
    %v2344 = vld [vmem:[#allocation3 + $0xa0] sm:$0xff]
    %v2345 = vld [vmem:[#allocation3 + $0xa8] sm:$0xff]
    %v2346 = vld [vmem:[#allocation3 + $0xb0] sm:$0xff]
    %v2347 = vld [vmem:[#allocation3 + $0xb8] sm:$0xff]
    %v2348 = vld [vmem:[#allocation3 + $0xc0] sm:$0xff]
    %v2349 = vld [vmem:[#allocation3 + $0xc8] sm:$0xff]
    %v2350 = vld [vmem:[#allocation3 + $0xd0] sm:$0xff]
    %v2351 = vld [vmem:[#allocation3 + $0xd8] sm:$0xff]
    %v2352 = vld [vmem:[#allocation3 + $0xe0] sm:$0xff]
    %v2353 = vld [vmem:[#allocation3 + $0xe8] sm:$0xff]
    %v2354 = vld [vmem:[#allocation3 + $0xf0] sm:$0xff]
    %v2355 = vld [vmem:[#allocation3 + $0xf8] sm:$0xff]
    %v2356 = vadd.f32 %v2324, %v2246
    %v2357 = vadd.f32 %v2325, %v2248
    %v2358 = vadd.f32 %v2326, %v2250
    %v2359 = vadd.f32 %v2327, %v2252
    %v2360 = vadd.f32 %v2328, %v2256
    %v2361 = vadd.f32 %v2329, %v2258
    %v2362 = vadd.f32 %v2330, %v2260
    %v2363 = vadd.f32 %v2331, %v2262
    %v2364 = vadd.f32 %v2332, %v2266
    %v2365 = vadd.f32 %v2333, %v2268
    %v2366 = vadd.f32 %v2334, %v2270
    %v2367 = vadd.f32 %v2335, %v2272
    %v2368 = vadd.f32 %v2336, %v2276
    %v2369 = vadd.f32 %v2337, %v2278
    %v2370 = vadd.f32 %v2338, %v2280
    %v2371 = vadd.f32 %v2339, %v2282
    %v2372 = vadd.f32 %v2340, %v2286
    %v2373 = vadd.f32 %v2341, %v2288
    %v2374 = vadd.f32 %v2342, %v2290
    %v2375 = vadd.f32 %v2343, %v2292
    %v2376 = vadd.f32 %v2344, %v2296
    %v2377 = vadd.f32 %v2345, %v2298
    %v2378 = vadd.f32 %v2346, %v2300
    %v2379 = vadd.f32 %v2347, %v2302
    %v2380 = vadd.f32 %v2348, %v2306
    %v2381 = vadd.f32 %v2349, %v2308
    %v2382 = vadd.f32 %v2350, %v2310
    %v2383 = vadd.f32 %v2351, %v2312
    %v2384 = vadd.f32 %v2352, %v2316
    %v2385 = vadd.f32 %v2353, %v2318
    %v2386 = vadd.f32 %v2354, %v2320
    %v2387 = vadd.f32 %v2355, %v2322
    %2388 = vst [vmem:[#allocation3] sm:$0xff] %v2356
    %2389 = vst [vmem:[#allocation3 + $0x8] sm:$0xff] %v2357
    %2390 = vst [vmem:[#allocation3 + $0x10] sm:$0xff] %v2358
    %2391 = vst [vmem:[#allocation3 + $0x18] sm:$0xff] %v2359
    %2392 = vst [vmem:[#allocation3 + $0x20] sm:$0xff] %v2360
    %2393 = vst [vmem:[#allocation3 + $0x28] sm:$0xff] %v2361
    %2394 = vst [vmem:[#allocation3 + $0x30] sm:$0xff] %v2362
    %2395 = vst [vmem:[#allocation3 + $0x38] sm:$0xff] %v2363
    %2396 = vst [vmem:[#allocation3 + $0x40] sm:$0xff] %v2364
    %2397 = vst [vmem:[#allocation3 + $0x48] sm:$0xff] %v2365
    %2398 = vst [vmem:[#allocation3 + $0x50] sm:$0xff] %v2366
    %2399 = vst [vmem:[#allocation3 + $0x58] sm:$0xff] %v2367
    %2400 = vst [vmem:[#allocation3 + $0x60] sm:$0xff] %v2368
    %2401 = vst [vmem:[#allocation3 + $0x68] sm:$0xff] %v2369
    %2402 = vst [vmem:[#allocation3 + $0x70] sm:$0xff] %v2370
    %2403 = vst [vmem:[#allocation3 + $0x78] sm:$0xff] %v2371
    %2404 = vst [vmem:[#allocation3 + $0x80] sm:$0xff] %v2372
    %2405 = vst [vmem:[#allocation3 + $0x88] sm:$0xff] %v2373
    %2406 = vst [vmem:[#allocation3 + $0x90] sm:$0xff] %v2374
    %2407 = vst [vmem:[#allocation3 + $0x98] sm:$0xff] %v2375
    %2408 = vst [vmem:[#allocation3 + $0xa0] sm:$0xff] %v2376
    %2409 = vst [vmem:[#allocation3 + $0xa8] sm:$0xff] %v2377
    %2410 = vst [vmem:[#allocation3 + $0xb0] sm:$0xff] %v2378
    %2411 = vst [vmem:[#allocation3 + $0xb8] sm:$0xff] %v2379
    %2412 = vst [vmem:[#allocation3 + $0xc0] sm:$0xff] %v2380
    %2413 = vst [vmem:[#allocation3 + $0xc8] sm:$0xff] %v2381
    %2414 = vst [vmem:[#allocation3 + $0xd0] sm:$0xff] %v2382
    %2415 = vst [vmem:[#allocation3 + $0xd8] sm:$0xff] %v2383
    %2416 = vst [vmem:[#allocation3 + $0xe0] sm:$0xff] %v2384
    %2417 = vst [vmem:[#allocation3 + $0xe8] sm:$0xff] %v2385
    %2418 = vst [vmem:[#allocation3 + $0xf0] sm:$0xff] %v2386
    %2419 = vst [vmem:[#allocation3 + $0xf8] sm:$0xff] %v2387
    %v2420 = vld [vmem:[%s563] sm:$0xff]
    %v2421 = vld [vmem:[%s563 + $0x10] sm:$0xff]
    %v2422 = vld [vmem:[%s563 + $0x20] sm:$0xff]
    %v2423 = vld [vmem:[%s563 + $0x30] sm:$0xff]
    %v2424 = vld [vmem:[%s563 + $0x40] sm:$0xff]
    %v2425 = vld [vmem:[%s563 + $0x50] sm:$0xff]
    %v2426 = vld [vmem:[%s563 + $0x60] sm:$0xff]
    %v2427 = vld [vmem:[%s563 + $0x70] sm:$0xff]
    %v2428 = vld [vmem:[%s563 + $0xa0] sm:$0xff]
    %v2429 = vld [vmem:[%s563 + $0xb0] sm:$0xff]
    %v2430 = vld [vmem:[%s563 + $0xc0] sm:$0xff]
    %v2431 = vld [vmem:[%s563 + $0xd0] sm:$0xff]
    %v2432 = vld [vmem:[%s563 + $0xe0] sm:$0xff]
    %v2433 = vld [vmem:[%s563 + $0xf0] sm:$0xff]
    %v2434 = vld [vmem:[%s563 + $0x100] sm:$0xff]
    %v2435 = vld [vmem:[%s563 + $0x110] sm:$0xff]
    %s2436 = scalar_lea.vmem [#allocation7], 768
    %v2437 = vld [vmem:[%s2436] sm:$0xff]
    %v2438 = vld [vmem:[%s2436 + $0x8] sm:$0xff]
    %v2439 = vld [vmem:[%s2436 + $0x10] sm:$0xff]
    %v2440 = vld [vmem:[%s2436 + $0x18] sm:$0xff]
    %v2441 = vld [vmem:[%s2436 + $0x20] sm:$0xff]
    %v2442 = vld [vmem:[%s2436 + $0x28] sm:$0xff]
    %v2443 = vld [vmem:[%s2436 + $0x30] sm:$0xff]
    %v2444 = vld [vmem:[%s2436 + $0x38] sm:$0xff]
    %v2445 = vld [vmem:[%s2436 + $0x40] sm:$0xff]
    %v2446 = vld [vmem:[%s2436 + $0x48] sm:$0xff]
    %v2447 = vld [vmem:[%s2436 + $0x50] sm:$0xff]
    %v2448 = vld [vmem:[%s2436 + $0x58] sm:$0xff]
    %v2449 = vld [vmem:[%s2436 + $0x60] sm:$0xff]
    %v2450 = vld [vmem:[%s2436 + $0x68] sm:$0xff]
    %v2451 = vld [vmem:[%s2436 + $0x70] sm:$0xff]
    %v2452 = vld [vmem:[%s2436 + $0x78] sm:$0xff]
    %v2453 = vld [vmem:[%s2436 + $0x80] sm:$0xff]
    %v2454 = vld [vmem:[%s2436 + $0x88] sm:$0xff]
    %v2455 = vld [vmem:[%s2436 + $0x90] sm:$0xff]
    %v2456 = vld [vmem:[%s2436 + $0x98] sm:$0xff]
    %v2457 = vld [vmem:[%s2436 + $0xa0] sm:$0xff]
    %v2458 = vld [vmem:[%s2436 + $0xa8] sm:$0xff]
    %v2459 = vld [vmem:[%s2436 + $0xb0] sm:$0xff]
    %v2460 = vld [vmem:[%s2436 + $0xb8] sm:$0xff]
    %v2461 = vld [vmem:[%s2436 + $0xc0] sm:$0xff]
    %v2462 = vld [vmem:[%s2436 + $0xc8] sm:$0xff]
    %v2463 = vld [vmem:[%s2436 + $0xd0] sm:$0xff]
    %v2464 = vld [vmem:[%s2436 + $0xd8] sm:$0xff]
    %v2465 = vld [vmem:[%s2436 + $0xe0] sm:$0xff]
    %v2466 = vld [vmem:[%s2436 + $0xe8] sm:$0xff]
    %v2467 = vld [vmem:[%s2436 + $0xf0] sm:$0xff]
    %v2468 = vld [vmem:[%s2436 + $0xf8] sm:$0xff]
    %v2485 = vunpack.c.l.b16 %v2420
    %v2486 = vunpack.c.h.b16 %v2420
    %v2487 = vunpack.c.l.b16 %v2421
    %v2488 = vunpack.c.h.b16 %v2421
    %v2489 = vunpack.c.l.b16 %v2422
    %v2490 = vunpack.c.h.b16 %v2422
    %v2491 = vunpack.c.l.b16 %v2423
    %v2492 = vunpack.c.h.b16 %v2423
    %v2493 = vunpack.c.l.b16 %v2424
    %v2494 = vunpack.c.h.b16 %v2424
    %v2495 = vunpack.c.l.b16 %v2425
    %v2496 = vunpack.c.h.b16 %v2425
    %v2497 = vunpack.c.l.b16 %v2426
    %v2498 = vunpack.c.h.b16 %v2426
    %v2499 = vunpack.c.l.b16 %v2427
    %v2500 = vunpack.c.h.b16 %v2427
    %v2501 = vunpack.c.l.b16 %v2428
    %v2502 = vunpack.c.h.b16 %v2428
    %v2503 = vunpack.c.l.b16 %v2429
    %v2504 = vunpack.c.h.b16 %v2429
    %v2505 = vunpack.c.l.b16 %v2430
    %v2506 = vunpack.c.h.b16 %v2430
    %v2507 = vunpack.c.l.b16 %v2431
    %v2508 = vunpack.c.h.b16 %v2431
    %v2509 = vunpack.c.l.b16 %v2432
    %v2510 = vunpack.c.h.b16 %v2432
    %v2511 = vunpack.c.l.b16 %v2433
    %v2512 = vunpack.c.h.b16 %v2433
    %v2513 = vunpack.c.l.b16 %v2434
    %v2514 = vunpack.c.h.b16 %v2434
    %v2515 = vunpack.c.l.b16 %v2435
    %v2516 = vunpack.c.h.b16 %v2435
    %v2517 = vpack.c.b16 %v2487, %v2485
    %v2518 = vpack.c.b16 %v2488, %v2486
    %v2519 = vpack.c.b16 %v2491, %v2489
    %v2520 = vpack.c.b16 %v2492, %v2490
    %v2521 = vpack.c.b16 %v2495, %v2493
    %v2522 = vpack.c.b16 %v2496, %v2494
    %v2523 = vpack.c.b16 %v2499, %v2497
    %v2524 = vpack.c.b16 %v2500, %v2498
    %v2525 = vpack.c.b16 %v2503, %v2501
    %v2526 = vpack.c.b16 %v2504, %v2502
    %v2527 = vpack.c.b16 %v2507, %v2505
    %v2528 = vpack.c.b16 %v2508, %v2506
    %v2529 = vpack.c.b16 %v2511, %v2509
    %v2530 = vpack.c.b16 %v2512, %v2510
    %v2531 = vpack.c.b16 %v2515, %v2513
    %v2532 = vpack.c.b16 %v2516, %v2514
    %v2581 = vunpack.c.l.b16 %v2437
    %v2582 = vunpack.c.h.b16 %v2437
    %v2583 = vunpack.c.l.b16 %v2438
    %v2584 = vunpack.c.h.b16 %v2438
    %v2585 = vunpack.c.l.b16 %v2439
    %v2586 = vunpack.c.h.b16 %v2439
    %v2587 = vunpack.c.l.b16 %v2440
    %v2588 = vunpack.c.h.b16 %v2440
    %v2589 = vunpack.c.l.b16 %v2441
    %v2590 = vunpack.c.h.b16 %v2441
    %v2591 = vunpack.c.l.b16 %v2442
    %v2592 = vunpack.c.h.b16 %v2442
    %v2593 = vunpack.c.l.b16 %v2443
    %v2594 = vunpack.c.h.b16 %v2443
    %v2595 = vunpack.c.l.b16 %v2444
    %v2596 = vunpack.c.h.b16 %v2444
    %v2597 = vunpack.c.l.b16 %v2445
    %v2598 = vunpack.c.h.b16 %v2445
    %v2599 = vunpack.c.l.b16 %v2446
    %v2600 = vunpack.c.h.b16 %v2446
    %v2601 = vunpack.c.l.b16 %v2447
    %v2602 = vunpack.c.h.b16 %v2447
    %v2603 = vunpack.c.l.b16 %v2448
    %v2604 = vunpack.c.h.b16 %v2448
    %v2605 = vunpack.c.l.b16 %v2449
    %v2606 = vunpack.c.h.b16 %v2449
    %v2607 = vunpack.c.l.b16 %v2450
    %v2608 = vunpack.c.h.b16 %v2450
    %v2609 = vunpack.c.l.b16 %v2451
    %v2610 = vunpack.c.h.b16 %v2451
    %v2611 = vunpack.c.l.b16 %v2452
    %v2612 = vunpack.c.h.b16 %v2452
    %v2613 = vunpack.c.l.b16 %v2453
    %v2614 = vunpack.c.h.b16 %v2453
    %v2615 = vunpack.c.l.b16 %v2454
    %v2616 = vunpack.c.h.b16 %v2454
    %v2617 = vunpack.c.l.b16 %v2455
    %v2618 = vunpack.c.h.b16 %v2455
    %v2619 = vunpack.c.l.b16 %v2456
    %v2620 = vunpack.c.h.b16 %v2456
    %v2621 = vunpack.c.l.b16 %v2457
    %v2622 = vunpack.c.h.b16 %v2457
    %v2623 = vunpack.c.l.b16 %v2458
    %v2624 = vunpack.c.h.b16 %v2458
    %v2625 = vunpack.c.l.b16 %v2459
    %v2626 = vunpack.c.h.b16 %v2459
    %v2627 = vunpack.c.l.b16 %v2460
    %v2628 = vunpack.c.h.b16 %v2460
    %v2629 = vunpack.c.l.b16 %v2461
    %v2630 = vunpack.c.h.b16 %v2461
    %v2631 = vunpack.c.l.b16 %v2462
    %v2632 = vunpack.c.h.b16 %v2462
    %v2633 = vunpack.c.l.b16 %v2463
    %v2634 = vunpack.c.h.b16 %v2463
    %v2635 = vunpack.c.l.b16 %v2464
    %v2636 = vunpack.c.h.b16 %v2464
    %v2637 = vunpack.c.l.b16 %v2465
    %v2638 = vunpack.c.h.b16 %v2465
    %v2639 = vunpack.c.l.b16 %v2466
    %v2640 = vunpack.c.h.b16 %v2466
    %v2641 = vunpack.c.l.b16 %v2467
    %v2642 = vunpack.c.h.b16 %v2467
    %v2643 = vunpack.c.l.b16 %v2468
    %v2644 = vunpack.c.h.b16 %v2468
    %v2645 = vpack.c.b16 %v2583, %v2581
    %v2646 = vpack.c.b16 %v2584, %v2582
    %v2647 = vpack.c.b16 %v2587, %v2585
    %v2648 = vpack.c.b16 %v2588, %v2586
    %v2649 = vpack.c.b16 %v2591, %v2589
    %v2650 = vpack.c.b16 %v2592, %v2590
    %v2651 = vpack.c.b16 %v2595, %v2593
    %v2652 = vpack.c.b16 %v2596, %v2594
    %v2653 = vpack.c.b16 %v2599, %v2597
    %v2654 = vpack.c.b16 %v2600, %v2598
    %v2655 = vpack.c.b16 %v2603, %v2601
    %v2656 = vpack.c.b16 %v2604, %v2602
    %v2657 = vpack.c.b16 %v2607, %v2605
    %v2658 = vpack.c.b16 %v2608, %v2606
    %v2659 = vpack.c.b16 %v2611, %v2609
    %v2660 = vpack.c.b16 %v2612, %v2610
    %v2661 = vpack.c.b16 %v2615, %v2613
    %v2662 = vpack.c.b16 %v2616, %v2614
    %v2663 = vpack.c.b16 %v2619, %v2617
    %v2664 = vpack.c.b16 %v2620, %v2618
    %v2665 = vpack.c.b16 %v2623, %v2621
    %v2666 = vpack.c.b16 %v2624, %v2622
    %v2667 = vpack.c.b16 %v2627, %v2625
    %v2668 = vpack.c.b16 %v2628, %v2626
    %v2669 = vpack.c.b16 %v2631, %v2629
    %v2670 = vpack.c.b16 %v2632, %v2630
    %v2671 = vpack.c.b16 %v2635, %v2633
    %v2672 = vpack.c.b16 %v2636, %v2634
    %v2673 = vpack.c.b16 %v2639, %v2637
    %v2674 = vpack.c.b16 %v2640, %v2638
    %v2675 = vpack.c.b16 %v2643, %v2641
    %v2676 = vpack.c.b16 %v2644, %v2642
    %2709 = vmatprep.subr.bf16.mxu0 %v2660
    %2710 = vmatpush1.bf16.msra.mxu0 %v2659
    %2711 = vmatprep.subr.bf16.mxu0 %v2658
    %2712 = vmatpush1.bf16.msra.mxu0 %v2657
    %2713 = vmatprep.subr.bf16.mxu0 %v2656
    %2714 = vmatpush1.bf16.msra.mxu0 %v2655
    %2715 = vmatprep.subr.bf16.mxu0 %v2654
    %2716 = vmatpush1.bf16.msra.mxu0 %v2653
    %2717 = vmatprep.subr.bf16.mxu0 %v2652
    %2718 = vmatpush1.bf16.msra.mxu0 %v2651
    %2719 = vmatprep.subr.bf16.mxu0 %v2650
    %2720 = vmatpush1.bf16.msra.mxu0 %v2649
    %2721 = vmatprep.subr.bf16.mxu0 %v2648
    %2722 = vmatpush1.bf16.msra.mxu0 %v2647
    %2723 = vmatprep.subr.bf16.mxu0 %v2646
    %2724 = vmatpush1.bf16.msra.mxu0 %v2645
    %2725 = vmatprep.subr.bf16.mxu0 %v2676
    %2726 = vmatpush2.bf16.msra.mxu0 %v2675
    %2727 = vmatprep.subr.bf16.mxu0 %v2674
    %2728 = vmatpush2.bf16.msra.mxu0 %v2673
    %2729 = vmatprep.subr.bf16.mxu0 %v2672
    %2730 = vmatpush2.bf16.msra.mxu0 %v2671
    %2731 = vmatprep.subr.bf16.mxu0 %v2670
    %2732 = vmatpush2.bf16.msra.mxu0 %v2669
    %2733 = vmatprep.subr.bf16.mxu0 %v2668
    %2734 = vmatpush2.bf16.msra.mxu0 %v2667
    %2735 = vmatprep.subr.bf16.mxu0 %v2666
    %2736 = vmatpush2.bf16.msra.mxu0 %v2665
    %2737 = vmatprep.subr.bf16.mxu0 %v2664
    %2738 = vmatpush2.bf16.msra.mxu0 %v2663
    %2739 = vmatprep.subr.bf16.mxu0 %v2662
    %2740 = vmatpush2.bf16.msra.mxu0 %v2661
    %2741 = vmatprep.mubr.bf16.mxu0 %v2518
    %2742 = vmatmul.mubr.bf16.gmra.mxu0 %v2517
    %v2743 = vpop.f32.mrf.mxu0
    %v2744 = vadd.f32 0.0, %v2743
    %v2745 = vpop.f32.mrf.mxu0
    %v2746 = vadd.f32 0.0, %v2745
    %v2747 = vpop.f32.mrf.mxu0
    %v2748 = vadd.f32 0.0, %v2747
    %v2749 = vpop.f32.mrf.mxu0
    %v2750 = vadd.f32 0.0, %v2749
    %2751 = vmatprep.mubr.bf16.mxu0 %v2520
    %2752 = vmatmul.mubr.bf16.gmra.mxu0 %v2519
    %v2753 = vpop.f32.mrf.mxu0
    %v2754 = vadd.f32 0.0, %v2753
    %v2755 = vpop.f32.mrf.mxu0
    %v2756 = vadd.f32 0.0, %v2755
    %v2757 = vpop.f32.mrf.mxu0
    %v2758 = vadd.f32 0.0, %v2757
    %v2759 = vpop.f32.mrf.mxu0
    %v2760 = vadd.f32 0.0, %v2759
    %2761 = vmatprep.mubr.bf16.mxu0 %v2522
    %2762 = vmatmul.mubr.bf16.gmra.mxu0 %v2521
    %v2763 = vpop.f32.mrf.mxu0
    %v2764 = vadd.f32 0.0, %v2763
    %v2765 = vpop.f32.mrf.mxu0
    %v2766 = vadd.f32 0.0, %v2765
    %v2767 = vpop.f32.mrf.mxu0
    %v2768 = vadd.f32 0.0, %v2767
    %v2769 = vpop.f32.mrf.mxu0
    %v2770 = vadd.f32 0.0, %v2769
    %2771 = vmatprep.mubr.bf16.mxu0 %v2524
    %2772 = vmatmul.mubr.bf16.gmra.mxu0 %v2523
    %v2773 = vpop.f32.mrf.mxu0
    %v2774 = vadd.f32 0.0, %v2773
    %v2775 = vpop.f32.mrf.mxu0
    %v2776 = vadd.f32 0.0, %v2775
    %v2777 = vpop.f32.mrf.mxu0
    %v2778 = vadd.f32 0.0, %v2777
    %v2779 = vpop.f32.mrf.mxu0
    %v2780 = vadd.f32 0.0, %v2779
    %2781 = vmatprep.mubr.bf16.mxu0 %v2526
    %2782 = vmatmul.mubr.bf16.gmra.mxu0 %v2525
    %v2783 = vpop.f32.mrf.mxu0
    %v2784 = vadd.f32 0.0, %v2783
    %v2785 = vpop.f32.mrf.mxu0
    %v2786 = vadd.f32 0.0, %v2785
    %v2787 = vpop.f32.mrf.mxu0
    %v2788 = vadd.f32 0.0, %v2787
    %v2789 = vpop.f32.mrf.mxu0
    %v2790 = vadd.f32 0.0, %v2789
    %2791 = vmatprep.mubr.bf16.mxu0 %v2528
    %2792 = vmatmul.mubr.bf16.gmra.mxu0 %v2527
    %v2793 = vpop.f32.mrf.mxu0
    %v2794 = vadd.f32 0.0, %v2793
    %v2795 = vpop.f32.mrf.mxu0
    %v2796 = vadd.f32 0.0, %v2795
    %v2797 = vpop.f32.mrf.mxu0
    %v2798 = vadd.f32 0.0, %v2797
    %v2799 = vpop.f32.mrf.mxu0
    %v2800 = vadd.f32 0.0, %v2799
    %2801 = vmatprep.mubr.bf16.mxu0 %v2530
    %2802 = vmatmul.mubr.bf16.gmra.mxu0 %v2529
    %v2803 = vpop.f32.mrf.mxu0
    %v2804 = vadd.f32 0.0, %v2803
    %v2805 = vpop.f32.mrf.mxu0
    %v2806 = vadd.f32 0.0, %v2805
    %v2807 = vpop.f32.mrf.mxu0
    %v2808 = vadd.f32 0.0, %v2807
    %v2809 = vpop.f32.mrf.mxu0
    %v2810 = vadd.f32 0.0, %v2809
    %2811 = vmatprep.mubr.bf16.mxu0 %v2532
    %2812 = vmatmul.mubr.bf16.gmra.mxu0 %v2531
    %v2813 = vpop.f32.mrf.mxu0
    %v2814 = vadd.f32 0.0, %v2813
    %v2815 = vpop.f32.mrf.mxu0
    %v2816 = vadd.f32 0.0, %v2815
    %v2817 = vpop.f32.mrf.mxu0
    %v2818 = vadd.f32 0.0, %v2817
    %v2819 = vpop.f32.mrf.mxu0
    %v2820 = vadd.f32 0.0, %v2819
    %2821 = vdwg.mxu0
    %v2822 = vld [vmem:[#allocation3] sm:$0xff]
    %v2823 = vld [vmem:[#allocation3 + $0x8] sm:$0xff]
    %v2824 = vld [vmem:[#allocation3 + $0x10] sm:$0xff]
    %v2825 = vld [vmem:[#allocation3 + $0x18] sm:$0xff]
    %v2826 = vld [vmem:[#allocation3 + $0x20] sm:$0xff]
    %v2827 = vld [vmem:[#allocation3 + $0x28] sm:$0xff]
    %v2828 = vld [vmem:[#allocation3 + $0x30] sm:$0xff]
    %v2829 = vld [vmem:[#allocation3 + $0x38] sm:$0xff]
    %v2830 = vld [vmem:[#allocation3 + $0x40] sm:$0xff]
    %v2831 = vld [vmem:[#allocation3 + $0x48] sm:$0xff]
    %v2832 = vld [vmem:[#allocation3 + $0x50] sm:$0xff]
    %v2833 = vld [vmem:[#allocation3 + $0x58] sm:$0xff]
    %v2834 = vld [vmem:[#allocation3 + $0x60] sm:$0xff]
    %v2835 = vld [vmem:[#allocation3 + $0x68] sm:$0xff]
    %v2836 = vld [vmem:[#allocation3 + $0x70] sm:$0xff]
    %v2837 = vld [vmem:[#allocation3 + $0x78] sm:$0xff]
    %v2838 = vld [vmem:[#allocation3 + $0x80] sm:$0xff]
    %v2839 = vld [vmem:[#allocation3 + $0x88] sm:$0xff]
    %v2840 = vld [vmem:[#allocation3 + $0x90] sm:$0xff]
    %v2841 = vld [vmem:[#allocation3 + $0x98] sm:$0xff]
    %v2842 = vld [vmem:[#allocation3 + $0xa0] sm:$0xff]
    %v2843 = vld [vmem:[#allocation3 + $0xa8] sm:$0xff]
    %v2844 = vld [vmem:[#allocation3 + $0xb0] sm:$0xff]
    %v2845 = vld [vmem:[#allocation3 + $0xb8] sm:$0xff]
    %v2846 = vld [vmem:[#allocation3 + $0xc0] sm:$0xff]
    %v2847 = vld [vmem:[#allocation3 + $0xc8] sm:$0xff]
    %v2848 = vld [vmem:[#allocation3 + $0xd0] sm:$0xff]
    %v2849 = vld [vmem:[#allocation3 + $0xd8] sm:$0xff]
    %v2850 = vld [vmem:[#allocation3 + $0xe0] sm:$0xff]
    %v2851 = vld [vmem:[#allocation3 + $0xe8] sm:$0xff]
    %v2852 = vld [vmem:[#allocation3 + $0xf0] sm:$0xff]
    %v2853 = vld [vmem:[#allocation3 + $0xf8] sm:$0xff]
    %v2854 = vadd.f32 %v2822, %v2744
    %v2855 = vadd.f32 %v2823, %v2746
    %v2856 = vadd.f32 %v2824, %v2748
    %v2857 = vadd.f32 %v2825, %v2750
    %v2858 = vadd.f32 %v2826, %v2754
    %v2859 = vadd.f32 %v2827, %v2756
    %v2860 = vadd.f32 %v2828, %v2758
    %v2861 = vadd.f32 %v2829, %v2760
    %v2862 = vadd.f32 %v2830, %v2764
    %v2863 = vadd.f32 %v2831, %v2766
    %v2864 = vadd.f32 %v2832, %v2768
    %v2865 = vadd.f32 %v2833, %v2770
    %v2866 = vadd.f32 %v2834, %v2774
    %v2867 = vadd.f32 %v2835, %v2776
    %v2868 = vadd.f32 %v2836, %v2778
    %v2869 = vadd.f32 %v2837, %v2780
    %v2870 = vadd.f32 %v2838, %v2784
    %v2871 = vadd.f32 %v2839, %v2786
    %v2872 = vadd.f32 %v2840, %v2788
    %v2873 = vadd.f32 %v2841, %v2790
    %v2874 = vadd.f32 %v2842, %v2794
    %v2875 = vadd.f32 %v2843, %v2796
    %v2876 = vadd.f32 %v2844, %v2798
    %v2877 = vadd.f32 %v2845, %v2800
    %v2878 = vadd.f32 %v2846, %v2804
    %v2879 = vadd.f32 %v2847, %v2806
    %v2880 = vadd.f32 %v2848, %v2808
    %v2881 = vadd.f32 %v2849, %v2810
    %v2882 = vadd.f32 %v2850, %v2814
    %v2883 = vadd.f32 %v2851, %v2816
    %v2884 = vadd.f32 %v2852, %v2818
    %v2885 = vadd.f32 %v2853, %v2820
    %2886 = vst [vmem:[#allocation3] sm:$0xff] %v2854
    %2887 = vst [vmem:[#allocation3 + $0x8] sm:$0xff] %v2855
    %2888 = vst [vmem:[#allocation3 + $0x10] sm:$0xff] %v2856
    %2889 = vst [vmem:[#allocation3 + $0x18] sm:$0xff] %v2857
    %2890 = vst [vmem:[#allocation3 + $0x20] sm:$0xff] %v2858
    %2891 = vst [vmem:[#allocation3 + $0x28] sm:$0xff] %v2859
    %2892 = vst [vmem:[#allocation3 + $0x30] sm:$0xff] %v2860
    %2893 = vst [vmem:[#allocation3 + $0x38] sm:$0xff] %v2861
    %2894 = vst [vmem:[#allocation3 + $0x40] sm:$0xff] %v2862
    %2895 = vst [vmem:[#allocation3 + $0x48] sm:$0xff] %v2863
    %2896 = vst [vmem:[#allocation3 + $0x50] sm:$0xff] %v2864
    %2897 = vst [vmem:[#allocation3 + $0x58] sm:$0xff] %v2865
    %2898 = vst [vmem:[#allocation3 + $0x60] sm:$0xff] %v2866
    %2899 = vst [vmem:[#allocation3 + $0x68] sm:$0xff] %v2867
    %2900 = vst [vmem:[#allocation3 + $0x70] sm:$0xff] %v2868
    %2901 = vst [vmem:[#allocation3 + $0x78] sm:$0xff] %v2869
    %2902 = vst [vmem:[#allocation3 + $0x80] sm:$0xff] %v2870
    %2903 = vst [vmem:[#allocation3 + $0x88] sm:$0xff] %v2871
    %2904 = vst [vmem:[#allocation3 + $0x90] sm:$0xff] %v2872
    %2905 = vst [vmem:[#allocation3 + $0x98] sm:$0xff] %v2873
    %2906 = vst [vmem:[#allocation3 + $0xa0] sm:$0xff] %v2874
    %2907 = vst [vmem:[#allocation3 + $0xa8] sm:$0xff] %v2875
    %2908 = vst [vmem:[#allocation3 + $0xb0] sm:$0xff] %v2876
    %2909 = vst [vmem:[#allocation3 + $0xb8] sm:$0xff] %v2877
    %2910 = vst [vmem:[#allocation3 + $0xc0] sm:$0xff] %v2878
    %2911 = vst [vmem:[#allocation3 + $0xc8] sm:$0xff] %v2879
    %2912 = vst [vmem:[#allocation3 + $0xd0] sm:$0xff] %v2880
    %2913 = vst [vmem:[#allocation3 + $0xd8] sm:$0xff] %v2881
    %2914 = vst [vmem:[#allocation3 + $0xe0] sm:$0xff] %v2882
    %2915 = vst [vmem:[#allocation3 + $0xe8] sm:$0xff] %v2883
    %2916 = vst [vmem:[#allocation3 + $0xf0] sm:$0xff] %v2884
    %2917 = vst [vmem:[#allocation3 + $0xf8] sm:$0xff] %v2885
    %v2918 = vld [vmem:[%s563] sm:$0xff]
    %v2919 = vld [vmem:[%s563 + $0x8] sm:$0x11]
    %v2920 = vld [vmem:[%s563 + $0x10] sm:$0xff]
    %v2921 = vld [vmem:[%s563 + $0x18] sm:$0x11]
    %v2922 = vld [vmem:[%s563 + $0x20] sm:$0xff]
    %v2923 = vld [vmem:[%s563 + $0x28] sm:$0x11]
    %v2924 = vld [vmem:[%s563 + $0x30] sm:$0xff]
    %v2925 = vld [vmem:[%s563 + $0x38] sm:$0x11]
    %v2926 = vld [vmem:[%s563 + $0x40] sm:$0xff]
    %v2927 = vld [vmem:[%s563 + $0x48] sm:$0x11]
    %v2928 = vld [vmem:[%s563 + $0x50] sm:$0xff]
    %v2929 = vld [vmem:[%s563 + $0x58] sm:$0x11]
    %v2930 = vld [vmem:[%s563 + $0x60] sm:$0xff]
    %v2931 = vld [vmem:[%s563 + $0x68] sm:$0x11]
    %v2932 = vld [vmem:[%s563 + $0x70] sm:$0xff]
    %v2933 = vld [vmem:[%s563 + $0x78] sm:$0x11]
    %v2934 = vld [vmem:[%s563 + $0xa0] sm:$0xff]
    %v2935 = vld [vmem:[%s563 + $0xa8] sm:$0x11]
    %v2936 = vld [vmem:[%s563 + $0xb0] sm:$0xff]
    %v2937 = vld [vmem:[%s563 + $0xb8] sm:$0x11]
    %v2938 = vld [vmem:[%s563 + $0xc0] sm:$0xff]
    %v2939 = vld [vmem:[%s563 + $0xc8] sm:$0x11]
    %v2940 = vld [vmem:[%s563 + $0xd0] sm:$0xff]
    %v2941 = vld [vmem:[%s563 + $0xd8] sm:$0x11]
    %v2942 = vld [vmem:[%s563 + $0xe0] sm:$0xff]
    %v2943 = vld [vmem:[%s563 + $0xe8] sm:$0x11]
    %v2944 = vld [vmem:[%s563 + $0xf0] sm:$0xff]
    %v2945 = vld [vmem:[%s563 + $0xf8] sm:$0x11]
    %v2946 = vld [vmem:[%s563 + $0x100] sm:$0xff]
    %v2947 = vld [vmem:[%s563 + $0x108] sm:$0x11]
    %v2948 = vld [vmem:[%s563 + $0x110] sm:$0xff]
    %v2949 = vld [vmem:[%s563 + $0x118] sm:$0x11]
    %v2951 = vshrl.u32 %v2918, 16
    %v2953 = vrot.slane %v2951, 4
    %v2954 = vshll.u32 %v2918, 16
    %v2956 = vrot.slane %v2954, 5
    %v2957 = vor.u32 %v2953, %v2956
    %v2958 = vrot.slane %v2957, 4
    %v2960 = vshll.u32 %v2919, 16
    %v2962 = vrot.slane %v2960, 5
    %v2963 = vsel %vm1132, %v2958, %v2962
    %v2965 = vshrl.u32 %v2920, 16
    %v2967 = vrot.slane %v2965, 4
    %v2968 = vshll.u32 %v2920, 16
    %v2970 = vrot.slane %v2968, 5
    %v2971 = vor.u32 %v2967, %v2970
    %v2972 = vrot.slane %v2971, 4
    %v2974 = vshll.u32 %v2921, 16
    %v2976 = vrot.slane %v2974, 5
    %v2977 = vsel %vm1132, %v2972, %v2976
    %v2979 = vshrl.u32 %v2922, 16
    %v2981 = vrot.slane %v2979, 4
    %v2982 = vshll.u32 %v2922, 16
    %v2984 = vrot.slane %v2982, 5
    %v2985 = vor.u32 %v2981, %v2984
    %v2986 = vrot.slane %v2985, 4
    %v2988 = vshll.u32 %v2923, 16
    %v2990 = vrot.slane %v2988, 5
    %v2991 = vsel %vm1132, %v2986, %v2990
    %v2993 = vshrl.u32 %v2924, 16
    %v2995 = vrot.slane %v2993, 4
    %v2996 = vshll.u32 %v2924, 16
    %v2998 = vrot.slane %v2996, 5
    %v2999 = vor.u32 %v2995, %v2998
    %v3000 = vrot.slane %v2999, 4
    %v3002 = vshll.u32 %v2925, 16
    %v3004 = vrot.slane %v3002, 5
    %v3005 = vsel %vm1132, %v3000, %v3004
    %v3007 = vshrl.u32 %v2926, 16
    %v3009 = vrot.slane %v3007, 4
    %v3010 = vshll.u32 %v2926, 16
    %v3012 = vrot.slane %v3010, 5
    %v3013 = vor.u32 %v3009, %v3012
    %v3014 = vrot.slane %v3013, 4
    %v3016 = vshll.u32 %v2927, 16
    %v3018 = vrot.slane %v3016, 5
    %v3019 = vsel %vm1132, %v3014, %v3018
    %v3021 = vshrl.u32 %v2928, 16
    %v3023 = vrot.slane %v3021, 4
    %v3024 = vshll.u32 %v2928, 16
    %v3026 = vrot.slane %v3024, 5
    %v3027 = vor.u32 %v3023, %v3026
    %v3028 = vrot.slane %v3027, 4
    %v3030 = vshll.u32 %v2929, 16
    %v3032 = vrot.slane %v3030, 5
    %v3033 = vsel %vm1132, %v3028, %v3032
    %v3035 = vshrl.u32 %v2930, 16
    %v3037 = vrot.slane %v3035, 4
    %v3038 = vshll.u32 %v2930, 16
    %v3040 = vrot.slane %v3038, 5
    %v3041 = vor.u32 %v3037, %v3040
    %v3042 = vrot.slane %v3041, 4
    %v3044 = vshll.u32 %v2931, 16
    %v3046 = vrot.slane %v3044, 5
    %v3047 = vsel %vm1132, %v3042, %v3046
    %v3049 = vshrl.u32 %v2932, 16
    %v3051 = vrot.slane %v3049, 4
    %v3052 = vshll.u32 %v2932, 16
    %v3054 = vrot.slane %v3052, 5
    %v3055 = vor.u32 %v3051, %v3054
    %v3056 = vrot.slane %v3055, 4
    %v3058 = vshll.u32 %v2933, 16
    %v3060 = vrot.slane %v3058, 5
    %v3061 = vsel %vm1132, %v3056, %v3060
    %v3063 = vshrl.u32 %v2934, 16
    %v3065 = vrot.slane %v3063, 4
    %v3066 = vshll.u32 %v2934, 16
    %v3068 = vrot.slane %v3066, 5
    %v3069 = vor.u32 %v3065, %v3068
    %v3070 = vrot.slane %v3069, 4
    %v3072 = vshll.u32 %v2935, 16
    %v3074 = vrot.slane %v3072, 5
    %v3075 = vsel %vm1132, %v3070, %v3074
    %v3077 = vshrl.u32 %v2936, 16
    %v3079 = vrot.slane %v3077, 4
    %v3080 = vshll.u32 %v2936, 16
    %v3082 = vrot.slane %v3080, 5
    %v3083 = vor.u32 %v3079, %v3082
    %v3084 = vrot.slane %v3083, 4
    %v3086 = vshll.u32 %v2937, 16
    %v3088 = vrot.slane %v3086, 5
    %v3089 = vsel %vm1132, %v3084, %v3088
    %v3091 = vshrl.u32 %v2938, 16
    %v3093 = vrot.slane %v3091, 4
    %v3094 = vshll.u32 %v2938, 16
    %v3096 = vrot.slane %v3094, 5
    %v3097 = vor.u32 %v3093, %v3096
    %v3098 = vrot.slane %v3097, 4
    %v3100 = vshll.u32 %v2939, 16
    %v3102 = vrot.slane %v3100, 5
    %v3103 = vsel %vm1132, %v3098, %v3102
    %v3105 = vshrl.u32 %v2940, 16
    %v3107 = vrot.slane %v3105, 4
    %v3108 = vshll.u32 %v2940, 16
    %v3110 = vrot.slane %v3108, 5
    %v3111 = vor.u32 %v3107, %v3110
    %v3112 = vrot.slane %v3111, 4
    %v3114 = vshll.u32 %v2941, 16
    %v3116 = vrot.slane %v3114, 5
    %v3117 = vsel %vm1132, %v3112, %v3116
    %v3119 = vshrl.u32 %v2942, 16
    %v3121 = vrot.slane %v3119, 4
    %v3122 = vshll.u32 %v2942, 16
    %v3124 = vrot.slane %v3122, 5
    %v3125 = vor.u32 %v3121, %v3124
    %v3126 = vrot.slane %v3125, 4
    %v3128 = vshll.u32 %v2943, 16
    %v3130 = vrot.slane %v3128, 5
    %v3131 = vsel %vm1132, %v3126, %v3130
    %v3133 = vshrl.u32 %v2944, 16
    %v3135 = vrot.slane %v3133, 4
    %v3136 = vshll.u32 %v2944, 16
    %v3138 = vrot.slane %v3136, 5
    %v3139 = vor.u32 %v3135, %v3138
    %v3140 = vrot.slane %v3139, 4
    %v3142 = vshll.u32 %v2945, 16
    %v3144 = vrot.slane %v3142, 5
    %v3145 = vsel %vm1132, %v3140, %v3144
    %v3147 = vshrl.u32 %v2946, 16
    %v3149 = vrot.slane %v3147, 4
    %v3150 = vshll.u32 %v2946, 16
    %v3152 = vrot.slane %v3150, 5
    %v3153 = vor.u32 %v3149, %v3152
    %v3154 = vrot.slane %v3153, 4
    %v3156 = vshll.u32 %v2947, 16
    %v3158 = vrot.slane %v3156, 5
    %v3159 = vsel %vm1132, %v3154, %v3158
    %v3161 = vshrl.u32 %v2948, 16
    %v3163 = vrot.slane %v3161, 4
    %v3164 = vshll.u32 %v2948, 16
    %v3166 = vrot.slane %v3164, 5
    %v3167 = vor.u32 %v3163, %v3166
    %v3168 = vrot.slane %v3167, 4
    %v3170 = vshll.u32 %v2949, 16
    %v3172 = vrot.slane %v3170, 5
    %v3173 = vsel %vm1132, %v3168, %v3172
    %s3174 = scalar_lea.vmem [#allocation7], 1024
    %v3175 = vld [vmem:[%s3174] sm:$0xff]
    %v3176 = vld [vmem:[%s3174 + $0x8] sm:$0xff]
    %v3177 = vld [vmem:[%s3174 + $0x10] sm:$0xff]
    %v3178 = vld [vmem:[%s3174 + $0x18] sm:$0xff]
    %v3179 = vld [vmem:[%s3174 + $0x20] sm:$0xff]
    %v3180 = vld [vmem:[%s3174 + $0x28] sm:$0xff]
    %v3181 = vld [vmem:[%s3174 + $0x30] sm:$0xff]
    %v3182 = vld [vmem:[%s3174 + $0x38] sm:$0xff]
    %v3183 = vld [vmem:[%s3174 + $0x40] sm:$0xff]
    %v3184 = vld [vmem:[%s3174 + $0x48] sm:$0xff]
    %v3185 = vld [vmem:[%s3174 + $0x50] sm:$0xff]
    %v3186 = vld [vmem:[%s3174 + $0x58] sm:$0xff]
    %v3187 = vld [vmem:[%s3174 + $0x60] sm:$0xff]
    %v3188 = vld [vmem:[%s3174 + $0x68] sm:$0xff]
    %v3189 = vld [vmem:[%s3174 + $0x70] sm:$0xff]
    %v3190 = vld [vmem:[%s3174 + $0x78] sm:$0xff]
    %v3191 = vld [vmem:[%s3174 + $0x80] sm:$0xff]
    %v3192 = vld [vmem:[%s3174 + $0x88] sm:$0xff]
    %v3193 = vld [vmem:[%s3174 + $0x90] sm:$0xff]
    %v3194 = vld [vmem:[%s3174 + $0x98] sm:$0xff]
    %v3195 = vld [vmem:[%s3174 + $0xa0] sm:$0xff]
    %v3196 = vld [vmem:[%s3174 + $0xa8] sm:$0xff]
    %v3197 = vld [vmem:[%s3174 + $0xb0] sm:$0xff]
    %v3198 = vld [vmem:[%s3174 + $0xb8] sm:$0xff]
    %v3199 = vld [vmem:[%s3174 + $0xc0] sm:$0xff]
    %v3200 = vld [vmem:[%s3174 + $0xc8] sm:$0xff]
    %v3201 = vld [vmem:[%s3174 + $0xd0] sm:$0xff]
    %v3202 = vld [vmem:[%s3174 + $0xd8] sm:$0xff]
    %v3203 = vld [vmem:[%s3174 + $0xe0] sm:$0xff]
    %v3204 = vld [vmem:[%s3174 + $0xe8] sm:$0xff]
    %v3205 = vld [vmem:[%s3174 + $0xf0] sm:$0xff]
    %v3206 = vld [vmem:[%s3174 + $0xf8] sm:$0xff]
    %v3207 = vunpack.c.l.b16 %v2963
    %v3208 = vunpack.c.h.b16 %v2963
    %v3209 = vunpack.c.l.b16 %v2977
    %v3210 = vunpack.c.h.b16 %v2977
    %v3211 = vunpack.c.l.b16 %v2991
    %v3212 = vunpack.c.h.b16 %v2991
    %v3213 = vunpack.c.l.b16 %v3005
    %v3214 = vunpack.c.h.b16 %v3005
    %v3215 = vunpack.c.l.b16 %v3019
    %v3216 = vunpack.c.h.b16 %v3019
    %v3217 = vunpack.c.l.b16 %v3033
    %v3218 = vunpack.c.h.b16 %v3033
    %v3219 = vunpack.c.l.b16 %v3047
    %v3220 = vunpack.c.h.b16 %v3047
    %v3221 = vunpack.c.l.b16 %v3061
    %v3222 = vunpack.c.h.b16 %v3061
    %v3223 = vunpack.c.l.b16 %v3075
    %v3224 = vunpack.c.h.b16 %v3075
    %v3225 = vunpack.c.l.b16 %v3089
    %v3226 = vunpack.c.h.b16 %v3089
    %v3227 = vunpack.c.l.b16 %v3103
    %v3228 = vunpack.c.h.b16 %v3103
    %v3229 = vunpack.c.l.b16 %v3117
    %v3230 = vunpack.c.h.b16 %v3117
    %v3231 = vunpack.c.l.b16 %v3131
    %v3232 = vunpack.c.h.b16 %v3131
    %v3233 = vunpack.c.l.b16 %v3145
    %v3234 = vunpack.c.h.b16 %v3145
    %v3235 = vunpack.c.l.b16 %v3159
    %v3236 = vunpack.c.h.b16 %v3159
    %v3237 = vunpack.c.l.b16 %v3173
    %v3238 = vunpack.c.h.b16 %v3173
    %v3239 = vpack.c.b16 %v3209, %v3207
    %v3240 = vpack.c.b16 %v3210, %v3208
    %v3241 = vpack.c.b16 %v3213, %v3211
    %v3242 = vpack.c.b16 %v3214, %v3212
    %v3243 = vpack.c.b16 %v3217, %v3215
    %v3244 = vpack.c.b16 %v3218, %v3216
    %v3245 = vpack.c.b16 %v3221, %v3219
    %v3246 = vpack.c.b16 %v3222, %v3220
    %v3247 = vpack.c.b16 %v3225, %v3223
    %v3248 = vpack.c.b16 %v3226, %v3224
    %v3249 = vpack.c.b16 %v3229, %v3227
    %v3250 = vpack.c.b16 %v3230, %v3228
    %v3251 = vpack.c.b16 %v3233, %v3231
    %v3252 = vpack.c.b16 %v3234, %v3232
    %v3253 = vpack.c.b16 %v3237, %v3235
    %v3254 = vpack.c.b16 %v3238, %v3236
    %v3303 = vunpack.c.l.b16 %v3175
    %v3304 = vunpack.c.h.b16 %v3175
    %v3305 = vunpack.c.l.b16 %v3176
    %v3306 = vunpack.c.h.b16 %v3176
    %v3307 = vunpack.c.l.b16 %v3177
    %v3308 = vunpack.c.h.b16 %v3177
    %v3309 = vunpack.c.l.b16 %v3178
    %v3310 = vunpack.c.h.b16 %v3178
    %v3311 = vunpack.c.l.b16 %v3179
    %v3312 = vunpack.c.h.b16 %v3179
    %v3313 = vunpack.c.l.b16 %v3180
    %v3314 = vunpack.c.h.b16 %v3180
    %v3315 = vunpack.c.l.b16 %v3181
    %v3316 = vunpack.c.h.b16 %v3181
    %v3317 = vunpack.c.l.b16 %v3182
    %v3318 = vunpack.c.h.b16 %v3182
    %v3319 = vunpack.c.l.b16 %v3183
    %v3320 = vunpack.c.h.b16 %v3183
    %v3321 = vunpack.c.l.b16 %v3184
    %v3322 = vunpack.c.h.b16 %v3184
    %v3323 = vunpack.c.l.b16 %v3185
    %v3324 = vunpack.c.h.b16 %v3185
    %v3325 = vunpack.c.l.b16 %v3186
    %v3326 = vunpack.c.h.b16 %v3186
    %v3327 = vunpack.c.l.b16 %v3187
    %v3328 = vunpack.c.h.b16 %v3187
    %v3329 = vunpack.c.l.b16 %v3188
    %v3330 = vunpack.c.h.b16 %v3188
    %v3331 = vunpack.c.l.b16 %v3189
    %v3332 = vunpack.c.h.b16 %v3189
    %v3333 = vunpack.c.l.b16 %v3190
    %v3334 = vunpack.c.h.b16 %v3190
    %v3335 = vunpack.c.l.b16 %v3191
    %v3336 = vunpack.c.h.b16 %v3191
    %v3337 = vunpack.c.l.b16 %v3192
    %v3338 = vunpack.c.h.b16 %v3192
    %v3339 = vunpack.c.l.b16 %v3193
    %v3340 = vunpack.c.h.b16 %v3193
    %v3341 = vunpack.c.l.b16 %v3194
    %v3342 = vunpack.c.h.b16 %v3194
    %v3343 = vunpack.c.l.b16 %v3195
    %v3344 = vunpack.c.h.b16 %v3195
    %v3345 = vunpack.c.l.b16 %v3196
    %v3346 = vunpack.c.h.b16 %v3196
    %v3347 = vunpack.c.l.b16 %v3197
    %v3348 = vunpack.c.h.b16 %v3197
    %v3349 = vunpack.c.l.b16 %v3198
    %v3350 = vunpack.c.h.b16 %v3198
    %v3351 = vunpack.c.l.b16 %v3199
    %v3352 = vunpack.c.h.b16 %v3199
    %v3353 = vunpack.c.l.b16 %v3200
    %v3354 = vunpack.c.h.b16 %v3200
    %v3355 = vunpack.c.l.b16 %v3201
    %v3356 = vunpack.c.h.b16 %v3201
    %v3357 = vunpack.c.l.b16 %v3202
    %v3358 = vunpack.c.h.b16 %v3202
    %v3359 = vunpack.c.l.b16 %v3203
    %v3360 = vunpack.c.h.b16 %v3203
    %v3361 = vunpack.c.l.b16 %v3204
    %v3362 = vunpack.c.h.b16 %v3204
    %v3363 = vunpack.c.l.b16 %v3205
    %v3364 = vunpack.c.h.b16 %v3205
    %v3365 = vunpack.c.l.b16 %v3206
    %v3366 = vunpack.c.h.b16 %v3206
    %v3367 = vpack.c.b16 %v3305, %v3303
    %v3368 = vpack.c.b16 %v3306, %v3304
    %v3369 = vpack.c.b16 %v3309, %v3307
    %v3370 = vpack.c.b16 %v3310, %v3308
    %v3371 = vpack.c.b16 %v3313, %v3311
    %v3372 = vpack.c.b16 %v3314, %v3312
    %v3373 = vpack.c.b16 %v3317, %v3315
    %v3374 = vpack.c.b16 %v3318, %v3316
    %v3375 = vpack.c.b16 %v3321, %v3319
    %v3376 = vpack.c.b16 %v3322, %v3320
    %v3377 = vpack.c.b16 %v3325, %v3323
    %v3378 = vpack.c.b16 %v3326, %v3324
    %v3379 = vpack.c.b16 %v3329, %v3327
    %v3380 = vpack.c.b16 %v3330, %v3328
    %v3381 = vpack.c.b16 %v3333, %v3331
    %v3382 = vpack.c.b16 %v3334, %v3332
    %v3383 = vpack.c.b16 %v3337, %v3335
    %v3384 = vpack.c.b16 %v3338, %v3336
    %v3385 = vpack.c.b16 %v3341, %v3339
    %v3386 = vpack.c.b16 %v3342, %v3340
    %v3387 = vpack.c.b16 %v3345, %v3343
    %v3388 = vpack.c.b16 %v3346, %v3344
    %v3389 = vpack.c.b16 %v3349, %v3347
    %v3390 = vpack.c.b16 %v3350, %v3348
    %v3391 = vpack.c.b16 %v3353, %v3351
    %v3392 = vpack.c.b16 %v3354, %v3352
    %v3393 = vpack.c.b16 %v3357, %v3355
    %v3394 = vpack.c.b16 %v3358, %v3356
    %v3395 = vpack.c.b16 %v3361, %v3359
    %v3396 = vpack.c.b16 %v3362, %v3360
    %v3397 = vpack.c.b16 %v3365, %v3363
    %v3398 = vpack.c.b16 %v3366, %v3364
    %3431 = vmatprep.subr.bf16.mxu0 %v3382
    %3432 = vmatpush1.bf16.msra.mxu0 %v3381
    %3433 = vmatprep.subr.bf16.mxu0 %v3380
    %3434 = vmatpush1.bf16.msra.mxu0 %v3379
    %3435 = vmatprep.subr.bf16.mxu0 %v3378
    %3436 = vmatpush1.bf16.msra.mxu0 %v3377
    %3437 = vmatprep.subr.bf16.mxu0 %v3376
    %3438 = vmatpush1.bf16.msra.mxu0 %v3375
    %3439 = vmatprep.subr.bf16.mxu0 %v3374
    %3440 = vmatpush1.bf16.msra.mxu0 %v3373
    %3441 = vmatprep.subr.bf16.mxu0 %v3372
    %3442 = vmatpush1.bf16.msra.mxu0 %v3371
    %3443 = vmatprep.subr.bf16.mxu0 %v3370
    %3444 = vmatpush1.bf16.msra.mxu0 %v3369
    %3445 = vmatprep.subr.bf16.mxu0 %v3368
    %3446 = vmatpush1.bf16.msra.mxu0 %v3367
    %3447 = vmatprep.subr.bf16.mxu0 %v3398
    %3448 = vmatpush2.bf16.msra.mxu0 %v3397
    %3449 = vmatprep.subr.bf16.mxu0 %v3396
    %3450 = vmatpush2.bf16.msra.mxu0 %v3395
    %3451 = vmatprep.subr.bf16.mxu0 %v3394
    %3452 = vmatpush2.bf16.msra.mxu0 %v3393
    %3453 = vmatprep.subr.bf16.mxu0 %v3392
    %3454 = vmatpush2.bf16.msra.mxu0 %v3391
    %3455 = vmatprep.subr.bf16.mxu0 %v3390
    %3456 = vmatpush2.bf16.msra.mxu0 %v3389
    %3457 = vmatprep.subr.bf16.mxu0 %v3388
    %3458 = vmatpush2.bf16.msra.mxu0 %v3387
    %3459 = vmatprep.subr.bf16.mxu0 %v3386
    %3460 = vmatpush2.bf16.msra.mxu0 %v3385
    %3461 = vmatprep.subr.bf16.mxu0 %v3384
    %3462 = vmatpush2.bf16.msra.mxu0 %v3383
    %3463 = vmatprep.mubr.bf16.mxu0 %v3240
    %3464 = vmatmul.mubr.bf16.gmra.mxu0 %v3239
    %v3465 = vpop.f32.mrf.mxu0
    %v3466 = vadd.f32 0.0, %v3465
    %v3467 = vpop.f32.mrf.mxu0
    %v3468 = vadd.f32 0.0, %v3467
    %v3469 = vpop.f32.mrf.mxu0
    %v3470 = vadd.f32 0.0, %v3469
    %v3471 = vpop.f32.mrf.mxu0
    %v3472 = vadd.f32 0.0, %v3471
    %3473 = vmatprep.mubr.bf16.mxu0 %v3242
    %3474 = vmatmul.mubr.bf16.gmra.mxu0 %v3241
    %v3475 = vpop.f32.mrf.mxu0
    %v3476 = vadd.f32 0.0, %v3475
    %v3477 = vpop.f32.mrf.mxu0
    %v3478 = vadd.f32 0.0, %v3477
    %v3479 = vpop.f32.mrf.mxu0
    %v3480 = vadd.f32 0.0, %v3479
    %v3481 = vpop.f32.mrf.mxu0
    %v3482 = vadd.f32 0.0, %v3481
    %3483 = vmatprep.mubr.bf16.mxu0 %v3244
    %3484 = vmatmul.mubr.bf16.gmra.mxu0 %v3243
    %v3485 = vpop.f32.mrf.mxu0
    %v3486 = vadd.f32 0.0, %v3485
    %v3487 = vpop.f32.mrf.mxu0
    %v3488 = vadd.f32 0.0, %v3487
    %v3489 = vpop.f32.mrf.mxu0
    %v3490 = vadd.f32 0.0, %v3489
    %v3491 = vpop.f32.mrf.mxu0
    %v3492 = vadd.f32 0.0, %v3491
    %3493 = vmatprep.mubr.bf16.mxu0 %v3246
    %3494 = vmatmul.mubr.bf16.gmra.mxu0 %v3245
    %v3495 = vpop.f32.mrf.mxu0
    %v3496 = vadd.f32 0.0, %v3495
    %v3497 = vpop.f32.mrf.mxu0
    %v3498 = vadd.f32 0.0, %v3497
    %v3499 = vpop.f32.mrf.mxu0
    %v3500 = vadd.f32 0.0, %v3499
    %v3501 = vpop.f32.mrf.mxu0
    %v3502 = vadd.f32 0.0, %v3501
    %3503 = vmatprep.mubr.bf16.mxu0 %v3248
    %3504 = vmatmul.mubr.bf16.gmra.mxu0 %v3247
    %v3505 = vpop.f32.mrf.mxu0
    %v3506 = vadd.f32 0.0, %v3505
    %v3507 = vpop.f32.mrf.mxu0
    %v3508 = vadd.f32 0.0, %v3507
    %v3509 = vpop.f32.mrf.mxu0
    %v3510 = vadd.f32 0.0, %v3509
    %v3511 = vpop.f32.mrf.mxu0
    %v3512 = vadd.f32 0.0, %v3511
    %3513 = vmatprep.mubr.bf16.mxu0 %v3250
    %3514 = vmatmul.mubr.bf16.gmra.mxu0 %v3249
    %v3515 = vpop.f32.mrf.mxu0
    %v3516 = vadd.f32 0.0, %v3515
    %v3517 = vpop.f32.mrf.mxu0
    %v3518 = vadd.f32 0.0, %v3517
    %v3519 = vpop.f32.mrf.mxu0
    %v3520 = vadd.f32 0.0, %v3519
    %v3521 = vpop.f32.mrf.mxu0
    %v3522 = vadd.f32 0.0, %v3521
    %3523 = vmatprep.mubr.bf16.mxu0 %v3252
    %3524 = vmatmul.mubr.bf16.gmra.mxu0 %v3251
    %v3525 = vpop.f32.mrf.mxu0
    %v3526 = vadd.f32 0.0, %v3525
    %v3527 = vpop.f32.mrf.mxu0
    %v3528 = vadd.f32 0.0, %v3527
    %v3529 = vpop.f32.mrf.mxu0
    %v3530 = vadd.f32 0.0, %v3529
    %v3531 = vpop.f32.mrf.mxu0
    %v3532 = vadd.f32 0.0, %v3531
    %3533 = vmatprep.mubr.bf16.mxu0 %v3254
    %3534 = vmatmul.mubr.bf16.gmra.mxu0 %v3253
    %v3535 = vpop.f32.mrf.mxu0
    %v3536 = vadd.f32 0.0, %v3535
    %v3537 = vpop.f32.mrf.mxu0
    %v3538 = vadd.f32 0.0, %v3537
    %v3539 = vpop.f32.mrf.mxu0
    %v3540 = vadd.f32 0.0, %v3539
    %v3541 = vpop.f32.mrf.mxu0
    %v3542 = vadd.f32 0.0, %v3541
    %3543 = vdwg.mxu0
    %v3544 = vld [vmem:[#allocation3] sm:$0xff]
    %v3545 = vld [vmem:[#allocation3 + $0x8] sm:$0xff]
    %v3546 = vld [vmem:[#allocation3 + $0x10] sm:$0xff]
    %v3547 = vld [vmem:[#allocation3 + $0x18] sm:$0xff]
    %v3548 = vld [vmem:[#allocation3 + $0x20] sm:$0xff]
    %v3549 = vld [vmem:[#allocation3 + $0x28] sm:$0xff]
    %v3550 = vld [vmem:[#allocation3 + $0x30] sm:$0xff]
    %v3551 = vld [vmem:[#allocation3 + $0x38] sm:$0xff]
    %v3552 = vld [vmem:[#allocation3 + $0x40] sm:$0xff]
    %v3553 = vld [vmem:[#allocation3 + $0x48] sm:$0xff]
    %v3554 = vld [vmem:[#allocation3 + $0x50] sm:$0xff]
    %v3555 = vld [vmem:[#allocation3 + $0x58] sm:$0xff]
    %v3556 = vld [vmem:[#allocation3 + $0x60] sm:$0xff]
    %v3557 = vld [vmem:[#allocation3 + $0x68] sm:$0xff]
    %v3558 = vld [vmem:[#allocation3 + $0x70] sm:$0xff]
    %v3559 = vld [vmem:[#allocation3 + $0x78] sm:$0xff]
    %v3560 = vld [vmem:[#allocation3 + $0x80] sm:$0xff]
    %v3561 = vld [vmem:[#allocation3 + $0x88] sm:$0xff]
    %v3562 = vld [vmem:[#allocation3 + $0x90] sm:$0xff]
    %v3563 = vld [vmem:[#allocation3 + $0x98] sm:$0xff]
    %v3564 = vld [vmem:[#allocation3 + $0xa0] sm:$0xff]
    %v3565 = vld [vmem:[#allocation3 + $0xa8] sm:$0xff]
    %v3566 = vld [vmem:[#allocation3 + $0xb0] sm:$0xff]
    %v3567 = vld [vmem:[#allocation3 + $0xb8] sm:$0xff]
    %v3568 = vld [vmem:[#allocation3 + $0xc0] sm:$0xff]
    %v3569 = vld [vmem:[#allocation3 + $0xc8] sm:$0xff]
    %v3570 = vld [vmem:[#allocation3 + $0xd0] sm:$0xff]
    %v3571 = vld [vmem:[#allocation3 + $0xd8] sm:$0xff]
    %v3572 = vld [vmem:[#allocation3 + $0xe0] sm:$0xff]
    %v3573 = vld [vmem:[#allocation3 + $0xe8] sm:$0xff]
    %v3574 = vld [vmem:[#allocation3 + $0xf0] sm:$0xff]
    %v3575 = vld [vmem:[#allocation3 + $0xf8] sm:$0xff]
    %v3576 = vadd.f32 %v3544, %v3466
    %v3577 = vadd.f32 %v3545, %v3468
    %v3578 = vadd.f32 %v3546, %v3470
    %v3579 = vadd.f32 %v3547, %v3472
    %v3580 = vadd.f32 %v3548, %v3476
    %v3581 = vadd.f32 %v3549, %v3478
    %v3582 = vadd.f32 %v3550, %v3480
    %v3583 = vadd.f32 %v3551, %v3482
    %v3584 = vadd.f32 %v3552, %v3486
    %v3585 = vadd.f32 %v3553, %v3488
    %v3586 = vadd.f32 %v3554, %v3490
    %v3587 = vadd.f32 %v3555, %v3492
    %v3588 = vadd.f32 %v3556, %v3496
    %v3589 = vadd.f32 %v3557, %v3498
    %v3590 = vadd.f32 %v3558, %v3500
    %v3591 = vadd.f32 %v3559, %v3502
    %v3592 = vadd.f32 %v3560, %v3506
    %v3593 = vadd.f32 %v3561, %v3508
    %v3594 = vadd.f32 %v3562, %v3510
    %v3595 = vadd.f32 %v3563, %v3512
    %v3596 = vadd.f32 %v3564, %v3516
    %v3597 = vadd.f32 %v3565, %v3518
    %v3598 = vadd.f32 %v3566, %v3520
    %v3599 = vadd.f32 %v3567, %v3522
    %v3600 = vadd.f32 %v3568, %v3526
    %v3601 = vadd.f32 %v3569, %v3528
    %v3602 = vadd.f32 %v3570, %v3530
    %v3603 = vadd.f32 %v3571, %v3532
    %v3604 = vadd.f32 %v3572, %v3536
    %v3605 = vadd.f32 %v3573, %v3538
    %v3606 = vadd.f32 %v3574, %v3540
    %v3607 = vadd.f32 %v3575, %v3542
    %3608 = vst [vmem:[#allocation3] sm:$0xff] %v3576
    %3609 = vst [vmem:[#allocation3 + $0x8] sm:$0xff] %v3577
    %3610 = vst [vmem:[#allocation3 + $0x10] sm:$0xff] %v3578
    %3611 = vst [vmem:[#allocation3 + $0x18] sm:$0xff] %v3579
    %3612 = vst [vmem:[#allocation3 + $0x20] sm:$0xff] %v3580
    %3613 = vst [vmem:[#allocation3 + $0x28] sm:$0xff] %v3581
    %3614 = vst [vmem:[#allocation3 + $0x30] sm:$0xff] %v3582
    %3615 = vst [vmem:[#allocation3 + $0x38] sm:$0xff] %v3583
    %3616 = vst [vmem:[#allocation3 + $0x40] sm:$0xff] %v3584
    %3617 = vst [vmem:[#allocation3 + $0x48] sm:$0xff] %v3585
    %3618 = vst [vmem:[#allocation3 + $0x50] sm:$0xff] %v3586
    %3619 = vst [vmem:[#allocation3 + $0x58] sm:$0xff] %v3587
    %3620 = vst [vmem:[#allocation3 + $0x60] sm:$0xff] %v3588
    %3621 = vst [vmem:[#allocation3 + $0x68] sm:$0xff] %v3589
    %3622 = vst [vmem:[#allocation3 + $0x70] sm:$0xff] %v3590
    %3623 = vst [vmem:[#allocation3 + $0x78] sm:$0xff] %v3591
    %3624 = vst [vmem:[#allocation3 + $0x80] sm:$0xff] %v3592
    %3625 = vst [vmem:[#allocation3 + $0x88] sm:$0xff] %v3593
    %3626 = vst [vmem:[#allocation3 + $0x90] sm:$0xff] %v3594
    %3627 = vst [vmem:[#allocation3 + $0x98] sm:$0xff] %v3595
    %3628 = vst [vmem:[#allocation3 + $0xa0] sm:$0xff] %v3596
    %3629 = vst [vmem:[#allocation3 + $0xa8] sm:$0xff] %v3597
    %3630 = vst [vmem:[#allocation3 + $0xb0] sm:$0xff] %v3598
    %3631 = vst [vmem:[#allocation3 + $0xb8] sm:$0xff] %v3599
    %3632 = vst [vmem:[#allocation3 + $0xc0] sm:$0xff] %v3600
    %3633 = vst [vmem:[#allocation3 + $0xc8] sm:$0xff] %v3601
    %3634 = vst [vmem:[#allocation3 + $0xd0] sm:$0xff] %v3602
    %3635 = vst [vmem:[#allocation3 + $0xd8] sm:$0xff] %v3603
    %3636 = vst [vmem:[#allocation3 + $0xe0] sm:$0xff] %v3604
    %3637 = vst [vmem:[#allocation3 + $0xe8] sm:$0xff] %v3605
    %3638 = vst [vmem:[#allocation3 + $0xf0] sm:$0xff] %v3606
    %3639 = vst [vmem:[#allocation3 + $0xf8] sm:$0xff] %v3607
    %v3640 = vld [vmem:[%s563] sm:$0xee]
    %v3641 = vld [vmem:[%s563 + $0x8] sm:$0x11]
    %v3642 = vld [vmem:[%s563 + $0x10] sm:$0xee]
    %v3643 = vld [vmem:[%s563 + $0x18] sm:$0x11]
    %v3644 = vld [vmem:[%s563 + $0x20] sm:$0xee]
    %v3645 = vld [vmem:[%s563 + $0x28] sm:$0x11]
    %v3646 = vld [vmem:[%s563 + $0x30] sm:$0xee]
    %v3647 = vld [vmem:[%s563 + $0x38] sm:$0x11]
    %v3648 = vld [vmem:[%s563 + $0x40] sm:$0xee]
    %v3649 = vld [vmem:[%s563 + $0x48] sm:$0x11]
    %v3650 = vld [vmem:[%s563 + $0x50] sm:$0xee]
    %v3651 = vld [vmem:[%s563 + $0x58] sm:$0x11]
    %v3652 = vld [vmem:[%s563 + $0x60] sm:$0xee]
    %v3653 = vld [vmem:[%s563 + $0x68] sm:$0x11]
    %v3654 = vld [vmem:[%s563 + $0x70] sm:$0xee]
    %v3655 = vld [vmem:[%s563 + $0x78] sm:$0x11]
    %v3656 = vld [vmem:[%s563 + $0xa0] sm:$0xee]
    %v3657 = vld [vmem:[%s563 + $0xa8] sm:$0x11]
    %v3658 = vld [vmem:[%s563 + $0xb0] sm:$0xee]
    %v3659 = vld [vmem:[%s563 + $0xb8] sm:$0x11]
    %v3660 = vld [vmem:[%s563 + $0xc0] sm:$0xee]
    %v3661 = vld [vmem:[%s563 + $0xc8] sm:$0x11]
    %v3662 = vld [vmem:[%s563 + $0xd0] sm:$0xee]
    %v3663 = vld [vmem:[%s563 + $0xd8] sm:$0x11]
    %v3664 = vld [vmem:[%s563 + $0xe0] sm:$0xee]
    %v3665 = vld [vmem:[%s563 + $0xe8] sm:$0x11]
    %v3666 = vld [vmem:[%s563 + $0xf0] sm:$0xee]
    %v3667 = vld [vmem:[%s563 + $0xf8] sm:$0x11]
    %v3668 = vld [vmem:[%s563 + $0x100] sm:$0xee]
    %v3669 = vld [vmem:[%s563 + $0x108] sm:$0x11]
    %v3670 = vld [vmem:[%s563 + $0x110] sm:$0xee]
    %v3671 = vld [vmem:[%s563 + $0x118] sm:$0x11]
    %v3704 = vrot.slane %v3640, 5
    %v3705 = vrot.slane %v3704, 4
    %v3706 = vrot.slane %v3641, 5
    %v3707 = vsel %vm1889, %v3705, %v3706
    %v3708 = vrot.slane %v3642, 5
    %v3709 = vrot.slane %v3708, 4
    %v3710 = vrot.slane %v3643, 5
    %v3711 = vsel %vm1889, %v3709, %v3710
    %v3712 = vrot.slane %v3644, 5
    %v3713 = vrot.slane %v3712, 4
    %v3714 = vrot.slane %v3645, 5
    %v3715 = vsel %vm1889, %v3713, %v3714
    %v3716 = vrot.slane %v3646, 5
    %v3717 = vrot.slane %v3716, 4
    %v3718 = vrot.slane %v3647, 5
    %v3719 = vsel %vm1889, %v3717, %v3718
    %v3720 = vrot.slane %v3648, 5
    %v3721 = vrot.slane %v3720, 4
    %v3722 = vrot.slane %v3649, 5
    %v3723 = vsel %vm1889, %v3721, %v3722
    %v3724 = vrot.slane %v3650, 5
    %v3725 = vrot.slane %v3724, 4
    %v3726 = vrot.slane %v3651, 5
    %v3727 = vsel %vm1889, %v3725, %v3726
    %v3728 = vrot.slane %v3652, 5
    %v3729 = vrot.slane %v3728, 4
    %v3730 = vrot.slane %v3653, 5
    %v3731 = vsel %vm1889, %v3729, %v3730
    %v3732 = vrot.slane %v3654, 5
    %v3733 = vrot.slane %v3732, 4
    %v3734 = vrot.slane %v3655, 5
    %v3735 = vsel %vm1889, %v3733, %v3734
    %v3736 = vrot.slane %v3656, 5
    %v3737 = vrot.slane %v3736, 4
    %v3738 = vrot.slane %v3657, 5
    %v3739 = vsel %vm1889, %v3737, %v3738
    %v3740 = vrot.slane %v3658, 5
    %v3741 = vrot.slane %v3740, 4
    %v3742 = vrot.slane %v3659, 5
    %v3743 = vsel %vm1889, %v3741, %v3742
    %v3744 = vrot.slane %v3660, 5
    %v3745 = vrot.slane %v3744, 4
    %v3746 = vrot.slane %v3661, 5
    %v3747 = vsel %vm1889, %v3745, %v3746
    %v3748 = vrot.slane %v3662, 5
    %v3749 = vrot.slane %v3748, 4
    %v3750 = vrot.slane %v3663, 5
    %v3751 = vsel %vm1889, %v3749, %v3750
    %v3752 = vrot.slane %v3664, 5
    %v3753 = vrot.slane %v3752, 4
    %v3754 = vrot.slane %v3665, 5
    %v3755 = vsel %vm1889, %v3753, %v3754
    %v3756 = vrot.slane %v3666, 5
    %v3757 = vrot.slane %v3756, 4
    %v3758 = vrot.slane %v3667, 5
    %v3759 = vsel %vm1889, %v3757, %v3758
    %v3760 = vrot.slane %v3668, 5
    %v3761 = vrot.slane %v3760, 4
    %v3762 = vrot.slane %v3669, 5
    %v3763 = vsel %vm1889, %v3761, %v3762
    %v3764 = vrot.slane %v3670, 5
    %v3765 = vrot.slane %v3764, 4
    %v3766 = vrot.slane %v3671, 5
    %v3767 = vsel %vm1889, %v3765, %v3766
    %s3768 = scalar_lea.vmem [#allocation7], 1280
    %v3769 = vld [vmem:[%s3768] sm:$0xff]
    %v3770 = vld [vmem:[%s3768 + $0x8] sm:$0xff]
    %v3771 = vld [vmem:[%s3768 + $0x10] sm:$0xff]
    %v3772 = vld [vmem:[%s3768 + $0x18] sm:$0xff]
    %v3773 = vld [vmem:[%s3768 + $0x20] sm:$0xff]
    %v3774 = vld [vmem:[%s3768 + $0x28] sm:$0xff]
    %v3775 = vld [vmem:[%s3768 + $0x30] sm:$0xff]
    %v3776 = vld [vmem:[%s3768 + $0x38] sm:$0xff]
    %v3777 = vld [vmem:[%s3768 + $0x40] sm:$0xff]
    %v3778 = vld [vmem:[%s3768 + $0x48] sm:$0xff]
    %v3779 = vld [vmem:[%s3768 + $0x50] sm:$0xff]
    %v3780 = vld [vmem:[%s3768 + $0x58] sm:$0xff]
    %v3781 = vld [vmem:[%s3768 + $0x60] sm:$0xff]
    %v3782 = vld [vmem:[%s3768 + $0x68] sm:$0xff]
    %v3783 = vld [vmem:[%s3768 + $0x70] sm:$0xff]
    %v3784 = vld [vmem:[%s3768 + $0x78] sm:$0xff]
    %v3785 = vld [vmem:[%s3768 + $0x80] sm:$0xff]
    %v3786 = vld [vmem:[%s3768 + $0x88] sm:$0xff]
    %v3787 = vld [vmem:[%s3768 + $0x90] sm:$0xff]
    %v3788 = vld [vmem:[%s3768 + $0x98] sm:$0xff]
    %v3789 = vld [vmem:[%s3768 + $0xa0] sm:$0xff]
    %v3790 = vld [vmem:[%s3768 + $0xa8] sm:$0xff]
    %v3791 = vld [vmem:[%s3768 + $0xb0] sm:$0xff]
    %v3792 = vld [vmem:[%s3768 + $0xb8] sm:$0xff]
    %v3793 = vld [vmem:[%s3768 + $0xc0] sm:$0xff]
    %v3794 = vld [vmem:[%s3768 + $0xc8] sm:$0xff]
    %v3795 = vld [vmem:[%s3768 + $0xd0] sm:$0xff]
    %v3796 = vld [vmem:[%s3768 + $0xd8] sm:$0xff]
    %v3797 = vld [vmem:[%s3768 + $0xe0] sm:$0xff]
    %v3798 = vld [vmem:[%s3768 + $0xe8] sm:$0xff]
    %v3799 = vld [vmem:[%s3768 + $0xf0] sm:$0xff]
    %v3800 = vld [vmem:[%s3768 + $0xf8] sm:$0xff]
    %v3801 = vunpack.c.l.b16 %v3707
    %v3802 = vunpack.c.h.b16 %v3707
    %v3803 = vunpack.c.l.b16 %v3711
    %v3804 = vunpack.c.h.b16 %v3711
    %v3805 = vunpack.c.l.b16 %v3715
    %v3806 = vunpack.c.h.b16 %v3715
    %v3807 = vunpack.c.l.b16 %v3719
    %v3808 = vunpack.c.h.b16 %v3719
    %v3809 = vunpack.c.l.b16 %v3723
    %v3810 = vunpack.c.h.b16 %v3723
    %v3811 = vunpack.c.l.b16 %v3727
    %v3812 = vunpack.c.h.b16 %v3727
    %v3813 = vunpack.c.l.b16 %v3731
    %v3814 = vunpack.c.h.b16 %v3731
    %v3815 = vunpack.c.l.b16 %v3735
    %v3816 = vunpack.c.h.b16 %v3735
    %v3817 = vunpack.c.l.b16 %v3739
    %v3818 = vunpack.c.h.b16 %v3739
    %v3819 = vunpack.c.l.b16 %v3743
    %v3820 = vunpack.c.h.b16 %v3743
    %v3821 = vunpack.c.l.b16 %v3747
    %v3822 = vunpack.c.h.b16 %v3747
    %v3823 = vunpack.c.l.b16 %v3751
    %v3824 = vunpack.c.h.b16 %v3751
    %v3825 = vunpack.c.l.b16 %v3755
    %v3826 = vunpack.c.h.b16 %v3755
    %v3827 = vunpack.c.l.b16 %v3759
    %v3828 = vunpack.c.h.b16 %v3759
    %v3829 = vunpack.c.l.b16 %v3763
    %v3830 = vunpack.c.h.b16 %v3763
    %v3831 = vunpack.c.l.b16 %v3767
    %v3832 = vunpack.c.h.b16 %v3767
    %v3833 = vpack.c.b16 %v3803, %v3801
    %v3834 = vpack.c.b16 %v3804, %v3802
    %v3835 = vpack.c.b16 %v3807, %v3805
    %v3836 = vpack.c.b16 %v3808, %v3806
    %v3837 = vpack.c.b16 %v3811, %v3809
    %v3838 = vpack.c.b16 %v3812, %v3810
    %v3839 = vpack.c.b16 %v3815, %v3813
    %v3840 = vpack.c.b16 %v3816, %v3814
    %v3841 = vpack.c.b16 %v3819, %v3817
    %v3842 = vpack.c.b16 %v3820, %v3818
    %v3843 = vpack.c.b16 %v3823, %v3821
    %v3844 = vpack.c.b16 %v3824, %v3822
    %v3845 = vpack.c.b16 %v3827, %v3825
    %v3846 = vpack.c.b16 %v3828, %v3826
    %v3847 = vpack.c.b16 %v3831, %v3829
    %v3848 = vpack.c.b16 %v3832, %v3830
    %v3897 = vunpack.c.l.b16 %v3769
    %v3898 = vunpack.c.h.b16 %v3769
    %v3899 = vunpack.c.l.b16 %v3770
    %v3900 = vunpack.c.h.b16 %v3770
    %v3901 = vunpack.c.l.b16 %v3771
    %v3902 = vunpack.c.h.b16 %v3771
    %v3903 = vunpack.c.l.b16 %v3772
    %v3904 = vunpack.c.h.b16 %v3772
    %v3905 = vunpack.c.l.b16 %v3773
    %v3906 = vunpack.c.h.b16 %v3773
    %v3907 = vunpack.c.l.b16 %v3774
    %v3908 = vunpack.c.h.b16 %v3774
    %v3909 = vunpack.c.l.b16 %v3775
    %v3910 = vunpack.c.h.b16 %v3775
    %v3911 = vunpack.c.l.b16 %v3776
    %v3912 = vunpack.c.h.b16 %v3776
    %v3913 = vunpack.c.l.b16 %v3777
    %v3914 = vunpack.c.h.b16 %v3777
    %v3915 = vunpack.c.l.b16 %v3778
    %v3916 = vunpack.c.h.b16 %v3778
    %v3917 = vunpack.c.l.b16 %v3779
    %v3918 = vunpack.c.h.b16 %v3779
    %v3919 = vunpack.c.l.b16 %v3780
    %v3920 = vunpack.c.h.b16 %v3780
    %v3921 = vunpack.c.l.b16 %v3781
    %v3922 = vunpack.c.h.b16 %v3781
    %v3923 = vunpack.c.l.b16 %v3782
    %v3924 = vunpack.c.h.b16 %v3782
    %v3925 = vunpack.c.l.b16 %v3783
    %v3926 = vunpack.c.h.b16 %v3783
    %v3927 = vunpack.c.l.b16 %v3784
    %v3928 = vunpack.c.h.b16 %v3784
    %v3929 = vunpack.c.l.b16 %v3785
    %v3930 = vunpack.c.h.b16 %v3785
    %v3931 = vunpack.c.l.b16 %v3786
    %v3932 = vunpack.c.h.b16 %v3786
    %v3933 = vunpack.c.l.b16 %v3787
    %v3934 = vunpack.c.h.b16 %v3787
    %v3935 = vunpack.c.l.b16 %v3788
    %v3936 = vunpack.c.h.b16 %v3788
    %v3937 = vunpack.c.l.b16 %v3789
    %v3938 = vunpack.c.h.b16 %v3789
    %v3939 = vunpack.c.l.b16 %v3790
    %v3940 = vunpack.c.h.b16 %v3790
    %v3941 = vunpack.c.l.b16 %v3791
    %v3942 = vunpack.c.h.b16 %v3791
    %v3943 = vunpack.c.l.b16 %v3792
    %v3944 = vunpack.c.h.b16 %v3792
    %v3945 = vunpack.c.l.b16 %v3793
    %v3946 = vunpack.c.h.b16 %v3793
    %v3947 = vunpack.c.l.b16 %v3794
    %v3948 = vunpack.c.h.b16 %v3794
    %v3949 = vunpack.c.l.b16 %v3795
    %v3950 = vunpack.c.h.b16 %v3795
    %v3951 = vunpack.c.l.b16 %v3796
    %v3952 = vunpack.c.h.b16 %v3796
    %v3953 = vunpack.c.l.b16 %v3797
    %v3954 = vunpack.c.h.b16 %v3797
    %v3955 = vunpack.c.l.b16 %v3798
    %v3956 = vunpack.c.h.b16 %v3798
    %v3957 = vunpack.c.l.b16 %v3799
    %v3958 = vunpack.c.h.b16 %v3799
    %v3959 = vunpack.c.l.b16 %v3800
    %v3960 = vunpack.c.h.b16 %v3800
    %v3961 = vpack.c.b16 %v3899, %v3897
    %v3962 = vpack.c.b16 %v3900, %v3898
    %v3963 = vpack.c.b16 %v3903, %v3901
    %v3964 = vpack.c.b16 %v3904, %v3902
    %v3965 = vpack.c.b16 %v3907, %v3905
    %v3966 = vpack.c.b16 %v3908, %v3906
    %v3967 = vpack.c.b16 %v3911, %v3909
    %v3968 = vpack.c.b16 %v3912, %v3910
    %v3969 = vpack.c.b16 %v3915, %v3913
    %v3970 = vpack.c.b16 %v3916, %v3914
    %v3971 = vpack.c.b16 %v3919, %v3917
    %v3972 = vpack.c.b16 %v3920, %v3918
    %v3973 = vpack.c.b16 %v3923, %v3921
    %v3974 = vpack.c.b16 %v3924, %v3922
    %v3975 = vpack.c.b16 %v3927, %v3925
    %v3976 = vpack.c.b16 %v3928, %v3926
    %v3977 = vpack.c.b16 %v3931, %v3929
    %v3978 = vpack.c.b16 %v3932, %v3930
    %v3979 = vpack.c.b16 %v3935, %v3933
    %v3980 = vpack.c.b16 %v3936, %v3934
    %v3981 = vpack.c.b16 %v3939, %v3937
    %v3982 = vpack.c.b16 %v3940, %v3938
    %v3983 = vpack.c.b16 %v3943, %v3941
    %v3984 = vpack.c.b16 %v3944, %v3942
    %v3985 = vpack.c.b16 %v3947, %v3945
    %v3986 = vpack.c.b16 %v3948, %v3946
    %v3987 = vpack.c.b16 %v3951, %v3949
    %v3988 = vpack.c.b16 %v3952, %v3950
    %v3989 = vpack.c.b16 %v3955, %v3953
    %v3990 = vpack.c.b16 %v3956, %v3954
    %v3991 = vpack.c.b16 %v3959, %v3957
    %v3992 = vpack.c.b16 %v3960, %v3958
    %4025 = vmatprep.subr.bf16.mxu0 %v3976
    %4026 = vmatpush1.bf16.msra.mxu0 %v3975
    %4027 = vmatprep.subr.bf16.mxu0 %v3974
    %4028 = vmatpush1.bf16.msra.mxu0 %v3973
    %4029 = vmatprep.subr.bf16.mxu0 %v3972
    %4030 = vmatpush1.bf16.msra.mxu0 %v3971
    %4031 = vmatprep.subr.bf16.mxu0 %v3970
    %4032 = vmatpush1.bf16.msra.mxu0 %v3969
    %4033 = vmatprep.subr.bf16.mxu0 %v3968
    %4034 = vmatpush1.bf16.msra.mxu0 %v3967
    %4035 = vmatprep.subr.bf16.mxu0 %v3966
    %4036 = vmatpush1.bf16.msra.mxu0 %v3965
    %4037 = vmatprep.subr.bf16.mxu0 %v3964
    %4038 = vmatpush1.bf16.msra.mxu0 %v3963
    %4039 = vmatprep.subr.bf16.mxu0 %v3962
    %4040 = vmatpush1.bf16.msra.mxu0 %v3961
    %4041 = vmatprep.subr.bf16.mxu0 %v3992
    %4042 = vmatpush2.bf16.msra.mxu0 %v3991
    %4043 = vmatprep.subr.bf16.mxu0 %v3990
    %4044 = vmatpush2.bf16.msra.mxu0 %v3989
    %4045 = vmatprep.subr.bf16.mxu0 %v3988
    %4046 = vmatpush2.bf16.msra.mxu0 %v3987
    %4047 = vmatprep.subr.bf16.mxu0 %v3986
    %4048 = vmatpush2.bf16.msra.mxu0 %v3985
    %4049 = vmatprep.subr.bf16.mxu0 %v3984
    %4050 = vmatpush2.bf16.msra.mxu0 %v3983
    %4051 = vmatprep.subr.bf16.mxu0 %v3982
    %4052 = vmatpush2.bf16.msra.mxu0 %v3981
    %4053 = vmatprep.subr.bf16.mxu0 %v3980
    %4054 = vmatpush2.bf16.msra.mxu0 %v3979
    %4055 = vmatprep.subr.bf16.mxu0 %v3978
    %4056 = vmatpush2.bf16.msra.mxu0 %v3977
    %4057 = vmatprep.mubr.bf16.mxu0 %v3834
    %4058 = vmatmul.mubr.bf16.gmra.mxu0 %v3833
    %v4059 = vpop.f32.mrf.mxu0
    %v4060 = vadd.f32 0.0, %v4059
    %v4061 = vpop.f32.mrf.mxu0
    %v4062 = vadd.f32 0.0, %v4061
    %v4063 = vpop.f32.mrf.mxu0
    %v4064 = vadd.f32 0.0, %v4063
    %v4065 = vpop.f32.mrf.mxu0
    %v4066 = vadd.f32 0.0, %v4065
    %4067 = vmatprep.mubr.bf16.mxu0 %v3836
    %4068 = vmatmul.mubr.bf16.gmra.mxu0 %v3835
    %v4069 = vpop.f32.mrf.mxu0
    %v4070 = vadd.f32 0.0, %v4069
    %v4071 = vpop.f32.mrf.mxu0
    %v4072 = vadd.f32 0.0, %v4071
    %v4073 = vpop.f32.mrf.mxu0
    %v4074 = vadd.f32 0.0, %v4073
    %v4075 = vpop.f32.mrf.mxu0
    %v4076 = vadd.f32 0.0, %v4075
    %4077 = vmatprep.mubr.bf16.mxu0 %v3838
    %4078 = vmatmul.mubr.bf16.gmra.mxu0 %v3837
    %v4079 = vpop.f32.mrf.mxu0
    %v4080 = vadd.f32 0.0, %v4079
    %v4081 = vpop.f32.mrf.mxu0
    %v4082 = vadd.f32 0.0, %v4081
    %v4083 = vpop.f32.mrf.mxu0
    %v4084 = vadd.f32 0.0, %v4083
    %v4085 = vpop.f32.mrf.mxu0
    %v4086 = vadd.f32 0.0, %v4085
    %4087 = vmatprep.mubr.bf16.mxu0 %v3840
    %4088 = vmatmul.mubr.bf16.gmra.mxu0 %v3839
    %v4089 = vpop.f32.mrf.mxu0
    %v4090 = vadd.f32 0.0, %v4089
    %v4091 = vpop.f32.mrf.mxu0
    %v4092 = vadd.f32 0.0, %v4091
    %v4093 = vpop.f32.mrf.mxu0
    %v4094 = vadd.f32 0.0, %v4093
    %v4095 = vpop.f32.mrf.mxu0
    %v4096 = vadd.f32 0.0, %v4095
    %4097 = vmatprep.mubr.bf16.mxu0 %v3842
    %4098 = vmatmul.mubr.bf16.gmra.mxu0 %v3841
    %v4099 = vpop.f32.mrf.mxu0
    %v4100 = vadd.f32 0.0, %v4099
    %v4101 = vpop.f32.mrf.mxu0
    %v4102 = vadd.f32 0.0, %v4101
    %v4103 = vpop.f32.mrf.mxu0
    %v4104 = vadd.f32 0.0, %v4103
    %v4105 = vpop.f32.mrf.mxu0
    %v4106 = vadd.f32 0.0, %v4105
    %4107 = vmatprep.mubr.bf16.mxu0 %v3844
    %4108 = vmatmul.mubr.bf16.gmra.mxu0 %v3843
    %v4109 = vpop.f32.mrf.mxu0
    %v4110 = vadd.f32 0.0, %v4109
    %v4111 = vpop.f32.mrf.mxu0
    %v4112 = vadd.f32 0.0, %v4111
    %v4113 = vpop.f32.mrf.mxu0
    %v4114 = vadd.f32 0.0, %v4113
    %v4115 = vpop.f32.mrf.mxu0
    %v4116 = vadd.f32 0.0, %v4115
    %4117 = vmatprep.mubr.bf16.mxu0 %v3846
    %4118 = vmatmul.mubr.bf16.gmra.mxu0 %v3845
    %v4119 = vpop.f32.mrf.mxu0
    %v4120 = vadd.f32 0.0, %v4119
    %v4121 = vpop.f32.mrf.mxu0
    %v4122 = vadd.f32 0.0, %v4121
    %v4123 = vpop.f32.mrf.mxu0
    %v4124 = vadd.f32 0.0, %v4123
    %v4125 = vpop.f32.mrf.mxu0
    %v4126 = vadd.f32 0.0, %v4125
    %4127 = vmatprep.mubr.bf16.mxu0 %v3848
    %4128 = vmatmul.mubr.bf16.gmra.mxu0 %v3847
    %v4129 = vpop.f32.mrf.mxu0
    %v4130 = vadd.f32 0.0, %v4129
    %v4131 = vpop.f32.mrf.mxu0
    %v4132 = vadd.f32 0.0, %v4131
    %v4133 = vpop.f32.mrf.mxu0
    %v4134 = vadd.f32 0.0, %v4133
    %v4135 = vpop.f32.mrf.mxu0
    %v4136 = vadd.f32 0.0, %v4135
    %4137 = vdwg.mxu0
    %v4138 = vld [vmem:[#allocation3] sm:$0xff]
    %v4139 = vld [vmem:[#allocation3 + $0x8] sm:$0xff]
    %v4140 = vld [vmem:[#allocation3 + $0x10] sm:$0xff]
    %v4141 = vld [vmem:[#allocation3 + $0x18] sm:$0xff]
    %v4142 = vld [vmem:[#allocation3 + $0x20] sm:$0xff]
    %v4143 = vld [vmem:[#allocation3 + $0x28] sm:$0xff]
    %v4144 = vld [vmem:[#allocation3 + $0x30] sm:$0xff]
    %v4145 = vld [vmem:[#allocation3 + $0x38] sm:$0xff]
    %v4146 = vld [vmem:[#allocation3 + $0x40] sm:$0xff]
    %v4147 = vld [vmem:[#allocation3 + $0x48] sm:$0xff]
    %v4148 = vld [vmem:[#allocation3 + $0x50] sm:$0xff]
    %v4149 = vld [vmem:[#allocation3 + $0x58] sm:$0xff]
    %v4150 = vld [vmem:[#allocation3 + $0x60] sm:$0xff]
    %v4151 = vld [vmem:[#allocation3 + $0x68] sm:$0xff]
    %v4152 = vld [vmem:[#allocation3 + $0x70] sm:$0xff]
    %v4153 = vld [vmem:[#allocation3 + $0x78] sm:$0xff]
    %v4154 = vld [vmem:[#allocation3 + $0x80] sm:$0xff]
    %v4155 = vld [vmem:[#allocation3 + $0x88] sm:$0xff]
    %v4156 = vld [vmem:[#allocation3 + $0x90] sm:$0xff]
    %v4157 = vld [vmem:[#allocation3 + $0x98] sm:$0xff]
    %v4158 = vld [vmem:[#allocation3 + $0xa0] sm:$0xff]
    %v4159 = vld [vmem:[#allocation3 + $0xa8] sm:$0xff]
    %v4160 = vld [vmem:[#allocation3 + $0xb0] sm:$0xff]
    %v4161 = vld [vmem:[#allocation3 + $0xb8] sm:$0xff]
    %v4162 = vld [vmem:[#allocation3 + $0xc0] sm:$0xff]
    %v4163 = vld [vmem:[#allocation3 + $0xc8] sm:$0xff]
    %v4164 = vld [vmem:[#allocation3 + $0xd0] sm:$0xff]
    %v4165 = vld [vmem:[#allocation3 + $0xd8] sm:$0xff]
    %v4166 = vld [vmem:[#allocation3 + $0xe0] sm:$0xff]
    %v4167 = vld [vmem:[#allocation3 + $0xe8] sm:$0xff]
    %v4168 = vld [vmem:[#allocation3 + $0xf0] sm:$0xff]
    %v4169 = vld [vmem:[#allocation3 + $0xf8] sm:$0xff]
    %v4170 = vadd.f32 %v4138, %v4060
    %v4171 = vadd.f32 %v4139, %v4062
    %v4172 = vadd.f32 %v4140, %v4064
    %v4173 = vadd.f32 %v4141, %v4066
    %v4174 = vadd.f32 %v4142, %v4070
    %v4175 = vadd.f32 %v4143, %v4072
    %v4176 = vadd.f32 %v4144, %v4074
    %v4177 = vadd.f32 %v4145, %v4076
    %v4178 = vadd.f32 %v4146, %v4080
    %v4179 = vadd.f32 %v4147, %v4082
    %v4180 = vadd.f32 %v4148, %v4084
    %v4181 = vadd.f32 %v4149, %v4086
    %v4182 = vadd.f32 %v4150, %v4090
    %v4183 = vadd.f32 %v4151, %v4092
    %v4184 = vadd.f32 %v4152, %v4094
    %v4185 = vadd.f32 %v4153, %v4096
    %v4186 = vadd.f32 %v4154, %v4100
    %v4187 = vadd.f32 %v4155, %v4102
    %v4188 = vadd.f32 %v4156, %v4104
    %v4189 = vadd.f32 %v4157, %v4106
    %v4190 = vadd.f32 %v4158, %v4110
    %v4191 = vadd.f32 %v4159, %v4112
    %v4192 = vadd.f32 %v4160, %v4114
    %v4193 = vadd.f32 %v4161, %v4116
    %v4194 = vadd.f32 %v4162, %v4120
    %v4195 = vadd.f32 %v4163, %v4122
    %v4196 = vadd.f32 %v4164, %v4124
    %v4197 = vadd.f32 %v4165, %v4126
    %v4198 = vadd.f32 %v4166, %v4130
    %v4199 = vadd.f32 %v4167, %v4132
    %v4200 = vadd.f32 %v4168, %v4134
    %v4201 = vadd.f32 %v4169, %v4136
    %4202 = vst [vmem:[#allocation3] sm:$0xff] %v4170
    %4203 = vst [vmem:[#allocation3 + $0x8] sm:$0xff] %v4171
    %4204 = vst [vmem:[#allocation3 + $0x10] sm:$0xff] %v4172
    %4205 = vst [vmem:[#allocation3 + $0x18] sm:$0xff] %v4173
    %4206 = vst [vmem:[#allocation3 + $0x20] sm:$0xff] %v4174
    %4207 = vst [vmem:[#allocation3 + $0x28] sm:$0xff] %v4175
    %4208 = vst [vmem:[#allocation3 + $0x30] sm:$0xff] %v4176
    %4209 = vst [vmem:[#allocation3 + $0x38] sm:$0xff] %v4177
    %4210 = vst [vmem:[#allocation3 + $0x40] sm:$0xff] %v4178
    %4211 = vst [vmem:[#allocation3 + $0x48] sm:$0xff] %v4179
    %4212 = vst [vmem:[#allocation3 + $0x50] sm:$0xff] %v4180
    %4213 = vst [vmem:[#allocation3 + $0x58] sm:$0xff] %v4181
    %4214 = vst [vmem:[#allocation3 + $0x60] sm:$0xff] %v4182
    %4215 = vst [vmem:[#allocation3 + $0x68] sm:$0xff] %v4183
    %4216 = vst [vmem:[#allocation3 + $0x70] sm:$0xff] %v4184
    %4217 = vst [vmem:[#allocation3 + $0x78] sm:$0xff] %v4185
    %4218 = vst [vmem:[#allocation3 + $0x80] sm:$0xff] %v4186
    %4219 = vst [vmem:[#allocation3 + $0x88] sm:$0xff] %v4187
    %4220 = vst [vmem:[#allocation3 + $0x90] sm:$0xff] %v4188
    %4221 = vst [vmem:[#allocation3 + $0x98] sm:$0xff] %v4189
    %4222 = vst [vmem:[#allocation3 + $0xa0] sm:$0xff] %v4190
    %4223 = vst [vmem:[#allocation3 + $0xa8] sm:$0xff] %v4191
    %4224 = vst [vmem:[#allocation3 + $0xb0] sm:$0xff] %v4192
    %4225 = vst [vmem:[#allocation3 + $0xb8] sm:$0xff] %v4193
    %4226 = vst [vmem:[#allocation3 + $0xc0] sm:$0xff] %v4194
    %4227 = vst [vmem:[#allocation3 + $0xc8] sm:$0xff] %v4195
    %4228 = vst [vmem:[#allocation3 + $0xd0] sm:$0xff] %v4196
    %4229 = vst [vmem:[#allocation3 + $0xd8] sm:$0xff] %v4197
    %4230 = vst [vmem:[#allocation3 + $0xe0] sm:$0xff] %v4198
    %4231 = vst [vmem:[#allocation3 + $0xe8] sm:$0xff] %v4199
    %4232 = vst [vmem:[#allocation3 + $0xf0] sm:$0xff] %v4200
    %4233 = vst [vmem:[#allocation3 + $0xf8] sm:$0xff] %v4201
    %s4234 = scalar_lea.vmem [#allocation2], 32
    %v4235 = vld [vmem:[%s4234] sm:$0xff]
    %v4236 = vld [vmem:[%s4234 + $0x10] sm:$0xff]
    %v4237 = vld [vmem:[%s4234 + $0x20] sm:$0xff]
    %v4238 = vld [vmem:[%s4234 + $0x30] sm:$0xff]
    %v4239 = vld [vmem:[%s4234 + $0x40] sm:$0xff]
    %v4240 = vld [vmem:[%s4234 + $0x50] sm:$0xff]
    %v4241 = vld [vmem:[%s4234 + $0x60] sm:$0xff]
    %v4242 = vld [vmem:[%s4234 + $0x70] sm:$0xff]
    %v4243 = vld [vmem:[%s4234 + $0xa0] sm:$0xff]
    %v4244 = vld [vmem:[%s4234 + $0xb0] sm:$0xff]
    %v4245 = vld [vmem:[%s4234 + $0xc0] sm:$0xff]
    %v4246 = vld [vmem:[%s4234 + $0xd0] sm:$0xff]
    %v4247 = vld [vmem:[%s4234 + $0xe0] sm:$0xff]
    %v4248 = vld [vmem:[%s4234 + $0xf0] sm:$0xff]
    %v4249 = vld [vmem:[%s4234 + $0x100] sm:$0xff]
    %v4250 = vld [vmem:[%s4234 + $0x110] sm:$0xff]
    %s4251 = scalar_lea.vmem [#allocation7], 1536
    %v4252 = vld [vmem:[%s4251] sm:$0xff]
    %v4253 = vld [vmem:[%s4251 + $0x8] sm:$0xff]
    %v4254 = vld [vmem:[%s4251 + $0x10] sm:$0xff]
    %v4255 = vld [vmem:[%s4251 + $0x18] sm:$0xff]
    %v4256 = vld [vmem:[%s4251 + $0x20] sm:$0xff]
    %v4257 = vld [vmem:[%s4251 + $0x28] sm:$0xff]
    %v4258 = vld [vmem:[%s4251 + $0x30] sm:$0xff]
    %v4259 = vld [vmem:[%s4251 + $0x38] sm:$0xff]
    %v4260 = vld [vmem:[%s4251 + $0x40] sm:$0xff]
    %v4261 = vld [vmem:[%s4251 + $0x48] sm:$0xff]
    %v4262 = vld [vmem:[%s4251 + $0x50] sm:$0xff]
    %v4263 = vld [vmem:[%s4251 + $0x58] sm:$0xff]
    %v4264 = vld [vmem:[%s4251 + $0x60] sm:$0xff]
    %v4265 = vld [vmem:[%s4251 + $0x68] sm:$0xff]
    %v4266 = vld [vmem:[%s4251 + $0x70] sm:$0xff]
    %v4267 = vld [vmem:[%s4251 + $0x78] sm:$0xff]
    %v4268 = vld [vmem:[%s4251 + $0x80] sm:$0xff]
    %v4269 = vld [vmem:[%s4251 + $0x88] sm:$0xff]
    %v4270 = vld [vmem:[%s4251 + $0x90] sm:$0xff]
    %v4271 = vld [vmem:[%s4251 + $0x98] sm:$0xff]
    %v4272 = vld [vmem:[%s4251 + $0xa0] sm:$0xff]
    %v4273 = vld [vmem:[%s4251 + $0xa8] sm:$0xff]
    %v4274 = vld [vmem:[%s4251 + $0xb0] sm:$0xff]
    %v4275 = vld [vmem:[%s4251 + $0xb8] sm:$0xff]
    %v4276 = vld [vmem:[%s4251 + $0xc0] sm:$0xff]
    %v4277 = vld [vmem:[%s4251 + $0xc8] sm:$0xff]
    %v4278 = vld [vmem:[%s4251 + $0xd0] sm:$0xff]
    %v4279 = vld [vmem:[%s4251 + $0xd8] sm:$0xff]
    %v4280 = vld [vmem:[%s4251 + $0xe0] sm:$0xff]
    %v4281 = vld [vmem:[%s4251 + $0xe8] sm:$0xff]
    %v4282 = vld [vmem:[%s4251 + $0xf0] sm:$0xff]
    %v4283 = vld [vmem:[%s4251 + $0xf8] sm:$0xff]
    %v4300 = vunpack.c.l.b16 %v4235
    %v4301 = vunpack.c.h.b16 %v4235
    %v4302 = vunpack.c.l.b16 %v4236
    %v4303 = vunpack.c.h.b16 %v4236
    %v4304 = vunpack.c.l.b16 %v4237
    %v4305 = vunpack.c.h.b16 %v4237
    %v4306 = vunpack.c.l.b16 %v4238
    %v4307 = vunpack.c.h.b16 %v4238
    %v4308 = vunpack.c.l.b16 %v4239
    %v4309 = vunpack.c.h.b16 %v4239
    %v4310 = vunpack.c.l.b16 %v4240
    %v4311 = vunpack.c.h.b16 %v4240
    %v4312 = vunpack.c.l.b16 %v4241
    %v4313 = vunpack.c.h.b16 %v4241
    %v4314 = vunpack.c.l.b16 %v4242
    %v4315 = vunpack.c.h.b16 %v4242
    %v4316 = vunpack.c.l.b16 %v4243
    %v4317 = vunpack.c.h.b16 %v4243
    %v4318 = vunpack.c.l.b16 %v4244
    %v4319 = vunpack.c.h.b16 %v4244
    %v4320 = vunpack.c.l.b16 %v4245
    %v4321 = vunpack.c.h.b16 %v4245
    %v4322 = vunpack.c.l.b16 %v4246
    %v4323 = vunpack.c.h.b16 %v4246
    %v4324 = vunpack.c.l.b16 %v4247
    %v4325 = vunpack.c.h.b16 %v4247
    %v4326 = vunpack.c.l.b16 %v4248
    %v4327 = vunpack.c.h.b16 %v4248
    %v4328 = vunpack.c.l.b16 %v4249
    %v4329 = vunpack.c.h.b16 %v4249
    %v4330 = vunpack.c.l.b16 %v4250
    %v4331 = vunpack.c.h.b16 %v4250
    %v4332 = vpack.c.b16 %v4302, %v4300
    %v4333 = vpack.c.b16 %v4303, %v4301
    %v4334 = vpack.c.b16 %v4306, %v4304
    %v4335 = vpack.c.b16 %v4307, %v4305
    %v4336 = vpack.c.b16 %v4310, %v4308
    %v4337 = vpack.c.b16 %v4311, %v4309
    %v4338 = vpack.c.b16 %v4314, %v4312
    %v4339 = vpack.c.b16 %v4315, %v4313
    %v4340 = vpack.c.b16 %v4318, %v4316
    %v4341 = vpack.c.b16 %v4319, %v4317
    %v4342 = vpack.c.b16 %v4322, %v4320
    %v4343 = vpack.c.b16 %v4323, %v4321
    %v4344 = vpack.c.b16 %v4326, %v4324
    %v4345 = vpack.c.b16 %v4327, %v4325
    %v4346 = vpack.c.b16 %v4330, %v4328
    %v4347 = vpack.c.b16 %v4331, %v4329
    %v4396 = vunpack.c.l.b16 %v4252
    %v4397 = vunpack.c.h.b16 %v4252
    %v4398 = vunpack.c.l.b16 %v4253
    %v4399 = vunpack.c.h.b16 %v4253
    %v4400 = vunpack.c.l.b16 %v4254
    %v4401 = vunpack.c.h.b16 %v4254
    %v4402 = vunpack.c.l.b16 %v4255
    %v4403 = vunpack.c.h.b16 %v4255
    %v4404 = vunpack.c.l.b16 %v4256
    %v4405 = vunpack.c.h.b16 %v4256
    %v4406 = vunpack.c.l.b16 %v4257
    %v4407 = vunpack.c.h.b16 %v4257
    %v4408 = vunpack.c.l.b16 %v4258
    %v4409 = vunpack.c.h.b16 %v4258
    %v4410 = vunpack.c.l.b16 %v4259
    %v4411 = vunpack.c.h.b16 %v4259
    %v4412 = vunpack.c.l.b16 %v4260
    %v4413 = vunpack.c.h.b16 %v4260
    %v4414 = vunpack.c.l.b16 %v4261
    %v4415 = vunpack.c.h.b16 %v4261
    %v4416 = vunpack.c.l.b16 %v4262
    %v4417 = vunpack.c.h.b16 %v4262
    %v4418 = vunpack.c.l.b16 %v4263
    %v4419 = vunpack.c.h.b16 %v4263
    %v4420 = vunpack.c.l.b16 %v4264
    %v4421 = vunpack.c.h.b16 %v4264
    %v4422 = vunpack.c.l.b16 %v4265
    %v4423 = vunpack.c.h.b16 %v4265
    %v4424 = vunpack.c.l.b16 %v4266
    %v4425 = vunpack.c.h.b16 %v4266
    %v4426 = vunpack.c.l.b16 %v4267
    %v4427 = vunpack.c.h.b16 %v4267
    %v4428 = vunpack.c.l.b16 %v4268
    %v4429 = vunpack.c.h.b16 %v4268
    %v4430 = vunpack.c.l.b16 %v4269
    %v4431 = vunpack.c.h.b16 %v4269
    %v4432 = vunpack.c.l.b16 %v4270
    %v4433 = vunpack.c.h.b16 %v4270
    %v4434 = vunpack.c.l.b16 %v4271
    %v4435 = vunpack.c.h.b16 %v4271
    %v4436 = vunpack.c.l.b16 %v4272
    %v4437 = vunpack.c.h.b16 %v4272
    %v4438 = vunpack.c.l.b16 %v4273
    %v4439 = vunpack.c.h.b16 %v4273
    %v4440 = vunpack.c.l.b16 %v4274
    %v4441 = vunpack.c.h.b16 %v4274
    %v4442 = vunpack.c.l.b16 %v4275
    %v4443 = vunpack.c.h.b16 %v4275
    %v4444 = vunpack.c.l.b16 %v4276
    %v4445 = vunpack.c.h.b16 %v4276
    %v4446 = vunpack.c.l.b16 %v4277
    %v4447 = vunpack.c.h.b16 %v4277
    %v4448 = vunpack.c.l.b16 %v4278
    %v4449 = vunpack.c.h.b16 %v4278
    %v4450 = vunpack.c.l.b16 %v4279
    %v4451 = vunpack.c.h.b16 %v4279
    %v4452 = vunpack.c.l.b16 %v4280
    %v4453 = vunpack.c.h.b16 %v4280
    %v4454 = vunpack.c.l.b16 %v4281
    %v4455 = vunpack.c.h.b16 %v4281
    %v4456 = vunpack.c.l.b16 %v4282
    %v4457 = vunpack.c.h.b16 %v4282
    %v4458 = vunpack.c.l.b16 %v4283
    %v4459 = vunpack.c.h.b16 %v4283
    %v4460 = vpack.c.b16 %v4398, %v4396
    %v4461 = vpack.c.b16 %v4399, %v4397
    %v4462 = vpack.c.b16 %v4402, %v4400
    %v4463 = vpack.c.b16 %v4403, %v4401
    %v4464 = vpack.c.b16 %v4406, %v4404
    %v4465 = vpack.c.b16 %v4407, %v4405
    %v4466 = vpack.c.b16 %v4410, %v4408
    %v4467 = vpack.c.b16 %v4411, %v4409
    %v4468 = vpack.c.b16 %v4414, %v4412
    %v4469 = vpack.c.b16 %v4415, %v4413
    %v4470 = vpack.c.b16 %v4418, %v4416
    %v4471 = vpack.c.b16 %v4419, %v4417
    %v4472 = vpack.c.b16 %v4422, %v4420
    %v4473 = vpack.c.b16 %v4423, %v4421
    %v4474 = vpack.c.b16 %v4426, %v4424
    %v4475 = vpack.c.b16 %v4427, %v4425
    %v4476 = vpack.c.b16 %v4430, %v4428
    %v4477 = vpack.c.b16 %v4431, %v4429
    %v4478 = vpack.c.b16 %v4434, %v4432
    %v4479 = vpack.c.b16 %v4435, %v4433
    %v4480 = vpack.c.b16 %v4438, %v4436
    %v4481 = vpack.c.b16 %v4439, %v4437
    %v4482 = vpack.c.b16 %v4442, %v4440
    %v4483 = vpack.c.b16 %v4443, %v4441
    %v4484 = vpack.c.b16 %v4446, %v4444
    %v4485 = vpack.c.b16 %v4447, %v4445
    %v4486 = vpack.c.b16 %v4450, %v4448
    %v4487 = vpack.c.b16 %v4451, %v4449
    %v4488 = vpack.c.b16 %v4454, %v4452
    %v4489 = vpack.c.b16 %v4455, %v4453
    %v4490 = vpack.c.b16 %v4458, %v4456
    %v4491 = vpack.c.b16 %v4459, %v4457
    %4524 = vmatprep.subr.bf16.mxu0 %v4475
    %4525 = vmatpush1.bf16.msra.mxu0 %v4474
    %4526 = vmatprep.subr.bf16.mxu0 %v4473
    %4527 = vmatpush1.bf16.msra.mxu0 %v4472
    %4528 = vmatprep.subr.bf16.mxu0 %v4471
    %4529 = vmatpush1.bf16.msra.mxu0 %v4470
    %4530 = vmatprep.subr.bf16.mxu0 %v4469
    %4531 = vmatpush1.bf16.msra.mxu0 %v4468
    %4532 = vmatprep.subr.bf16.mxu0 %v4467
    %4533 = vmatpush1.bf16.msra.mxu0 %v4466
    %4534 = vmatprep.subr.bf16.mxu0 %v4465
    %4535 = vmatpush1.bf16.msra.mxu0 %v4464
    %4536 = vmatprep.subr.bf16.mxu0 %v4463
    %4537 = vmatpush1.bf16.msra.mxu0 %v4462
    %4538 = vmatprep.subr.bf16.mxu0 %v4461
    %4539 = vmatpush1.bf16.msra.mxu0 %v4460
    %4540 = vmatprep.subr.bf16.mxu0 %v4491
    %4541 = vmatpush2.bf16.msra.mxu0 %v4490
    %4542 = vmatprep.subr.bf16.mxu0 %v4489
    %4543 = vmatpush2.bf16.msra.mxu0 %v4488
    %4544 = vmatprep.subr.bf16.mxu0 %v4487
    %4545 = vmatpush2.bf16.msra.mxu0 %v4486
    %4546 = vmatprep.subr.bf16.mxu0 %v4485
    %4547 = vmatpush2.bf16.msra.mxu0 %v4484
    %4548 = vmatprep.subr.bf16.mxu0 %v4483
    %4549 = vmatpush2.bf16.msra.mxu0 %v4482
    %4550 = vmatprep.subr.bf16.mxu0 %v4481
    %4551 = vmatpush2.bf16.msra.mxu0 %v4480
    %4552 = vmatprep.subr.bf16.mxu0 %v4479
    %4553 = vmatpush2.bf16.msra.mxu0 %v4478
    %4554 = vmatprep.subr.bf16.mxu0 %v4477
    %4555 = vmatpush2.bf16.msra.mxu0 %v4476
    %4556 = vmatprep.mubr.bf16.mxu0 %v4333
    %4557 = vmatmul.mubr.bf16.gmra.mxu0 %v4332
    %v4558 = vpop.f32.mrf.mxu0
    %v4559 = vadd.f32 0.0, %v4558
    %v4560 = vpop.f32.mrf.mxu0
    %v4561 = vadd.f32 0.0, %v4560
    %v4562 = vpop.f32.mrf.mxu0
    %v4563 = vadd.f32 0.0, %v4562
    %v4564 = vpop.f32.mrf.mxu0
    %v4565 = vadd.f32 0.0, %v4564
    %4566 = vmatprep.mubr.bf16.mxu0 %v4335
    %4567 = vmatmul.mubr.bf16.gmra.mxu0 %v4334
    %v4568 = vpop.f32.mrf.mxu0
    %v4569 = vadd.f32 0.0, %v4568
    %v4570 = vpop.f32.mrf.mxu0
    %v4571 = vadd.f32 0.0, %v4570
    %v4572 = vpop.f32.mrf.mxu0
    %v4573 = vadd.f32 0.0, %v4572
    %v4574 = vpop.f32.mrf.mxu0
    %v4575 = vadd.f32 0.0, %v4574
    %4576 = vmatprep.mubr.bf16.mxu0 %v4337
    %4577 = vmatmul.mubr.bf16.gmra.mxu0 %v4336
    %v4578 = vpop.f32.mrf.mxu0
    %v4579 = vadd.f32 0.0, %v4578
    %v4580 = vpop.f32.mrf.mxu0
    %v4581 = vadd.f32 0.0, %v4580
    %v4582 = vpop.f32.mrf.mxu0
    %v4583 = vadd.f32 0.0, %v4582
    %v4584 = vpop.f32.mrf.mxu0
    %v4585 = vadd.f32 0.0, %v4584
    %4586 = vmatprep.mubr.bf16.mxu0 %v4339
    %4587 = vmatmul.mubr.bf16.gmra.mxu0 %v4338
    %v4588 = vpop.f32.mrf.mxu0
    %v4589 = vadd.f32 0.0, %v4588
    %v4590 = vpop.f32.mrf.mxu0
    %v4591 = vadd.f32 0.0, %v4590
    %v4592 = vpop.f32.mrf.mxu0
    %v4593 = vadd.f32 0.0, %v4592
    %v4594 = vpop.f32.mrf.mxu0
    %v4595 = vadd.f32 0.0, %v4594
    %4596 = vmatprep.mubr.bf16.mxu0 %v4341
    %4597 = vmatmul.mubr.bf16.gmra.mxu0 %v4340
    %v4598 = vpop.f32.mrf.mxu0
    %v4599 = vadd.f32 0.0, %v4598
    %v4600 = vpop.f32.mrf.mxu0
    %v4601 = vadd.f32 0.0, %v4600
    %v4602 = vpop.f32.mrf.mxu0
    %v4603 = vadd.f32 0.0, %v4602
    %v4604 = vpop.f32.mrf.mxu0
    %v4605 = vadd.f32 0.0, %v4604
    %4606 = vmatprep.mubr.bf16.mxu0 %v4343
    %4607 = vmatmul.mubr.bf16.gmra.mxu0 %v4342
    %v4608 = vpop.f32.mrf.mxu0
    %v4609 = vadd.f32 0.0, %v4608
    %v4610 = vpop.f32.mrf.mxu0
    %v4611 = vadd.f32 0.0, %v4610
    %v4612 = vpop.f32.mrf.mxu0
    %v4613 = vadd.f32 0.0, %v4612
    %v4614 = vpop.f32.mrf.mxu0
    %v4615 = vadd.f32 0.0, %v4614
    %4616 = vmatprep.mubr.bf16.mxu0 %v4345
    %4617 = vmatmul.mubr.bf16.gmra.mxu0 %v4344
    %v4618 = vpop.f32.mrf.mxu0
    %v4619 = vadd.f32 0.0, %v4618
    %v4620 = vpop.f32.mrf.mxu0
    %v4621 = vadd.f32 0.0, %v4620
    %v4622 = vpop.f32.mrf.mxu0
    %v4623 = vadd.f32 0.0, %v4622
    %v4624 = vpop.f32.mrf.mxu0
    %v4625 = vadd.f32 0.0, %v4624
    %4626 = vmatprep.mubr.bf16.mxu0 %v4347
    %4627 = vmatmul.mubr.bf16.gmra.mxu0 %v4346
    %v4628 = vpop.f32.mrf.mxu0
    %v4629 = vadd.f32 0.0, %v4628
    %v4630 = vpop.f32.mrf.mxu0
    %v4631 = vadd.f32 0.0, %v4630
    %v4632 = vpop.f32.mrf.mxu0
    %v4633 = vadd.f32 0.0, %v4632
    %v4634 = vpop.f32.mrf.mxu0
    %v4635 = vadd.f32 0.0, %v4634
    %4636 = vdwg.mxu0
    %v4637 = vld [vmem:[#allocation3] sm:$0xff]
    %v4638 = vld [vmem:[#allocation3 + $0x8] sm:$0xff]
    %v4639 = vld [vmem:[#allocation3 + $0x10] sm:$0xff]
    %v4640 = vld [vmem:[#allocation3 + $0x18] sm:$0xff]
    %v4641 = vld [vmem:[#allocation3 + $0x20] sm:$0xff]
    %v4642 = vld [vmem:[#allocation3 + $0x28] sm:$0xff]
    %v4643 = vld [vmem:[#allocation3 + $0x30] sm:$0xff]
    %v4644 = vld [vmem:[#allocation3 + $0x38] sm:$0xff]
    %v4645 = vld [vmem:[#allocation3 + $0x40] sm:$0xff]
    %v4646 = vld [vmem:[#allocation3 + $0x48] sm:$0xff]
    %v4647 = vld [vmem:[#allocation3 + $0x50] sm:$0xff]
    %v4648 = vld [vmem:[#allocation3 + $0x58] sm:$0xff]
    %v4649 = vld [vmem:[#allocation3 + $0x60] sm:$0xff]
    %v4650 = vld [vmem:[#allocation3 + $0x68] sm:$0xff]
    %v4651 = vld [vmem:[#allocation3 + $0x70] sm:$0xff]
    %v4652 = vld [vmem:[#allocation3 + $0x78] sm:$0xff]
    %v4653 = vld [vmem:[#allocation3 + $0x80] sm:$0xff]
    %v4654 = vld [vmem:[#allocation3 + $0x88] sm:$0xff]
    %v4655 = vld [vmem:[#allocation3 + $0x90] sm:$0xff]
    %v4656 = vld [vmem:[#allocation3 + $0x98] sm:$0xff]
    %v4657 = vld [vmem:[#allocation3 + $0xa0] sm:$0xff]
    %v4658 = vld [vmem:[#allocation3 + $0xa8] sm:$0xff]
    %v4659 = vld [vmem:[#allocation3 + $0xb0] sm:$0xff]
    %v4660 = vld [vmem:[#allocation3 + $0xb8] sm:$0xff]
    %v4661 = vld [vmem:[#allocation3 + $0xc0] sm:$0xff]
    %v4662 = vld [vmem:[#allocation3 + $0xc8] sm:$0xff]
    %v4663 = vld [vmem:[#allocation3 + $0xd0] sm:$0xff]
    %v4664 = vld [vmem:[#allocation3 + $0xd8] sm:$0xff]
    %v4665 = vld [vmem:[#allocation3 + $0xe0] sm:$0xff]
    %v4666 = vld [vmem:[#allocation3 + $0xe8] sm:$0xff]
    %v4667 = vld [vmem:[#allocation3 + $0xf0] sm:$0xff]
    %v4668 = vld [vmem:[#allocation3 + $0xf8] sm:$0xff]
    %v4669 = vadd.f32 %v4637, %v4559
    %v4670 = vadd.f32 %v4638, %v4561
    %v4671 = vadd.f32 %v4639, %v4563
    %v4672 = vadd.f32 %v4640, %v4565
    %v4673 = vadd.f32 %v4641, %v4569
    %v4674 = vadd.f32 %v4642, %v4571
    %v4675 = vadd.f32 %v4643, %v4573
    %v4676 = vadd.f32 %v4644, %v4575
    %v4677 = vadd.f32 %v4645, %v4579
    %v4678 = vadd.f32 %v4646, %v4581
    %v4679 = vadd.f32 %v4647, %v4583
    %v4680 = vadd.f32 %v4648, %v4585
    %v4681 = vadd.f32 %v4649, %v4589
    %v4682 = vadd.f32 %v4650, %v4591
    %v4683 = vadd.f32 %v4651, %v4593
    %v4684 = vadd.f32 %v4652, %v4595
    %v4685 = vadd.f32 %v4653, %v4599
    %v4686 = vadd.f32 %v4654, %v4601
    %v4687 = vadd.f32 %v4655, %v4603
    %v4688 = vadd.f32 %v4656, %v4605
    %v4689 = vadd.f32 %v4657, %v4609
    %v4690 = vadd.f32 %v4658, %v4611
    %v4691 = vadd.f32 %v4659, %v4613
    %v4692 = vadd.f32 %v4660, %v4615
    %v4693 = vadd.f32 %v4661, %v4619
    %v4694 = vadd.f32 %v4662, %v4621
    %v4695 = vadd.f32 %v4663, %v4623
    %v4696 = vadd.f32 %v4664, %v4625
    %v4697 = vadd.f32 %v4665, %v4629
    %v4698 = vadd.f32 %v4666, %v4631
    %v4699 = vadd.f32 %v4667, %v4633
    %v4700 = vadd.f32 %v4668, %v4635
    %4701 = vst [vmem:[#allocation3] sm:$0xff] %v4669
    %4702 = vst [vmem:[#allocation3 + $0x8] sm:$0xff] %v4670
    %4703 = vst [vmem:[#allocation3 + $0x10] sm:$0xff] %v4671
    %4704 = vst [vmem:[#allocation3 + $0x18] sm:$0xff] %v4672
    %4705 = vst [vmem:[#allocation3 + $0x20] sm:$0xff] %v4673
    %4706 = vst [vmem:[#allocation3 + $0x28] sm:$0xff] %v4674
    %4707 = vst [vmem:[#allocation3 + $0x30] sm:$0xff] %v4675
    %4708 = vst [vmem:[#allocation3 + $0x38] sm:$0xff] %v4676
    %4709 = vst [vmem:[#allocation3 + $0x40] sm:$0xff] %v4677
    %4710 = vst [vmem:[#allocation3 + $0x48] sm:$0xff] %v4678
    %4711 = vst [vmem:[#allocation3 + $0x50] sm:$0xff] %v4679
    %4712 = vst [vmem:[#allocation3 + $0x58] sm:$0xff] %v4680
    %4713 = vst [vmem:[#allocation3 + $0x60] sm:$0xff] %v4681
    %4714 = vst [vmem:[#allocation3 + $0x68] sm:$0xff] %v4682
    %4715 = vst [vmem:[#allocation3 + $0x70] sm:$0xff] %v4683
    %4716 = vst [vmem:[#allocation3 + $0x78] sm:$0xff] %v4684
    %4717 = vst [vmem:[#allocation3 + $0x80] sm:$0xff] %v4685
    %4718 = vst [vmem:[#allocation3 + $0x88] sm:$0xff] %v4686
    %4719 = vst [vmem:[#allocation3 + $0x90] sm:$0xff] %v4687
    %4720 = vst [vmem:[#allocation3 + $0x98] sm:$0xff] %v4688
    %4721 = vst [vmem:[#allocation3 + $0xa0] sm:$0xff] %v4689
    %4722 = vst [vmem:[#allocation3 + $0xa8] sm:$0xff] %v4690
    %4723 = vst [vmem:[#allocation3 + $0xb0] sm:$0xff] %v4691
    %4724 = vst [vmem:[#allocation3 + $0xb8] sm:$0xff] %v4692
    %4725 = vst [vmem:[#allocation3 + $0xc0] sm:$0xff] %v4693
    %4726 = vst [vmem:[#allocation3 + $0xc8] sm:$0xff] %v4694
    %4727 = vst [vmem:[#allocation3 + $0xd0] sm:$0xff] %v4695
    %4728 = vst [vmem:[#allocation3 + $0xd8] sm:$0xff] %v4696
    %4729 = vst [vmem:[#allocation3 + $0xe0] sm:$0xff] %v4697
    %4730 = vst [vmem:[#allocation3 + $0xe8] sm:$0xff] %v4698
    %4731 = vst [vmem:[#allocation3 + $0xf0] sm:$0xff] %v4699
    %4732 = vst [vmem:[#allocation3 + $0xf8] sm:$0xff] %v4700
    %v4733 = vld [vmem:[%s4234] sm:$0xff]
    %v4734 = vld [vmem:[%s4234 + $0x8] sm:$0x11]
    %v4735 = vld [vmem:[%s4234 + $0x10] sm:$0xff]
    %v4736 = vld [vmem:[%s4234 + $0x18] sm:$0x11]
    %v4737 = vld [vmem:[%s4234 + $0x20] sm:$0xff]
    %v4738 = vld [vmem:[%s4234 + $0x28] sm:$0x11]
    %v4739 = vld [vmem:[%s4234 + $0x30] sm:$0xff]
    %v4740 = vld [vmem:[%s4234 + $0x38] sm:$0x11]
    %v4741 = vld [vmem:[%s4234 + $0x40] sm:$0xff]
    %v4742 = vld [vmem:[%s4234 + $0x48] sm:$0x11]
    %v4743 = vld [vmem:[%s4234 + $0x50] sm:$0xff]
    %v4744 = vld [vmem:[%s4234 + $0x58] sm:$0x11]
    %v4745 = vld [vmem:[%s4234 + $0x60] sm:$0xff]
    %v4746 = vld [vmem:[%s4234 + $0x68] sm:$0x11]
    %v4747 = vld [vmem:[%s4234 + $0x70] sm:$0xff]
    %v4748 = vld [vmem:[%s4234 + $0x78] sm:$0x11]
    %v4749 = vld [vmem:[%s4234 + $0xa0] sm:$0xff]
    %v4750 = vld [vmem:[%s4234 + $0xa8] sm:$0x11]
    %v4751 = vld [vmem:[%s4234 + $0xb0] sm:$0xff]
    %v4752 = vld [vmem:[%s4234 + $0xb8] sm:$0x11]
    %v4753 = vld [vmem:[%s4234 + $0xc0] sm:$0xff]
    %v4754 = vld [vmem:[%s4234 + $0xc8] sm:$0x11]
    %v4755 = vld [vmem:[%s4234 + $0xd0] sm:$0xff]
    %v4756 = vld [vmem:[%s4234 + $0xd8] sm:$0x11]
    %v4757 = vld [vmem:[%s4234 + $0xe0] sm:$0xff]
    %v4758 = vld [vmem:[%s4234 + $0xe8] sm:$0x11]
    %v4759 = vld [vmem:[%s4234 + $0xf0] sm:$0xff]
    %v4760 = vld [vmem:[%s4234 + $0xf8] sm:$0x11]
    %v4761 = vld [vmem:[%s4234 + $0x100] sm:$0xff]
    %v4762 = vld [vmem:[%s4234 + $0x108] sm:$0x11]
    %v4763 = vld [vmem:[%s4234 + $0x110] sm:$0xff]
    %v4764 = vld [vmem:[%s4234 + $0x118] sm:$0x11]
    %v4766 = vshrl.u32 %v4733, 16
    %v4768 = vrot.slane %v4766, 4
    %v4769 = vshll.u32 %v4733, 16
    %v4771 = vrot.slane %v4769, 5
    %v4772 = vor.u32 %v4768, %v4771
    %v4773 = vrot.slane %v4772, 4
    %v4775 = vshll.u32 %v4734, 16
    %v4777 = vrot.slane %v4775, 5
    %v4778 = vsel %vm1132, %v4773, %v4777
    %v4780 = vshrl.u32 %v4735, 16
    %v4782 = vrot.slane %v4780, 4
    %v4783 = vshll.u32 %v4735, 16
    %v4785 = vrot.slane %v4783, 5
    %v4786 = vor.u32 %v4782, %v4785
    %v4787 = vrot.slane %v4786, 4
    %v4789 = vshll.u32 %v4736, 16
    %v4791 = vrot.slane %v4789, 5
    %v4792 = vsel %vm1132, %v4787, %v4791
    %v4794 = vshrl.u32 %v4737, 16
    %v4796 = vrot.slane %v4794, 4
    %v4797 = vshll.u32 %v4737, 16
    %v4799 = vrot.slane %v4797, 5
    %v4800 = vor.u32 %v4796, %v4799
    %v4801 = vrot.slane %v4800, 4
    %v4803 = vshll.u32 %v4738, 16
    %v4805 = vrot.slane %v4803, 5
    %v4806 = vsel %vm1132, %v4801, %v4805
    %v4808 = vshrl.u32 %v4739, 16
    %v4810 = vrot.slane %v4808, 4
    %v4811 = vshll.u32 %v4739, 16
    %v4813 = vrot.slane %v4811, 5
    %v4814 = vor.u32 %v4810, %v4813
    %v4815 = vrot.slane %v4814, 4
    %v4817 = vshll.u32 %v4740, 16
    %v4819 = vrot.slane %v4817, 5
    %v4820 = vsel %vm1132, %v4815, %v4819
    %v4822 = vshrl.u32 %v4741, 16
    %v4824 = vrot.slane %v4822, 4
    %v4825 = vshll.u32 %v4741, 16
    %v4827 = vrot.slane %v4825, 5
    %v4828 = vor.u32 %v4824, %v4827
    %v4829 = vrot.slane %v4828, 4
    %v4831 = vshll.u32 %v4742, 16
    %v4833 = vrot.slane %v4831, 5
    %v4834 = vsel %vm1132, %v4829, %v4833
    %v4836 = vshrl.u32 %v4743, 16
    %v4838 = vrot.slane %v4836, 4
    %v4839 = vshll.u32 %v4743, 16
    %v4841 = vrot.slane %v4839, 5
    %v4842 = vor.u32 %v4838, %v4841
    %v4843 = vrot.slane %v4842, 4
    %v4845 = vshll.u32 %v4744, 16
    %v4847 = vrot.slane %v4845, 5
    %v4848 = vsel %vm1132, %v4843, %v4847
    %v4850 = vshrl.u32 %v4745, 16
    %v4852 = vrot.slane %v4850, 4
    %v4853 = vshll.u32 %v4745, 16
    %v4855 = vrot.slane %v4853, 5
    %v4856 = vor.u32 %v4852, %v4855
    %v4857 = vrot.slane %v4856, 4
    %v4859 = vshll.u32 %v4746, 16
    %v4861 = vrot.slane %v4859, 5
    %v4862 = vsel %vm1132, %v4857, %v4861
    %v4864 = vshrl.u32 %v4747, 16
    %v4866 = vrot.slane %v4864, 4
    %v4867 = vshll.u32 %v4747, 16
    %v4869 = vrot.slane %v4867, 5
    %v4870 = vor.u32 %v4866, %v4869
    %v4871 = vrot.slane %v4870, 4
    %v4873 = vshll.u32 %v4748, 16
    %v4875 = vrot.slane %v4873, 5
    %v4876 = vsel %vm1132, %v4871, %v4875
    %v4878 = vshrl.u32 %v4749, 16
    %v4880 = vrot.slane %v4878, 4
    %v4881 = vshll.u32 %v4749, 16
    %v4883 = vrot.slane %v4881, 5
    %v4884 = vor.u32 %v4880, %v4883
    %v4885 = vrot.slane %v4884, 4
    %v4887 = vshll.u32 %v4750, 16
    %v4889 = vrot.slane %v4887, 5
    %v4890 = vsel %vm1132, %v4885, %v4889
    %v4892 = vshrl.u32 %v4751, 16
    %v4894 = vrot.slane %v4892, 4
    %v4895 = vshll.u32 %v4751, 16
    %v4897 = vrot.slane %v4895, 5
    %v4898 = vor.u32 %v4894, %v4897
    %v4899 = vrot.slane %v4898, 4
    %v4901 = vshll.u32 %v4752, 16
    %v4903 = vrot.slane %v4901, 5
    %v4904 = vsel %vm1132, %v4899, %v4903
    %v4906 = vshrl.u32 %v4753, 16
    %v4908 = vrot.slane %v4906, 4
    %v4909 = vshll.u32 %v4753, 16
    %v4911 = vrot.slane %v4909, 5
    %v4912 = vor.u32 %v4908, %v4911
    %v4913 = vrot.slane %v4912, 4
    %v4915 = vshll.u32 %v4754, 16
    %v4917 = vrot.slane %v4915, 5
    %v4918 = vsel %vm1132, %v4913, %v4917
    %v4920 = vshrl.u32 %v4755, 16
    %v4922 = vrot.slane %v4920, 4
    %v4923 = vshll.u32 %v4755, 16
    %v4925 = vrot.slane %v4923, 5
    %v4926 = vor.u32 %v4922, %v4925
    %v4927 = vrot.slane %v4926, 4
    %v4929 = vshll.u32 %v4756, 16
    %v4931 = vrot.slane %v4929, 5
    %v4932 = vsel %vm1132, %v4927, %v4931
    %v4934 = vshrl.u32 %v4757, 16
    %v4936 = vrot.slane %v4934, 4
    %v4937 = vshll.u32 %v4757, 16
    %v4939 = vrot.slane %v4937, 5
    %v4940 = vor.u32 %v4936, %v4939
    %v4941 = vrot.slane %v4940, 4
    %v4943 = vshll.u32 %v4758, 16
    %v4945 = vrot.slane %v4943, 5
    %v4946 = vsel %vm1132, %v4941, %v4945
    %v4948 = vshrl.u32 %v4759, 16
    %v4950 = vrot.slane %v4948, 4
    %v4951 = vshll.u32 %v4759, 16
    %v4953 = vrot.slane %v4951, 5
    %v4954 = vor.u32 %v4950, %v4953
    %v4955 = vrot.slane %v4954, 4
    %v4957 = vshll.u32 %v4760, 16
    %v4959 = vrot.slane %v4957, 5
    %v4960 = vsel %vm1132, %v4955, %v4959
    %v4962 = vshrl.u32 %v4761, 16
    %v4964 = vrot.slane %v4962, 4
    %v4965 = vshll.u32 %v4761, 16
    %v4967 = vrot.slane %v4965, 5
    %v4968 = vor.u32 %v4964, %v4967
    %v4969 = vrot.slane %v4968, 4
    %v4971 = vshll.u32 %v4762, 16
    %v4973 = vrot.slane %v4971, 5
    %v4974 = vsel %vm1132, %v4969, %v4973
    %v4976 = vshrl.u32 %v4763, 16
    %v4978 = vrot.slane %v4976, 4
    %v4979 = vshll.u32 %v4763, 16
    %v4981 = vrot.slane %v4979, 5
    %v4982 = vor.u32 %v4978, %v4981
    %v4983 = vrot.slane %v4982, 4
    %v4985 = vshll.u32 %v4764, 16
    %v4987 = vrot.slane %v4985, 5
    %v4988 = vsel %vm1132, %v4983, %v4987
    %s4989 = scalar_lea.vmem [#allocation7], 1792
    %v4990 = vld [vmem:[%s4989] sm:$0xff]
    %v4991 = vld [vmem:[%s4989 + $0x8] sm:$0xff]
    %v4992 = vld [vmem:[%s4989 + $0x10] sm:$0xff]
    %v4993 = vld [vmem:[%s4989 + $0x18] sm:$0xff]
    %v4994 = vld [vmem:[%s4989 + $0x20] sm:$0xff]
    %v4995 = vld [vmem:[%s4989 + $0x28] sm:$0xff]
    %v4996 = vld [vmem:[%s4989 + $0x30] sm:$0xff]
    %v4997 = vld [vmem:[%s4989 + $0x38] sm:$0xff]
    %v4998 = vld [vmem:[%s4989 + $0x40] sm:$0xff]
    %v4999 = vld [vmem:[%s4989 + $0x48] sm:$0xff]
    %v5000 = vld [vmem:[%s4989 + $0x50] sm:$0xff]
    %v5001 = vld [vmem:[%s4989 + $0x58] sm:$0xff]
    %v5002 = vld [vmem:[%s4989 + $0x60] sm:$0xff]
    %v5003 = vld [vmem:[%s4989 + $0x68] sm:$0xff]
    %v5004 = vld [vmem:[%s4989 + $0x70] sm:$0xff]
    %v5005 = vld [vmem:[%s4989 + $0x78] sm:$0xff]
    %v5006 = vld [vmem:[%s4989 + $0x80] sm:$0xff]
    %v5007 = vld [vmem:[%s4989 + $0x88] sm:$0xff]
    %v5008 = vld [vmem:[%s4989 + $0x90] sm:$0xff]
    %v5009 = vld [vmem:[%s4989 + $0x98] sm:$0xff]
    %v5010 = vld [vmem:[%s4989 + $0xa0] sm:$0xff]
    %v5011 = vld [vmem:[%s4989 + $0xa8] sm:$0xff]
    %v5012 = vld [vmem:[%s4989 + $0xb0] sm:$0xff]
    %v5013 = vld [vmem:[%s4989 + $0xb8] sm:$0xff]
    %v5014 = vld [vmem:[%s4989 + $0xc0] sm:$0xff]
    %v5015 = vld [vmem:[%s4989 + $0xc8] sm:$0xff]
    %v5016 = vld [vmem:[%s4989 + $0xd0] sm:$0xff]
    %v5017 = vld [vmem:[%s4989 + $0xd8] sm:$0xff]
    %v5018 = vld [vmem:[%s4989 + $0xe0] sm:$0xff]
    %v5019 = vld [vmem:[%s4989 + $0xe8] sm:$0xff]
    %v5020 = vld [vmem:[%s4989 + $0xf0] sm:$0xff]
    %v5021 = vld [vmem:[%s4989 + $0xf8] sm:$0xff]
    %v5022 = vunpack.c.l.b16 %v4778
    %v5023 = vunpack.c.h.b16 %v4778
    %v5024 = vunpack.c.l.b16 %v4792
    %v5025 = vunpack.c.h.b16 %v4792
    %v5026 = vunpack.c.l.b16 %v4806
    %v5027 = vunpack.c.h.b16 %v4806
    %v5028 = vunpack.c.l.b16 %v4820
    %v5029 = vunpack.c.h.b16 %v4820
    %v5030 = vunpack.c.l.b16 %v4834
    %v5031 = vunpack.c.h.b16 %v4834
    %v5032 = vunpack.c.l.b16 %v4848
    %v5033 = vunpack.c.h.b16 %v4848
    %v5034 = vunpack.c.l.b16 %v4862
    %v5035 = vunpack.c.h.b16 %v4862
    %v5036 = vunpack.c.l.b16 %v4876
    %v5037 = vunpack.c.h.b16 %v4876
    %v5038 = vunpack.c.l.b16 %v4890
    %v5039 = vunpack.c.h.b16 %v4890
    %v5040 = vunpack.c.l.b16 %v4904
    %v5041 = vunpack.c.h.b16 %v4904
    %v5042 = vunpack.c.l.b16 %v4918
    %v5043 = vunpack.c.h.b16 %v4918
    %v5044 = vunpack.c.l.b16 %v4932
    %v5045 = vunpack.c.h.b16 %v4932
    %v5046 = vunpack.c.l.b16 %v4946
    %v5047 = vunpack.c.h.b16 %v4946
    %v5048 = vunpack.c.l.b16 %v4960
    %v5049 = vunpack.c.h.b16 %v4960
    %v5050 = vunpack.c.l.b16 %v4974
    %v5051 = vunpack.c.h.b16 %v4974
    %v5052 = vunpack.c.l.b16 %v4988
    %v5053 = vunpack.c.h.b16 %v4988
    %v5054 = vpack.c.b16 %v5024, %v5022
    %v5055 = vpack.c.b16 %v5025, %v5023
    %v5056 = vpack.c.b16 %v5028, %v5026
    %v5057 = vpack.c.b16 %v5029, %v5027
    %v5058 = vpack.c.b16 %v5032, %v5030
    %v5059 = vpack.c.b16 %v5033, %v5031
    %v5060 = vpack.c.b16 %v5036, %v5034
    %v5061 = vpack.c.b16 %v5037, %v5035
    %v5062 = vpack.c.b16 %v5040, %v5038
    %v5063 = vpack.c.b16 %v5041, %v5039
    %v5064 = vpack.c.b16 %v5044, %v5042
    %v5065 = vpack.c.b16 %v5045, %v5043
    %v5066 = vpack.c.b16 %v5048, %v5046
    %v5067 = vpack.c.b16 %v5049, %v5047
    %v5068 = vpack.c.b16 %v5052, %v5050
    %v5069 = vpack.c.b16 %v5053, %v5051
    %v5118 = vunpack.c.l.b16 %v4990
    %v5119 = vunpack.c.h.b16 %v4990
    %v5120 = vunpack.c.l.b16 %v4991
    %v5121 = vunpack.c.h.b16 %v4991
    %v5122 = vunpack.c.l.b16 %v4992
    %v5123 = vunpack.c.h.b16 %v4992
    %v5124 = vunpack.c.l.b16 %v4993
    %v5125 = vunpack.c.h.b16 %v4993
    %v5126 = vunpack.c.l.b16 %v4994
    %v5127 = vunpack.c.h.b16 %v4994
    %v5128 = vunpack.c.l.b16 %v4995
    %v5129 = vunpack.c.h.b16 %v4995
    %v5130 = vunpack.c.l.b16 %v4996
    %v5131 = vunpack.c.h.b16 %v4996
    %v5132 = vunpack.c.l.b16 %v4997
    %v5133 = vunpack.c.h.b16 %v4997
    %v5134 = vunpack.c.l.b16 %v4998
    %v5135 = vunpack.c.h.b16 %v4998
    %v5136 = vunpack.c.l.b16 %v4999
    %v5137 = vunpack.c.h.b16 %v4999
    %v5138 = vunpack.c.l.b16 %v5000
    %v5139 = vunpack.c.h.b16 %v5000
    %v5140 = vunpack.c.l.b16 %v5001
    %v5141 = vunpack.c.h.b16 %v5001
    %v5142 = vunpack.c.l.b16 %v5002
    %v5143 = vunpack.c.h.b16 %v5002
    %v5144 = vunpack.c.l.b16 %v5003
    %v5145 = vunpack.c.h.b16 %v5003
    %v5146 = vunpack.c.l.b16 %v5004
    %v5147 = vunpack.c.h.b16 %v5004
    %v5148 = vunpack.c.l.b16 %v5005
    %v5149 = vunpack.c.h.b16 %v5005
    %v5150 = vunpack.c.l.b16 %v5006
    %v5151 = vunpack.c.h.b16 %v5006
    %v5152 = vunpack.c.l.b16 %v5007
    %v5153 = vunpack.c.h.b16 %v5007
    %v5154 = vunpack.c.l.b16 %v5008
    %v5155 = vunpack.c.h.b16 %v5008
    %v5156 = vunpack.c.l.b16 %v5009
    %v5157 = vunpack.c.h.b16 %v5009
    %v5158 = vunpack.c.l.b16 %v5010
    %v5159 = vunpack.c.h.b16 %v5010
    %v5160 = vunpack.c.l.b16 %v5011
    %v5161 = vunpack.c.h.b16 %v5011
    %v5162 = vunpack.c.l.b16 %v5012
    %v5163 = vunpack.c.h.b16 %v5012
    %v5164 = vunpack.c.l.b16 %v5013
    %v5165 = vunpack.c.h.b16 %v5013
    %v5166 = vunpack.c.l.b16 %v5014
    %v5167 = vunpack.c.h.b16 %v5014
    %v5168 = vunpack.c.l.b16 %v5015
    %v5169 = vunpack.c.h.b16 %v5015
    %v5170 = vunpack.c.l.b16 %v5016
    %v5171 = vunpack.c.h.b16 %v5016
    %v5172 = vunpack.c.l.b16 %v5017
    %v5173 = vunpack.c.h.b16 %v5017
    %v5174 = vunpack.c.l.b16 %v5018
    %v5175 = vunpack.c.h.b16 %v5018
    %v5176 = vunpack.c.l.b16 %v5019
    %v5177 = vunpack.c.h.b16 %v5019
    %v5178 = vunpack.c.l.b16 %v5020
    %v5179 = vunpack.c.h.b16 %v5020
    %v5180 = vunpack.c.l.b16 %v5021
    %v5181 = vunpack.c.h.b16 %v5021
    %v5182 = vpack.c.b16 %v5120, %v5118
    %v5183 = vpack.c.b16 %v5121, %v5119
    %v5184 = vpack.c.b16 %v5124, %v5122
    %v5185 = vpack.c.b16 %v5125, %v5123
    %v5186 = vpack.c.b16 %v5128, %v5126
    %v5187 = vpack.c.b16 %v5129, %v5127
    %v5188 = vpack.c.b16 %v5132, %v5130
    %v5189 = vpack.c.b16 %v5133, %v5131
    %v5190 = vpack.c.b16 %v5136, %v5134
    %v5191 = vpack.c.b16 %v5137, %v5135
    %v5192 = vpack.c.b16 %v5140, %v5138
    %v5193 = vpack.c.b16 %v5141, %v5139
    %v5194 = vpack.c.b16 %v5144, %v5142
    %v5195 = vpack.c.b16 %v5145, %v5143
    %v5196 = vpack.c.b16 %v5148, %v5146
    %v5197 = vpack.c.b16 %v5149, %v5147
    %v5198 = vpack.c.b16 %v5152, %v5150
    %v5199 = vpack.c.b16 %v5153, %v5151
    %v5200 = vpack.c.b16 %v5156, %v5154
    %v5201 = vpack.c.b16 %v5157, %v5155
    %v5202 = vpack.c.b16 %v5160, %v5158
    %v5203 = vpack.c.b16 %v5161, %v5159
    %v5204 = vpack.c.b16 %v5164, %v5162
    %v5205 = vpack.c.b16 %v5165, %v5163
    %v5206 = vpack.c.b16 %v5168, %v5166
    %v5207 = vpack.c.b16 %v5169, %v5167
    %v5208 = vpack.c.b16 %v5172, %v5170
    %v5209 = vpack.c.b16 %v5173, %v5171
    %v5210 = vpack.c.b16 %v5176, %v5174
    %v5211 = vpack.c.b16 %v5177, %v5175
    %v5212 = vpack.c.b16 %v5180, %v5178
    %v5213 = vpack.c.b16 %v5181, %v5179
    %5246 = vmatprep.subr.bf16.mxu0 %v5197
    %5247 = vmatpush1.bf16.msra.mxu0 %v5196
    %5248 = vmatprep.subr.bf16.mxu0 %v5195
    %5249 = vmatpush1.bf16.msra.mxu0 %v5194
    %5250 = vmatprep.subr.bf16.mxu0 %v5193
    %5251 = vmatpush1.bf16.msra.mxu0 %v5192
    %5252 = vmatprep.subr.bf16.mxu0 %v5191
    %5253 = vmatpush1.bf16.msra.mxu0 %v5190
    %5254 = vmatprep.subr.bf16.mxu0 %v5189
    %5255 = vmatpush1.bf16.msra.mxu0 %v5188
    %5256 = vmatprep.subr.bf16.mxu0 %v5187
    %5257 = vmatpush1.bf16.msra.mxu0 %v5186
    %5258 = vmatprep.subr.bf16.mxu0 %v5185
    %5259 = vmatpush1.bf16.msra.mxu0 %v5184
    %5260 = vmatprep.subr.bf16.mxu0 %v5183
    %5261 = vmatpush1.bf16.msra.mxu0 %v5182
    %5262 = vmatprep.subr.bf16.mxu0 %v5213
    %5263 = vmatpush2.bf16.msra.mxu0 %v5212
    %5264 = vmatprep.subr.bf16.mxu0 %v5211
    %5265 = vmatpush2.bf16.msra.mxu0 %v5210
    %5266 = vmatprep.subr.bf16.mxu0 %v5209
    %5267 = vmatpush2.bf16.msra.mxu0 %v5208
    %5268 = vmatprep.subr.bf16.mxu0 %v5207
    %5269 = vmatpush2.bf16.msra.mxu0 %v5206
    %5270 = vmatprep.subr.bf16.mxu0 %v5205
    %5271 = vmatpush2.bf16.msra.mxu0 %v5204
    %5272 = vmatprep.subr.bf16.mxu0 %v5203
    %5273 = vmatpush2.bf16.msra.mxu0 %v5202
    %5274 = vmatprep.subr.bf16.mxu0 %v5201
    %5275 = vmatpush2.bf16.msra.mxu0 %v5200
    %5276 = vmatprep.subr.bf16.mxu0 %v5199
    %5277 = vmatpush2.bf16.msra.mxu0 %v5198
    %5278 = vmatprep.mubr.bf16.mxu0 %v5055
    %5279 = vmatmul.mubr.bf16.gmra.mxu0 %v5054
    %v5280 = vpop.f32.mrf.mxu0
    %v5281 = vadd.f32 0.0, %v5280
    %v5282 = vpop.f32.mrf.mxu0
    %v5283 = vadd.f32 0.0, %v5282
    %v5284 = vpop.f32.mrf.mxu0
    %v5285 = vadd.f32 0.0, %v5284
    %v5286 = vpop.f32.mrf.mxu0
    %v5287 = vadd.f32 0.0, %v5286
    %5288 = vmatprep.mubr.bf16.mxu0 %v5057
    %5289 = vmatmul.mubr.bf16.gmra.mxu0 %v5056
    %v5290 = vpop.f32.mrf.mxu0
    %v5291 = vadd.f32 0.0, %v5290
    %v5292 = vpop.f32.mrf.mxu0
    %v5293 = vadd.f32 0.0, %v5292
    %v5294 = vpop.f32.mrf.mxu0
    %v5295 = vadd.f32 0.0, %v5294
    %v5296 = vpop.f32.mrf.mxu0
    %v5297 = vadd.f32 0.0, %v5296
    %5298 = vmatprep.mubr.bf16.mxu0 %v5059
    %5299 = vmatmul.mubr.bf16.gmra.mxu0 %v5058
    %v5300 = vpop.f32.mrf.mxu0
    %v5301 = vadd.f32 0.0, %v5300
    %v5302 = vpop.f32.mrf.mxu0
    %v5303 = vadd.f32 0.0, %v5302
    %v5304 = vpop.f32.mrf.mxu0
    %v5305 = vadd.f32 0.0, %v5304
    %v5306 = vpop.f32.mrf.mxu0
    %v5307 = vadd.f32 0.0, %v5306
    %5308 = vmatprep.mubr.bf16.mxu0 %v5061
    %5309 = vmatmul.mubr.bf16.gmra.mxu0 %v5060
    %v5310 = vpop.f32.mrf.mxu0
    %v5311 = vadd.f32 0.0, %v5310
    %v5312 = vpop.f32.mrf.mxu0
    %v5313 = vadd.f32 0.0, %v5312
    %v5314 = vpop.f32.mrf.mxu0
    %v5315 = vadd.f32 0.0, %v5314
    %v5316 = vpop.f32.mrf.mxu0
    %v5317 = vadd.f32 0.0, %v5316
    %5318 = vmatprep.mubr.bf16.mxu0 %v5063
    %5319 = vmatmul.mubr.bf16.gmra.mxu0 %v5062
    %v5320 = vpop.f32.mrf.mxu0
    %v5321 = vadd.f32 0.0, %v5320
    %v5322 = vpop.f32.mrf.mxu0
    %v5323 = vadd.f32 0.0, %v5322
    %v5324 = vpop.f32.mrf.mxu0
    %v5325 = vadd.f32 0.0, %v5324
    %v5326 = vpop.f32.mrf.mxu0
    %v5327 = vadd.f32 0.0, %v5326
    %5328 = vmatprep.mubr.bf16.mxu0 %v5065
    %5329 = vmatmul.mubr.bf16.gmra.mxu0 %v5064
    %v5330 = vpop.f32.mrf.mxu0
    %v5331 = vadd.f32 0.0, %v5330
    %v5332 = vpop.f32.mrf.mxu0
    %v5333 = vadd.f32 0.0, %v5332
    %v5334 = vpop.f32.mrf.mxu0
    %v5335 = vadd.f32 0.0, %v5334
    %v5336 = vpop.f32.mrf.mxu0
    %v5337 = vadd.f32 0.0, %v5336
    %5338 = vmatprep.mubr.bf16.mxu0 %v5067
    %5339 = vmatmul.mubr.bf16.gmra.mxu0 %v5066
    %v5340 = vpop.f32.mrf.mxu0
    %v5341 = vadd.f32 0.0, %v5340
    %v5342 = vpop.f32.mrf.mxu0
    %v5343 = vadd.f32 0.0, %v5342
    %v5344 = vpop.f32.mrf.mxu0
    %v5345 = vadd.f32 0.0, %v5344
    %v5346 = vpop.f32.mrf.mxu0
    %v5347 = vadd.f32 0.0, %v5346
    %5348 = vmatprep.mubr.bf16.mxu0 %v5069
    %5349 = vmatmul.mubr.bf16.gmra.mxu0 %v5068
    %v5350 = vpop.f32.mrf.mxu0
    %v5351 = vadd.f32 0.0, %v5350
    %v5352 = vpop.f32.mrf.mxu0
    %v5353 = vadd.f32 0.0, %v5352
    %v5354 = vpop.f32.mrf.mxu0
    %v5355 = vadd.f32 0.0, %v5354
    %v5356 = vpop.f32.mrf.mxu0
    %v5357 = vadd.f32 0.0, %v5356
    %5358 = vdwg.mxu0
    %v5359 = vld [vmem:[#allocation3] sm:$0xff]
    %v5360 = vld [vmem:[#allocation3 + $0x8] sm:$0xff]
    %v5361 = vld [vmem:[#allocation3 + $0x10] sm:$0xff]
    %v5362 = vld [vmem:[#allocation3 + $0x18] sm:$0xff]
    %v5363 = vld [vmem:[#allocation3 + $0x20] sm:$0xff]
    %v5364 = vld [vmem:[#allocation3 + $0x28] sm:$0xff]
    %v5365 = vld [vmem:[#allocation3 + $0x30] sm:$0xff]
    %v5366 = vld [vmem:[#allocation3 + $0x38] sm:$0xff]
    %v5367 = vld [vmem:[#allocation3 + $0x40] sm:$0xff]
    %v5368 = vld [vmem:[#allocation3 + $0x48] sm:$0xff]
    %v5369 = vld [vmem:[#allocation3 + $0x50] sm:$0xff]
    %v5370 = vld [vmem:[#allocation3 + $0x58] sm:$0xff]
    %v5371 = vld [vmem:[#allocation3 + $0x60] sm:$0xff]
    %v5372 = vld [vmem:[#allocation3 + $0x68] sm:$0xff]
    %v5373 = vld [vmem:[#allocation3 + $0x70] sm:$0xff]
    %v5374 = vld [vmem:[#allocation3 + $0x78] sm:$0xff]
    %v5375 = vld [vmem:[#allocation3 + $0x80] sm:$0xff]
    %v5376 = vld [vmem:[#allocation3 + $0x88] sm:$0xff]
    %v5377 = vld [vmem:[#allocation3 + $0x90] sm:$0xff]
    %v5378 = vld [vmem:[#allocation3 + $0x98] sm:$0xff]
    %v5379 = vld [vmem:[#allocation3 + $0xa0] sm:$0xff]
    %v5380 = vld [vmem:[#allocation3 + $0xa8] sm:$0xff]
    %v5381 = vld [vmem:[#allocation3 + $0xb0] sm:$0xff]
    %v5382 = vld [vmem:[#allocation3 + $0xb8] sm:$0xff]
    %v5383 = vld [vmem:[#allocation3 + $0xc0] sm:$0xff]
    %v5384 = vld [vmem:[#allocation3 + $0xc8] sm:$0xff]
    %v5385 = vld [vmem:[#allocation3 + $0xd0] sm:$0xff]
    %v5386 = vld [vmem:[#allocation3 + $0xd8] sm:$0xff]
    %v5387 = vld [vmem:[#allocation3 + $0xe0] sm:$0xff]
    %v5388 = vld [vmem:[#allocation3 + $0xe8] sm:$0xff]
    %v5389 = vld [vmem:[#allocation3 + $0xf0] sm:$0xff]
    %v5390 = vld [vmem:[#allocation3 + $0xf8] sm:$0xff]
    %v5391 = vadd.f32 %v5359, %v5281
    %v5392 = vadd.f32 %v5360, %v5283
    %v5393 = vadd.f32 %v5361, %v5285
    %v5394 = vadd.f32 %v5362, %v5287
    %v5395 = vadd.f32 %v5363, %v5291
    %v5396 = vadd.f32 %v5364, %v5293
    %v5397 = vadd.f32 %v5365, %v5295
    %v5398 = vadd.f32 %v5366, %v5297
    %v5399 = vadd.f32 %v5367, %v5301
    %v5400 = vadd.f32 %v5368, %v5303
    %v5401 = vadd.f32 %v5369, %v5305
    %v5402 = vadd.f32 %v5370, %v5307
    %v5403 = vadd.f32 %v5371, %v5311
    %v5404 = vadd.f32 %v5372, %v5313
    %v5405 = vadd.f32 %v5373, %v5315
    %v5406 = vadd.f32 %v5374, %v5317
    %v5407 = vadd.f32 %v5375, %v5321
    %v5408 = vadd.f32 %v5376, %v5323
    %v5409 = vadd.f32 %v5377, %v5325
    %v5410 = vadd.f32 %v5378, %v5327
    %v5411 = vadd.f32 %v5379, %v5331
    %v5412 = vadd.f32 %v5380, %v5333
    %v5413 = vadd.f32 %v5381, %v5335
    %v5414 = vadd.f32 %v5382, %v5337
    %v5415 = vadd.f32 %v5383, %v5341
    %v5416 = vadd.f32 %v5384, %v5343
    %v5417 = vadd.f32 %v5385, %v5345
    %v5418 = vadd.f32 %v5386, %v5347
    %v5419 = vadd.f32 %v5387, %v5351
    %v5420 = vadd.f32 %v5388, %v5353
    %v5421 = vadd.f32 %v5389, %v5355
    %v5422 = vadd.f32 %v5390, %v5357
    %5423 = vst [vmem:[#allocation3] sm:$0xff] %v5391
    %5424 = vst [vmem:[#allocation3 + $0x8] sm:$0xff] %v5392
    %5425 = vst [vmem:[#allocation3 + $0x10] sm:$0xff] %v5393
    %5426 = vst [vmem:[#allocation3 + $0x18] sm:$0xff] %v5394
    %5427 = vst [vmem:[#allocation3 + $0x20] sm:$0xff] %v5395
    %5428 = vst [vmem:[#allocation3 + $0x28] sm:$0xff] %v5396
    %5429 = vst [vmem:[#allocation3 + $0x30] sm:$0xff] %v5397
    %5430 = vst [vmem:[#allocation3 + $0x38] sm:$0xff] %v5398
    %5431 = vst [vmem:[#allocation3 + $0x40] sm:$0xff] %v5399
    %5432 = vst [vmem:[#allocation3 + $0x48] sm:$0xff] %v5400
    %5433 = vst [vmem:[#allocation3 + $0x50] sm:$0xff] %v5401
    %5434 = vst [vmem:[#allocation3 + $0x58] sm:$0xff] %v5402
    %5435 = vst [vmem:[#allocation3 + $0x60] sm:$0xff] %v5403
    %5436 = vst [vmem:[#allocation3 + $0x68] sm:$0xff] %v5404
    %5437 = vst [vmem:[#allocation3 + $0x70] sm:$0xff] %v5405
    %5438 = vst [vmem:[#allocation3 + $0x78] sm:$0xff] %v5406
    %5439 = vst [vmem:[#allocation3 + $0x80] sm:$0xff] %v5407
    %5440 = vst [vmem:[#allocation3 + $0x88] sm:$0xff] %v5408
    %5441 = vst [vmem:[#allocation3 + $0x90] sm:$0xff] %v5409
    %5442 = vst [vmem:[#allocation3 + $0x98] sm:$0xff] %v5410
    %5443 = vst [vmem:[#allocation3 + $0xa0] sm:$0xff] %v5411
    %5444 = vst [vmem:[#allocation3 + $0xa8] sm:$0xff] %v5412
    %5445 = vst [vmem:[#allocation3 + $0xb0] sm:$0xff] %v5413
    %5446 = vst [vmem:[#allocation3 + $0xb8] sm:$0xff] %v5414
    %5447 = vst [vmem:[#allocation3 + $0xc0] sm:$0xff] %v5415
    %5448 = vst [vmem:[#allocation3 + $0xc8] sm:$0xff] %v5416
    %5449 = vst [vmem:[#allocation3 + $0xd0] sm:$0xff] %v5417
    %5450 = vst [vmem:[#allocation3 + $0xd8] sm:$0xff] %v5418
    %5451 = vst [vmem:[#allocation3 + $0xe0] sm:$0xff] %v5419
    %5452 = vst [vmem:[#allocation3 + $0xe8] sm:$0xff] %v5420
    %5453 = vst [vmem:[#allocation3 + $0xf0] sm:$0xff] %v5421
    %5454 = vst [vmem:[#allocation3 + $0xf8] sm:$0xff] %v5422
    %v5455 = vld [vmem:[%s4234] sm:$0xee]
    %v5456 = vld [vmem:[%s4234 + $0x8] sm:$0x11]
    %v5457 = vld [vmem:[%s4234 + $0x10] sm:$0xee]
    %v5458 = vld [vmem:[%s4234 + $0x18] sm:$0x11]
    %v5459 = vld [vmem:[%s4234 + $0x20] sm:$0xee]
    %v5460 = vld [vmem:[%s4234 + $0x28] sm:$0x11]
    %v5461 = vld [vmem:[%s4234 + $0x30] sm:$0xee]
    %v5462 = vld [vmem:[%s4234 + $0x38] sm:$0x11]
    %v5463 = vld [vmem:[%s4234 + $0x40] sm:$0xee]
    %v5464 = vld [vmem:[%s4234 + $0x48] sm:$0x11]
    %v5465 = vld [vmem:[%s4234 + $0x50] sm:$0xee]
    %v5466 = vld [vmem:[%s4234 + $0x58] sm:$0x11]
    %v5467 = vld [vmem:[%s4234 + $0x60] sm:$0xee]
    %v5468 = vld [vmem:[%s4234 + $0x68] sm:$0x11]
    %v5469 = vld [vmem:[%s4234 + $0x70] sm:$0xee]
    %v5470 = vld [vmem:[%s4234 + $0x78] sm:$0x11]
    %v5471 = vld [vmem:[%s4234 + $0xa0] sm:$0xee]
    %v5472 = vld [vmem:[%s4234 + $0xa8] sm:$0x11]
    %v5473 = vld [vmem:[%s4234 + $0xb0] sm:$0xee]
    %v5474 = vld [vmem:[%s4234 + $0xb8] sm:$0x11]
    %v5475 = vld [vmem:[%s4234 + $0xc0] sm:$0xee]
    %v5476 = vld [vmem:[%s4234 + $0xc8] sm:$0x11]
    %v5477 = vld [vmem:[%s4234 + $0xd0] sm:$0xee]
    %v5478 = vld [vmem:[%s4234 + $0xd8] sm:$0x11]
    %v5479 = vld [vmem:[%s4234 + $0xe0] sm:$0xee]
    %v5480 = vld [vmem:[%s4234 + $0xe8] sm:$0x11]
    %v5481 = vld [vmem:[%s4234 + $0xf0] sm:$0xee]
    %v5482 = vld [vmem:[%s4234 + $0xf8] sm:$0x11]
    %v5483 = vld [vmem:[%s4234 + $0x100] sm:$0xee]
    %v5484 = vld [vmem:[%s4234 + $0x108] sm:$0x11]
    %v5485 = vld [vmem:[%s4234 + $0x110] sm:$0xee]
    %v5486 = vld [vmem:[%s4234 + $0x118] sm:$0x11]
    %v5519 = vrot.slane %v5455, 5
    %v5520 = vrot.slane %v5519, 4
    %v5521 = vrot.slane %v5456, 5
    %v5522 = vsel %vm1889, %v5520, %v5521
    %v5523 = vrot.slane %v5457, 5
    %v5524 = vrot.slane %v5523, 4
    %v5525 = vrot.slane %v5458, 5
    %v5526 = vsel %vm1889, %v5524, %v5525
    %v5527 = vrot.slane %v5459, 5
    %v5528 = vrot.slane %v5527, 4
    %v5529 = vrot.slane %v5460, 5
    %v5530 = vsel %vm1889, %v5528, %v5529
    %v5531 = vrot.slane %v5461, 5
    %v5532 = vrot.slane %v5531, 4
    %v5533 = vrot.slane %v5462, 5
    %v5534 = vsel %vm1889, %v5532, %v5533
    %v5535 = vrot.slane %v5463, 5
    %v5536 = vrot.slane %v5535, 4
    %v5537 = vrot.slane %v5464, 5
    %v5538 = vsel %vm1889, %v5536, %v5537
    %v5539 = vrot.slane %v5465, 5
    %v5540 = vrot.slane %v5539, 4
    %v5541 = vrot.slane %v5466, 5
    %v5542 = vsel %vm1889, %v5540, %v5541
    %v5543 = vrot.slane %v5467, 5
    %v5544 = vrot.slane %v5543, 4
    %v5545 = vrot.slane %v5468, 5
    %v5546 = vsel %vm1889, %v5544, %v5545
    %v5547 = vrot.slane %v5469, 5
    %v5548 = vrot.slane %v5547, 4
    %v5549 = vrot.slane %v5470, 5
    %v5550 = vsel %vm1889, %v5548, %v5549
    %v5551 = vrot.slane %v5471, 5
    %v5552 = vrot.slane %v5551, 4
    %v5553 = vrot.slane %v5472, 5
    %v5554 = vsel %vm1889, %v5552, %v5553
    %v5555 = vrot.slane %v5473, 5
    %v5556 = vrot.slane %v5555, 4
    %v5557 = vrot.slane %v5474, 5
    %v5558 = vsel %vm1889, %v5556, %v5557
    %v5559 = vrot.slane %v5475, 5
    %v5560 = vrot.slane %v5559, 4
    %v5561 = vrot.slane %v5476, 5
    %v5562 = vsel %vm1889, %v5560, %v5561
    %v5563 = vrot.slane %v5477, 5
    %v5564 = vrot.slane %v5563, 4
    %v5565 = vrot.slane %v5478, 5
    %v5566 = vsel %vm1889, %v5564, %v5565
    %v5567 = vrot.slane %v5479, 5
    %v5568 = vrot.slane %v5567, 4
    %v5569 = vrot.slane %v5480, 5
    %v5570 = vsel %vm1889, %v5568, %v5569
    %v5571 = vrot.slane %v5481, 5
    %v5572 = vrot.slane %v5571, 4
    %v5573 = vrot.slane %v5482, 5
    %v5574 = vsel %vm1889, %v5572, %v5573
    %v5575 = vrot.slane %v5483, 5
    %v5576 = vrot.slane %v5575, 4
    %v5577 = vrot.slane %v5484, 5
    %v5578 = vsel %vm1889, %v5576, %v5577
    %v5579 = vrot.slane %v5485, 5
    %v5580 = vrot.slane %v5579, 4
    %v5581 = vrot.slane %v5486, 5
    %v5582 = vsel %vm1889, %v5580, %v5581
    %s5583 = scalar_lea.vmem [#allocation7], 2048
    %v5584 = vld [vmem:[%s5583] sm:$0xff]
    %v5585 = vld [vmem:[%s5583 + $0x8] sm:$0xff]
    %v5586 = vld [vmem:[%s5583 + $0x10] sm:$0xff]
    %v5587 = vld [vmem:[%s5583 + $0x18] sm:$0xff]
    %v5588 = vld [vmem:[%s5583 + $0x20] sm:$0xff]
    %v5589 = vld [vmem:[%s5583 + $0x28] sm:$0xff]
    %v5590 = vld [vmem:[%s5583 + $0x30] sm:$0xff]
    %v5591 = vld [vmem:[%s5583 + $0x38] sm:$0xff]
    %v5592 = vld [vmem:[%s5583 + $0x40] sm:$0xff]
    %v5593 = vld [vmem:[%s5583 + $0x48] sm:$0xff]
    %v5594 = vld [vmem:[%s5583 + $0x50] sm:$0xff]
    %v5595 = vld [vmem:[%s5583 + $0x58] sm:$0xff]
    %v5596 = vld [vmem:[%s5583 + $0x60] sm:$0xff]
    %v5597 = vld [vmem:[%s5583 + $0x68] sm:$0xff]
    %v5598 = vld [vmem:[%s5583 + $0x70] sm:$0xff]
    %v5599 = vld [vmem:[%s5583 + $0x78] sm:$0xff]
    %v5600 = vld [vmem:[%s5583 + $0x80] sm:$0xff]
    %v5601 = vld [vmem:[%s5583 + $0x88] sm:$0xff]
    %v5602 = vld [vmem:[%s5583 + $0x90] sm:$0xff]
    %v5603 = vld [vmem:[%s5583 + $0x98] sm:$0xff]
    %v5604 = vld [vmem:[%s5583 + $0xa0] sm:$0xff]
    %v5605 = vld [vmem:[%s5583 + $0xa8] sm:$0xff]
    %v5606 = vld [vmem:[%s5583 + $0xb0] sm:$0xff]
    %v5607 = vld [vmem:[%s5583 + $0xb8] sm:$0xff]
    %v5608 = vld [vmem:[%s5583 + $0xc0] sm:$0xff]
    %v5609 = vld [vmem:[%s5583 + $0xc8] sm:$0xff]
    %v5610 = vld [vmem:[%s5583 + $0xd0] sm:$0xff]
    %v5611 = vld [vmem:[%s5583 + $0xd8] sm:$0xff]
    %v5612 = vld [vmem:[%s5583 + $0xe0] sm:$0xff]
    %v5613 = vld [vmem:[%s5583 + $0xe8] sm:$0xff]
    %v5614 = vld [vmem:[%s5583 + $0xf0] sm:$0xff]
    %v5615 = vld [vmem:[%s5583 + $0xf8] sm:$0xff]
    %v5616 = vunpack.c.l.b16 %v5522
    %v5617 = vunpack.c.h.b16 %v5522
    %v5618 = vunpack.c.l.b16 %v5526
    %v5619 = vunpack.c.h.b16 %v5526
    %v5620 = vunpack.c.l.b16 %v5530
    %v5621 = vunpack.c.h.b16 %v5530
    %v5622 = vunpack.c.l.b16 %v5534
    %v5623 = vunpack.c.h.b16 %v5534
    %v5624 = vunpack.c.l.b16 %v5538
    %v5625 = vunpack.c.h.b16 %v5538
    %v5626 = vunpack.c.l.b16 %v5542
    %v5627 = vunpack.c.h.b16 %v5542
    %v5628 = vunpack.c.l.b16 %v5546
    %v5629 = vunpack.c.h.b16 %v5546
    %v5630 = vunpack.c.l.b16 %v5550
    %v5631 = vunpack.c.h.b16 %v5550
    %v5632 = vunpack.c.l.b16 %v5554
    %v5633 = vunpack.c.h.b16 %v5554
    %v5634 = vunpack.c.l.b16 %v5558
    %v5635 = vunpack.c.h.b16 %v5558
    %v5636 = vunpack.c.l.b16 %v5562
    %v5637 = vunpack.c.h.b16 %v5562
    %v5638 = vunpack.c.l.b16 %v5566
    %v5639 = vunpack.c.h.b16 %v5566
    %v5640 = vunpack.c.l.b16 %v5570
    %v5641 = vunpack.c.h.b16 %v5570
    %v5642 = vunpack.c.l.b16 %v5574
    %v5643 = vunpack.c.h.b16 %v5574
    %v5644 = vunpack.c.l.b16 %v5578
    %v5645 = vunpack.c.h.b16 %v5578
    %v5646 = vunpack.c.l.b16 %v5582
    %v5647 = vunpack.c.h.b16 %v5582
    %v5648 = vpack.c.b16 %v5618, %v5616
    %v5649 = vpack.c.b16 %v5619, %v5617
    %v5650 = vpack.c.b16 %v5622, %v5620
    %v5651 = vpack.c.b16 %v5623, %v5621
    %v5652 = vpack.c.b16 %v5626, %v5624
    %v5653 = vpack.c.b16 %v5627, %v5625
    %v5654 = vpack.c.b16 %v5630, %v5628
    %v5655 = vpack.c.b16 %v5631, %v5629
    %v5656 = vpack.c.b16 %v5634, %v5632
    %v5657 = vpack.c.b16 %v5635, %v5633
    %v5658 = vpack.c.b16 %v5638, %v5636
    %v5659 = vpack.c.b16 %v5639, %v5637
    %v5660 = vpack.c.b16 %v5642, %v5640
    %v5661 = vpack.c.b16 %v5643, %v5641
    %v5662 = vpack.c.b16 %v5646, %v5644
    %v5663 = vpack.c.b16 %v5647, %v5645
    %v5712 = vunpack.c.l.b16 %v5584
    %v5713 = vunpack.c.h.b16 %v5584
    %v5714 = vunpack.c.l.b16 %v5585
    %v5715 = vunpack.c.h.b16 %v5585
    %v5716 = vunpack.c.l.b16 %v5586
    %v5717 = vunpack.c.h.b16 %v5586
    %v5718 = vunpack.c.l.b16 %v5587
    %v5719 = vunpack.c.h.b16 %v5587
    %v5720 = vunpack.c.l.b16 %v5588
    %v5721 = vunpack.c.h.b16 %v5588
    %v5722 = vunpack.c.l.b16 %v5589
    %v5723 = vunpack.c.h.b16 %v5589
    %v5724 = vunpack.c.l.b16 %v5590
    %v5725 = vunpack.c.h.b16 %v5590
    %v5726 = vunpack.c.l.b16 %v5591
    %v5727 = vunpack.c.h.b16 %v5591
    %v5728 = vunpack.c.l.b16 %v5592
    %v5729 = vunpack.c.h.b16 %v5592
    %v5730 = vunpack.c.l.b16 %v5593
    %v5731 = vunpack.c.h.b16 %v5593
    %v5732 = vunpack.c.l.b16 %v5594
    %v5733 = vunpack.c.h.b16 %v5594
    %v5734 = vunpack.c.l.b16 %v5595
    %v5735 = vunpack.c.h.b16 %v5595
    %v5736 = vunpack.c.l.b16 %v5596
    %v5737 = vunpack.c.h.b16 %v5596
    %v5738 = vunpack.c.l.b16 %v5597
    %v5739 = vunpack.c.h.b16 %v5597
    %v5740 = vunpack.c.l.b16 %v5598
    %v5741 = vunpack.c.h.b16 %v5598
    %v5742 = vunpack.c.l.b16 %v5599
    %v5743 = vunpack.c.h.b16 %v5599
    %v5744 = vunpack.c.l.b16 %v5600
    %v5745 = vunpack.c.h.b16 %v5600
    %v5746 = vunpack.c.l.b16 %v5601
    %v5747 = vunpack.c.h.b16 %v5601
    %v5748 = vunpack.c.l.b16 %v5602
    %v5749 = vunpack.c.h.b16 %v5602
    %v5750 = vunpack.c.l.b16 %v5603
    %v5751 = vunpack.c.h.b16 %v5603
    %v5752 = vunpack.c.l.b16 %v5604
    %v5753 = vunpack.c.h.b16 %v5604
    %v5754 = vunpack.c.l.b16 %v5605
    %v5755 = vunpack.c.h.b16 %v5605
    %v5756 = vunpack.c.l.b16 %v5606
    %v5757 = vunpack.c.h.b16 %v5606
    %v5758 = vunpack.c.l.b16 %v5607
    %v5759 = vunpack.c.h.b16 %v5607
    %v5760 = vunpack.c.l.b16 %v5608
    %v5761 = vunpack.c.h.b16 %v5608
    %v5762 = vunpack.c.l.b16 %v5609
    %v5763 = vunpack.c.h.b16 %v5609
    %v5764 = vunpack.c.l.b16 %v5610
    %v5765 = vunpack.c.h.b16 %v5610
    %v5766 = vunpack.c.l.b16 %v5611
    %v5767 = vunpack.c.h.b16 %v5611
    %v5768 = vunpack.c.l.b16 %v5612
    %v5769 = vunpack.c.h.b16 %v5612
    %v5770 = vunpack.c.l.b16 %v5613
    %v5771 = vunpack.c.h.b16 %v5613
    %v5772 = vunpack.c.l.b16 %v5614
    %v5773 = vunpack.c.h.b16 %v5614
    %v5774 = vunpack.c.l.b16 %v5615
    %v5775 = vunpack.c.h.b16 %v5615
    %v5776 = vpack.c.b16 %v5714, %v5712
    %v5777 = vpack.c.b16 %v5715, %v5713
    %v5778 = vpack.c.b16 %v5718, %v5716
    %v5779 = vpack.c.b16 %v5719, %v5717
    %v5780 = vpack.c.b16 %v5722, %v5720
    %v5781 = vpack.c.b16 %v5723, %v5721
    %v5782 = vpack.c.b16 %v5726, %v5724
    %v5783 = vpack.c.b16 %v5727, %v5725
    %v5784 = vpack.c.b16 %v5730, %v5728
    %v5785 = vpack.c.b16 %v5731, %v5729
    %v5786 = vpack.c.b16 %v5734, %v5732
    %v5787 = vpack.c.b16 %v5735, %v5733
    %v5788 = vpack.c.b16 %v5738, %v5736
    %v5789 = vpack.c.b16 %v5739, %v5737
    %v5790 = vpack.c.b16 %v5742, %v5740
    %v5791 = vpack.c.b16 %v5743, %v5741
    %v5792 = vpack.c.b16 %v5746, %v5744
    %v5793 = vpack.c.b16 %v5747, %v5745
    %v5794 = vpack.c.b16 %v5750, %v5748
    %v5795 = vpack.c.b16 %v5751, %v5749
    %v5796 = vpack.c.b16 %v5754, %v5752
    %v5797 = vpack.c.b16 %v5755, %v5753
    %v5798 = vpack.c.b16 %v5758, %v5756
    %v5799 = vpack.c.b16 %v5759, %v5757
    %v5800 = vpack.c.b16 %v5762, %v5760
    %v5801 = vpack.c.b16 %v5763, %v5761
    %v5802 = vpack.c.b16 %v5766, %v5764
    %v5803 = vpack.c.b16 %v5767, %v5765
    %v5804 = vpack.c.b16 %v5770, %v5768
    %v5805 = vpack.c.b16 %v5771, %v5769
    %v5806 = vpack.c.b16 %v5774, %v5772
    %v5807 = vpack.c.b16 %v5775, %v5773
    %5840 = vmatprep.subr.bf16.mxu0 %v5791
    %5841 = vmatpush1.bf16.msra.mxu0 %v5790
    %5842 = vmatprep.subr.bf16.mxu0 %v5789
    %5843 = vmatpush1.bf16.msra.mxu0 %v5788
    %5844 = vmatprep.subr.bf16.mxu0 %v5787
    %5845 = vmatpush1.bf16.msra.mxu0 %v5786
    %5846 = vmatprep.subr.bf16.mxu0 %v5785
    %5847 = vmatpush1.bf16.msra.mxu0 %v5784
    %5848 = vmatprep.subr.bf16.mxu0 %v5783
    %5849 = vmatpush1.bf16.msra.mxu0 %v5782
    %5850 = vmatprep.subr.bf16.mxu0 %v5781
    %5851 = vmatpush1.bf16.msra.mxu0 %v5780
    %5852 = vmatprep.subr.bf16.mxu0 %v5779
    %5853 = vmatpush1.bf16.msra.mxu0 %v5778
    %5854 = vmatprep.subr.bf16.mxu0 %v5777
    %5855 = vmatpush1.bf16.msra.mxu0 %v5776
    %5856 = vmatprep.subr.bf16.mxu0 %v5807
    %5857 = vmatpush2.bf16.msra.mxu0 %v5806
    %5858 = vmatprep.subr.bf16.mxu0 %v5805
    %5859 = vmatpush2.bf16.msra.mxu0 %v5804
    %5860 = vmatprep.subr.bf16.mxu0 %v5803
    %5861 = vmatpush2.bf16.msra.mxu0 %v5802
    %5862 = vmatprep.subr.bf16.mxu0 %v5801
    %5863 = vmatpush2.bf16.msra.mxu0 %v5800
    %5864 = vmatprep.subr.bf16.mxu0 %v5799
    %5865 = vmatpush2.bf16.msra.mxu0 %v5798
    %5866 = vmatprep.subr.bf16.mxu0 %v5797
    %5867 = vmatpush2.bf16.msra.mxu0 %v5796
    %5868 = vmatprep.subr.bf16.mxu0 %v5795
    %5869 = vmatpush2.bf16.msra.mxu0 %v5794
    %5870 = vmatprep.subr.bf16.mxu0 %v5793
    %5871 = vmatpush2.bf16.msra.mxu0 %v5792
    %5872 = vmatprep.mubr.bf16.mxu0 %v5649
    %5873 = vmatmul.mubr.bf16.gmra.mxu0 %v5648
    %v5874 = vpop.f32.mrf.mxu0
    %v5875 = vadd.f32 0.0, %v5874
    %v5876 = vpop.f32.mrf.mxu0
    %v5877 = vadd.f32 0.0, %v5876
    %v5878 = vpop.f32.mrf.mxu0
    %v5879 = vadd.f32 0.0, %v5878
    %v5880 = vpop.f32.mrf.mxu0
    %v5881 = vadd.f32 0.0, %v5880
    %5882 = vmatprep.mubr.bf16.mxu0 %v5651
    %5883 = vmatmul.mubr.bf16.gmra.mxu0 %v5650
    %v5884 = vpop.f32.mrf.mxu0
    %v5885 = vadd.f32 0.0, %v5884
    %v5886 = vpop.f32.mrf.mxu0
    %v5887 = vadd.f32 0.0, %v5886
    %v5888 = vpop.f32.mrf.mxu0
    %v5889 = vadd.f32 0.0, %v5888
    %v5890 = vpop.f32.mrf.mxu0
    %v5891 = vadd.f32 0.0, %v5890
    %5892 = vmatprep.mubr.bf16.mxu0 %v5653
    %5893 = vmatmul.mubr.bf16.gmra.mxu0 %v5652
    %v5894 = vpop.f32.mrf.mxu0
    %v5895 = vadd.f32 0.0, %v5894
    %v5896 = vpop.f32.mrf.mxu0
    %v5897 = vadd.f32 0.0, %v5896
    %v5898 = vpop.f32.mrf.mxu0
    %v5899 = vadd.f32 0.0, %v5898
    %v5900 = vpop.f32.mrf.mxu0
    %v5901 = vadd.f32 0.0, %v5900
    %5902 = vmatprep.mubr.bf16.mxu0 %v5655
    %5903 = vmatmul.mubr.bf16.gmra.mxu0 %v5654
    %v5904 = vpop.f32.mrf.mxu0
    %v5905 = vadd.f32 0.0, %v5904
    %v5906 = vpop.f32.mrf.mxu0
    %v5907 = vadd.f32 0.0, %v5906
    %v5908 = vpop.f32.mrf.mxu0
    %v5909 = vadd.f32 0.0, %v5908
    %v5910 = vpop.f32.mrf.mxu0
    %v5911 = vadd.f32 0.0, %v5910
    %5912 = vmatprep.mubr.bf16.mxu0 %v5657
    %5913 = vmatmul.mubr.bf16.gmra.mxu0 %v5656
    %v5914 = vpop.f32.mrf.mxu0
    %v5915 = vadd.f32 0.0, %v5914
    %v5916 = vpop.f32.mrf.mxu0
    %v5917 = vadd.f32 0.0, %v5916
    %v5918 = vpop.f32.mrf.mxu0
    %v5919 = vadd.f32 0.0, %v5918
    %v5920 = vpop.f32.mrf.mxu0
    %v5921 = vadd.f32 0.0, %v5920
    %5922 = vmatprep.mubr.bf16.mxu0 %v5659
    %5923 = vmatmul.mubr.bf16.gmra.mxu0 %v5658
    %v5924 = vpop.f32.mrf.mxu0
    %v5925 = vadd.f32 0.0, %v5924
    %v5926 = vpop.f32.mrf.mxu0
    %v5927 = vadd.f32 0.0, %v5926
    %v5928 = vpop.f32.mrf.mxu0
    %v5929 = vadd.f32 0.0, %v5928
    %v5930 = vpop.f32.mrf.mxu0
    %v5931 = vadd.f32 0.0, %v5930
    %5932 = vmatprep.mubr.bf16.mxu0 %v5661
    %5933 = vmatmul.mubr.bf16.gmra.mxu0 %v5660
    %v5934 = vpop.f32.mrf.mxu0
    %v5935 = vadd.f32 0.0, %v5934
    %v5936 = vpop.f32.mrf.mxu0
    %v5937 = vadd.f32 0.0, %v5936
    %v5938 = vpop.f32.mrf.mxu0
    %v5939 = vadd.f32 0.0, %v5938
    %v5940 = vpop.f32.mrf.mxu0
    %v5941 = vadd.f32 0.0, %v5940
    %5942 = vmatprep.mubr.bf16.mxu0 %v5663
    %5943 = vmatmul.mubr.bf16.gmra.mxu0 %v5662
    %v5944 = vpop.f32.mrf.mxu0
    %v5945 = vadd.f32 0.0, %v5944
    %v5946 = vpop.f32.mrf.mxu0
    %v5947 = vadd.f32 0.0, %v5946
    %v5948 = vpop.f32.mrf.mxu0
    %v5949 = vadd.f32 0.0, %v5948
    %v5950 = vpop.f32.mrf.mxu0
    %v5951 = vadd.f32 0.0, %v5950
    %5952 = vdwg.mxu0
    %v5953 = vld [vmem:[#allocation3] sm:$0xff]
    %v5954 = vld [vmem:[#allocation3 + $0x8] sm:$0xff]
    %v5955 = vld [vmem:[#allocation3 + $0x10] sm:$0xff]
    %v5956 = vld [vmem:[#allocation3 + $0x18] sm:$0xff]
    %v5957 = vld [vmem:[#allocation3 + $0x20] sm:$0xff]
    %v5958 = vld [vmem:[#allocation3 + $0x28] sm:$0xff]
    %v5959 = vld [vmem:[#allocation3 + $0x30] sm:$0xff]
    %v5960 = vld [vmem:[#allocation3 + $0x38] sm:$0xff]
    %v5961 = vld [vmem:[#allocation3 + $0x40] sm:$0xff]
    %v5962 = vld [vmem:[#allocation3 + $0x48] sm:$0xff]
    %v5963 = vld [vmem:[#allocation3 + $0x50] sm:$0xff]
    %v5964 = vld [vmem:[#allocation3 + $0x58] sm:$0xff]
    %v5965 = vld [vmem:[#allocation3 + $0x60] sm:$0xff]
    %v5966 = vld [vmem:[#allocation3 + $0x68] sm:$0xff]
    %v5967 = vld [vmem:[#allocation3 + $0x70] sm:$0xff]
    %v5968 = vld [vmem:[#allocation3 + $0x78] sm:$0xff]
    %v5969 = vld [vmem:[#allocation3 + $0x80] sm:$0xff]
    %v5970 = vld [vmem:[#allocation3 + $0x88] sm:$0xff]
    %v5971 = vld [vmem:[#allocation3 + $0x90] sm:$0xff]
    %v5972 = vld [vmem:[#allocation3 + $0x98] sm:$0xff]
    %v5973 = vld [vmem:[#allocation3 + $0xa0] sm:$0xff]
    %v5974 = vld [vmem:[#allocation3 + $0xa8] sm:$0xff]
    %v5975 = vld [vmem:[#allocation3 + $0xb0] sm:$0xff]
    %v5976 = vld [vmem:[#allocation3 + $0xb8] sm:$0xff]
    %v5977 = vld [vmem:[#allocation3 + $0xc0] sm:$0xff]
    %v5978 = vld [vmem:[#allocation3 + $0xc8] sm:$0xff]
    %v5979 = vld [vmem:[#allocation3 + $0xd0] sm:$0xff]
    %v5980 = vld [vmem:[#allocation3 + $0xd8] sm:$0xff]
    %v5981 = vld [vmem:[#allocation3 + $0xe0] sm:$0xff]
    %v5982 = vld [vmem:[#allocation3 + $0xe8] sm:$0xff]
    %v5983 = vld [vmem:[#allocation3 + $0xf0] sm:$0xff]
    %v5984 = vld [vmem:[#allocation3 + $0xf8] sm:$0xff]
    %v5985 = vadd.f32 %v5953, %v5875
    %v5986 = vadd.f32 %v5954, %v5877
    %v5987 = vadd.f32 %v5955, %v5879
    %v5988 = vadd.f32 %v5956, %v5881
    %v5989 = vadd.f32 %v5957, %v5885
    %v5990 = vadd.f32 %v5958, %v5887
    %v5991 = vadd.f32 %v5959, %v5889
    %v5992 = vadd.f32 %v5960, %v5891
    %v5993 = vadd.f32 %v5961, %v5895
    %v5994 = vadd.f32 %v5962, %v5897
    %v5995 = vadd.f32 %v5963, %v5899
    %v5996 = vadd.f32 %v5964, %v5901
    %v5997 = vadd.f32 %v5965, %v5905
    %v5998 = vadd.f32 %v5966, %v5907
    %v5999 = vadd.f32 %v5967, %v5909
    %v6000 = vadd.f32 %v5968, %v5911
    %v6001 = vadd.f32 %v5969, %v5915
    %v6002 = vadd.f32 %v5970, %v5917
    %v6003 = vadd.f32 %v5971, %v5919
    %v6004 = vadd.f32 %v5972, %v5921
    %v6005 = vadd.f32 %v5973, %v5925
    %v6006 = vadd.f32 %v5974, %v5927
    %v6007 = vadd.f32 %v5975, %v5929
    %v6008 = vadd.f32 %v5976, %v5931
    %v6009 = vadd.f32 %v5977, %v5935
    %v6010 = vadd.f32 %v5978, %v5937
    %v6011 = vadd.f32 %v5979, %v5939
    %v6012 = vadd.f32 %v5980, %v5941
    %v6013 = vadd.f32 %v5981, %v5945
    %v6014 = vadd.f32 %v5982, %v5947
    %v6015 = vadd.f32 %v5983, %v5949
    %v6016 = vadd.f32 %v5984, %v5951
    %6017 = vst [vmem:[#allocation3] sm:$0xff] %v5985
    %6018 = vst [vmem:[#allocation3 + $0x8] sm:$0xff] %v5986
    %6019 = vst [vmem:[#allocation3 + $0x10] sm:$0xff] %v5987
    %6020 = vst [vmem:[#allocation3 + $0x18] sm:$0xff] %v5988
    %6021 = vst [vmem:[#allocation3 + $0x20] sm:$0xff] %v5989
    %6022 = vst [vmem:[#allocation3 + $0x28] sm:$0xff] %v5990
    %6023 = vst [vmem:[#allocation3 + $0x30] sm:$0xff] %v5991
    %6024 = vst [vmem:[#allocation3 + $0x38] sm:$0xff] %v5992
    %6025 = vst [vmem:[#allocation3 + $0x40] sm:$0xff] %v5993
    %6026 = vst [vmem:[#allocation3 + $0x48] sm:$0xff] %v5994
    %6027 = vst [vmem:[#allocation3 + $0x50] sm:$0xff] %v5995
    %6028 = vst [vmem:[#allocation3 + $0x58] sm:$0xff] %v5996
    %6029 = vst [vmem:[#allocation3 + $0x60] sm:$0xff] %v5997
    %6030 = vst [vmem:[#allocation3 + $0x68] sm:$0xff] %v5998
    %6031 = vst [vmem:[#allocation3 + $0x70] sm:$0xff] %v5999
    %6032 = vst [vmem:[#allocation3 + $0x78] sm:$0xff] %v6000
    %6033 = vst [vmem:[#allocation3 + $0x80] sm:$0xff] %v6001
    %6034 = vst [vmem:[#allocation3 + $0x88] sm:$0xff] %v6002
    %6035 = vst [vmem:[#allocation3 + $0x90] sm:$0xff] %v6003
    %6036 = vst [vmem:[#allocation3 + $0x98] sm:$0xff] %v6004
    %6037 = vst [vmem:[#allocation3 + $0xa0] sm:$0xff] %v6005
    %6038 = vst [vmem:[#allocation3 + $0xa8] sm:$0xff] %v6006
    %6039 = vst [vmem:[#allocation3 + $0xb0] sm:$0xff] %v6007
    %6040 = vst [vmem:[#allocation3 + $0xb8] sm:$0xff] %v6008
    %6041 = vst [vmem:[#allocation3 + $0xc0] sm:$0xff] %v6009
    %6042 = vst [vmem:[#allocation3 + $0xc8] sm:$0xff] %v6010
    %6043 = vst [vmem:[#allocation3 + $0xd0] sm:$0xff] %v6011
    %6044 = vst [vmem:[#allocation3 + $0xd8] sm:$0xff] %v6012
    %6045 = vst [vmem:[#allocation3 + $0xe0] sm:$0xff] %v6013
    %6046 = vst [vmem:[#allocation3 + $0xe8] sm:$0xff] %v6014
    %6047 = vst [vmem:[#allocation3 + $0xf0] sm:$0xff] %v6015
    %6048 = vst [vmem:[#allocation3 + $0xf8] sm:$0xff] %v6016
    %v6049 = vld [vmem:[#allocation3] sm:$0xff]
    %v6050 = vld [vmem:[#allocation3 + $0x8] sm:$0xff]
    %v6051 = vld [vmem:[#allocation3 + $0x10] sm:$0xff]
    %v6052 = vld [vmem:[#allocation3 + $0x18] sm:$0xff]
    %v6053 = vld [vmem:[#allocation3 + $0x20] sm:$0xff]
    %v6054 = vld [vmem:[#allocation3 + $0x28] sm:$0xff]
    %v6055 = vld [vmem:[#allocation3 + $0x30] sm:$0xff]
    %v6056 = vld [vmem:[#allocation3 + $0x38] sm:$0xff]
    %v6057 = vld [vmem:[#allocation3 + $0x40] sm:$0xff]
    %v6058 = vld [vmem:[#allocation3 + $0x48] sm:$0xff]
    %v6059 = vld [vmem:[#allocation3 + $0x50] sm:$0xff]
    %v6060 = vld [vmem:[#allocation3 + $0x58] sm:$0xff]
    %v6061 = vld [vmem:[#allocation3 + $0x60] sm:$0xff]
    %v6062 = vld [vmem:[#allocation3 + $0x68] sm:$0xff]
    %v6063 = vld [vmem:[#allocation3 + $0x70] sm:$0xff]
    %v6064 = vld [vmem:[#allocation3 + $0x78] sm:$0xff]
    %v6065 = vld [vmem:[#allocation3 + $0x80] sm:$0xff]
    %v6066 = vld [vmem:[#allocation3 + $0x88] sm:$0xff]
    %v6067 = vld [vmem:[#allocation3 + $0x90] sm:$0xff]
    %v6068 = vld [vmem:[#allocation3 + $0x98] sm:$0xff]
    %v6069 = vld [vmem:[#allocation3 + $0xa0] sm:$0xff]
    %v6070 = vld [vmem:[#allocation3 + $0xa8] sm:$0xff]
    %v6071 = vld [vmem:[#allocation3 + $0xb0] sm:$0xff]
    %v6072 = vld [vmem:[#allocation3 + $0xb8] sm:$0xff]
    %v6073 = vld [vmem:[#allocation3 + $0xc0] sm:$0xff]
    %v6074 = vld [vmem:[#allocation3 + $0xc8] sm:$0xff]
    %v6075 = vld [vmem:[#allocation3 + $0xd0] sm:$0xff]
    %v6076 = vld [vmem:[#allocation3 + $0xd8] sm:$0xff]
    %v6077 = vld [vmem:[#allocation3 + $0xe0] sm:$0xff]
    %v6078 = vld [vmem:[#allocation3 + $0xe8] sm:$0xff]
    %v6079 = vld [vmem:[#allocation3 + $0xf0] sm:$0xff]
    %v6080 = vld [vmem:[#allocation3 + $0xf8] sm:$0xff]
    %v6081 = vld [vmem:[#allocation9] sm:$0x3]
    %v6083 = vlaneseq
    %v6084 = vshrl.u32 %v6083, 7
    %v6085 = vsub.s32 0, %v6084
    %v6086 = vrot.slane %v6081, %v6085
    %v6087 = vlaneseq
    %v6088 = vshrl.u32 %v6087, 7
    %v6089 = vsub.s32 1, %v6088
    %v6090 = vrot.slane %v6081, %v6089
    %v6093 = vadd.f32 %v6049, %v6086
    %v6094 = vadd.f32 %v6050, %v6090
    %v6095 = vadd.f32 %v6051, %v6086
    %v6096 = vadd.f32 %v6052, %v6090
    %v6097 = vadd.f32 %v6053, %v6086
    %v6098 = vadd.f32 %v6054, %v6090
    %v6099 = vadd.f32 %v6055, %v6086
    %v6100 = vadd.f32 %v6056, %v6090
    %v6101 = vadd.f32 %v6057, %v6086
    %v6102 = vadd.f32 %v6058, %v6090
    %v6103 = vadd.f32 %v6059, %v6086
    %v6104 = vadd.f32 %v6060, %v6090
    %v6105 = vadd.f32 %v6061, %v6086
    %v6106 = vadd.f32 %v6062, %v6090
    %v6107 = vadd.f32 %v6063, %v6086
    %v6108 = vadd.f32 %v6064, %v6090
    %v6109 = vadd.f32 %v6065, %v6086
    %v6110 = vadd.f32 %v6066, %v6090
    %v6111 = vadd.f32 %v6067, %v6086
    %v6112 = vadd.f32 %v6068, %v6090
    %v6113 = vadd.f32 %v6069, %v6086
    %v6114 = vadd.f32 %v6070, %v6090
    %v6115 = vadd.f32 %v6071, %v6086
    %v6116 = vadd.f32 %v6072, %v6090
    %v6117 = vadd.f32 %v6073, %v6086
    %v6118 = vadd.f32 %v6074, %v6090
    %v6119 = vadd.f32 %v6075, %v6086
    %v6120 = vadd.f32 %v6076, %v6090
    %v6121 = vadd.f32 %v6077, %v6086
    %v6122 = vadd.f32 %v6078, %v6090
    %v6123 = vadd.f32 %v6079, %v6086
    %v6124 = vadd.f32 %v6080, %v6090
    %v6125 = vmax.f32 %v6093, 0.0
    %v6126 = vmax.f32 %v6094, 0.0
    %v6127 = vmax.f32 %v6095, 0.0
    %v6128 = vmax.f32 %v6096, 0.0
    %v6129 = vmax.f32 %v6097, 0.0
    %v6130 = vmax.f32 %v6098, 0.0
    %v6131 = vmax.f32 %v6099, 0.0
    %v6132 = vmax.f32 %v6100, 0.0
    %v6133 = vmax.f32 %v6101, 0.0
    %v6134 = vmax.f32 %v6102, 0.0
    %v6135 = vmax.f32 %v6103, 0.0
    %v6136 = vmax.f32 %v6104, 0.0
    %v6137 = vmax.f32 %v6105, 0.0
    %v6138 = vmax.f32 %v6106, 0.0
    %v6139 = vmax.f32 %v6107, 0.0
    %v6140 = vmax.f32 %v6108, 0.0
    %v6141 = vmax.f32 %v6109, 0.0
    %v6142 = vmax.f32 %v6110, 0.0
    %v6143 = vmax.f32 %v6111, 0.0
    %v6144 = vmax.f32 %v6112, 0.0
    %v6145 = vmax.f32 %v6113, 0.0
    %v6146 = vmax.f32 %v6114, 0.0
    %v6147 = vmax.f32 %v6115, 0.0
    %v6148 = vmax.f32 %v6116, 0.0
    %v6149 = vmax.f32 %v6117, 0.0
    %v6150 = vmax.f32 %v6118, 0.0
    %v6151 = vmax.f32 %v6119, 0.0
    %v6152 = vmax.f32 %v6120, 0.0
    %v6153 = vmax.f32 %v6121, 0.0
    %v6154 = vmax.f32 %v6122, 0.0
    %v6155 = vmax.f32 %v6123, 0.0
    %v6156 = vmax.f32 %v6124, 0.0
    %v6157 = vpack.c.bf16 %v6125, %v6125
    %v6158 = vpack.c.bf16 %v6126, %v6126
    %v6159 = vpack.c.bf16 %v6127, %v6127
    %v6160 = vpack.c.bf16 %v6128, %v6128
    %v6161 = vpack.c.bf16 %v6129, %v6129
    %v6162 = vpack.c.bf16 %v6130, %v6130
    %v6163 = vpack.c.bf16 %v6131, %v6131
    %v6164 = vpack.c.bf16 %v6132, %v6132
    %v6165 = vpack.c.bf16 %v6133, %v6133
    %v6166 = vpack.c.bf16 %v6134, %v6134
    %v6167 = vpack.c.bf16 %v6135, %v6135
    %v6168 = vpack.c.bf16 %v6136, %v6136
    %v6169 = vpack.c.bf16 %v6137, %v6137
    %v6170 = vpack.c.bf16 %v6138, %v6138
    %v6171 = vpack.c.bf16 %v6139, %v6139
    %v6172 = vpack.c.bf16 %v6140, %v6140
    %v6173 = vpack.c.bf16 %v6141, %v6141
    %v6174 = vpack.c.bf16 %v6142, %v6142
    %v6175 = vpack.c.bf16 %v6143, %v6143
    %v6176 = vpack.c.bf16 %v6144, %v6144
    %v6177 = vpack.c.bf16 %v6145, %v6145
    %v6178 = vpack.c.bf16 %v6146, %v6146
    %v6179 = vpack.c.bf16 %v6147, %v6147
    %v6180 = vpack.c.bf16 %v6148, %v6148
    %v6181 = vpack.c.bf16 %v6149, %v6149
    %v6182 = vpack.c.bf16 %v6150, %v6150
    %v6183 = vpack.c.bf16 %v6151, %v6151
    %v6184 = vpack.c.bf16 %v6152, %v6152
    %v6185 = vpack.c.bf16 %v6153, %v6153
    %v6186 = vpack.c.bf16 %v6154, %v6154
    %v6187 = vpack.c.bf16 %v6155, %v6155
    %v6188 = vpack.c.bf16 %v6156, %v6156
    %v6221 = vunpack.c.l.b16 %v6157
    %v6222 = vunpack.c.l.b16 %v6158
    %v6223 = vunpack.c.l.b16 %v6159
    %v6224 = vunpack.c.l.b16 %v6160
    %v6225 = vunpack.c.l.b16 %v6161
    %v6226 = vunpack.c.l.b16 %v6162
    %v6227 = vunpack.c.l.b16 %v6163
    %v6228 = vunpack.c.l.b16 %v6164
    %v6229 = vunpack.c.l.b16 %v6165
    %v6230 = vunpack.c.l.b16 %v6166
    %v6231 = vunpack.c.l.b16 %v6167
    %v6232 = vunpack.c.l.b16 %v6168
    %v6233 = vunpack.c.l.b16 %v6169
    %v6234 = vunpack.c.l.b16 %v6170
    %v6235 = vunpack.c.l.b16 %v6171
    %v6236 = vunpack.c.l.b16 %v6172
    %v6237 = vunpack.c.l.b16 %v6173
    %v6238 = vunpack.c.l.b16 %v6174
    %v6239 = vunpack.c.l.b16 %v6175
    %v6240 = vunpack.c.l.b16 %v6176
    %v6241 = vunpack.c.l.b16 %v6177
    %v6242 = vunpack.c.l.b16 %v6178
    %v6243 = vunpack.c.l.b16 %v6179
    %v6244 = vunpack.c.l.b16 %v6180
    %v6245 = vunpack.c.l.b16 %v6181
    %v6246 = vunpack.c.l.b16 %v6182
    %v6247 = vunpack.c.l.b16 %v6183
    %v6248 = vunpack.c.l.b16 %v6184
    %v6249 = vunpack.c.l.b16 %v6185
    %v6250 = vunpack.c.l.b16 %v6186
    %v6251 = vunpack.c.l.b16 %v6187
    %v6252 = vunpack.c.l.b16 %v6188
    %v6253 = vpack.c.b16 %v6222, %v6221
    %v6254 = vpack.c.b16 %v6224, %v6223
    %v6255 = vpack.c.b16 %v6226, %v6225
    %v6256 = vpack.c.b16 %v6228, %v6227
    %v6257 = vpack.c.b16 %v6230, %v6229
    %v6258 = vpack.c.b16 %v6232, %v6231
    %v6259 = vpack.c.b16 %v6234, %v6233
    %v6260 = vpack.c.b16 %v6236, %v6235
    %v6261 = vpack.c.b16 %v6238, %v6237
    %v6262 = vpack.c.b16 %v6240, %v6239
    %v6263 = vpack.c.b16 %v6242, %v6241
    %v6264 = vpack.c.b16 %v6244, %v6243
    %v6265 = vpack.c.b16 %v6246, %v6245
    %v6266 = vpack.c.b16 %v6248, %v6247
    %v6267 = vpack.c.b16 %v6250, %v6249
    %v6268 = vpack.c.b16 %v6252, %v6251
    %v6270 = vshrl.u32 %v6253, 16
    %v6272 = vrot.slane %v6270, 7
    %v6273 = vshll.u32 %v6253, 16
    %v6275 = vor.u32 %v6272, %v6273
    %v6276 = vrot.slane %v6272, 4
    %v6278 = vshrl.u32 %v6254, 16
    %v6280 = vrot.slane %v6278, 7
    %v6281 = vshll.u32 %v6254, 16
    %v6283 = vor.u32 %v6280, %v6281
    %v6284 = vrot.slane %v6280, 4
    %v6286 = vshrl.u32 %v6255, 16
    %v6288 = vrot.slane %v6286, 7
    %v6289 = vshll.u32 %v6255, 16
    %v6291 = vor.u32 %v6288, %v6289
    %v6292 = vrot.slane %v6288, 4
    %v6294 = vshrl.u32 %v6256, 16
    %v6296 = vrot.slane %v6294, 7
    %v6297 = vshll.u32 %v6256, 16
    %v6299 = vor.u32 %v6296, %v6297
    %v6300 = vrot.slane %v6296, 4
    %v6302 = vshrl.u32 %v6257, 16
    %v6304 = vrot.slane %v6302, 7
    %v6305 = vshll.u32 %v6257, 16
    %v6307 = vor.u32 %v6304, %v6305
    %v6308 = vrot.slane %v6304, 4
    %v6310 = vshrl.u32 %v6258, 16
    %v6312 = vrot.slane %v6310, 7
    %v6313 = vshll.u32 %v6258, 16
    %v6315 = vor.u32 %v6312, %v6313
    %v6316 = vrot.slane %v6312, 4
    %v6318 = vshrl.u32 %v6259, 16
    %v6320 = vrot.slane %v6318, 7
    %v6321 = vshll.u32 %v6259, 16
    %v6323 = vor.u32 %v6320, %v6321
    %v6324 = vrot.slane %v6320, 4
    %v6326 = vshrl.u32 %v6260, 16
    %v6328 = vrot.slane %v6326, 7
    %v6329 = vshll.u32 %v6260, 16
    %v6331 = vor.u32 %v6328, %v6329
    %v6332 = vrot.slane %v6328, 4
    %v6334 = vshrl.u32 %v6261, 16
    %v6336 = vrot.slane %v6334, 7
    %v6337 = vshll.u32 %v6261, 16
    %v6339 = vor.u32 %v6336, %v6337
    %v6340 = vrot.slane %v6336, 4
    %v6342 = vshrl.u32 %v6262, 16
    %v6344 = vrot.slane %v6342, 7
    %v6345 = vshll.u32 %v6262, 16
    %v6347 = vor.u32 %v6344, %v6345
    %v6348 = vrot.slane %v6344, 4
    %v6350 = vshrl.u32 %v6263, 16
    %v6352 = vrot.slane %v6350, 7
    %v6353 = vshll.u32 %v6263, 16
    %v6355 = vor.u32 %v6352, %v6353
    %v6356 = vrot.slane %v6352, 4
    %v6358 = vshrl.u32 %v6264, 16
    %v6360 = vrot.slane %v6358, 7
    %v6361 = vshll.u32 %v6264, 16
    %v6363 = vor.u32 %v6360, %v6361
    %v6364 = vrot.slane %v6360, 4
    %v6366 = vshrl.u32 %v6265, 16
    %v6368 = vrot.slane %v6366, 7
    %v6369 = vshll.u32 %v6265, 16
    %v6371 = vor.u32 %v6368, %v6369
    %v6372 = vrot.slane %v6368, 4
    %v6374 = vshrl.u32 %v6266, 16
    %v6376 = vrot.slane %v6374, 7
    %v6377 = vshll.u32 %v6266, 16
    %v6379 = vor.u32 %v6376, %v6377
    %v6380 = vrot.slane %v6376, 4
    %v6382 = vshrl.u32 %v6267, 16
    %v6384 = vrot.slane %v6382, 7
    %v6385 = vshll.u32 %v6267, 16
    %v6387 = vor.u32 %v6384, %v6385
    %v6388 = vrot.slane %v6384, 4
    %v6390 = vshrl.u32 %v6268, 16
    %v6392 = vrot.slane %v6390, 7
    %v6393 = vshll.u32 %v6268, 16
    %v6395 = vor.u32 %v6392, %v6393
    %v6396 = vrot.slane %v6392, 4
    %v6429 = vld [vmem:[%s563] sm:$0xff]
    %v6430 = vsel %vm568, %v6275, %v6429
    %6431 = vst [vmem:[%s563] sm:$0xff] %v6430
    %v6432 = vld [vmem:[%s563 + $0x8] sm:$0x11]
    %v6433 = vsel %vm101, %v6276, %v6432
    %6434 = vst [vmem:[%s563 + $0x8] sm:$0x11] %v6433
    %v6435 = vld [vmem:[%s563 + $0x10] sm:$0xff]
    %v6436 = vsel %vm568, %v6283, %v6435
    %6437 = vst [vmem:[%s563 + $0x10] sm:$0xff] %v6436
    %v6438 = vld [vmem:[%s563 + $0x18] sm:$0x11]
    %v6439 = vsel %vm101, %v6284, %v6438
    %6440 = vst [vmem:[%s563 + $0x18] sm:$0x11] %v6439
    %v6441 = vld [vmem:[%s563 + $0x20] sm:$0xff]
    %v6442 = vsel %vm568, %v6291, %v6441
    %6443 = vst [vmem:[%s563 + $0x20] sm:$0xff] %v6442
    %v6444 = vld [vmem:[%s563 + $0x28] sm:$0x11]
    %v6445 = vsel %vm101, %v6292, %v6444
    %6446 = vst [vmem:[%s563 + $0x28] sm:$0x11] %v6445
    %v6447 = vld [vmem:[%s563 + $0x30] sm:$0xff]
    %v6448 = vsel %vm568, %v6299, %v6447
    %6449 = vst [vmem:[%s563 + $0x30] sm:$0xff] %v6448
    %v6450 = vld [vmem:[%s563 + $0x38] sm:$0x11]
    %v6451 = vsel %vm101, %v6300, %v6450
    %6452 = vst [vmem:[%s563 + $0x38] sm:$0x11] %v6451
    %v6453 = vld [vmem:[%s563 + $0x40] sm:$0xff]
    %v6454 = vsel %vm568, %v6307, %v6453
    %6455 = vst [vmem:[%s563 + $0x40] sm:$0xff] %v6454
    %v6456 = vld [vmem:[%s563 + $0x48] sm:$0x11]
    %v6457 = vsel %vm101, %v6308, %v6456
    %6458 = vst [vmem:[%s563 + $0x48] sm:$0x11] %v6457
    %v6459 = vld [vmem:[%s563 + $0x50] sm:$0xff]
    %v6460 = vsel %vm568, %v6315, %v6459
    %6461 = vst [vmem:[%s563 + $0x50] sm:$0xff] %v6460
    %v6462 = vld [vmem:[%s563 + $0x58] sm:$0x11]
    %v6463 = vsel %vm101, %v6316, %v6462
    %6464 = vst [vmem:[%s563 + $0x58] sm:$0x11] %v6463
    %v6465 = vld [vmem:[%s563 + $0x60] sm:$0xff]
    %v6466 = vsel %vm568, %v6323, %v6465
    %6467 = vst [vmem:[%s563 + $0x60] sm:$0xff] %v6466
    %v6468 = vld [vmem:[%s563 + $0x68] sm:$0x11]
    %v6469 = vsel %vm101, %v6324, %v6468
    %6470 = vst [vmem:[%s563 + $0x68] sm:$0x11] %v6469
    %v6471 = vld [vmem:[%s563 + $0x70] sm:$0xff]
    %v6472 = vsel %vm568, %v6331, %v6471
    %6473 = vst [vmem:[%s563 + $0x70] sm:$0xff] %v6472
    %v6474 = vld [vmem:[%s563 + $0x78] sm:$0x11]
    %v6475 = vsel %vm101, %v6332, %v6474
    %6476 = vst [vmem:[%s563 + $0x78] sm:$0x11] %v6475
    %v6477 = vld [vmem:[%s563 + $0xa0] sm:$0xff]
    %v6478 = vsel %vm568, %v6339, %v6477
    %6479 = vst [vmem:[%s563 + $0xa0] sm:$0xff] %v6478
    %v6480 = vld [vmem:[%s563 + $0xa8] sm:$0x11]
    %v6481 = vsel %vm101, %v6340, %v6480
    %6482 = vst [vmem:[%s563 + $0xa8] sm:$0x11] %v6481
    %v6483 = vld [vmem:[%s563 + $0xb0] sm:$0xff]
    %v6484 = vsel %vm568, %v6347, %v6483
    %6485 = vst [vmem:[%s563 + $0xb0] sm:$0xff] %v6484
    %v6486 = vld [vmem:[%s563 + $0xb8] sm:$0x11]
    %v6487 = vsel %vm101, %v6348, %v6486
    %6488 = vst [vmem:[%s563 + $0xb8] sm:$0x11] %v6487
    %v6489 = vld [vmem:[%s563 + $0xc0] sm:$0xff]
    %v6490 = vsel %vm568, %v6355, %v6489
    %6491 = vst [vmem:[%s563 + $0xc0] sm:$0xff] %v6490
    %v6492 = vld [vmem:[%s563 + $0xc8] sm:$0x11]
    %v6493 = vsel %vm101, %v6356, %v6492
    %6494 = vst [vmem:[%s563 + $0xc8] sm:$0x11] %v6493
    %v6495 = vld [vmem:[%s563 + $0xd0] sm:$0xff]
    %v6496 = vsel %vm568, %v6363, %v6495
    %6497 = vst [vmem:[%s563 + $0xd0] sm:$0xff] %v6496
    %v6498 = vld [vmem:[%s563 + $0xd8] sm:$0x11]
    %v6499 = vsel %vm101, %v6364, %v6498
    %6500 = vst [vmem:[%s563 + $0xd8] sm:$0x11] %v6499
    %v6501 = vld [vmem:[%s563 + $0xe0] sm:$0xff]
    %v6502 = vsel %vm568, %v6371, %v6501
    %6503 = vst [vmem:[%s563 + $0xe0] sm:$0xff] %v6502
    %v6504 = vld [vmem:[%s563 + $0xe8] sm:$0x11]
    %v6505 = vsel %vm101, %v6372, %v6504
    %6506 = vst [vmem:[%s563 + $0xe8] sm:$0x11] %v6505
    %v6507 = vld [vmem:[%s563 + $0xf0] sm:$0xff]
    %v6508 = vsel %vm568, %v6379, %v6507
    %6509 = vst [vmem:[%s563 + $0xf0] sm:$0xff] %v6508
    %v6510 = vld [vmem:[%s563 + $0xf8] sm:$0x11]
    %v6511 = vsel %vm101, %v6380, %v6510
    %6512 = vst [vmem:[%s563 + $0xf8] sm:$0x11] %v6511
    %v6513 = vld [vmem:[%s563 + $0x100] sm:$0xff]
    %v6514 = vsel %vm568, %v6387, %v6513
    %6515 = vst [vmem:[%s563 + $0x100] sm:$0xff] %v6514
    %v6516 = vld [vmem:[%s563 + $0x108] sm:$0x11]
    %v6517 = vsel %vm101, %v6388, %v6516
    %6518 = vst [vmem:[%s563 + $0x108] sm:$0x11] %v6517
    %v6519 = vld [vmem:[%s563 + $0x110] sm:$0xff]
    %v6520 = vsel %vm568, %v6395, %v6519
    %6521 = vst [vmem:[%s563 + $0x110] sm:$0xff] %v6520
    %v6522 = vld [vmem:[%s563 + $0x118] sm:$0x11]
    %v6523 = vsel %vm101, %v6396, %v6522
    %6524 = vst [vmem:[%s563 + $0x118] sm:$0x11] %v6523
    %v6525 = vld [vmem:[#allocation2] sm:$0xff]
    %v6526 = vld [vmem:[#allocation2 + $0x10] sm:$0xff]
    %v6527 = vld [vmem:[#allocation2 + $0x20] sm:$0xff]
    %v6528 = vld [vmem:[#allocation2 + $0x30] sm:$0xff]
    %v6529 = vld [vmem:[#allocation2 + $0x40] sm:$0xff]
    %v6530 = vld [vmem:[#allocation2 + $0x50] sm:$0xff]
    %v6531 = vld [vmem:[#allocation2 + $0x60] sm:$0xff]
    %v6532 = vld [vmem:[#allocation2 + $0x70] sm:$0xff]
    %v6533 = vld [vmem:[#allocation2 + $0xa0] sm:$0xff]
    %v6534 = vld [vmem:[#allocation2 + $0xb0] sm:$0xff]
    %v6535 = vld [vmem:[#allocation2 + $0xc0] sm:$0xff]
    %v6536 = vld [vmem:[#allocation2 + $0xd0] sm:$0xff]
    %v6537 = vld [vmem:[#allocation2 + $0xe0] sm:$0xff]
    %v6538 = vld [vmem:[#allocation2 + $0xf0] sm:$0xff]
    %v6539 = vld [vmem:[#allocation2 + $0x100] sm:$0xff]
    %v6540 = vld [vmem:[#allocation2 + $0x110] sm:$0xff]
    %v6541 = vld [vmem:[#allocation10] sm:$0xff]
    %v6542 = vld [vmem:[#allocation10 + $0x8] sm:$0xff]
    %v6543 = vld [vmem:[#allocation10 + $0x10] sm:$0xff]
    %v6544 = vld [vmem:[#allocation10 + $0x18] sm:$0xff]
    %v6545 = vld [vmem:[#allocation10 + $0x20] sm:$0xff]
    %v6546 = vld [vmem:[#allocation10 + $0x28] sm:$0xff]
    %v6547 = vld [vmem:[#allocation10 + $0x30] sm:$0xff]
    %v6548 = vld [vmem:[#allocation10 + $0x38] sm:$0xff]
    %v6549 = vld [vmem:[#allocation10 + $0x40] sm:$0xff]
    %v6550 = vld [vmem:[#allocation10 + $0x48] sm:$0xff]
    %v6551 = vld [vmem:[#allocation10 + $0x50] sm:$0xff]
    %v6552 = vld [vmem:[#allocation10 + $0x58] sm:$0xff]
    %v6553 = vld [vmem:[#allocation10 + $0x60] sm:$0xff]
    %v6554 = vld [vmem:[#allocation10 + $0x68] sm:$0xff]
    %v6555 = vld [vmem:[#allocation10 + $0x70] sm:$0xff]
    %v6556 = vld [vmem:[#allocation10 + $0x78] sm:$0xff]
    %v6557 = vld [vmem:[#allocation10 + $0x80] sm:$0xff]
    %v6558 = vld [vmem:[#allocation10 + $0x88] sm:$0xff]
    %v6559 = vld [vmem:[#allocation10 + $0x90] sm:$0xff]
    %v6560 = vld [vmem:[#allocation10 + $0x98] sm:$0xff]
    %v6561 = vld [vmem:[#allocation10 + $0xa0] sm:$0xff]
    %v6562 = vld [vmem:[#allocation10 + $0xa8] sm:$0xff]
    %v6563 = vld [vmem:[#allocation10 + $0xb0] sm:$0xff]
    %v6564 = vld [vmem:[#allocation10 + $0xb8] sm:$0xff]
    %v6565 = vld [vmem:[#allocation10 + $0xc0] sm:$0xff]
    %v6566 = vld [vmem:[#allocation10 + $0xc8] sm:$0xff]
    %v6567 = vld [vmem:[#allocation10 + $0xd0] sm:$0xff]
    %v6568 = vld [vmem:[#allocation10 + $0xd8] sm:$0xff]
    %v6569 = vld [vmem:[#allocation10 + $0xe0] sm:$0xff]
    %v6570 = vld [vmem:[#allocation10 + $0xe8] sm:$0xff]
    %v6571 = vld [vmem:[#allocation10 + $0xf0] sm:$0xff]
    %v6572 = vld [vmem:[#allocation10 + $0xf8] sm:$0xff]
    %v6589 = vunpack.c.l.b16 %v6525
    %v6590 = vunpack.c.h.b16 %v6525
    %v6591 = vunpack.c.l.b16 %v6526
    %v6592 = vunpack.c.h.b16 %v6526
    %v6593 = vunpack.c.l.b16 %v6527
    %v6594 = vunpack.c.h.b16 %v6527
    %v6595 = vunpack.c.l.b16 %v6528
    %v6596 = vunpack.c.h.b16 %v6528
    %v6597 = vunpack.c.l.b16 %v6529
    %v6598 = vunpack.c.h.b16 %v6529
    %v6599 = vunpack.c.l.b16 %v6530
    %v6600 = vunpack.c.h.b16 %v6530
    %v6601 = vunpack.c.l.b16 %v6531
    %v6602 = vunpack.c.h.b16 %v6531
    %v6603 = vunpack.c.l.b16 %v6532
    %v6604 = vunpack.c.h.b16 %v6532
    %v6605 = vunpack.c.l.b16 %v6533
    %v6606 = vunpack.c.h.b16 %v6533
    %v6607 = vunpack.c.l.b16 %v6534
    %v6608 = vunpack.c.h.b16 %v6534
    %v6609 = vunpack.c.l.b16 %v6535
    %v6610 = vunpack.c.h.b16 %v6535
    %v6611 = vunpack.c.l.b16 %v6536
    %v6612 = vunpack.c.h.b16 %v6536
    %v6613 = vunpack.c.l.b16 %v6537
    %v6614 = vunpack.c.h.b16 %v6537
    %v6615 = vunpack.c.l.b16 %v6538
    %v6616 = vunpack.c.h.b16 %v6538
    %v6617 = vunpack.c.l.b16 %v6539
    %v6618 = vunpack.c.h.b16 %v6539
    %v6619 = vunpack.c.l.b16 %v6540
    %v6620 = vunpack.c.h.b16 %v6540
    %v6621 = vpack.c.b16 %v6591, %v6589
    %v6622 = vpack.c.b16 %v6592, %v6590
    %v6623 = vpack.c.b16 %v6595, %v6593
    %v6624 = vpack.c.b16 %v6596, %v6594
    %v6625 = vpack.c.b16 %v6599, %v6597
    %v6626 = vpack.c.b16 %v6600, %v6598
    %v6627 = vpack.c.b16 %v6603, %v6601
    %v6628 = vpack.c.b16 %v6604, %v6602
    %v6629 = vpack.c.b16 %v6607, %v6605
    %v6630 = vpack.c.b16 %v6608, %v6606
    %v6631 = vpack.c.b16 %v6611, %v6609
    %v6632 = vpack.c.b16 %v6612, %v6610
    %v6633 = vpack.c.b16 %v6615, %v6613
    %v6634 = vpack.c.b16 %v6616, %v6614
    %v6635 = vpack.c.b16 %v6619, %v6617
    %v6636 = vpack.c.b16 %v6620, %v6618
    %v6685 = vunpack.c.l.b16 %v6541
    %v6686 = vunpack.c.h.b16 %v6541
    %v6687 = vunpack.c.l.b16 %v6542
    %v6688 = vunpack.c.h.b16 %v6542
    %v6689 = vunpack.c.l.b16 %v6543
    %v6690 = vunpack.c.h.b16 %v6543
    %v6691 = vunpack.c.l.b16 %v6544
    %v6692 = vunpack.c.h.b16 %v6544
    %v6693 = vunpack.c.l.b16 %v6545
    %v6694 = vunpack.c.h.b16 %v6545
    %v6695 = vunpack.c.l.b16 %v6546
    %v6696 = vunpack.c.h.b16 %v6546
    %v6697 = vunpack.c.l.b16 %v6547
    %v6698 = vunpack.c.h.b16 %v6547
    %v6699 = vunpack.c.l.b16 %v6548
    %v6700 = vunpack.c.h.b16 %v6548
    %v6701 = vunpack.c.l.b16 %v6549
    %v6702 = vunpack.c.h.b16 %v6549
    %v6703 = vunpack.c.l.b16 %v6550
    %v6704 = vunpack.c.h.b16 %v6550
    %v6705 = vunpack.c.l.b16 %v6551
    %v6706 = vunpack.c.h.b16 %v6551
    %v6707 = vunpack.c.l.b16 %v6552
    %v6708 = vunpack.c.h.b16 %v6552
    %v6709 = vunpack.c.l.b16 %v6553
    %v6710 = vunpack.c.h.b16 %v6553
    %v6711 = vunpack.c.l.b16 %v6554
    %v6712 = vunpack.c.h.b16 %v6554
    %v6713 = vunpack.c.l.b16 %v6555
    %v6714 = vunpack.c.h.b16 %v6555
    %v6715 = vunpack.c.l.b16 %v6556
    %v6716 = vunpack.c.h.b16 %v6556
    %v6717 = vunpack.c.l.b16 %v6557
    %v6718 = vunpack.c.h.b16 %v6557
    %v6719 = vunpack.c.l.b16 %v6558
    %v6720 = vunpack.c.h.b16 %v6558
    %v6721 = vunpack.c.l.b16 %v6559
    %v6722 = vunpack.c.h.b16 %v6559
    %v6723 = vunpack.c.l.b16 %v6560
    %v6724 = vunpack.c.h.b16 %v6560
    %v6725 = vunpack.c.l.b16 %v6561
    %v6726 = vunpack.c.h.b16 %v6561
    %v6727 = vunpack.c.l.b16 %v6562
    %v6728 = vunpack.c.h.b16 %v6562
    %v6729 = vunpack.c.l.b16 %v6563
    %v6730 = vunpack.c.h.b16 %v6563
    %v6731 = vunpack.c.l.b16 %v6564
    %v6732 = vunpack.c.h.b16 %v6564
    %v6733 = vunpack.c.l.b16 %v6565
    %v6734 = vunpack.c.h.b16 %v6565
    %v6735 = vunpack.c.l.b16 %v6566
    %v6736 = vunpack.c.h.b16 %v6566
    %v6737 = vunpack.c.l.b16 %v6567
    %v6738 = vunpack.c.h.b16 %v6567
    %v6739 = vunpack.c.l.b16 %v6568
    %v6740 = vunpack.c.h.b16 %v6568
    %v6741 = vunpack.c.l.b16 %v6569
    %v6742 = vunpack.c.h.b16 %v6569
    %v6743 = vunpack.c.l.b16 %v6570
    %v6744 = vunpack.c.h.b16 %v6570
    %v6745 = vunpack.c.l.b16 %v6571
    %v6746 = vunpack.c.h.b16 %v6571
    %v6747 = vunpack.c.l.b16 %v6572
    %v6748 = vunpack.c.h.b16 %v6572
    %v6749 = vpack.c.b16 %v6687, %v6685
    %v6750 = vpack.c.b16 %v6688, %v6686
    %v6751 = vpack.c.b16 %v6691, %v6689
    %v6752 = vpack.c.b16 %v6692, %v6690
    %v6753 = vpack.c.b16 %v6695, %v6693
    %v6754 = vpack.c.b16 %v6696, %v6694
    %v6755 = vpack.c.b16 %v6699, %v6697
    %v6756 = vpack.c.b16 %v6700, %v6698
    %v6757 = vpack.c.b16 %v6703, %v6701
    %v6758 = vpack.c.b16 %v6704, %v6702
    %v6759 = vpack.c.b16 %v6707, %v6705
    %v6760 = vpack.c.b16 %v6708, %v6706
    %v6761 = vpack.c.b16 %v6711, %v6709
    %v6762 = vpack.c.b16 %v6712, %v6710
    %v6763 = vpack.c.b16 %v6715, %v6713
    %v6764 = vpack.c.b16 %v6716, %v6714
    %v6765 = vpack.c.b16 %v6719, %v6717
    %v6766 = vpack.c.b16 %v6720, %v6718
    %v6767 = vpack.c.b16 %v6723, %v6721
    %v6768 = vpack.c.b16 %v6724, %v6722
    %v6769 = vpack.c.b16 %v6727, %v6725
    %v6770 = vpack.c.b16 %v6728, %v6726
    %v6771 = vpack.c.b16 %v6731, %v6729
    %v6772 = vpack.c.b16 %v6732, %v6730
    %v6773 = vpack.c.b16 %v6735, %v6733
    %v6774 = vpack.c.b16 %v6736, %v6734
    %v6775 = vpack.c.b16 %v6739, %v6737
    %v6776 = vpack.c.b16 %v6740, %v6738
    %v6777 = vpack.c.b16 %v6743, %v6741
    %v6778 = vpack.c.b16 %v6744, %v6742
    %v6779 = vpack.c.b16 %v6747, %v6745
    %v6780 = vpack.c.b16 %v6748, %v6746
    %6813 = vmatprep.subr.bf16.mxu0 %v6764
    %6814 = vmatpush1.bf16.msra.mxu0 %v6763
    %6815 = vmatprep.subr.bf16.mxu0 %v6762
    %6816 = vmatpush1.bf16.msra.mxu0 %v6761
    %6817 = vmatprep.subr.bf16.mxu0 %v6760
    %6818 = vmatpush1.bf16.msra.mxu0 %v6759
    %6819 = vmatprep.subr.bf16.mxu0 %v6758
    %6820 = vmatpush1.bf16.msra.mxu0 %v6757
    %6821 = vmatprep.subr.bf16.mxu0 %v6756
    %6822 = vmatpush1.bf16.msra.mxu0 %v6755
    %6823 = vmatprep.subr.bf16.mxu0 %v6754
    %6824 = vmatpush1.bf16.msra.mxu0 %v6753
    %6825 = vmatprep.subr.bf16.mxu0 %v6752
    %6826 = vmatpush1.bf16.msra.mxu0 %v6751
    %6827 = vmatprep.subr.bf16.mxu0 %v6750
    %6828 = vmatpush1.bf16.msra.mxu0 %v6749
    %6829 = vmatprep.subr.bf16.mxu0 %v6780
    %6830 = vmatpush2.bf16.msra.mxu0 %v6779
    %6831 = vmatprep.subr.bf16.mxu0 %v6778
    %6832 = vmatpush2.bf16.msra.mxu0 %v6777
    %6833 = vmatprep.subr.bf16.mxu0 %v6776
    %6834 = vmatpush2.bf16.msra.mxu0 %v6775
    %6835 = vmatprep.subr.bf16.mxu0 %v6774
    %6836 = vmatpush2.bf16.msra.mxu0 %v6773
    %6837 = vmatprep.subr.bf16.mxu0 %v6772
    %6838 = vmatpush2.bf16.msra.mxu0 %v6771
    %6839 = vmatprep.subr.bf16.mxu0 %v6770
    %6840 = vmatpush2.bf16.msra.mxu0 %v6769
    %6841 = vmatprep.subr.bf16.mxu0 %v6768
    %6842 = vmatpush2.bf16.msra.mxu0 %v6767
    %6843 = vmatprep.subr.bf16.mxu0 %v6766
    %6844 = vmatpush2.bf16.msra.mxu0 %v6765
    %6845 = vmatprep.mubr.bf16.mxu0 %v6622
    %6846 = vmatmul.mubr.bf16.gmra.mxu0 %v6621
    %v6847 = vpop.f32.mrf.mxu0
    %v6848 = vadd.f32 0.0, %v6847
    %v6849 = vpop.f32.mrf.mxu0
    %v6850 = vadd.f32 0.0, %v6849
    %v6851 = vpop.f32.mrf.mxu0
    %v6852 = vadd.f32 0.0, %v6851
    %v6853 = vpop.f32.mrf.mxu0
    %v6854 = vadd.f32 0.0, %v6853
    %6855 = vmatprep.mubr.bf16.mxu0 %v6624
    %6856 = vmatmul.mubr.bf16.gmra.mxu0 %v6623
    %v6857 = vpop.f32.mrf.mxu0
    %v6858 = vadd.f32 0.0, %v6857
    %v6859 = vpop.f32.mrf.mxu0
    %v6860 = vadd.f32 0.0, %v6859
    %v6861 = vpop.f32.mrf.mxu0
    %v6862 = vadd.f32 0.0, %v6861
    %v6863 = vpop.f32.mrf.mxu0
    %v6864 = vadd.f32 0.0, %v6863
    %6865 = vmatprep.mubr.bf16.mxu0 %v6626
    %6866 = vmatmul.mubr.bf16.gmra.mxu0 %v6625
    %v6867 = vpop.f32.mrf.mxu0
    %v6868 = vadd.f32 0.0, %v6867
    %v6869 = vpop.f32.mrf.mxu0
    %v6870 = vadd.f32 0.0, %v6869
    %v6871 = vpop.f32.mrf.mxu0
    %v6872 = vadd.f32 0.0, %v6871
    %v6873 = vpop.f32.mrf.mxu0
    %v6874 = vadd.f32 0.0, %v6873
    %6875 = vmatprep.mubr.bf16.mxu0 %v6628
    %6876 = vmatmul.mubr.bf16.gmra.mxu0 %v6627
    %v6877 = vpop.f32.mrf.mxu0
    %v6878 = vadd.f32 0.0, %v6877
    %v6879 = vpop.f32.mrf.mxu0
    %v6880 = vadd.f32 0.0, %v6879
    %v6881 = vpop.f32.mrf.mxu0
    %v6882 = vadd.f32 0.0, %v6881
    %v6883 = vpop.f32.mrf.mxu0
    %v6884 = vadd.f32 0.0, %v6883
    %6885 = vmatprep.mubr.bf16.mxu0 %v6630
    %6886 = vmatmul.mubr.bf16.gmra.mxu0 %v6629
    %v6887 = vpop.f32.mrf.mxu0
    %v6888 = vadd.f32 0.0, %v6887
    %v6889 = vpop.f32.mrf.mxu0
    %v6890 = vadd.f32 0.0, %v6889
    %v6891 = vpop.f32.mrf.mxu0
    %v6892 = vadd.f32 0.0, %v6891
    %v6893 = vpop.f32.mrf.mxu0
    %v6894 = vadd.f32 0.0, %v6893
    %6895 = vmatprep.mubr.bf16.mxu0 %v6632
    %6896 = vmatmul.mubr.bf16.gmra.mxu0 %v6631
    %v6897 = vpop.f32.mrf.mxu0
    %v6898 = vadd.f32 0.0, %v6897
    %v6899 = vpop.f32.mrf.mxu0
    %v6900 = vadd.f32 0.0, %v6899
    %v6901 = vpop.f32.mrf.mxu0
    %v6902 = vadd.f32 0.0, %v6901
    %v6903 = vpop.f32.mrf.mxu0
    %v6904 = vadd.f32 0.0, %v6903
    %6905 = vmatprep.mubr.bf16.mxu0 %v6634
    %6906 = vmatmul.mubr.bf16.gmra.mxu0 %v6633
    %v6907 = vpop.f32.mrf.mxu0
    %v6908 = vadd.f32 0.0, %v6907
    %v6909 = vpop.f32.mrf.mxu0
    %v6910 = vadd.f32 0.0, %v6909
    %v6911 = vpop.f32.mrf.mxu0
    %v6912 = vadd.f32 0.0, %v6911
    %v6913 = vpop.f32.mrf.mxu0
    %v6914 = vadd.f32 0.0, %v6913
    %6915 = vmatprep.mubr.bf16.mxu0 %v6636
    %6916 = vmatmul.mubr.bf16.gmra.mxu0 %v6635
    %v6917 = vpop.f32.mrf.mxu0
    %v6918 = vadd.f32 0.0, %v6917
    %v6919 = vpop.f32.mrf.mxu0
    %v6920 = vadd.f32 0.0, %v6919
    %v6921 = vpop.f32.mrf.mxu0
    %v6922 = vadd.f32 0.0, %v6921
    %v6923 = vpop.f32.mrf.mxu0
    %v6924 = vadd.f32 0.0, %v6923
    %6925 = vdwg.mxu0
    %6926 = vst [vmem:[#allocation3] sm:$0xff] %v6848
    %6927 = vst [vmem:[#allocation3 + $0x8] sm:$0xff] %v6850
    %6928 = vst [vmem:[#allocation3 + $0x10] sm:$0xff] %v6852
    %6929 = vst [vmem:[#allocation3 + $0x18] sm:$0xff] %v6854
    %6930 = vst [vmem:[#allocation3 + $0x20] sm:$0xff] %v6858
    %6931 = vst [vmem:[#allocation3 + $0x28] sm:$0xff] %v6860
    %6932 = vst [vmem:[#allocation3 + $0x30] sm:$0xff] %v6862
    %6933 = vst [vmem:[#allocation3 + $0x38] sm:$0xff] %v6864
    %6934 = vst [vmem:[#allocation3 + $0x40] sm:$0xff] %v6868
    %6935 = vst [vmem:[#allocation3 + $0x48] sm:$0xff] %v6870
    %6936 = vst [vmem:[#allocation3 + $0x50] sm:$0xff] %v6872
    %6937 = vst [vmem:[#allocation3 + $0x58] sm:$0xff] %v6874
    %6938 = vst [vmem:[#allocation3 + $0x60] sm:$0xff] %v6878
    %6939 = vst [vmem:[#allocation3 + $0x68] sm:$0xff] %v6880
    %6940 = vst [vmem:[#allocation3 + $0x70] sm:$0xff] %v6882
    %6941 = vst [vmem:[#allocation3 + $0x78] sm:$0xff] %v6884
    %6942 = vst [vmem:[#allocation3 + $0x80] sm:$0xff] %v6888
    %6943 = vst [vmem:[#allocation3 + $0x88] sm:$0xff] %v6890
    %6944 = vst [vmem:[#allocation3 + $0x90] sm:$0xff] %v6892
    %6945 = vst [vmem:[#allocation3 + $0x98] sm:$0xff] %v6894
    %6946 = vst [vmem:[#allocation3 + $0xa0] sm:$0xff] %v6898
    %6947 = vst [vmem:[#allocation3 + $0xa8] sm:$0xff] %v6900
    %6948 = vst [vmem:[#allocation3 + $0xb0] sm:$0xff] %v6902
    %6949 = vst [vmem:[#allocation3 + $0xb8] sm:$0xff] %v6904
    %6950 = vst [vmem:[#allocation3 + $0xc0] sm:$0xff] %v6908
    %6951 = vst [vmem:[#allocation3 + $0xc8] sm:$0xff] %v6910
    %6952 = vst [vmem:[#allocation3 + $0xd0] sm:$0xff] %v6912
    %6953 = vst [vmem:[#allocation3 + $0xd8] sm:$0xff] %v6914
    %6954 = vst [vmem:[#allocation3 + $0xe0] sm:$0xff] %v6918
    %6955 = vst [vmem:[#allocation3 + $0xe8] sm:$0xff] %v6920
    %6956 = vst [vmem:[#allocation3 + $0xf0] sm:$0xff] %v6922
    %6957 = vst [vmem:[#allocation3 + $0xf8] sm:$0xff] %v6924
    %v6958 = vld [vmem:[#allocation2] sm:$0xff]
    %v6959 = vld [vmem:[#allocation2 + $0x8] sm:$0x11]
    %v6960 = vld [vmem:[#allocation2 + $0x10] sm:$0xff]
    %v6961 = vld [vmem:[#allocation2 + $0x18] sm:$0x11]
    %v6962 = vld [vmem:[#allocation2 + $0x20] sm:$0xff]
    %v6963 = vld [vmem:[#allocation2 + $0x28] sm:$0x11]
    %v6964 = vld [vmem:[#allocation2 + $0x30] sm:$0xff]
    %v6965 = vld [vmem:[#allocation2 + $0x38] sm:$0x11]
    %v6966 = vld [vmem:[#allocation2 + $0x40] sm:$0xff]
    %v6967 = vld [vmem:[#allocation2 + $0x48] sm:$0x11]
    %v6968 = vld [vmem:[#allocation2 + $0x50] sm:$0xff]
    %v6969 = vld [vmem:[#allocation2 + $0x58] sm:$0x11]
    %v6970 = vld [vmem:[#allocation2 + $0x60] sm:$0xff]
    %v6971 = vld [vmem:[#allocation2 + $0x68] sm:$0x11]
    %v6972 = vld [vmem:[#allocation2 + $0x70] sm:$0xff]
    %v6973 = vld [vmem:[#allocation2 + $0x78] sm:$0x11]
    %v6974 = vld [vmem:[#allocation2 + $0xa0] sm:$0xff]
    %v6975 = vld [vmem:[#allocation2 + $0xa8] sm:$0x11]
    %v6976 = vld [vmem:[#allocation2 + $0xb0] sm:$0xff]
    %v6977 = vld [vmem:[#allocation2 + $0xb8] sm:$0x11]
    %v6978 = vld [vmem:[#allocation2 + $0xc0] sm:$0xff]
    %v6979 = vld [vmem:[#allocation2 + $0xc8] sm:$0x11]
    %v6980 = vld [vmem:[#allocation2 + $0xd0] sm:$0xff]
    %v6981 = vld [vmem:[#allocation2 + $0xd8] sm:$0x11]
    %v6982 = vld [vmem:[#allocation2 + $0xe0] sm:$0xff]
    %v6983 = vld [vmem:[#allocation2 + $0xe8] sm:$0x11]
    %v6984 = vld [vmem:[#allocation2 + $0xf0] sm:$0xff]
    %v6985 = vld [vmem:[#allocation2 + $0xf8] sm:$0x11]
    %v6986 = vld [vmem:[#allocation2 + $0x100] sm:$0xff]
    %v6987 = vld [vmem:[#allocation2 + $0x108] sm:$0x11]
    %v6988 = vld [vmem:[#allocation2 + $0x110] sm:$0xff]
    %v6989 = vld [vmem:[#allocation2 + $0x118] sm:$0x11]
    %v6991 = vshrl.u32 %v6958, 16
    %v6993 = vrot.slane %v6991, 4
    %v6994 = vshll.u32 %v6958, 16
    %v6996 = vrot.slane %v6994, 5
    %v6997 = vor.u32 %v6993, %v6996
    %v6998 = vrot.slane %v6997, 4
    %v7000 = vshll.u32 %v6959, 16
    %v7002 = vrot.slane %v7000, 5
    %v7003 = vsel %vm1132, %v6998, %v7002
    %v7005 = vshrl.u32 %v6960, 16
    %v7007 = vrot.slane %v7005, 4
    %v7008 = vshll.u32 %v6960, 16
    %v7010 = vrot.slane %v7008, 5
    %v7011 = vor.u32 %v7007, %v7010
    %v7012 = vrot.slane %v7011, 4
    %v7014 = vshll.u32 %v6961, 16
    %v7016 = vrot.slane %v7014, 5
    %v7017 = vsel %vm1132, %v7012, %v7016
    %v7019 = vshrl.u32 %v6962, 16
    %v7021 = vrot.slane %v7019, 4
    %v7022 = vshll.u32 %v6962, 16
    %v7024 = vrot.slane %v7022, 5
    %v7025 = vor.u32 %v7021, %v7024
    %v7026 = vrot.slane %v7025, 4
    %v7028 = vshll.u32 %v6963, 16
    %v7030 = vrot.slane %v7028, 5
    %v7031 = vsel %vm1132, %v7026, %v7030
    %v7033 = vshrl.u32 %v6964, 16
    %v7035 = vrot.slane %v7033, 4
    %v7036 = vshll.u32 %v6964, 16
    %v7038 = vrot.slane %v7036, 5
    %v7039 = vor.u32 %v7035, %v7038
    %v7040 = vrot.slane %v7039, 4
    %v7042 = vshll.u32 %v6965, 16
    %v7044 = vrot.slane %v7042, 5
    %v7045 = vsel %vm1132, %v7040, %v7044
    %v7047 = vshrl.u32 %v6966, 16
    %v7049 = vrot.slane %v7047, 4
    %v7050 = vshll.u32 %v6966, 16
    %v7052 = vrot.slane %v7050, 5
    %v7053 = vor.u32 %v7049, %v7052
    %v7054 = vrot.slane %v7053, 4
    %v7056 = vshll.u32 %v6967, 16
    %v7058 = vrot.slane %v7056, 5
    %v7059 = vsel %vm1132, %v7054, %v7058
    %v7061 = vshrl.u32 %v6968, 16
    %v7063 = vrot.slane %v7061, 4
    %v7064 = vshll.u32 %v6968, 16
    %v7066 = vrot.slane %v7064, 5
    %v7067 = vor.u32 %v7063, %v7066
    %v7068 = vrot.slane %v7067, 4
    %v7070 = vshll.u32 %v6969, 16
    %v7072 = vrot.slane %v7070, 5
    %v7073 = vsel %vm1132, %v7068, %v7072
    %v7075 = vshrl.u32 %v6970, 16
    %v7077 = vrot.slane %v7075, 4
    %v7078 = vshll.u32 %v6970, 16
    %v7080 = vrot.slane %v7078, 5
    %v7081 = vor.u32 %v7077, %v7080
    %v7082 = vrot.slane %v7081, 4
    %v7084 = vshll.u32 %v6971, 16
    %v7086 = vrot.slane %v7084, 5
    %v7087 = vsel %vm1132, %v7082, %v7086
    %v7089 = vshrl.u32 %v6972, 16
    %v7091 = vrot.slane %v7089, 4
    %v7092 = vshll.u32 %v6972, 16
    %v7094 = vrot.slane %v7092, 5
    %v7095 = vor.u32 %v7091, %v7094
    %v7096 = vrot.slane %v7095, 4
    %v7098 = vshll.u32 %v6973, 16
    %v7100 = vrot.slane %v7098, 5
    %v7101 = vsel %vm1132, %v7096, %v7100
    %v7103 = vshrl.u32 %v6974, 16
    %v7105 = vrot.slane %v7103, 4
    %v7106 = vshll.u32 %v6974, 16
    %v7108 = vrot.slane %v7106, 5
    %v7109 = vor.u32 %v7105, %v7108
    %v7110 = vrot.slane %v7109, 4
    %v7112 = vshll.u32 %v6975, 16
    %v7114 = vrot.slane %v7112, 5
    %v7115 = vsel %vm1132, %v7110, %v7114
    %v7117 = vshrl.u32 %v6976, 16
    %v7119 = vrot.slane %v7117, 4
    %v7120 = vshll.u32 %v6976, 16
    %v7122 = vrot.slane %v7120, 5
    %v7123 = vor.u32 %v7119, %v7122
    %v7124 = vrot.slane %v7123, 4
    %v7126 = vshll.u32 %v6977, 16
    %v7128 = vrot.slane %v7126, 5
    %v7129 = vsel %vm1132, %v7124, %v7128
    %v7131 = vshrl.u32 %v6978, 16
    %v7133 = vrot.slane %v7131, 4
    %v7134 = vshll.u32 %v6978, 16
    %v7136 = vrot.slane %v7134, 5
    %v7137 = vor.u32 %v7133, %v7136
    %v7138 = vrot.slane %v7137, 4
    %v7140 = vshll.u32 %v6979, 16
    %v7142 = vrot.slane %v7140, 5
    %v7143 = vsel %vm1132, %v7138, %v7142
    %v7145 = vshrl.u32 %v6980, 16
    %v7147 = vrot.slane %v7145, 4
    %v7148 = vshll.u32 %v6980, 16
    %v7150 = vrot.slane %v7148, 5
    %v7151 = vor.u32 %v7147, %v7150
    %v7152 = vrot.slane %v7151, 4
    %v7154 = vshll.u32 %v6981, 16
    %v7156 = vrot.slane %v7154, 5
    %v7157 = vsel %vm1132, %v7152, %v7156
    %v7159 = vshrl.u32 %v6982, 16
    %v7161 = vrot.slane %v7159, 4
    %v7162 = vshll.u32 %v6982, 16
    %v7164 = vrot.slane %v7162, 5
    %v7165 = vor.u32 %v7161, %v7164
    %v7166 = vrot.slane %v7165, 4
    %v7168 = vshll.u32 %v6983, 16
    %v7170 = vrot.slane %v7168, 5
    %v7171 = vsel %vm1132, %v7166, %v7170
    %v7173 = vshrl.u32 %v6984, 16
    %v7175 = vrot.slane %v7173, 4
    %v7176 = vshll.u32 %v6984, 16
    %v7178 = vrot.slane %v7176, 5
    %v7179 = vor.u32 %v7175, %v7178
    %v7180 = vrot.slane %v7179, 4
    %v7182 = vshll.u32 %v6985, 16
    %v7184 = vrot.slane %v7182, 5
    %v7185 = vsel %vm1132, %v7180, %v7184
    %v7187 = vshrl.u32 %v6986, 16
    %v7189 = vrot.slane %v7187, 4
    %v7190 = vshll.u32 %v6986, 16
    %v7192 = vrot.slane %v7190, 5
    %v7193 = vor.u32 %v7189, %v7192
    %v7194 = vrot.slane %v7193, 4
    %v7196 = vshll.u32 %v6987, 16
    %v7198 = vrot.slane %v7196, 5
    %v7199 = vsel %vm1132, %v7194, %v7198
    %v7201 = vshrl.u32 %v6988, 16
    %v7203 = vrot.slane %v7201, 4
    %v7204 = vshll.u32 %v6988, 16
    %v7206 = vrot.slane %v7204, 5
    %v7207 = vor.u32 %v7203, %v7206
    %v7208 = vrot.slane %v7207, 4
    %v7210 = vshll.u32 %v6989, 16
    %v7212 = vrot.slane %v7210, 5
    %v7213 = vsel %vm1132, %v7208, %v7212
    %s7214 = scalar_lea.vmem [#allocation10], 256
    %v7215 = vld [vmem:[%s7214] sm:$0xff]
    %v7216 = vld [vmem:[%s7214 + $0x8] sm:$0xff]
    %v7217 = vld [vmem:[%s7214 + $0x10] sm:$0xff]
    %v7218 = vld [vmem:[%s7214 + $0x18] sm:$0xff]
    %v7219 = vld [vmem:[%s7214 + $0x20] sm:$0xff]
    %v7220 = vld [vmem:[%s7214 + $0x28] sm:$0xff]
    %v7221 = vld [vmem:[%s7214 + $0x30] sm:$0xff]
    %v7222 = vld [vmem:[%s7214 + $0x38] sm:$0xff]
    %v7223 = vld [vmem:[%s7214 + $0x40] sm:$0xff]
    %v7224 = vld [vmem:[%s7214 + $0x48] sm:$0xff]
    %v7225 = vld [vmem:[%s7214 + $0x50] sm:$0xff]
    %v7226 = vld [vmem:[%s7214 + $0x58] sm:$0xff]
    %v7227 = vld [vmem:[%s7214 + $0x60] sm:$0xff]
    %v7228 = vld [vmem:[%s7214 + $0x68] sm:$0xff]
    %v7229 = vld [vmem:[%s7214 + $0x70] sm:$0xff]
    %v7230 = vld [vmem:[%s7214 + $0x78] sm:$0xff]
    %v7231 = vld [vmem:[%s7214 + $0x80] sm:$0xff]
    %v7232 = vld [vmem:[%s7214 + $0x88] sm:$0xff]
    %v7233 = vld [vmem:[%s7214 + $0x90] sm:$0xff]
    %v7234 = vld [vmem:[%s7214 + $0x98] sm:$0xff]
    %v7235 = vld [vmem:[%s7214 + $0xa0] sm:$0xff]
    %v7236 = vld [vmem:[%s7214 + $0xa8] sm:$0xff]
    %v7237 = vld [vmem:[%s7214 + $0xb0] sm:$0xff]
    %v7238 = vld [vmem:[%s7214 + $0xb8] sm:$0xff]
    %v7239 = vld [vmem:[%s7214 + $0xc0] sm:$0xff]
    %v7240 = vld [vmem:[%s7214 + $0xc8] sm:$0xff]
    %v7241 = vld [vmem:[%s7214 + $0xd0] sm:$0xff]
    %v7242 = vld [vmem:[%s7214 + $0xd8] sm:$0xff]
    %v7243 = vld [vmem:[%s7214 + $0xe0] sm:$0xff]
    %v7244 = vld [vmem:[%s7214 + $0xe8] sm:$0xff]
    %v7245 = vld [vmem:[%s7214 + $0xf0] sm:$0xff]
    %v7246 = vld [vmem:[%s7214 + $0xf8] sm:$0xff]
    %v7247 = vunpack.c.l.b16 %v7003
    %v7248 = vunpack.c.h.b16 %v7003
    %v7249 = vunpack.c.l.b16 %v7017
    %v7250 = vunpack.c.h.b16 %v7017
    %v7251 = vunpack.c.l.b16 %v7031
    %v7252 = vunpack.c.h.b16 %v7031
    %v7253 = vunpack.c.l.b16 %v7045
    %v7254 = vunpack.c.h.b16 %v7045
    %v7255 = vunpack.c.l.b16 %v7059
    %v7256 = vunpack.c.h.b16 %v7059
    %v7257 = vunpack.c.l.b16 %v7073
    %v7258 = vunpack.c.h.b16 %v7073
    %v7259 = vunpack.c.l.b16 %v7087
    %v7260 = vunpack.c.h.b16 %v7087
    %v7261 = vunpack.c.l.b16 %v7101
    %v7262 = vunpack.c.h.b16 %v7101
    %v7263 = vunpack.c.l.b16 %v7115
    %v7264 = vunpack.c.h.b16 %v7115
    %v7265 = vunpack.c.l.b16 %v7129
    %v7266 = vunpack.c.h.b16 %v7129
    %v7267 = vunpack.c.l.b16 %v7143
    %v7268 = vunpack.c.h.b16 %v7143
    %v7269 = vunpack.c.l.b16 %v7157
    %v7270 = vunpack.c.h.b16 %v7157
    %v7271 = vunpack.c.l.b16 %v7171
    %v7272 = vunpack.c.h.b16 %v7171
    %v7273 = vunpack.c.l.b16 %v7185
    %v7274 = vunpack.c.h.b16 %v7185
    %v7275 = vunpack.c.l.b16 %v7199
    %v7276 = vunpack.c.h.b16 %v7199
    %v7277 = vunpack.c.l.b16 %v7213
    %v7278 = vunpack.c.h.b16 %v7213
    %v7279 = vpack.c.b16 %v7249, %v7247
    %v7280 = vpack.c.b16 %v7250, %v7248
    %v7281 = vpack.c.b16 %v7253, %v7251
    %v7282 = vpack.c.b16 %v7254, %v7252
    %v7283 = vpack.c.b16 %v7257, %v7255
    %v7284 = vpack.c.b16 %v7258, %v7256
    %v7285 = vpack.c.b16 %v7261, %v7259
    %v7286 = vpack.c.b16 %v7262, %v7260
    %v7287 = vpack.c.b16 %v7265, %v7263
    %v7288 = vpack.c.b16 %v7266, %v7264
    %v7289 = vpack.c.b16 %v7269, %v7267
    %v7290 = vpack.c.b16 %v7270, %v7268
    %v7291 = vpack.c.b16 %v7273, %v7271
    %v7292 = vpack.c.b16 %v7274, %v7272
    %v7293 = vpack.c.b16 %v7277, %v7275
    %v7294 = vpack.c.b16 %v7278, %v7276
    %v7343 = vunpack.c.l.b16 %v7215
    %v7344 = vunpack.c.h.b16 %v7215
    %v7345 = vunpack.c.l.b16 %v7216
    %v7346 = vunpack.c.h.b16 %v7216
    %v7347 = vunpack.c.l.b16 %v7217
    %v7348 = vunpack.c.h.b16 %v7217
    %v7349 = vunpack.c.l.b16 %v7218
    %v7350 = vunpack.c.h.b16 %v7218
    %v7351 = vunpack.c.l.b16 %v7219
    %v7352 = vunpack.c.h.b16 %v7219
    %v7353 = vunpack.c.l.b16 %v7220
    %v7354 = vunpack.c.h.b16 %v7220
    %v7355 = vunpack.c.l.b16 %v7221
    %v7356 = vunpack.c.h.b16 %v7221
    %v7357 = vunpack.c.l.b16 %v7222
    %v7358 = vunpack.c.h.b16 %v7222
    %v7359 = vunpack.c.l.b16 %v7223
    %v7360 = vunpack.c.h.b16 %v7223
    %v7361 = vunpack.c.l.b16 %v7224
    %v7362 = vunpack.c.h.b16 %v7224
    %v7363 = vunpack.c.l.b16 %v7225
    %v7364 = vunpack.c.h.b16 %v7225
    %v7365 = vunpack.c.l.b16 %v7226
    %v7366 = vunpack.c.h.b16 %v7226
    %v7367 = vunpack.c.l.b16 %v7227
    %v7368 = vunpack.c.h.b16 %v7227
    %v7369 = vunpack.c.l.b16 %v7228
    %v7370 = vunpack.c.h.b16 %v7228
    %v7371 = vunpack.c.l.b16 %v7229
    %v7372 = vunpack.c.h.b16 %v7229
    %v7373 = vunpack.c.l.b16 %v7230
    %v7374 = vunpack.c.h.b16 %v7230
    %v7375 = vunpack.c.l.b16 %v7231
    %v7376 = vunpack.c.h.b16 %v7231
    %v7377 = vunpack.c.l.b16 %v7232
    %v7378 = vunpack.c.h.b16 %v7232
    %v7379 = vunpack.c.l.b16 %v7233
    %v7380 = vunpack.c.h.b16 %v7233
    %v7381 = vunpack.c.l.b16 %v7234
    %v7382 = vunpack.c.h.b16 %v7234
    %v7383 = vunpack.c.l.b16 %v7235
    %v7384 = vunpack.c.h.b16 %v7235
    %v7385 = vunpack.c.l.b16 %v7236
    %v7386 = vunpack.c.h.b16 %v7236
    %v7387 = vunpack.c.l.b16 %v7237
    %v7388 = vunpack.c.h.b16 %v7237
    %v7389 = vunpack.c.l.b16 %v7238
    %v7390 = vunpack.c.h.b16 %v7238
    %v7391 = vunpack.c.l.b16 %v7239
    %v7392 = vunpack.c.h.b16 %v7239
    %v7393 = vunpack.c.l.b16 %v7240
    %v7394 = vunpack.c.h.b16 %v7240
    %v7395 = vunpack.c.l.b16 %v7241
    %v7396 = vunpack.c.h.b16 %v7241
    %v7397 = vunpack.c.l.b16 %v7242
    %v7398 = vunpack.c.h.b16 %v7242
    %v7399 = vunpack.c.l.b16 %v7243
    %v7400 = vunpack.c.h.b16 %v7243
    %v7401 = vunpack.c.l.b16 %v7244
    %v7402 = vunpack.c.h.b16 %v7244
    %v7403 = vunpack.c.l.b16 %v7245
    %v7404 = vunpack.c.h.b16 %v7245
    %v7405 = vunpack.c.l.b16 %v7246
    %v7406 = vunpack.c.h.b16 %v7246
    %v7407 = vpack.c.b16 %v7345, %v7343
    %v7408 = vpack.c.b16 %v7346, %v7344
    %v7409 = vpack.c.b16 %v7349, %v7347
    %v7410 = vpack.c.b16 %v7350, %v7348
    %v7411 = vpack.c.b16 %v7353, %v7351
    %v7412 = vpack.c.b16 %v7354, %v7352
    %v7413 = vpack.c.b16 %v7357, %v7355
    %v7414 = vpack.c.b16 %v7358, %v7356
    %v7415 = vpack.c.b16 %v7361, %v7359
    %v7416 = vpack.c.b16 %v7362, %v7360
    %v7417 = vpack.c.b16 %v7365, %v7363
    %v7418 = vpack.c.b16 %v7366, %v7364
    %v7419 = vpack.c.b16 %v7369, %v7367
    %v7420 = vpack.c.b16 %v7370, %v7368
    %v7421 = vpack.c.b16 %v7373, %v7371
    %v7422 = vpack.c.b16 %v7374, %v7372
    %v7423 = vpack.c.b16 %v7377, %v7375
    %v7424 = vpack.c.b16 %v7378, %v7376
    %v7425 = vpack.c.b16 %v7381, %v7379
    %v7426 = vpack.c.b16 %v7382, %v7380
    %v7427 = vpack.c.b16 %v7385, %v7383
    %v7428 = vpack.c.b16 %v7386, %v7384
    %v7429 = vpack.c.b16 %v7389, %v7387
    %v7430 = vpack.c.b16 %v7390, %v7388
    %v7431 = vpack.c.b16 %v7393, %v7391
    %v7432 = vpack.c.b16 %v7394, %v7392
    %v7433 = vpack.c.b16 %v7397, %v7395
    %v7434 = vpack.c.b16 %v7398, %v7396
    %v7435 = vpack.c.b16 %v7401, %v7399
    %v7436 = vpack.c.b16 %v7402, %v7400
    %v7437 = vpack.c.b16 %v7405, %v7403
    %v7438 = vpack.c.b16 %v7406, %v7404
    %7471 = vmatprep.subr.bf16.mxu0 %v7422
    %7472 = vmatpush1.bf16.msra.mxu0 %v7421
    %7473 = vmatprep.subr.bf16.mxu0 %v7420
    %7474 = vmatpush1.bf16.msra.mxu0 %v7419
    %7475 = vmatprep.subr.bf16.mxu0 %v7418
    %7476 = vmatpush1.bf16.msra.mxu0 %v7417
    %7477 = vmatprep.subr.bf16.mxu0 %v7416
    %7478 = vmatpush1.bf16.msra.mxu0 %v7415
    %7479 = vmatprep.subr.bf16.mxu0 %v7414
    %7480 = vmatpush1.bf16.msra.mxu0 %v7413
    %7481 = vmatprep.subr.bf16.mxu0 %v7412
    %7482 = vmatpush1.bf16.msra.mxu0 %v7411
    %7483 = vmatprep.subr.bf16.mxu0 %v7410
    %7484 = vmatpush1.bf16.msra.mxu0 %v7409
    %7485 = vmatprep.subr.bf16.mxu0 %v7408
    %7486 = vmatpush1.bf16.msra.mxu0 %v7407
    %7487 = vmatprep.subr.bf16.mxu0 %v7438
    %7488 = vmatpush2.bf16.msra.mxu0 %v7437
    %7489 = vmatprep.subr.bf16.mxu0 %v7436
    %7490 = vmatpush2.bf16.msra.mxu0 %v7435
    %7491 = vmatprep.subr.bf16.mxu0 %v7434
    %7492 = vmatpush2.bf16.msra.mxu0 %v7433
    %7493 = vmatprep.subr.bf16.mxu0 %v7432
    %7494 = vmatpush2.bf16.msra.mxu0 %v7431
    %7495 = vmatprep.subr.bf16.mxu0 %v7430
    %7496 = vmatpush2.bf16.msra.mxu0 %v7429
    %7497 = vmatprep.subr.bf16.mxu0 %v7428
    %7498 = vmatpush2.bf16.msra.mxu0 %v7427
    %7499 = vmatprep.subr.bf16.mxu0 %v7426
    %7500 = vmatpush2.bf16.msra.mxu0 %v7425
    %7501 = vmatprep.subr.bf16.mxu0 %v7424
    %7502 = vmatpush2.bf16.msra.mxu0 %v7423
    %7503 = vmatprep.mubr.bf16.mxu0 %v7280
    %7504 = vmatmul.mubr.bf16.gmra.mxu0 %v7279
    %v7505 = vpop.f32.mrf.mxu0
    %v7506 = vadd.f32 0.0, %v7505
    %v7507 = vpop.f32.mrf.mxu0
    %v7508 = vadd.f32 0.0, %v7507
    %v7509 = vpop.f32.mrf.mxu0
    %v7510 = vadd.f32 0.0, %v7509
    %v7511 = vpop.f32.mrf.mxu0
    %v7512 = vadd.f32 0.0, %v7511
    %7513 = vmatprep.mubr.bf16.mxu0 %v7282
    %7514 = vmatmul.mubr.bf16.gmra.mxu0 %v7281
    %v7515 = vpop.f32.mrf.mxu0
    %v7516 = vadd.f32 0.0, %v7515
    %v7517 = vpop.f32.mrf.mxu0
    %v7518 = vadd.f32 0.0, %v7517
    %v7519 = vpop.f32.mrf.mxu0
    %v7520 = vadd.f32 0.0, %v7519
    %v7521 = vpop.f32.mrf.mxu0
    %v7522 = vadd.f32 0.0, %v7521
    %7523 = vmatprep.mubr.bf16.mxu0 %v7284
    %7524 = vmatmul.mubr.bf16.gmra.mxu0 %v7283
    %v7525 = vpop.f32.mrf.mxu0
    %v7526 = vadd.f32 0.0, %v7525
    %v7527 = vpop.f32.mrf.mxu0
    %v7528 = vadd.f32 0.0, %v7527
    %v7529 = vpop.f32.mrf.mxu0
    %v7530 = vadd.f32 0.0, %v7529
    %v7531 = vpop.f32.mrf.mxu0
    %v7532 = vadd.f32 0.0, %v7531
    %7533 = vmatprep.mubr.bf16.mxu0 %v7286
    %7534 = vmatmul.mubr.bf16.gmra.mxu0 %v7285
    %v7535 = vpop.f32.mrf.mxu0
    %v7536 = vadd.f32 0.0, %v7535
    %v7537 = vpop.f32.mrf.mxu0
    %v7538 = vadd.f32 0.0, %v7537
    %v7539 = vpop.f32.mrf.mxu0
    %v7540 = vadd.f32 0.0, %v7539
    %v7541 = vpop.f32.mrf.mxu0
    %v7542 = vadd.f32 0.0, %v7541
    %7543 = vmatprep.mubr.bf16.mxu0 %v7288
    %7544 = vmatmul.mubr.bf16.gmra.mxu0 %v7287
    %v7545 = vpop.f32.mrf.mxu0
    %v7546 = vadd.f32 0.0, %v7545
    %v7547 = vpop.f32.mrf.mxu0
    %v7548 = vadd.f32 0.0, %v7547
    %v7549 = vpop.f32.mrf.mxu0
    %v7550 = vadd.f32 0.0, %v7549
    %v7551 = vpop.f32.mrf.mxu0
    %v7552 = vadd.f32 0.0, %v7551
    %7553 = vmatprep.mubr.bf16.mxu0 %v7290
    %7554 = vmatmul.mubr.bf16.gmra.mxu0 %v7289
    %v7555 = vpop.f32.mrf.mxu0
    %v7556 = vadd.f32 0.0, %v7555
    %v7557 = vpop.f32.mrf.mxu0
    %v7558 = vadd.f32 0.0, %v7557
    %v7559 = vpop.f32.mrf.mxu0
    %v7560 = vadd.f32 0.0, %v7559
    %v7561 = vpop.f32.mrf.mxu0
    %v7562 = vadd.f32 0.0, %v7561
    %7563 = vmatprep.mubr.bf16.mxu0 %v7292
    %7564 = vmatmul.mubr.bf16.gmra.mxu0 %v7291
    %v7565 = vpop.f32.mrf.mxu0
    %v7566 = vadd.f32 0.0, %v7565
    %v7567 = vpop.f32.mrf.mxu0
    %v7568 = vadd.f32 0.0, %v7567
    %v7569 = vpop.f32.mrf.mxu0
    %v7570 = vadd.f32 0.0, %v7569
    %v7571 = vpop.f32.mrf.mxu0
    %v7572 = vadd.f32 0.0, %v7571
    %7573 = vmatprep.mubr.bf16.mxu0 %v7294
    %7574 = vmatmul.mubr.bf16.gmra.mxu0 %v7293
    %v7575 = vpop.f32.mrf.mxu0
    %v7576 = vadd.f32 0.0, %v7575
    %v7577 = vpop.f32.mrf.mxu0
    %v7578 = vadd.f32 0.0, %v7577
    %v7579 = vpop.f32.mrf.mxu0
    %v7580 = vadd.f32 0.0, %v7579
    %v7581 = vpop.f32.mrf.mxu0
    %v7582 = vadd.f32 0.0, %v7581
    %7583 = vdwg.mxu0
    %v7584 = vld [vmem:[#allocation3] sm:$0xff]
    %v7585 = vld [vmem:[#allocation3 + $0x8] sm:$0xff]
    %v7586 = vld [vmem:[#allocation3 + $0x10] sm:$0xff]
    %v7587 = vld [vmem:[#allocation3 + $0x18] sm:$0xff]
    %v7588 = vld [vmem:[#allocation3 + $0x20] sm:$0xff]
    %v7589 = vld [vmem:[#allocation3 + $0x28] sm:$0xff]
    %v7590 = vld [vmem:[#allocation3 + $0x30] sm:$0xff]
    %v7591 = vld [vmem:[#allocation3 + $0x38] sm:$0xff]
    %v7592 = vld [vmem:[#allocation3 + $0x40] sm:$0xff]
    %v7593 = vld [vmem:[#allocation3 + $0x48] sm:$0xff]
    %v7594 = vld [vmem:[#allocation3 + $0x50] sm:$0xff]
    %v7595 = vld [vmem:[#allocation3 + $0x58] sm:$0xff]
    %v7596 = vld [vmem:[#allocation3 + $0x60] sm:$0xff]
    %v7597 = vld [vmem:[#allocation3 + $0x68] sm:$0xff]
    %v7598 = vld [vmem:[#allocation3 + $0x70] sm:$0xff]
    %v7599 = vld [vmem:[#allocation3 + $0x78] sm:$0xff]
    %v7600 = vld [vmem:[#allocation3 + $0x80] sm:$0xff]
    %v7601 = vld [vmem:[#allocation3 + $0x88] sm:$0xff]
    %v7602 = vld [vmem:[#allocation3 + $0x90] sm:$0xff]
    %v7603 = vld [vmem:[#allocation3 + $0x98] sm:$0xff]
    %v7604 = vld [vmem:[#allocation3 + $0xa0] sm:$0xff]
    %v7605 = vld [vmem:[#allocation3 + $0xa8] sm:$0xff]
    %v7606 = vld [vmem:[#allocation3 + $0xb0] sm:$0xff]
    %v7607 = vld [vmem:[#allocation3 + $0xb8] sm:$0xff]
    %v7608 = vld [vmem:[#allocation3 + $0xc0] sm:$0xff]
    %v7609 = vld [vmem:[#allocation3 + $0xc8] sm:$0xff]
    %v7610 = vld [vmem:[#allocation3 + $0xd0] sm:$0xff]
    %v7611 = vld [vmem:[#allocation3 + $0xd8] sm:$0xff]
    %v7612 = vld [vmem:[#allocation3 + $0xe0] sm:$0xff]
    %v7613 = vld [vmem:[#allocation3 + $0xe8] sm:$0xff]
    %v7614 = vld [vmem:[#allocation3 + $0xf0] sm:$0xff]
    %v7615 = vld [vmem:[#allocation3 + $0xf8] sm:$0xff]
    %v7616 = vadd.f32 %v7584, %v7506
    %v7617 = vadd.f32 %v7585, %v7508
    %v7618 = vadd.f32 %v7586, %v7510
    %v7619 = vadd.f32 %v7587, %v7512
    %v7620 = vadd.f32 %v7588, %v7516
    %v7621 = vadd.f32 %v7589, %v7518
    %v7622 = vadd.f32 %v7590, %v7520
    %v7623 = vadd.f32 %v7591, %v7522
    %v7624 = vadd.f32 %v7592, %v7526
    %v7625 = vadd.f32 %v7593, %v7528
    %v7626 = vadd.f32 %v7594, %v7530
    %v7627 = vadd.f32 %v7595, %v7532
    %v7628 = vadd.f32 %v7596, %v7536
    %v7629 = vadd.f32 %v7597, %v7538
    %v7630 = vadd.f32 %v7598, %v7540
    %v7631 = vadd.f32 %v7599, %v7542
    %v7632 = vadd.f32 %v7600, %v7546
    %v7633 = vadd.f32 %v7601, %v7548
    %v7634 = vadd.f32 %v7602, %v7550
    %v7635 = vadd.f32 %v7603, %v7552
    %v7636 = vadd.f32 %v7604, %v7556
    %v7637 = vadd.f32 %v7605, %v7558
    %v7638 = vadd.f32 %v7606, %v7560
    %v7639 = vadd.f32 %v7607, %v7562
    %v7640 = vadd.f32 %v7608, %v7566
    %v7641 = vadd.f32 %v7609, %v7568
    %v7642 = vadd.f32 %v7610, %v7570
    %v7643 = vadd.f32 %v7611, %v7572
    %v7644 = vadd.f32 %v7612, %v7576
    %v7645 = vadd.f32 %v7613, %v7578
    %v7646 = vadd.f32 %v7614, %v7580
    %v7647 = vadd.f32 %v7615, %v7582
    %7648 = vst [vmem:[#allocation3] sm:$0xff] %v7616
    %7649 = vst [vmem:[#allocation3 + $0x8] sm:$0xff] %v7617
    %7650 = vst [vmem:[#allocation3 + $0x10] sm:$0xff] %v7618
    %7651 = vst [vmem:[#allocation3 + $0x18] sm:$0xff] %v7619
    %7652 = vst [vmem:[#allocation3 + $0x20] sm:$0xff] %v7620
    %7653 = vst [vmem:[#allocation3 + $0x28] sm:$0xff] %v7621
    %7654 = vst [vmem:[#allocation3 + $0x30] sm:$0xff] %v7622
    %7655 = vst [vmem:[#allocation3 + $0x38] sm:$0xff] %v7623
    %7656 = vst [vmem:[#allocation3 + $0x40] sm:$0xff] %v7624
    %7657 = vst [vmem:[#allocation3 + $0x48] sm:$0xff] %v7625
    %7658 = vst [vmem:[#allocation3 + $0x50] sm:$0xff] %v7626
    %7659 = vst [vmem:[#allocation3 + $0x58] sm:$0xff] %v7627
    %7660 = vst [vmem:[#allocation3 + $0x60] sm:$0xff] %v7628
    %7661 = vst [vmem:[#allocation3 + $0x68] sm:$0xff] %v7629
    %7662 = vst [vmem:[#allocation3 + $0x70] sm:$0xff] %v7630
    %7663 = vst [vmem:[#allocation3 + $0x78] sm:$0xff] %v7631
    %7664 = vst [vmem:[#allocation3 + $0x80] sm:$0xff] %v7632
    %7665 = vst [vmem:[#allocation3 + $0x88] sm:$0xff] %v7633
    %7666 = vst [vmem:[#allocation3 + $0x90] sm:$0xff] %v7634
    %7667 = vst [vmem:[#allocation3 + $0x98] sm:$0xff] %v7635
    %7668 = vst [vmem:[#allocation3 + $0xa0] sm:$0xff] %v7636
    %7669 = vst [vmem:[#allocation3 + $0xa8] sm:$0xff] %v7637
    %7670 = vst [vmem:[#allocation3 + $0xb0] sm:$0xff] %v7638
    %7671 = vst [vmem:[#allocation3 + $0xb8] sm:$0xff] %v7639
    %7672 = vst [vmem:[#allocation3 + $0xc0] sm:$0xff] %v7640
    %7673 = vst [vmem:[#allocation3 + $0xc8] sm:$0xff] %v7641
    %7674 = vst [vmem:[#allocation3 + $0xd0] sm:$0xff] %v7642
    %7675 = vst [vmem:[#allocation3 + $0xd8] sm:$0xff] %v7643
    %7676 = vst [vmem:[#allocation3 + $0xe0] sm:$0xff] %v7644
    %7677 = vst [vmem:[#allocation3 + $0xe8] sm:$0xff] %v7645
    %7678 = vst [vmem:[#allocation3 + $0xf0] sm:$0xff] %v7646
    %7679 = vst [vmem:[#allocation3 + $0xf8] sm:$0xff] %v7647
    %v7680 = vld [vmem:[#allocation2] sm:$0xee]
    %v7681 = vld [vmem:[#allocation2 + $0x8] sm:$0x11]
    %v7682 = vld [vmem:[#allocation2 + $0x10] sm:$0xee]
    %v7683 = vld [vmem:[#allocation2 + $0x18] sm:$0x11]
    %v7684 = vld [vmem:[#allocation2 + $0x20] sm:$0xee]
    %v7685 = vld [vmem:[#allocation2 + $0x28] sm:$0x11]
    %v7686 = vld [vmem:[#allocation2 + $0x30] sm:$0xee]
    %v7687 = vld [vmem:[#allocation2 + $0x38] sm:$0x11]
    %v7688 = vld [vmem:[#allocation2 + $0x40] sm:$0xee]
    %v7689 = vld [vmem:[#allocation2 + $0x48] sm:$0x11]
    %v7690 = vld [vmem:[#allocation2 + $0x50] sm:$0xee]
    %v7691 = vld [vmem:[#allocation2 + $0x58] sm:$0x11]
    %v7692 = vld [vmem:[#allocation2 + $0x60] sm:$0xee]
    %v7693 = vld [vmem:[#allocation2 + $0x68] sm:$0x11]
    %v7694 = vld [vmem:[#allocation2 + $0x70] sm:$0xee]
    %v7695 = vld [vmem:[#allocation2 + $0x78] sm:$0x11]
    %v7696 = vld [vmem:[#allocation2 + $0xa0] sm:$0xee]
    %v7697 = vld [vmem:[#allocation2 + $0xa8] sm:$0x11]
    %v7698 = vld [vmem:[#allocation2 + $0xb0] sm:$0xee]
    %v7699 = vld [vmem:[#allocation2 + $0xb8] sm:$0x11]
    %v7700 = vld [vmem:[#allocation2 + $0xc0] sm:$0xee]
    %v7701 = vld [vmem:[#allocation2 + $0xc8] sm:$0x11]
    %v7702 = vld [vmem:[#allocation2 + $0xd0] sm:$0xee]
    %v7703 = vld [vmem:[#allocation2 + $0xd8] sm:$0x11]
    %v7704 = vld [vmem:[#allocation2 + $0xe0] sm:$0xee]
    %v7705 = vld [vmem:[#allocation2 + $0xe8] sm:$0x11]
    %v7706 = vld [vmem:[#allocation2 + $0xf0] sm:$0xee]
    %v7707 = vld [vmem:[#allocation2 + $0xf8] sm:$0x11]
    %v7708 = vld [vmem:[#allocation2 + $0x100] sm:$0xee]
    %v7709 = vld [vmem:[#allocation2 + $0x108] sm:$0x11]
    %v7710 = vld [vmem:[#allocation2 + $0x110] sm:$0xee]
    %v7711 = vld [vmem:[#allocation2 + $0x118] sm:$0x11]
    %v7744 = vrot.slane %v7680, 5
    %v7745 = vrot.slane %v7744, 4
    %v7746 = vrot.slane %v7681, 5
    %v7747 = vsel %vm1889, %v7745, %v7746
    %v7748 = vrot.slane %v7682, 5
    %v7749 = vrot.slane %v7748, 4
    %v7750 = vrot.slane %v7683, 5
    %v7751 = vsel %vm1889, %v7749, %v7750
    %v7752 = vrot.slane %v7684, 5
    %v7753 = vrot.slane %v7752, 4
    %v7754 = vrot.slane %v7685, 5
    %v7755 = vsel %vm1889, %v7753, %v7754
    %v7756 = vrot.slane %v7686, 5
    %v7757 = vrot.slane %v7756, 4
    %v7758 = vrot.slane %v7687, 5
    %v7759 = vsel %vm1889, %v7757, %v7758
    %v7760 = vrot.slane %v7688, 5
    %v7761 = vrot.slane %v7760, 4
    %v7762 = vrot.slane %v7689, 5
    %v7763 = vsel %vm1889, %v7761, %v7762
    %v7764 = vrot.slane %v7690, 5
    %v7765 = vrot.slane %v7764, 4
    %v7766 = vrot.slane %v7691, 5
    %v7767 = vsel %vm1889, %v7765, %v7766
    %v7768 = vrot.slane %v7692, 5
    %v7769 = vrot.slane %v7768, 4
    %v7770 = vrot.slane %v7693, 5
    %v7771 = vsel %vm1889, %v7769, %v7770
    %v7772 = vrot.slane %v7694, 5
    %v7773 = vrot.slane %v7772, 4
    %v7774 = vrot.slane %v7695, 5
    %v7775 = vsel %vm1889, %v7773, %v7774
    %v7776 = vrot.slane %v7696, 5
    %v7777 = vrot.slane %v7776, 4
    %v7778 = vrot.slane %v7697, 5
    %v7779 = vsel %vm1889, %v7777, %v7778
    %v7780 = vrot.slane %v7698, 5
    %v7781 = vrot.slane %v7780, 4
    %v7782 = vrot.slane %v7699, 5
    %v7783 = vsel %vm1889, %v7781, %v7782
    %v7784 = vrot.slane %v7700, 5
    %v7785 = vrot.slane %v7784, 4
    %v7786 = vrot.slane %v7701, 5
    %v7787 = vsel %vm1889, %v7785, %v7786
    %v7788 = vrot.slane %v7702, 5
    %v7789 = vrot.slane %v7788, 4
    %v7790 = vrot.slane %v7703, 5
    %v7791 = vsel %vm1889, %v7789, %v7790
    %v7792 = vrot.slane %v7704, 5
    %v7793 = vrot.slane %v7792, 4
    %v7794 = vrot.slane %v7705, 5
    %v7795 = vsel %vm1889, %v7793, %v7794
    %v7796 = vrot.slane %v7706, 5
    %v7797 = vrot.slane %v7796, 4
    %v7798 = vrot.slane %v7707, 5
    %v7799 = vsel %vm1889, %v7797, %v7798
    %v7800 = vrot.slane %v7708, 5
    %v7801 = vrot.slane %v7800, 4
    %v7802 = vrot.slane %v7709, 5
    %v7803 = vsel %vm1889, %v7801, %v7802
    %v7804 = vrot.slane %v7710, 5
    %v7805 = vrot.slane %v7804, 4
    %v7806 = vrot.slane %v7711, 5
    %v7807 = vsel %vm1889, %v7805, %v7806
    %s7808 = scalar_lea.vmem [#allocation10], 512
    %v7809 = vld [vmem:[%s7808] sm:$0xff]
    %v7810 = vld [vmem:[%s7808 + $0x8] sm:$0xff]
    %v7811 = vld [vmem:[%s7808 + $0x10] sm:$0xff]
    %v7812 = vld [vmem:[%s7808 + $0x18] sm:$0xff]
    %v7813 = vld [vmem:[%s7808 + $0x20] sm:$0xff]
    %v7814 = vld [vmem:[%s7808 + $0x28] sm:$0xff]
    %v7815 = vld [vmem:[%s7808 + $0x30] sm:$0xff]
    %v7816 = vld [vmem:[%s7808 + $0x38] sm:$0xff]
    %v7817 = vld [vmem:[%s7808 + $0x40] sm:$0xff]
    %v7818 = vld [vmem:[%s7808 + $0x48] sm:$0xff]
    %v7819 = vld [vmem:[%s7808 + $0x50] sm:$0xff]
    %v7820 = vld [vmem:[%s7808 + $0x58] sm:$0xff]
    %v7821 = vld [vmem:[%s7808 + $0x60] sm:$0xff]
    %v7822 = vld [vmem:[%s7808 + $0x68] sm:$0xff]
    %v7823 = vld [vmem:[%s7808 + $0x70] sm:$0xff]
    %v7824 = vld [vmem:[%s7808 + $0x78] sm:$0xff]
    %v7825 = vld [vmem:[%s7808 + $0x80] sm:$0xff]
    %v7826 = vld [vmem:[%s7808 + $0x88] sm:$0xff]
    %v7827 = vld [vmem:[%s7808 + $0x90] sm:$0xff]
    %v7828 = vld [vmem:[%s7808 + $0x98] sm:$0xff]
    %v7829 = vld [vmem:[%s7808 + $0xa0] sm:$0xff]
    %v7830 = vld [vmem:[%s7808 + $0xa8] sm:$0xff]
    %v7831 = vld [vmem:[%s7808 + $0xb0] sm:$0xff]
    %v7832 = vld [vmem:[%s7808 + $0xb8] sm:$0xff]
    %v7833 = vld [vmem:[%s7808 + $0xc0] sm:$0xff]
    %v7834 = vld [vmem:[%s7808 + $0xc8] sm:$0xff]
    %v7835 = vld [vmem:[%s7808 + $0xd0] sm:$0xff]
    %v7836 = vld [vmem:[%s7808 + $0xd8] sm:$0xff]
    %v7837 = vld [vmem:[%s7808 + $0xe0] sm:$0xff]
    %v7838 = vld [vmem:[%s7808 + $0xe8] sm:$0xff]
    %v7839 = vld [vmem:[%s7808 + $0xf0] sm:$0xff]
    %v7840 = vld [vmem:[%s7808 + $0xf8] sm:$0xff]
    %v7841 = vunpack.c.l.b16 %v7747
    %v7842 = vunpack.c.h.b16 %v7747
    %v7843 = vunpack.c.l.b16 %v7751
    %v7844 = vunpack.c.h.b16 %v7751
    %v7845 = vunpack.c.l.b16 %v7755
    %v7846 = vunpack.c.h.b16 %v7755
    %v7847 = vunpack.c.l.b16 %v7759
    %v7848 = vunpack.c.h.b16 %v7759
    %v7849 = vunpack.c.l.b16 %v7763
    %v7850 = vunpack.c.h.b16 %v7763
    %v7851 = vunpack.c.l.b16 %v7767
    %v7852 = vunpack.c.h.b16 %v7767
    %v7853 = vunpack.c.l.b16 %v7771
    %v7854 = vunpack.c.h.b16 %v7771
    %v7855 = vunpack.c.l.b16 %v7775
    %v7856 = vunpack.c.h.b16 %v7775
    %v7857 = vunpack.c.l.b16 %v7779
    %v7858 = vunpack.c.h.b16 %v7779
    %v7859 = vunpack.c.l.b16 %v7783
    %v7860 = vunpack.c.h.b16 %v7783
    %v7861 = vunpack.c.l.b16 %v7787
    %v7862 = vunpack.c.h.b16 %v7787
    %v7863 = vunpack.c.l.b16 %v7791
    %v7864 = vunpack.c.h.b16 %v7791
    %v7865 = vunpack.c.l.b16 %v7795
    %v7866 = vunpack.c.h.b16 %v7795
    %v7867 = vunpack.c.l.b16 %v7799
    %v7868 = vunpack.c.h.b16 %v7799
    %v7869 = vunpack.c.l.b16 %v7803
    %v7870 = vunpack.c.h.b16 %v7803
    %v7871 = vunpack.c.l.b16 %v7807
    %v7872 = vunpack.c.h.b16 %v7807
    %v7873 = vpack.c.b16 %v7843, %v7841
    %v7874 = vpack.c.b16 %v7844, %v7842
    %v7875 = vpack.c.b16 %v7847, %v7845
    %v7876 = vpack.c.b16 %v7848, %v7846
    %v7877 = vpack.c.b16 %v7851, %v7849
    %v7878 = vpack.c.b16 %v7852, %v7850
    %v7879 = vpack.c.b16 %v7855, %v7853
    %v7880 = vpack.c.b16 %v7856, %v7854
    %v7881 = vpack.c.b16 %v7859, %v7857
    %v7882 = vpack.c.b16 %v7860, %v7858
    %v7883 = vpack.c.b16 %v7863, %v7861
    %v7884 = vpack.c.b16 %v7864, %v7862
    %v7885 = vpack.c.b16 %v7867, %v7865
    %v7886 = vpack.c.b16 %v7868, %v7866
    %v7887 = vpack.c.b16 %v7871, %v7869
    %v7888 = vpack.c.b16 %v7872, %v7870
    %v7937 = vunpack.c.l.b16 %v7809
    %v7938 = vunpack.c.h.b16 %v7809
    %v7939 = vunpack.c.l.b16 %v7810
    %v7940 = vunpack.c.h.b16 %v7810
    %v7941 = vunpack.c.l.b16 %v7811
    %v7942 = vunpack.c.h.b16 %v7811
    %v7943 = vunpack.c.l.b16 %v7812
    %v7944 = vunpack.c.h.b16 %v7812
    %v7945 = vunpack.c.l.b16 %v7813
    %v7946 = vunpack.c.h.b16 %v7813
    %v7947 = vunpack.c.l.b16 %v7814
    %v7948 = vunpack.c.h.b16 %v7814
    %v7949 = vunpack.c.l.b16 %v7815
    %v7950 = vunpack.c.h.b16 %v7815
    %v7951 = vunpack.c.l.b16 %v7816
    %v7952 = vunpack.c.h.b16 %v7816
    %v7953 = vunpack.c.l.b16 %v7817
    %v7954 = vunpack.c.h.b16 %v7817
    %v7955 = vunpack.c.l.b16 %v7818
    %v7956 = vunpack.c.h.b16 %v7818
    %v7957 = vunpack.c.l.b16 %v7819
    %v7958 = vunpack.c.h.b16 %v7819
    %v7959 = vunpack.c.l.b16 %v7820
    %v7960 = vunpack.c.h.b16 %v7820
    %v7961 = vunpack.c.l.b16 %v7821
    %v7962 = vunpack.c.h.b16 %v7821
    %v7963 = vunpack.c.l.b16 %v7822
    %v7964 = vunpack.c.h.b16 %v7822
    %v7965 = vunpack.c.l.b16 %v7823
    %v7966 = vunpack.c.h.b16 %v7823
    %v7967 = vunpack.c.l.b16 %v7824
    %v7968 = vunpack.c.h.b16 %v7824
    %v7969 = vunpack.c.l.b16 %v7825
    %v7970 = vunpack.c.h.b16 %v7825
    %v7971 = vunpack.c.l.b16 %v7826
    %v7972 = vunpack.c.h.b16 %v7826
    %v7973 = vunpack.c.l.b16 %v7827
    %v7974 = vunpack.c.h.b16 %v7827
    %v7975 = vunpack.c.l.b16 %v7828
    %v7976 = vunpack.c.h.b16 %v7828
    %v7977 = vunpack.c.l.b16 %v7829
    %v7978 = vunpack.c.h.b16 %v7829
    %v7979 = vunpack.c.l.b16 %v7830
    %v7980 = vunpack.c.h.b16 %v7830
    %v7981 = vunpack.c.l.b16 %v7831
    %v7982 = vunpack.c.h.b16 %v7831
    %v7983 = vunpack.c.l.b16 %v7832
    %v7984 = vunpack.c.h.b16 %v7832
    %v7985 = vunpack.c.l.b16 %v7833
    %v7986 = vunpack.c.h.b16 %v7833
    %v7987 = vunpack.c.l.b16 %v7834
    %v7988 = vunpack.c.h.b16 %v7834
    %v7989 = vunpack.c.l.b16 %v7835
    %v7990 = vunpack.c.h.b16 %v7835
    %v7991 = vunpack.c.l.b16 %v7836
    %v7992 = vunpack.c.h.b16 %v7836
    %v7993 = vunpack.c.l.b16 %v7837
    %v7994 = vunpack.c.h.b16 %v7837
    %v7995 = vunpack.c.l.b16 %v7838
    %v7996 = vunpack.c.h.b16 %v7838
    %v7997 = vunpack.c.l.b16 %v7839
    %v7998 = vunpack.c.h.b16 %v7839
    %v7999 = vunpack.c.l.b16 %v7840
    %v8000 = vunpack.c.h.b16 %v7840
    %v8001 = vpack.c.b16 %v7939, %v7937
    %v8002 = vpack.c.b16 %v7940, %v7938
    %v8003 = vpack.c.b16 %v7943, %v7941
    %v8004 = vpack.c.b16 %v7944, %v7942
    %v8005 = vpack.c.b16 %v7947, %v7945
    %v8006 = vpack.c.b16 %v7948, %v7946
    %v8007 = vpack.c.b16 %v7951, %v7949
    %v8008 = vpack.c.b16 %v7952, %v7950
    %v8009 = vpack.c.b16 %v7955, %v7953
    %v8010 = vpack.c.b16 %v7956, %v7954
    %v8011 = vpack.c.b16 %v7959, %v7957
    %v8012 = vpack.c.b16 %v7960, %v7958
    %v8013 = vpack.c.b16 %v7963, %v7961
    %v8014 = vpack.c.b16 %v7964, %v7962
    %v8015 = vpack.c.b16 %v7967, %v7965
    %v8016 = vpack.c.b16 %v7968, %v7966
    %v8017 = vpack.c.b16 %v7971, %v7969
    %v8018 = vpack.c.b16 %v7972, %v7970
    %v8019 = vpack.c.b16 %v7975, %v7973
    %v8020 = vpack.c.b16 %v7976, %v7974
    %v8021 = vpack.c.b16 %v7979, %v7977
    %v8022 = vpack.c.b16 %v7980, %v7978
    %v8023 = vpack.c.b16 %v7983, %v7981
    %v8024 = vpack.c.b16 %v7984, %v7982
    %v8025 = vpack.c.b16 %v7987, %v7985
    %v8026 = vpack.c.b16 %v7988, %v7986
    %v8027 = vpack.c.b16 %v7991, %v7989
    %v8028 = vpack.c.b16 %v7992, %v7990
    %v8029 = vpack.c.b16 %v7995, %v7993
    %v8030 = vpack.c.b16 %v7996, %v7994
    %v8031 = vpack.c.b16 %v7999, %v7997
    %v8032 = vpack.c.b16 %v8000, %v7998
    %8065 = vmatprep.subr.bf16.mxu0 %v8016
    %8066 = vmatpush1.bf16.msra.mxu0 %v8015
    %8067 = vmatprep.subr.bf16.mxu0 %v8014
    %8068 = vmatpush1.bf16.msra.mxu0 %v8013
    %8069 = vmatprep.subr.bf16.mxu0 %v8012
    %8070 = vmatpush1.bf16.msra.mxu0 %v8011
    %8071 = vmatprep.subr.bf16.mxu0 %v8010
    %8072 = vmatpush1.bf16.msra.mxu0 %v8009
    %8073 = vmatprep.subr.bf16.mxu0 %v8008
    %8074 = vmatpush1.bf16.msra.mxu0 %v8007
    %8075 = vmatprep.subr.bf16.mxu0 %v8006
    %8076 = vmatpush1.bf16.msra.mxu0 %v8005
    %8077 = vmatprep.subr.bf16.mxu0 %v8004
    %8078 = vmatpush1.bf16.msra.mxu0 %v8003
    %8079 = vmatprep.subr.bf16.mxu0 %v8002
    %8080 = vmatpush1.bf16.msra.mxu0 %v8001
    %8081 = vmatprep.subr.bf16.mxu0 %v8032
    %8082 = vmatpush2.bf16.msra.mxu0 %v8031
    %8083 = vmatprep.subr.bf16.mxu0 %v8030
    %8084 = vmatpush2.bf16.msra.mxu0 %v8029
    %8085 = vmatprep.subr.bf16.mxu0 %v8028
    %8086 = vmatpush2.bf16.msra.mxu0 %v8027
    %8087 = vmatprep.subr.bf16.mxu0 %v8026
    %8088 = vmatpush2.bf16.msra.mxu0 %v8025
    %8089 = vmatprep.subr.bf16.mxu0 %v8024
    %8090 = vmatpush2.bf16.msra.mxu0 %v8023
    %8091 = vmatprep.subr.bf16.mxu0 %v8022
    %8092 = vmatpush2.bf16.msra.mxu0 %v8021
    %8093 = vmatprep.subr.bf16.mxu0 %v8020
    %8094 = vmatpush2.bf16.msra.mxu0 %v8019
    %8095 = vmatprep.subr.bf16.mxu0 %v8018
    %8096 = vmatpush2.bf16.msra.mxu0 %v8017
    %8097 = vmatprep.mubr.bf16.mxu0 %v7874
    %8098 = vmatmul.mubr.bf16.gmra.mxu0 %v7873
    %v8099 = vpop.f32.mrf.mxu0
    %v8100 = vadd.f32 0.0, %v8099
    %v8101 = vpop.f32.mrf.mxu0
    %v8102 = vadd.f32 0.0, %v8101
    %v8103 = vpop.f32.mrf.mxu0
    %v8104 = vadd.f32 0.0, %v8103
    %v8105 = vpop.f32.mrf.mxu0
    %v8106 = vadd.f32 0.0, %v8105
    %8107 = vmatprep.mubr.bf16.mxu0 %v7876
    %8108 = vmatmul.mubr.bf16.gmra.mxu0 %v7875
    %v8109 = vpop.f32.mrf.mxu0
    %v8110 = vadd.f32 0.0, %v8109
    %v8111 = vpop.f32.mrf.mxu0
    %v8112 = vadd.f32 0.0, %v8111
    %v8113 = vpop.f32.mrf.mxu0
    %v8114 = vadd.f32 0.0, %v8113
    %v8115 = vpop.f32.mrf.mxu0
    %v8116 = vadd.f32 0.0, %v8115
    %8117 = vmatprep.mubr.bf16.mxu0 %v7878
    %8118 = vmatmul.mubr.bf16.gmra.mxu0 %v7877
    %v8119 = vpop.f32.mrf.mxu0
    %v8120 = vadd.f32 0.0, %v8119
    %v8121 = vpop.f32.mrf.mxu0
    %v8122 = vadd.f32 0.0, %v8121
    %v8123 = vpop.f32.mrf.mxu0
    %v8124 = vadd.f32 0.0, %v8123
    %v8125 = vpop.f32.mrf.mxu0
    %v8126 = vadd.f32 0.0, %v8125
    %8127 = vmatprep.mubr.bf16.mxu0 %v7880
    %8128 = vmatmul.mubr.bf16.gmra.mxu0 %v7879
    %v8129 = vpop.f32.mrf.mxu0
    %v8130 = vadd.f32 0.0, %v8129
    %v8131 = vpop.f32.mrf.mxu0
    %v8132 = vadd.f32 0.0, %v8131
    %v8133 = vpop.f32.mrf.mxu0
    %v8134 = vadd.f32 0.0, %v8133
    %v8135 = vpop.f32.mrf.mxu0
    %v8136 = vadd.f32 0.0, %v8135
    %8137 = vmatprep.mubr.bf16.mxu0 %v7882
    %8138 = vmatmul.mubr.bf16.gmra.mxu0 %v7881
    %v8139 = vpop.f32.mrf.mxu0
    %v8140 = vadd.f32 0.0, %v8139
    %v8141 = vpop.f32.mrf.mxu0
    %v8142 = vadd.f32 0.0, %v8141
    %v8143 = vpop.f32.mrf.mxu0
    %v8144 = vadd.f32 0.0, %v8143
    %v8145 = vpop.f32.mrf.mxu0
    %v8146 = vadd.f32 0.0, %v8145
    %8147 = vmatprep.mubr.bf16.mxu0 %v7884
    %8148 = vmatmul.mubr.bf16.gmra.mxu0 %v7883
    %v8149 = vpop.f32.mrf.mxu0
    %v8150 = vadd.f32 0.0, %v8149
    %v8151 = vpop.f32.mrf.mxu0
    %v8152 = vadd.f32 0.0, %v8151
    %v8153 = vpop.f32.mrf.mxu0
    %v8154 = vadd.f32 0.0, %v8153
    %v8155 = vpop.f32.mrf.mxu0
    %v8156 = vadd.f32 0.0, %v8155
    %8157 = vmatprep.mubr.bf16.mxu0 %v7886
    %8158 = vmatmul.mubr.bf16.gmra.mxu0 %v7885
    %v8159 = vpop.f32.mrf.mxu0
    %v8160 = vadd.f32 0.0, %v8159
    %v8161 = vpop.f32.mrf.mxu0
    %v8162 = vadd.f32 0.0, %v8161
    %v8163 = vpop.f32.mrf.mxu0
    %v8164 = vadd.f32 0.0, %v8163
    %v8165 = vpop.f32.mrf.mxu0
    %v8166 = vadd.f32 0.0, %v8165
    %8167 = vmatprep.mubr.bf16.mxu0 %v7888
    %8168 = vmatmul.mubr.bf16.gmra.mxu0 %v7887
    %v8169 = vpop.f32.mrf.mxu0
    %v8170 = vadd.f32 0.0, %v8169
    %v8171 = vpop.f32.mrf.mxu0
    %v8172 = vadd.f32 0.0, %v8171
    %v8173 = vpop.f32.mrf.mxu0
    %v8174 = vadd.f32 0.0, %v8173
    %v8175 = vpop.f32.mrf.mxu0
    %v8176 = vadd.f32 0.0, %v8175
    %8177 = vdwg.mxu0
    %v8178 = vld [vmem:[#allocation3] sm:$0xff]
    %v8179 = vld [vmem:[#allocation3 + $0x8] sm:$0xff]
    %v8180 = vld [vmem:[#allocation3 + $0x10] sm:$0xff]
    %v8181 = vld [vmem:[#allocation3 + $0x18] sm:$0xff]
    %v8182 = vld [vmem:[#allocation3 + $0x20] sm:$0xff]
    %v8183 = vld [vmem:[#allocation3 + $0x28] sm:$0xff]
    %v8184 = vld [vmem:[#allocation3 + $0x30] sm:$0xff]
    %v8185 = vld [vmem:[#allocation3 + $0x38] sm:$0xff]
    %v8186 = vld [vmem:[#allocation3 + $0x40] sm:$0xff]
    %v8187 = vld [vmem:[#allocation3 + $0x48] sm:$0xff]
    %v8188 = vld [vmem:[#allocation3 + $0x50] sm:$0xff]
    %v8189 = vld [vmem:[#allocation3 + $0x58] sm:$0xff]
    %v8190 = vld [vmem:[#allocation3 + $0x60] sm:$0xff]
    %v8191 = vld [vmem:[#allocation3 + $0x68] sm:$0xff]
    %v8192 = vld [vmem:[#allocation3 + $0x70] sm:$0xff]
    %v8193 = vld [vmem:[#allocation3 + $0x78] sm:$0xff]
    %v8194 = vld [vmem:[#allocation3 + $0x80] sm:$0xff]
    %v8195 = vld [vmem:[#allocation3 + $0x88] sm:$0xff]
    %v8196 = vld [vmem:[#allocation3 + $0x90] sm:$0xff]
    %v8197 = vld [vmem:[#allocation3 + $0x98] sm:$0xff]
    %v8198 = vld [vmem:[#allocation3 + $0xa0] sm:$0xff]
    %v8199 = vld [vmem:[#allocation3 + $0xa8] sm:$0xff]
    %v8200 = vld [vmem:[#allocation3 + $0xb0] sm:$0xff]
    %v8201 = vld [vmem:[#allocation3 + $0xb8] sm:$0xff]
    %v8202 = vld [vmem:[#allocation3 + $0xc0] sm:$0xff]
    %v8203 = vld [vmem:[#allocation3 + $0xc8] sm:$0xff]
    %v8204 = vld [vmem:[#allocation3 + $0xd0] sm:$0xff]
    %v8205 = vld [vmem:[#allocation3 + $0xd8] sm:$0xff]
    %v8206 = vld [vmem:[#allocation3 + $0xe0] sm:$0xff]
    %v8207 = vld [vmem:[#allocation3 + $0xe8] sm:$0xff]
    %v8208 = vld [vmem:[#allocation3 + $0xf0] sm:$0xff]
    %v8209 = vld [vmem:[#allocation3 + $0xf8] sm:$0xff]
    %v8210 = vadd.f32 %v8178, %v8100
    %v8211 = vadd.f32 %v8179, %v8102
    %v8212 = vadd.f32 %v8180, %v8104
    %v8213 = vadd.f32 %v8181, %v8106
    %v8214 = vadd.f32 %v8182, %v8110
    %v8215 = vadd.f32 %v8183, %v8112
    %v8216 = vadd.f32 %v8184, %v8114
    %v8217 = vadd.f32 %v8185, %v8116
    %v8218 = vadd.f32 %v8186, %v8120
    %v8219 = vadd.f32 %v8187, %v8122
    %v8220 = vadd.f32 %v8188, %v8124
    %v8221 = vadd.f32 %v8189, %v8126
    %v8222 = vadd.f32 %v8190, %v8130
    %v8223 = vadd.f32 %v8191, %v8132
    %v8224 = vadd.f32 %v8192, %v8134
    %v8225 = vadd.f32 %v8193, %v8136
    %v8226 = vadd.f32 %v8194, %v8140
    %v8227 = vadd.f32 %v8195, %v8142
    %v8228 = vadd.f32 %v8196, %v8144
    %v8229 = vadd.f32 %v8197, %v8146
    %v8230 = vadd.f32 %v8198, %v8150
    %v8231 = vadd.f32 %v8199, %v8152
    %v8232 = vadd.f32 %v8200, %v8154
    %v8233 = vadd.f32 %v8201, %v8156
    %v8234 = vadd.f32 %v8202, %v8160
    %v8235 = vadd.f32 %v8203, %v8162
    %v8236 = vadd.f32 %v8204, %v8164
    %v8237 = vadd.f32 %v8205, %v8166
    %v8238 = vadd.f32 %v8206, %v8170
    %v8239 = vadd.f32 %v8207, %v8172
    %v8240 = vadd.f32 %v8208, %v8174
    %v8241 = vadd.f32 %v8209, %v8176
    %8242 = vst [vmem:[#allocation3] sm:$0xff] %v8210
    %8243 = vst [vmem:[#allocation3 + $0x8] sm:$0xff] %v8211
    %8244 = vst [vmem:[#allocation3 + $0x10] sm:$0xff] %v8212
    %8245 = vst [vmem:[#allocation3 + $0x18] sm:$0xff] %v8213
    %8246 = vst [vmem:[#allocation3 + $0x20] sm:$0xff] %v8214
    %8247 = vst [vmem:[#allocation3 + $0x28] sm:$0xff] %v8215
    %8248 = vst [vmem:[#allocation3 + $0x30] sm:$0xff] %v8216
    %8249 = vst [vmem:[#allocation3 + $0x38] sm:$0xff] %v8217
    %8250 = vst [vmem:[#allocation3 + $0x40] sm:$0xff] %v8218
    %8251 = vst [vmem:[#allocation3 + $0x48] sm:$0xff] %v8219
    %8252 = vst [vmem:[#allocation3 + $0x50] sm:$0xff] %v8220
    %8253 = vst [vmem:[#allocation3 + $0x58] sm:$0xff] %v8221
    %8254 = vst [vmem:[#allocation3 + $0x60] sm:$0xff] %v8222
    %8255 = vst [vmem:[#allocation3 + $0x68] sm:$0xff] %v8223
    %8256 = vst [vmem:[#allocation3 + $0x70] sm:$0xff] %v8224
    %8257 = vst [vmem:[#allocation3 + $0x78] sm:$0xff] %v8225
    %8258 = vst [vmem:[#allocation3 + $0x80] sm:$0xff] %v8226
    %8259 = vst [vmem:[#allocation3 + $0x88] sm:$0xff] %v8227
    %8260 = vst [vmem:[#allocation3 + $0x90] sm:$0xff] %v8228
    %8261 = vst [vmem:[#allocation3 + $0x98] sm:$0xff] %v8229
    %8262 = vst [vmem:[#allocation3 + $0xa0] sm:$0xff] %v8230
    %8263 = vst [vmem:[#allocation3 + $0xa8] sm:$0xff] %v8231
    %8264 = vst [vmem:[#allocation3 + $0xb0] sm:$0xff] %v8232
    %8265 = vst [vmem:[#allocation3 + $0xb8] sm:$0xff] %v8233
    %8266 = vst [vmem:[#allocation3 + $0xc0] sm:$0xff] %v8234
    %8267 = vst [vmem:[#allocation3 + $0xc8] sm:$0xff] %v8235
    %8268 = vst [vmem:[#allocation3 + $0xd0] sm:$0xff] %v8236
    %8269 = vst [vmem:[#allocation3 + $0xd8] sm:$0xff] %v8237
    %8270 = vst [vmem:[#allocation3 + $0xe0] sm:$0xff] %v8238
    %8271 = vst [vmem:[#allocation3 + $0xe8] sm:$0xff] %v8239
    %8272 = vst [vmem:[#allocation3 + $0xf0] sm:$0xff] %v8240
    %8273 = vst [vmem:[#allocation3 + $0xf8] sm:$0xff] %v8241
    %v8274 = vld [vmem:[%s563] sm:$0xff]
    %v8275 = vld [vmem:[%s563 + $0x10] sm:$0xff]
    %v8276 = vld [vmem:[%s563 + $0x20] sm:$0xff]
    %v8277 = vld [vmem:[%s563 + $0x30] sm:$0xff]
    %v8278 = vld [vmem:[%s563 + $0x40] sm:$0xff]
    %v8279 = vld [vmem:[%s563 + $0x50] sm:$0xff]
    %v8280 = vld [vmem:[%s563 + $0x60] sm:$0xff]
    %v8281 = vld [vmem:[%s563 + $0x70] sm:$0xff]
    %v8282 = vld [vmem:[%s563 + $0xa0] sm:$0xff]
    %v8283 = vld [vmem:[%s563 + $0xb0] sm:$0xff]
    %v8284 = vld [vmem:[%s563 + $0xc0] sm:$0xff]
    %v8285 = vld [vmem:[%s563 + $0xd0] sm:$0xff]
    %v8286 = vld [vmem:[%s563 + $0xe0] sm:$0xff]
    %v8287 = vld [vmem:[%s563 + $0xf0] sm:$0xff]
    %v8288 = vld [vmem:[%s563 + $0x100] sm:$0xff]
    %v8289 = vld [vmem:[%s563 + $0x110] sm:$0xff]
    %s8290 = scalar_lea.vmem [#allocation10], 768
    %v8291 = vld [vmem:[%s8290] sm:$0xff]
    %v8292 = vld [vmem:[%s8290 + $0x8] sm:$0xff]
    %v8293 = vld [vmem:[%s8290 + $0x10] sm:$0xff]
    %v8294 = vld [vmem:[%s8290 + $0x18] sm:$0xff]
    %v8295 = vld [vmem:[%s8290 + $0x20] sm:$0xff]
    %v8296 = vld [vmem:[%s8290 + $0x28] sm:$0xff]
    %v8297 = vld [vmem:[%s8290 + $0x30] sm:$0xff]
    %v8298 = vld [vmem:[%s8290 + $0x38] sm:$0xff]
    %v8299 = vld [vmem:[%s8290 + $0x40] sm:$0xff]
    %v8300 = vld [vmem:[%s8290 + $0x48] sm:$0xff]
    %v8301 = vld [vmem:[%s8290 + $0x50] sm:$0xff]
    %v8302 = vld [vmem:[%s8290 + $0x58] sm:$0xff]
    %v8303 = vld [vmem:[%s8290 + $0x60] sm:$0xff]
    %v8304 = vld [vmem:[%s8290 + $0x68] sm:$0xff]
    %v8305 = vld [vmem:[%s8290 + $0x70] sm:$0xff]
    %v8306 = vld [vmem:[%s8290 + $0x78] sm:$0xff]
    %v8307 = vld [vmem:[%s8290 + $0x80] sm:$0xff]
    %v8308 = vld [vmem:[%s8290 + $0x88] sm:$0xff]
    %v8309 = vld [vmem:[%s8290 + $0x90] sm:$0xff]
    %v8310 = vld [vmem:[%s8290 + $0x98] sm:$0xff]
    %v8311 = vld [vmem:[%s8290 + $0xa0] sm:$0xff]
    %v8312 = vld [vmem:[%s8290 + $0xa8] sm:$0xff]
    %v8313 = vld [vmem:[%s8290 + $0xb0] sm:$0xff]
    %v8314 = vld [vmem:[%s8290 + $0xb8] sm:$0xff]
    %v8315 = vld [vmem:[%s8290 + $0xc0] sm:$0xff]
    %v8316 = vld [vmem:[%s8290 + $0xc8] sm:$0xff]
    %v8317 = vld [vmem:[%s8290 + $0xd0] sm:$0xff]
    %v8318 = vld [vmem:[%s8290 + $0xd8] sm:$0xff]
    %v8319 = vld [vmem:[%s8290 + $0xe0] sm:$0xff]
    %v8320 = vld [vmem:[%s8290 + $0xe8] sm:$0xff]
    %v8321 = vld [vmem:[%s8290 + $0xf0] sm:$0xff]
    %v8322 = vld [vmem:[%s8290 + $0xf8] sm:$0xff]
    %v8339 = vunpack.c.l.b16 %v8274
    %v8340 = vunpack.c.h.b16 %v8274
    %v8341 = vunpack.c.l.b16 %v8275
    %v8342 = vunpack.c.h.b16 %v8275
    %v8343 = vunpack.c.l.b16 %v8276
    %v8344 = vunpack.c.h.b16 %v8276
    %v8345 = vunpack.c.l.b16 %v8277
    %v8346 = vunpack.c.h.b16 %v8277
    %v8347 = vunpack.c.l.b16 %v8278
    %v8348 = vunpack.c.h.b16 %v8278
    %v8349 = vunpack.c.l.b16 %v8279
    %v8350 = vunpack.c.h.b16 %v8279
    %v8351 = vunpack.c.l.b16 %v8280
    %v8352 = vunpack.c.h.b16 %v8280
    %v8353 = vunpack.c.l.b16 %v8281
    %v8354 = vunpack.c.h.b16 %v8281
    %v8355 = vunpack.c.l.b16 %v8282
    %v8356 = vunpack.c.h.b16 %v8282
    %v8357 = vunpack.c.l.b16 %v8283
    %v8358 = vunpack.c.h.b16 %v8283
    %v8359 = vunpack.c.l.b16 %v8284
    %v8360 = vunpack.c.h.b16 %v8284
    %v8361 = vunpack.c.l.b16 %v8285
    %v8362 = vunpack.c.h.b16 %v8285
    %v8363 = vunpack.c.l.b16 %v8286
    %v8364 = vunpack.c.h.b16 %v8286
    %v8365 = vunpack.c.l.b16 %v8287
    %v8366 = vunpack.c.h.b16 %v8287
    %v8367 = vunpack.c.l.b16 %v8288
    %v8368 = vunpack.c.h.b16 %v8288
    %v8369 = vunpack.c.l.b16 %v8289
    %v8370 = vunpack.c.h.b16 %v8289
    %v8371 = vpack.c.b16 %v8341, %v8339
    %v8372 = vpack.c.b16 %v8342, %v8340
    %v8373 = vpack.c.b16 %v8345, %v8343
    %v8374 = vpack.c.b16 %v8346, %v8344
    %v8375 = vpack.c.b16 %v8349, %v8347
    %v8376 = vpack.c.b16 %v8350, %v8348
    %v8377 = vpack.c.b16 %v8353, %v8351
    %v8378 = vpack.c.b16 %v8354, %v8352
    %v8379 = vpack.c.b16 %v8357, %v8355
    %v8380 = vpack.c.b16 %v8358, %v8356
    %v8381 = vpack.c.b16 %v8361, %v8359
    %v8382 = vpack.c.b16 %v8362, %v8360
    %v8383 = vpack.c.b16 %v8365, %v8363
    %v8384 = vpack.c.b16 %v8366, %v8364
    %v8385 = vpack.c.b16 %v8369, %v8367
    %v8386 = vpack.c.b16 %v8370, %v8368
    %v8435 = vunpack.c.l.b16 %v8291
    %v8436 = vunpack.c.h.b16 %v8291
    %v8437 = vunpack.c.l.b16 %v8292
    %v8438 = vunpack.c.h.b16 %v8292
    %v8439 = vunpack.c.l.b16 %v8293
    %v8440 = vunpack.c.h.b16 %v8293
    %v8441 = vunpack.c.l.b16 %v8294
    %v8442 = vunpack.c.h.b16 %v8294
    %v8443 = vunpack.c.l.b16 %v8295
    %v8444 = vunpack.c.h.b16 %v8295
    %v8445 = vunpack.c.l.b16 %v8296
    %v8446 = vunpack.c.h.b16 %v8296
    %v8447 = vunpack.c.l.b16 %v8297
    %v8448 = vunpack.c.h.b16 %v8297
    %v8449 = vunpack.c.l.b16 %v8298
    %v8450 = vunpack.c.h.b16 %v8298
    %v8451 = vunpack.c.l.b16 %v8299
    %v8452 = vunpack.c.h.b16 %v8299
    %v8453 = vunpack.c.l.b16 %v8300
    %v8454 = vunpack.c.h.b16 %v8300
    %v8455 = vunpack.c.l.b16 %v8301
    %v8456 = vunpack.c.h.b16 %v8301
    %v8457 = vunpack.c.l.b16 %v8302
    %v8458 = vunpack.c.h.b16 %v8302
    %v8459 = vunpack.c.l.b16 %v8303
    %v8460 = vunpack.c.h.b16 %v8303
    %v8461 = vunpack.c.l.b16 %v8304
    %v8462 = vunpack.c.h.b16 %v8304
    %v8463 = vunpack.c.l.b16 %v8305
    %v8464 = vunpack.c.h.b16 %v8305
    %v8465 = vunpack.c.l.b16 %v8306
    %v8466 = vunpack.c.h.b16 %v8306
    %v8467 = vunpack.c.l.b16 %v8307
    %v8468 = vunpack.c.h.b16 %v8307
    %v8469 = vunpack.c.l.b16 %v8308
    %v8470 = vunpack.c.h.b16 %v8308
    %v8471 = vunpack.c.l.b16 %v8309
    %v8472 = vunpack.c.h.b16 %v8309
    %v8473 = vunpack.c.l.b16 %v8310
    %v8474 = vunpack.c.h.b16 %v8310
    %v8475 = vunpack.c.l.b16 %v8311
    %v8476 = vunpack.c.h.b16 %v8311
    %v8477 = vunpack.c.l.b16 %v8312
    %v8478 = vunpack.c.h.b16 %v8312
    %v8479 = vunpack.c.l.b16 %v8313
    %v8480 = vunpack.c.h.b16 %v8313
    %v8481 = vunpack.c.l.b16 %v8314
    %v8482 = vunpack.c.h.b16 %v8314
    %v8483 = vunpack.c.l.b16 %v8315
    %v8484 = vunpack.c.h.b16 %v8315
    %v8485 = vunpack.c.l.b16 %v8316
    %v8486 = vunpack.c.h.b16 %v8316
    %v8487 = vunpack.c.l.b16 %v8317
    %v8488 = vunpack.c.h.b16 %v8317
    %v8489 = vunpack.c.l.b16 %v8318
    %v8490 = vunpack.c.h.b16 %v8318
    %v8491 = vunpack.c.l.b16 %v8319
    %v8492 = vunpack.c.h.b16 %v8319
    %v8493 = vunpack.c.l.b16 %v8320
    %v8494 = vunpack.c.h.b16 %v8320
    %v8495 = vunpack.c.l.b16 %v8321
    %v8496 = vunpack.c.h.b16 %v8321
    %v8497 = vunpack.c.l.b16 %v8322
    %v8498 = vunpack.c.h.b16 %v8322
    %v8499 = vpack.c.b16 %v8437, %v8435
    %v8500 = vpack.c.b16 %v8438, %v8436
    %v8501 = vpack.c.b16 %v8441, %v8439
    %v8502 = vpack.c.b16 %v8442, %v8440
    %v8503 = vpack.c.b16 %v8445, %v8443
    %v8504 = vpack.c.b16 %v8446, %v8444
    %v8505 = vpack.c.b16 %v8449, %v8447
    %v8506 = vpack.c.b16 %v8450, %v8448
    %v8507 = vpack.c.b16 %v8453, %v8451
    %v8508 = vpack.c.b16 %v8454, %v8452
    %v8509 = vpack.c.b16 %v8457, %v8455
    %v8510 = vpack.c.b16 %v8458, %v8456
    %v8511 = vpack.c.b16 %v8461, %v8459
    %v8512 = vpack.c.b16 %v8462, %v8460
    %v8513 = vpack.c.b16 %v8465, %v8463
    %v8514 = vpack.c.b16 %v8466, %v8464
    %v8515 = vpack.c.b16 %v8469, %v8467
    %v8516 = vpack.c.b16 %v8470, %v8468
    %v8517 = vpack.c.b16 %v8473, %v8471
    %v8518 = vpack.c.b16 %v8474, %v8472
    %v8519 = vpack.c.b16 %v8477, %v8475
    %v8520 = vpack.c.b16 %v8478, %v8476
    %v8521 = vpack.c.b16 %v8481, %v8479
    %v8522 = vpack.c.b16 %v8482, %v8480
    %v8523 = vpack.c.b16 %v8485, %v8483
    %v8524 = vpack.c.b16 %v8486, %v8484
    %v8525 = vpack.c.b16 %v8489, %v8487
    %v8526 = vpack.c.b16 %v8490, %v8488
    %v8527 = vpack.c.b16 %v8493, %v8491
    %v8528 = vpack.c.b16 %v8494, %v8492
    %v8529 = vpack.c.b16 %v8497, %v8495
    %v8530 = vpack.c.b16 %v8498, %v8496
    %8563 = vmatprep.subr.bf16.mxu0 %v8514
    %8564 = vmatpush1.bf16.msra.mxu0 %v8513
    %8565 = vmatprep.subr.bf16.mxu0 %v8512
    %8566 = vmatpush1.bf16.msra.mxu0 %v8511
    %8567 = vmatprep.subr.bf16.mxu0 %v8510
    %8568 = vmatpush1.bf16.msra.mxu0 %v8509
    %8569 = vmatprep.subr.bf16.mxu0 %v8508
    %8570 = vmatpush1.bf16.msra.mxu0 %v8507
    %8571 = vmatprep.subr.bf16.mxu0 %v8506
    %8572 = vmatpush1.bf16.msra.mxu0 %v8505
    %8573 = vmatprep.subr.bf16.mxu0 %v8504
    %8574 = vmatpush1.bf16.msra.mxu0 %v8503
    %8575 = vmatprep.subr.bf16.mxu0 %v8502
    %8576 = vmatpush1.bf16.msra.mxu0 %v8501
    %8577 = vmatprep.subr.bf16.mxu0 %v8500
    %8578 = vmatpush1.bf16.msra.mxu0 %v8499
    %8579 = vmatprep.subr.bf16.mxu0 %v8530
    %8580 = vmatpush2.bf16.msra.mxu0 %v8529
    %8581 = vmatprep.subr.bf16.mxu0 %v8528
    %8582 = vmatpush2.bf16.msra.mxu0 %v8527
    %8583 = vmatprep.subr.bf16.mxu0 %v8526
    %8584 = vmatpush2.bf16.msra.mxu0 %v8525
    %8585 = vmatprep.subr.bf16.mxu0 %v8524
    %8586 = vmatpush2.bf16.msra.mxu0 %v8523
    %8587 = vmatprep.subr.bf16.mxu0 %v8522
    %8588 = vmatpush2.bf16.msra.mxu0 %v8521
    %8589 = vmatprep.subr.bf16.mxu0 %v8520
    %8590 = vmatpush2.bf16.msra.mxu0 %v8519
    %8591 = vmatprep.subr.bf16.mxu0 %v8518
    %8592 = vmatpush2.bf16.msra.mxu0 %v8517
    %8593 = vmatprep.subr.bf16.mxu0 %v8516
    %8594 = vmatpush2.bf16.msra.mxu0 %v8515
    %8595 = vmatprep.mubr.bf16.mxu0 %v8372
    %8596 = vmatmul.mubr.bf16.gmra.mxu0 %v8371
    %v8597 = vpop.f32.mrf.mxu0
    %v8598 = vadd.f32 0.0, %v8597
    %v8599 = vpop.f32.mrf.mxu0
    %v8600 = vadd.f32 0.0, %v8599
    %v8601 = vpop.f32.mrf.mxu0
    %v8602 = vadd.f32 0.0, %v8601
    %v8603 = vpop.f32.mrf.mxu0
    %v8604 = vadd.f32 0.0, %v8603
    %8605 = vmatprep.mubr.bf16.mxu0 %v8374
    %8606 = vmatmul.mubr.bf16.gmra.mxu0 %v8373
    %v8607 = vpop.f32.mrf.mxu0
    %v8608 = vadd.f32 0.0, %v8607
    %v8609 = vpop.f32.mrf.mxu0
    %v8610 = vadd.f32 0.0, %v8609
    %v8611 = vpop.f32.mrf.mxu0
    %v8612 = vadd.f32 0.0, %v8611
    %v8613 = vpop.f32.mrf.mxu0
    %v8614 = vadd.f32 0.0, %v8613
    %8615 = vmatprep.mubr.bf16.mxu0 %v8376
    %8616 = vmatmul.mubr.bf16.gmra.mxu0 %v8375
    %v8617 = vpop.f32.mrf.mxu0
    %v8618 = vadd.f32 0.0, %v8617
    %v8619 = vpop.f32.mrf.mxu0
    %v8620 = vadd.f32 0.0, %v8619
    %v8621 = vpop.f32.mrf.mxu0
    %v8622 = vadd.f32 0.0, %v8621
    %v8623 = vpop.f32.mrf.mxu0
    %v8624 = vadd.f32 0.0, %v8623
    %8625 = vmatprep.mubr.bf16.mxu0 %v8378
    %8626 = vmatmul.mubr.bf16.gmra.mxu0 %v8377
    %v8627 = vpop.f32.mrf.mxu0
    %v8628 = vadd.f32 0.0, %v8627
    %v8629 = vpop.f32.mrf.mxu0
    %v8630 = vadd.f32 0.0, %v8629
    %v8631 = vpop.f32.mrf.mxu0
    %v8632 = vadd.f32 0.0, %v8631
    %v8633 = vpop.f32.mrf.mxu0
    %v8634 = vadd.f32 0.0, %v8633
    %8635 = vmatprep.mubr.bf16.mxu0 %v8380
    %8636 = vmatmul.mubr.bf16.gmra.mxu0 %v8379
    %v8637 = vpop.f32.mrf.mxu0
    %v8638 = vadd.f32 0.0, %v8637
    %v8639 = vpop.f32.mrf.mxu0
    %v8640 = vadd.f32 0.0, %v8639
    %v8641 = vpop.f32.mrf.mxu0
    %v8642 = vadd.f32 0.0, %v8641
    %v8643 = vpop.f32.mrf.mxu0
    %v8644 = vadd.f32 0.0, %v8643
    %8645 = vmatprep.mubr.bf16.mxu0 %v8382
    %8646 = vmatmul.mubr.bf16.gmra.mxu0 %v8381
    %v8647 = vpop.f32.mrf.mxu0
    %v8648 = vadd.f32 0.0, %v8647
    %v8649 = vpop.f32.mrf.mxu0
    %v8650 = vadd.f32 0.0, %v8649
    %v8651 = vpop.f32.mrf.mxu0
    %v8652 = vadd.f32 0.0, %v8651
    %v8653 = vpop.f32.mrf.mxu0
    %v8654 = vadd.f32 0.0, %v8653
    %8655 = vmatprep.mubr.bf16.mxu0 %v8384
    %8656 = vmatmul.mubr.bf16.gmra.mxu0 %v8383
    %v8657 = vpop.f32.mrf.mxu0
    %v8658 = vadd.f32 0.0, %v8657
    %v8659 = vpop.f32.mrf.mxu0
    %v8660 = vadd.f32 0.0, %v8659
    %v8661 = vpop.f32.mrf.mxu0
    %v8662 = vadd.f32 0.0, %v8661
    %v8663 = vpop.f32.mrf.mxu0
    %v8664 = vadd.f32 0.0, %v8663
    %8665 = vmatprep.mubr.bf16.mxu0 %v8386
    %8666 = vmatmul.mubr.bf16.gmra.mxu0 %v8385
    %v8667 = vpop.f32.mrf.mxu0
    %v8668 = vadd.f32 0.0, %v8667
    %v8669 = vpop.f32.mrf.mxu0
    %v8670 = vadd.f32 0.0, %v8669
    %v8671 = vpop.f32.mrf.mxu0
    %v8672 = vadd.f32 0.0, %v8671
    %v8673 = vpop.f32.mrf.mxu0
    %v8674 = vadd.f32 0.0, %v8673
    %8675 = vdwg.mxu0
    %v8676 = vld [vmem:[#allocation3] sm:$0xff]
    %v8677 = vld [vmem:[#allocation3 + $0x8] sm:$0xff]
    %v8678 = vld [vmem:[#allocation3 + $0x10] sm:$0xff]
    %v8679 = vld [vmem:[#allocation3 + $0x18] sm:$0xff]
    %v8680 = vld [vmem:[#allocation3 + $0x20] sm:$0xff]
    %v8681 = vld [vmem:[#allocation3 + $0x28] sm:$0xff]
    %v8682 = vld [vmem:[#allocation3 + $0x30] sm:$0xff]
    %v8683 = vld [vmem:[#allocation3 + $0x38] sm:$0xff]
    %v8684 = vld [vmem:[#allocation3 + $0x40] sm:$0xff]
    %v8685 = vld [vmem:[#allocation3 + $0x48] sm:$0xff]
    %v8686 = vld [vmem:[#allocation3 + $0x50] sm:$0xff]
    %v8687 = vld [vmem:[#allocation3 + $0x58] sm:$0xff]
    %v8688 = vld [vmem:[#allocation3 + $0x60] sm:$0xff]
    %v8689 = vld [vmem:[#allocation3 + $0x68] sm:$0xff]
    %v8690 = vld [vmem:[#allocation3 + $0x70] sm:$0xff]
    %v8691 = vld [vmem:[#allocation3 + $0x78] sm:$0xff]
    %v8692 = vld [vmem:[#allocation3 + $0x80] sm:$0xff]
    %v8693 = vld [vmem:[#allocation3 + $0x88] sm:$0xff]
    %v8694 = vld [vmem:[#allocation3 + $0x90] sm:$0xff]
    %v8695 = vld [vmem:[#allocation3 + $0x98] sm:$0xff]
    %v8696 = vld [vmem:[#allocation3 + $0xa0] sm:$0xff]
    %v8697 = vld [vmem:[#allocation3 + $0xa8] sm:$0xff]
    %v8698 = vld [vmem:[#allocation3 + $0xb0] sm:$0xff]
    %v8699 = vld [vmem:[#allocation3 + $0xb8] sm:$0xff]
    %v8700 = vld [vmem:[#allocation3 + $0xc0] sm:$0xff]
    %v8701 = vld [vmem:[#allocation3 + $0xc8] sm:$0xff]
    %v8702 = vld [vmem:[#allocation3 + $0xd0] sm:$0xff]
    %v8703 = vld [vmem:[#allocation3 + $0xd8] sm:$0xff]
    %v8704 = vld [vmem:[#allocation3 + $0xe0] sm:$0xff]
    %v8705 = vld [vmem:[#allocation3 + $0xe8] sm:$0xff]
    %v8706 = vld [vmem:[#allocation3 + $0xf0] sm:$0xff]
    %v8707 = vld [vmem:[#allocation3 + $0xf8] sm:$0xff]
    %v8708 = vadd.f32 %v8676, %v8598
    %v8709 = vadd.f32 %v8677, %v8600
    %v8710 = vadd.f32 %v8678, %v8602
    %v8711 = vadd.f32 %v8679, %v8604
    %v8712 = vadd.f32 %v8680, %v8608
    %v8713 = vadd.f32 %v8681, %v8610
    %v8714 = vadd.f32 %v8682, %v8612
    %v8715 = vadd.f32 %v8683, %v8614
    %v8716 = vadd.f32 %v8684, %v8618
    %v8717 = vadd.f32 %v8685, %v8620
    %v8718 = vadd.f32 %v8686, %v8622
    %v8719 = vadd.f32 %v8687, %v8624
    %v8720 = vadd.f32 %v8688, %v8628
    %v8721 = vadd.f32 %v8689, %v8630
    %v8722 = vadd.f32 %v8690, %v8632
    %v8723 = vadd.f32 %v8691, %v8634
    %v8724 = vadd.f32 %v8692, %v8638
    %v8725 = vadd.f32 %v8693, %v8640
    %v8726 = vadd.f32 %v8694, %v8642
    %v8727 = vadd.f32 %v8695, %v8644
    %v8728 = vadd.f32 %v8696, %v8648
    %v8729 = vadd.f32 %v8697, %v8650
    %v8730 = vadd.f32 %v8698, %v8652
    %v8731 = vadd.f32 %v8699, %v8654
    %v8732 = vadd.f32 %v8700, %v8658
    %v8733 = vadd.f32 %v8701, %v8660
    %v8734 = vadd.f32 %v8702, %v8662
    %v8735 = vadd.f32 %v8703, %v8664
    %v8736 = vadd.f32 %v8704, %v8668
    %v8737 = vadd.f32 %v8705, %v8670
    %v8738 = vadd.f32 %v8706, %v8672
    %v8739 = vadd.f32 %v8707, %v8674
    %8740 = vst [vmem:[#allocation3] sm:$0xff] %v8708
    %8741 = vst [vmem:[#allocation3 + $0x8] sm:$0xff] %v8709
    %8742 = vst [vmem:[#allocation3 + $0x10] sm:$0xff] %v8710
    %8743 = vst [vmem:[#allocation3 + $0x18] sm:$0xff] %v8711
    %8744 = vst [vmem:[#allocation3 + $0x20] sm:$0xff] %v8712
    %8745 = vst [vmem:[#allocation3 + $0x28] sm:$0xff] %v8713
    %8746 = vst [vmem:[#allocation3 + $0x30] sm:$0xff] %v8714
    %8747 = vst [vmem:[#allocation3 + $0x38] sm:$0xff] %v8715
    %8748 = vst [vmem:[#allocation3 + $0x40] sm:$0xff] %v8716
    %8749 = vst [vmem:[#allocation3 + $0x48] sm:$0xff] %v8717
    %8750 = vst [vmem:[#allocation3 + $0x50] sm:$0xff] %v8718
    %8751 = vst [vmem:[#allocation3 + $0x58] sm:$0xff] %v8719
    %8752 = vst [vmem:[#allocation3 + $0x60] sm:$0xff] %v8720
    %8753 = vst [vmem:[#allocation3 + $0x68] sm:$0xff] %v8721
    %8754 = vst [vmem:[#allocation3 + $0x70] sm:$0xff] %v8722
    %8755 = vst [vmem:[#allocation3 + $0x78] sm:$0xff] %v8723
    %8756 = vst [vmem:[#allocation3 + $0x80] sm:$0xff] %v8724
    %8757 = vst [vmem:[#allocation3 + $0x88] sm:$0xff] %v8725
    %8758 = vst [vmem:[#allocation3 + $0x90] sm:$0xff] %v8726
    %8759 = vst [vmem:[#allocation3 + $0x98] sm:$0xff] %v8727
    %8760 = vst [vmem:[#allocation3 + $0xa0] sm:$0xff] %v8728
    %8761 = vst [vmem:[#allocation3 + $0xa8] sm:$0xff] %v8729
    %8762 = vst [vmem:[#allocation3 + $0xb0] sm:$0xff] %v8730
    %8763 = vst [vmem:[#allocation3 + $0xb8] sm:$0xff] %v8731
    %8764 = vst [vmem:[#allocation3 + $0xc0] sm:$0xff] %v8732
    %8765 = vst [vmem:[#allocation3 + $0xc8] sm:$0xff] %v8733
    %8766 = vst [vmem:[#allocation3 + $0xd0] sm:$0xff] %v8734
    %8767 = vst [vmem:[#allocation3 + $0xd8] sm:$0xff] %v8735
    %8768 = vst [vmem:[#allocation3 + $0xe0] sm:$0xff] %v8736
    %8769 = vst [vmem:[#allocation3 + $0xe8] sm:$0xff] %v8737
    %8770 = vst [vmem:[#allocation3 + $0xf0] sm:$0xff] %v8738
    %8771 = vst [vmem:[#allocation3 + $0xf8] sm:$0xff] %v8739
    %v8772 = vld [vmem:[%s563] sm:$0xff]
    %v8773 = vld [vmem:[%s563 + $0x8] sm:$0x11]
    %v8774 = vld [vmem:[%s563 + $0x10] sm:$0xff]
    %v8775 = vld [vmem:[%s563 + $0x18] sm:$0x11]
    %v8776 = vld [vmem:[%s563 + $0x20] sm:$0xff]
    %v8777 = vld [vmem:[%s563 + $0x28] sm:$0x11]
    %v8778 = vld [vmem:[%s563 + $0x30] sm:$0xff]
    %v8779 = vld [vmem:[%s563 + $0x38] sm:$0x11]
    %v8780 = vld [vmem:[%s563 + $0x40] sm:$0xff]
    %v8781 = vld [vmem:[%s563 + $0x48] sm:$0x11]
    %v8782 = vld [vmem:[%s563 + $0x50] sm:$0xff]
    %v8783 = vld [vmem:[%s563 + $0x58] sm:$0x11]
    %v8784 = vld [vmem:[%s563 + $0x60] sm:$0xff]
    %v8785 = vld [vmem:[%s563 + $0x68] sm:$0x11]
    %v8786 = vld [vmem:[%s563 + $0x70] sm:$0xff]
    %v8787 = vld [vmem:[%s563 + $0x78] sm:$0x11]
    %v8788 = vld [vmem:[%s563 + $0xa0] sm:$0xff]
    %v8789 = vld [vmem:[%s563 + $0xa8] sm:$0x11]
    %v8790 = vld [vmem:[%s563 + $0xb0] sm:$0xff]
    %v8791 = vld [vmem:[%s563 + $0xb8] sm:$0x11]
    %v8792 = vld [vmem:[%s563 + $0xc0] sm:$0xff]
    %v8793 = vld [vmem:[%s563 + $0xc8] sm:$0x11]
    %v8794 = vld [vmem:[%s563 + $0xd0] sm:$0xff]
    %v8795 = vld [vmem:[%s563 + $0xd8] sm:$0x11]
    %v8796 = vld [vmem:[%s563 + $0xe0] sm:$0xff]
    %v8797 = vld [vmem:[%s563 + $0xe8] sm:$0x11]
    %v8798 = vld [vmem:[%s563 + $0xf0] sm:$0xff]
    %v8799 = vld [vmem:[%s563 + $0xf8] sm:$0x11]
    %v8800 = vld [vmem:[%s563 + $0x100] sm:$0xff]
    %v8801 = vld [vmem:[%s563 + $0x108] sm:$0x11]
    %v8802 = vld [vmem:[%s563 + $0x110] sm:$0xff]
    %v8803 = vld [vmem:[%s563 + $0x118] sm:$0x11]
    %v8805 = vshrl.u32 %v8772, 16
    %v8807 = vrot.slane %v8805, 4
    %v8808 = vshll.u32 %v8772, 16
    %v8810 = vrot.slane %v8808, 5
    %v8811 = vor.u32 %v8807, %v8810
    %v8812 = vrot.slane %v8811, 4
    %v8814 = vshll.u32 %v8773, 16
    %v8816 = vrot.slane %v8814, 5
    %v8817 = vsel %vm1132, %v8812, %v8816
    %v8819 = vshrl.u32 %v8774, 16
    %v8821 = vrot.slane %v8819, 4
    %v8822 = vshll.u32 %v8774, 16
    %v8824 = vrot.slane %v8822, 5
    %v8825 = vor.u32 %v8821, %v8824
    %v8826 = vrot.slane %v8825, 4
    %v8828 = vshll.u32 %v8775, 16
    %v8830 = vrot.slane %v8828, 5
    %v8831 = vsel %vm1132, %v8826, %v8830
    %v8833 = vshrl.u32 %v8776, 16
    %v8835 = vrot.slane %v8833, 4
    %v8836 = vshll.u32 %v8776, 16
    %v8838 = vrot.slane %v8836, 5
    %v8839 = vor.u32 %v8835, %v8838
    %v8840 = vrot.slane %v8839, 4
    %v8842 = vshll.u32 %v8777, 16
    %v8844 = vrot.slane %v8842, 5
    %v8845 = vsel %vm1132, %v8840, %v8844
    %v8847 = vshrl.u32 %v8778, 16
    %v8849 = vrot.slane %v8847, 4
    %v8850 = vshll.u32 %v8778, 16
    %v8852 = vrot.slane %v8850, 5
    %v8853 = vor.u32 %v8849, %v8852
    %v8854 = vrot.slane %v8853, 4
    %v8856 = vshll.u32 %v8779, 16
    %v8858 = vrot.slane %v8856, 5
    %v8859 = vsel %vm1132, %v8854, %v8858
    %v8861 = vshrl.u32 %v8780, 16
    %v8863 = vrot.slane %v8861, 4
    %v8864 = vshll.u32 %v8780, 16
    %v8866 = vrot.slane %v8864, 5
    %v8867 = vor.u32 %v8863, %v8866
    %v8868 = vrot.slane %v8867, 4
    %v8870 = vshll.u32 %v8781, 16
    %v8872 = vrot.slane %v8870, 5
    %v8873 = vsel %vm1132, %v8868, %v8872
    %v8875 = vshrl.u32 %v8782, 16
    %v8877 = vrot.slane %v8875, 4
    %v8878 = vshll.u32 %v8782, 16
    %v8880 = vrot.slane %v8878, 5
    %v8881 = vor.u32 %v8877, %v8880
    %v8882 = vrot.slane %v8881, 4
    %v8884 = vshll.u32 %v8783, 16
    %v8886 = vrot.slane %v8884, 5
    %v8887 = vsel %vm1132, %v8882, %v8886
    %v8889 = vshrl.u32 %v8784, 16
    %v8891 = vrot.slane %v8889, 4
    %v8892 = vshll.u32 %v8784, 16
    %v8894 = vrot.slane %v8892, 5
    %v8895 = vor.u32 %v8891, %v8894
    %v8896 = vrot.slane %v8895, 4
    %v8898 = vshll.u32 %v8785, 16
    %v8900 = vrot.slane %v8898, 5
    %v8901 = vsel %vm1132, %v8896, %v8900
    %v8903 = vshrl.u32 %v8786, 16
    %v8905 = vrot.slane %v8903, 4
    %v8906 = vshll.u32 %v8786, 16
    %v8908 = vrot.slane %v8906, 5
    %v8909 = vor.u32 %v8905, %v8908
    %v8910 = vrot.slane %v8909, 4
    %v8912 = vshll.u32 %v8787, 16
    %v8914 = vrot.slane %v8912, 5
    %v8915 = vsel %vm1132, %v8910, %v8914
    %v8917 = vshrl.u32 %v8788, 16
    %v8919 = vrot.slane %v8917, 4
    %v8920 = vshll.u32 %v8788, 16
    %v8922 = vrot.slane %v8920, 5
    %v8923 = vor.u32 %v8919, %v8922
    %v8924 = vrot.slane %v8923, 4
    %v8926 = vshll.u32 %v8789, 16
    %v8928 = vrot.slane %v8926, 5
    %v8929 = vsel %vm1132, %v8924, %v8928
    %v8931 = vshrl.u32 %v8790, 16
    %v8933 = vrot.slane %v8931, 4
    %v8934 = vshll.u32 %v8790, 16
    %v8936 = vrot.slane %v8934, 5
    %v8937 = vor.u32 %v8933, %v8936
    %v8938 = vrot.slane %v8937, 4
    %v8940 = vshll.u32 %v8791, 16
    %v8942 = vrot.slane %v8940, 5
    %v8943 = vsel %vm1132, %v8938, %v8942
    %v8945 = vshrl.u32 %v8792, 16
    %v8947 = vrot.slane %v8945, 4
    %v8948 = vshll.u32 %v8792, 16
    %v8950 = vrot.slane %v8948, 5
    %v8951 = vor.u32 %v8947, %v8950
    %v8952 = vrot.slane %v8951, 4
    %v8954 = vshll.u32 %v8793, 16
    %v8956 = vrot.slane %v8954, 5
    %v8957 = vsel %vm1132, %v8952, %v8956
    %v8959 = vshrl.u32 %v8794, 16
    %v8961 = vrot.slane %v8959, 4
    %v8962 = vshll.u32 %v8794, 16
    %v8964 = vrot.slane %v8962, 5
    %v8965 = vor.u32 %v8961, %v8964
    %v8966 = vrot.slane %v8965, 4
    %v8968 = vshll.u32 %v8795, 16
    %v8970 = vrot.slane %v8968, 5
    %v8971 = vsel %vm1132, %v8966, %v8970
    %v8973 = vshrl.u32 %v8796, 16
    %v8975 = vrot.slane %v8973, 4
    %v8976 = vshll.u32 %v8796, 16
    %v8978 = vrot.slane %v8976, 5
    %v8979 = vor.u32 %v8975, %v8978
    %v8980 = vrot.slane %v8979, 4
    %v8982 = vshll.u32 %v8797, 16
    %v8984 = vrot.slane %v8982, 5
    %v8985 = vsel %vm1132, %v8980, %v8984
    %v8987 = vshrl.u32 %v8798, 16
    %v8989 = vrot.slane %v8987, 4
    %v8990 = vshll.u32 %v8798, 16
    %v8992 = vrot.slane %v8990, 5
    %v8993 = vor.u32 %v8989, %v8992
    %v8994 = vrot.slane %v8993, 4
    %v8996 = vshll.u32 %v8799, 16
    %v8998 = vrot.slane %v8996, 5
    %v8999 = vsel %vm1132, %v8994, %v8998
    %v9001 = vshrl.u32 %v8800, 16
    %v9003 = vrot.slane %v9001, 4
    %v9004 = vshll.u32 %v8800, 16
    %v9006 = vrot.slane %v9004, 5
    %v9007 = vor.u32 %v9003, %v9006
    %v9008 = vrot.slane %v9007, 4
    %v9010 = vshll.u32 %v8801, 16
    %v9012 = vrot.slane %v9010, 5
    %v9013 = vsel %vm1132, %v9008, %v9012
    %v9015 = vshrl.u32 %v8802, 16
    %v9017 = vrot.slane %v9015, 4
    %v9018 = vshll.u32 %v8802, 16
    %v9020 = vrot.slane %v9018, 5
    %v9021 = vor.u32 %v9017, %v9020
    %v9022 = vrot.slane %v9021, 4
    %v9024 = vshll.u32 %v8803, 16
    %v9026 = vrot.slane %v9024, 5
    %v9027 = vsel %vm1132, %v9022, %v9026
    %s9028 = scalar_lea.vmem [#allocation10], 1024
    %v9029 = vld [vmem:[%s9028] sm:$0xff]
    %v9030 = vld [vmem:[%s9028 + $0x8] sm:$0xff]
    %v9031 = vld [vmem:[%s9028 + $0x10] sm:$0xff]
    %v9032 = vld [vmem:[%s9028 + $0x18] sm:$0xff]
    %v9033 = vld [vmem:[%s9028 + $0x20] sm:$0xff]
    %v9034 = vld [vmem:[%s9028 + $0x28] sm:$0xff]
    %v9035 = vld [vmem:[%s9028 + $0x30] sm:$0xff]
    %v9036 = vld [vmem:[%s9028 + $0x38] sm:$0xff]
    %v9037 = vld [vmem:[%s9028 + $0x40] sm:$0xff]
    %v9038 = vld [vmem:[%s9028 + $0x48] sm:$0xff]
    %v9039 = vld [vmem:[%s9028 + $0x50] sm:$0xff]
    %v9040 = vld [vmem:[%s9028 + $0x58] sm:$0xff]
    %v9041 = vld [vmem:[%s9028 + $0x60] sm:$0xff]
    %v9042 = vld [vmem:[%s9028 + $0x68] sm:$0xff]
    %v9043 = vld [vmem:[%s9028 + $0x70] sm:$0xff]
    %v9044 = vld [vmem:[%s9028 + $0x78] sm:$0xff]
    %v9045 = vld [vmem:[%s9028 + $0x80] sm:$0xff]
    %v9046 = vld [vmem:[%s9028 + $0x88] sm:$0xff]
    %v9047 = vld [vmem:[%s9028 + $0x90] sm:$0xff]
    %v9048 = vld [vmem:[%s9028 + $0x98] sm:$0xff]
    %v9049 = vld [vmem:[%s9028 + $0xa0] sm:$0xff]
    %v9050 = vld [vmem:[%s9028 + $0xa8] sm:$0xff]
    %v9051 = vld [vmem:[%s9028 + $0xb0] sm:$0xff]
    %v9052 = vld [vmem:[%s9028 + $0xb8] sm:$0xff]
    %v9053 = vld [vmem:[%s9028 + $0xc0] sm:$0xff]
    %v9054 = vld [vmem:[%s9028 + $0xc8] sm:$0xff]
    %v9055 = vld [vmem:[%s9028 + $0xd0] sm:$0xff]
    %v9056 = vld [vmem:[%s9028 + $0xd8] sm:$0xff]
    %v9057 = vld [vmem:[%s9028 + $0xe0] sm:$0xff]
    %v9058 = vld [vmem:[%s9028 + $0xe8] sm:$0xff]
    %v9059 = vld [vmem:[%s9028 + $0xf0] sm:$0xff]
    %v9060 = vld [vmem:[%s9028 + $0xf8] sm:$0xff]
    %v9061 = vunpack.c.l.b16 %v8817
    %v9062 = vunpack.c.h.b16 %v8817
    %v9063 = vunpack.c.l.b16 %v8831
    %v9064 = vunpack.c.h.b16 %v8831
    %v9065 = vunpack.c.l.b16 %v8845
    %v9066 = vunpack.c.h.b16 %v8845
    %v9067 = vunpack.c.l.b16 %v8859
    %v9068 = vunpack.c.h.b16 %v8859
    %v9069 = vunpack.c.l.b16 %v8873
    %v9070 = vunpack.c.h.b16 %v8873
    %v9071 = vunpack.c.l.b16 %v8887
    %v9072 = vunpack.c.h.b16 %v8887
    %v9073 = vunpack.c.l.b16 %v8901
    %v9074 = vunpack.c.h.b16 %v8901
    %v9075 = vunpack.c.l.b16 %v8915
    %v9076 = vunpack.c.h.b16 %v8915
    %v9077 = vunpack.c.l.b16 %v8929
    %v9078 = vunpack.c.h.b16 %v8929
    %v9079 = vunpack.c.l.b16 %v8943
    %v9080 = vunpack.c.h.b16 %v8943
    %v9081 = vunpack.c.l.b16 %v8957
    %v9082 = vunpack.c.h.b16 %v8957
    %v9083 = vunpack.c.l.b16 %v8971
    %v9084 = vunpack.c.h.b16 %v8971
    %v9085 = vunpack.c.l.b16 %v8985
    %v9086 = vunpack.c.h.b16 %v8985
    %v9087 = vunpack.c.l.b16 %v8999
    %v9088 = vunpack.c.h.b16 %v8999
    %v9089 = vunpack.c.l.b16 %v9013
    %v9090 = vunpack.c.h.b16 %v9013
    %v9091 = vunpack.c.l.b16 %v9027
    %v9092 = vunpack.c.h.b16 %v9027
    %v9093 = vpack.c.b16 %v9063, %v9061
    %v9094 = vpack.c.b16 %v9064, %v9062
    %v9095 = vpack.c.b16 %v9067, %v9065
    %v9096 = vpack.c.b16 %v9068, %v9066
    %v9097 = vpack.c.b16 %v9071, %v9069
    %v9098 = vpack.c.b16 %v9072, %v9070
    %v9099 = vpack.c.b16 %v9075, %v9073
    %v9100 = vpack.c.b16 %v9076, %v9074
    %v9101 = vpack.c.b16 %v9079, %v9077
    %v9102 = vpack.c.b16 %v9080, %v9078
    %v9103 = vpack.c.b16 %v9083, %v9081
    %v9104 = vpack.c.b16 %v9084, %v9082
    %v9105 = vpack.c.b16 %v9087, %v9085
    %v9106 = vpack.c.b16 %v9088, %v9086
    %v9107 = vpack.c.b16 %v9091, %v9089
    %v9108 = vpack.c.b16 %v9092, %v9090
    %v9157 = vunpack.c.l.b16 %v9029
    %v9158 = vunpack.c.h.b16 %v9029
    %v9159 = vunpack.c.l.b16 %v9030
    %v9160 = vunpack.c.h.b16 %v9030
    %v9161 = vunpack.c.l.b16 %v9031
    %v9162 = vunpack.c.h.b16 %v9031
    %v9163 = vunpack.c.l.b16 %v9032
    %v9164 = vunpack.c.h.b16 %v9032
    %v9165 = vunpack.c.l.b16 %v9033
    %v9166 = vunpack.c.h.b16 %v9033
    %v9167 = vunpack.c.l.b16 %v9034
    %v9168 = vunpack.c.h.b16 %v9034
    %v9169 = vunpack.c.l.b16 %v9035
    %v9170 = vunpack.c.h.b16 %v9035
    %v9171 = vunpack.c.l.b16 %v9036
    %v9172 = vunpack.c.h.b16 %v9036
    %v9173 = vunpack.c.l.b16 %v9037
    %v9174 = vunpack.c.h.b16 %v9037
    %v9175 = vunpack.c.l.b16 %v9038
    %v9176 = vunpack.c.h.b16 %v9038
    %v9177 = vunpack.c.l.b16 %v9039
    %v9178 = vunpack.c.h.b16 %v9039
    %v9179 = vunpack.c.l.b16 %v9040
    %v9180 = vunpack.c.h.b16 %v9040
    %v9181 = vunpack.c.l.b16 %v9041
    %v9182 = vunpack.c.h.b16 %v9041
    %v9183 = vunpack.c.l.b16 %v9042
    %v9184 = vunpack.c.h.b16 %v9042
    %v9185 = vunpack.c.l.b16 %v9043
    %v9186 = vunpack.c.h.b16 %v9043
    %v9187 = vunpack.c.l.b16 %v9044
    %v9188 = vunpack.c.h.b16 %v9044
    %v9189 = vunpack.c.l.b16 %v9045
    %v9190 = vunpack.c.h.b16 %v9045
    %v9191 = vunpack.c.l.b16 %v9046
    %v9192 = vunpack.c.h.b16 %v9046
    %v9193 = vunpack.c.l.b16 %v9047
    %v9194 = vunpack.c.h.b16 %v9047
    %v9195 = vunpack.c.l.b16 %v9048
    %v9196 = vunpack.c.h.b16 %v9048
    %v9197 = vunpack.c.l.b16 %v9049
    %v9198 = vunpack.c.h.b16 %v9049
    %v9199 = vunpack.c.l.b16 %v9050
    %v9200 = vunpack.c.h.b16 %v9050
    %v9201 = vunpack.c.l.b16 %v9051
    %v9202 = vunpack.c.h.b16 %v9051
    %v9203 = vunpack.c.l.b16 %v9052
    %v9204 = vunpack.c.h.b16 %v9052
    %v9205 = vunpack.c.l.b16 %v9053
    %v9206 = vunpack.c.h.b16 %v9053
    %v9207 = vunpack.c.l.b16 %v9054
    %v9208 = vunpack.c.h.b16 %v9054
    %v9209 = vunpack.c.l.b16 %v9055
    %v9210 = vunpack.c.h.b16 %v9055
    %v9211 = vunpack.c.l.b16 %v9056
    %v9212 = vunpack.c.h.b16 %v9056
    %v9213 = vunpack.c.l.b16 %v9057
    %v9214 = vunpack.c.h.b16 %v9057
    %v9215 = vunpack.c.l.b16 %v9058
    %v9216 = vunpack.c.h.b16 %v9058
    %v9217 = vunpack.c.l.b16 %v9059
    %v9218 = vunpack.c.h.b16 %v9059
    %v9219 = vunpack.c.l.b16 %v9060
    %v9220 = vunpack.c.h.b16 %v9060
    %v9221 = vpack.c.b16 %v9159, %v9157
    %v9222 = vpack.c.b16 %v9160, %v9158
    %v9223 = vpack.c.b16 %v9163, %v9161
    %v9224 = vpack.c.b16 %v9164, %v9162
    %v9225 = vpack.c.b16 %v9167, %v9165
    %v9226 = vpack.c.b16 %v9168, %v9166
    %v9227 = vpack.c.b16 %v9171, %v9169
    %v9228 = vpack.c.b16 %v9172, %v9170
    %v9229 = vpack.c.b16 %v9175, %v9173
    %v9230 = vpack.c.b16 %v9176, %v9174
    %v9231 = vpack.c.b16 %v9179, %v9177
    %v9232 = vpack.c.b16 %v9180, %v9178
    %v9233 = vpack.c.b16 %v9183, %v9181
    %v9234 = vpack.c.b16 %v9184, %v9182
    %v9235 = vpack.c.b16 %v9187, %v9185
    %v9236 = vpack.c.b16 %v9188, %v9186
    %v9237 = vpack.c.b16 %v9191, %v9189
    %v9238 = vpack.c.b16 %v9192, %v9190
    %v9239 = vpack.c.b16 %v9195, %v9193
    %v9240 = vpack.c.b16 %v9196, %v9194
    %v9241 = vpack.c.b16 %v9199, %v9197
    %v9242 = vpack.c.b16 %v9200, %v9198
    %v9243 = vpack.c.b16 %v9203, %v9201
    %v9244 = vpack.c.b16 %v9204, %v9202
    %v9245 = vpack.c.b16 %v9207, %v9205
    %v9246 = vpack.c.b16 %v9208, %v9206
    %v9247 = vpack.c.b16 %v9211, %v9209
    %v9248 = vpack.c.b16 %v9212, %v9210
    %v9249 = vpack.c.b16 %v9215, %v9213
    %v9250 = vpack.c.b16 %v9216, %v9214
    %v9251 = vpack.c.b16 %v9219, %v9217
    %v9252 = vpack.c.b16 %v9220, %v9218
    %9285 = vmatprep.subr.bf16.mxu0 %v9236
    %9286 = vmatpush1.bf16.msra.mxu0 %v9235
    %9287 = vmatprep.subr.bf16.mxu0 %v9234
    %9288 = vmatpush1.bf16.msra.mxu0 %v9233
    %9289 = vmatprep.subr.bf16.mxu0 %v9232
    %9290 = vmatpush1.bf16.msra.mxu0 %v9231
    %9291 = vmatprep.subr.bf16.mxu0 %v9230
    %9292 = vmatpush1.bf16.msra.mxu0 %v9229
    %9293 = vmatprep.subr.bf16.mxu0 %v9228
    %9294 = vmatpush1.bf16.msra.mxu0 %v9227
    %9295 = vmatprep.subr.bf16.mxu0 %v9226
    %9296 = vmatpush1.bf16.msra.mxu0 %v9225
    %9297 = vmatprep.subr.bf16.mxu0 %v9224
    %9298 = vmatpush1.bf16.msra.mxu0 %v9223
    %9299 = vmatprep.subr.bf16.mxu0 %v9222
    %9300 = vmatpush1.bf16.msra.mxu0 %v9221
    %9301 = vmatprep.subr.bf16.mxu0 %v9252
    %9302 = vmatpush2.bf16.msra.mxu0 %v9251
    %9303 = vmatprep.subr.bf16.mxu0 %v9250
    %9304 = vmatpush2.bf16.msra.mxu0 %v9249
    %9305 = vmatprep.subr.bf16.mxu0 %v9248
    %9306 = vmatpush2.bf16.msra.mxu0 %v9247
    %9307 = vmatprep.subr.bf16.mxu0 %v9246
    %9308 = vmatpush2.bf16.msra.mxu0 %v9245
    %9309 = vmatprep.subr.bf16.mxu0 %v9244
    %9310 = vmatpush2.bf16.msra.mxu0 %v9243
    %9311 = vmatprep.subr.bf16.mxu0 %v9242
    %9312 = vmatpush2.bf16.msra.mxu0 %v9241
    %9313 = vmatprep.subr.bf16.mxu0 %v9240
    %9314 = vmatpush2.bf16.msra.mxu0 %v9239
    %9315 = vmatprep.subr.bf16.mxu0 %v9238
    %9316 = vmatpush2.bf16.msra.mxu0 %v9237
    %9317 = vmatprep.mubr.bf16.mxu0 %v9094
    %9318 = vmatmul.mubr.bf16.gmra.mxu0 %v9093
    %v9319 = vpop.f32.mrf.mxu0
    %v9320 = vadd.f32 0.0, %v9319
    %v9321 = vpop.f32.mrf.mxu0
    %v9322 = vadd.f32 0.0, %v9321
    %v9323 = vpop.f32.mrf.mxu0
    %v9324 = vadd.f32 0.0, %v9323
    %v9325 = vpop.f32.mrf.mxu0
    %v9326 = vadd.f32 0.0, %v9325
    %9327 = vmatprep.mubr.bf16.mxu0 %v9096
    %9328 = vmatmul.mubr.bf16.gmra.mxu0 %v9095
    %v9329 = vpop.f32.mrf.mxu0
    %v9330 = vadd.f32 0.0, %v9329
    %v9331 = vpop.f32.mrf.mxu0
    %v9332 = vadd.f32 0.0, %v9331
    %v9333 = vpop.f32.mrf.mxu0
    %v9334 = vadd.f32 0.0, %v9333
    %v9335 = vpop.f32.mrf.mxu0
    %v9336 = vadd.f32 0.0, %v9335
    %9337 = vmatprep.mubr.bf16.mxu0 %v9098
    %9338 = vmatmul.mubr.bf16.gmra.mxu0 %v9097
    %v9339 = vpop.f32.mrf.mxu0
    %v9340 = vadd.f32 0.0, %v9339
    %v9341 = vpop.f32.mrf.mxu0
    %v9342 = vadd.f32 0.0, %v9341
    %v9343 = vpop.f32.mrf.mxu0
    %v9344 = vadd.f32 0.0, %v9343
    %v9345 = vpop.f32.mrf.mxu0
    %v9346 = vadd.f32 0.0, %v9345
    %9347 = vmatprep.mubr.bf16.mxu0 %v9100
    %9348 = vmatmul.mubr.bf16.gmra.mxu0 %v9099
    %v9349 = vpop.f32.mrf.mxu0
    %v9350 = vadd.f32 0.0, %v9349
    %v9351 = vpop.f32.mrf.mxu0
    %v9352 = vadd.f32 0.0, %v9351
    %v9353 = vpop.f32.mrf.mxu0
    %v9354 = vadd.f32 0.0, %v9353
    %v9355 = vpop.f32.mrf.mxu0
    %v9356 = vadd.f32 0.0, %v9355
    %9357 = vmatprep.mubr.bf16.mxu0 %v9102
    %9358 = vmatmul.mubr.bf16.gmra.mxu0 %v9101
    %v9359 = vpop.f32.mrf.mxu0
    %v9360 = vadd.f32 0.0, %v9359
    %v9361 = vpop.f32.mrf.mxu0
    %v9362 = vadd.f32 0.0, %v9361
    %v9363 = vpop.f32.mrf.mxu0
    %v9364 = vadd.f32 0.0, %v9363
    %v9365 = vpop.f32.mrf.mxu0
    %v9366 = vadd.f32 0.0, %v9365
    %9367 = vmatprep.mubr.bf16.mxu0 %v9104
    %9368 = vmatmul.mubr.bf16.gmra.mxu0 %v9103
    %v9369 = vpop.f32.mrf.mxu0
    %v9370 = vadd.f32 0.0, %v9369
    %v9371 = vpop.f32.mrf.mxu0
    %v9372 = vadd.f32 0.0, %v9371
    %v9373 = vpop.f32.mrf.mxu0
    %v9374 = vadd.f32 0.0, %v9373
    %v9375 = vpop.f32.mrf.mxu0
    %v9376 = vadd.f32 0.0, %v9375
    %9377 = vmatprep.mubr.bf16.mxu0 %v9106
    %9378 = vmatmul.mubr.bf16.gmra.mxu0 %v9105
    %v9379 = vpop.f32.mrf.mxu0
    %v9380 = vadd.f32 0.0, %v9379
    %v9381 = vpop.f32.mrf.mxu0
    %v9382 = vadd.f32 0.0, %v9381
    %v9383 = vpop.f32.mrf.mxu0
    %v9384 = vadd.f32 0.0, %v9383
    %v9385 = vpop.f32.mrf.mxu0
    %v9386 = vadd.f32 0.0, %v9385
    %9387 = vmatprep.mubr.bf16.mxu0 %v9108
    %9388 = vmatmul.mubr.bf16.gmra.mxu0 %v9107
    %v9389 = vpop.f32.mrf.mxu0
    %v9390 = vadd.f32 0.0, %v9389
    %v9391 = vpop.f32.mrf.mxu0
    %v9392 = vadd.f32 0.0, %v9391
    %v9393 = vpop.f32.mrf.mxu0
    %v9394 = vadd.f32 0.0, %v9393
    %v9395 = vpop.f32.mrf.mxu0
    %v9396 = vadd.f32 0.0, %v9395
    %9397 = vdwg.mxu0
    %v9398 = vld [vmem:[#allocation3] sm:$0xff]
    %v9399 = vld [vmem:[#allocation3 + $0x8] sm:$0xff]
    %v9400 = vld [vmem:[#allocation3 + $0x10] sm:$0xff]
    %v9401 = vld [vmem:[#allocation3 + $0x18] sm:$0xff]
    %v9402 = vld [vmem:[#allocation3 + $0x20] sm:$0xff]
    %v9403 = vld [vmem:[#allocation3 + $0x28] sm:$0xff]
    %v9404 = vld [vmem:[#allocation3 + $0x30] sm:$0xff]
    %v9405 = vld [vmem:[#allocation3 + $0x38] sm:$0xff]
    %v9406 = vld [vmem:[#allocation3 + $0x40] sm:$0xff]
    %v9407 = vld [vmem:[#allocation3 + $0x48] sm:$0xff]
    %v9408 = vld [vmem:[#allocation3 + $0x50] sm:$0xff]
    %v9409 = vld [vmem:[#allocation3 + $0x58] sm:$0xff]
    %v9410 = vld [vmem:[#allocation3 + $0x60] sm:$0xff]
    %v9411 = vld [vmem:[#allocation3 + $0x68] sm:$0xff]
    %v9412 = vld [vmem:[#allocation3 + $0x70] sm:$0xff]
    %v9413 = vld [vmem:[#allocation3 + $0x78] sm:$0xff]
    %v9414 = vld [vmem:[#allocation3 + $0x80] sm:$0xff]
    %v9415 = vld [vmem:[#allocation3 + $0x88] sm:$0xff]
    %v9416 = vld [vmem:[#allocation3 + $0x90] sm:$0xff]
    %v9417 = vld [vmem:[#allocation3 + $0x98] sm:$0xff]
    %v9418 = vld [vmem:[#allocation3 + $0xa0] sm:$0xff]
    %v9419 = vld [vmem:[#allocation3 + $0xa8] sm:$0xff]
    %v9420 = vld [vmem:[#allocation3 + $0xb0] sm:$0xff]
    %v9421 = vld [vmem:[#allocation3 + $0xb8] sm:$0xff]
    %v9422 = vld [vmem:[#allocation3 + $0xc0] sm:$0xff]
    %v9423 = vld [vmem:[#allocation3 + $0xc8] sm:$0xff]
    %v9424 = vld [vmem:[#allocation3 + $0xd0] sm:$0xff]
    %v9425 = vld [vmem:[#allocation3 + $0xd8] sm:$0xff]
    %v9426 = vld [vmem:[#allocation3 + $0xe0] sm:$0xff]
    %v9427 = vld [vmem:[#allocation3 + $0xe8] sm:$0xff]
    %v9428 = vld [vmem:[#allocation3 + $0xf0] sm:$0xff]
    %v9429 = vld [vmem:[#allocation3 + $0xf8] sm:$0xff]
    %v9430 = vadd.f32 %v9398, %v9320
    %v9431 = vadd.f32 %v9399, %v9322
    %v9432 = vadd.f32 %v9400, %v9324
    %v9433 = vadd.f32 %v9401, %v9326
    %v9434 = vadd.f32 %v9402, %v9330
    %v9435 = vadd.f32 %v9403, %v9332
    %v9436 = vadd.f32 %v9404, %v9334
    %v9437 = vadd.f32 %v9405, %v9336
    %v9438 = vadd.f32 %v9406, %v9340
    %v9439 = vadd.f32 %v9407, %v9342
    %v9440 = vadd.f32 %v9408, %v9344
    %v9441 = vadd.f32 %v9409, %v9346
    %v9442 = vadd.f32 %v9410, %v9350
    %v9443 = vadd.f32 %v9411, %v9352
    %v9444 = vadd.f32 %v9412, %v9354
    %v9445 = vadd.f32 %v9413, %v9356
    %v9446 = vadd.f32 %v9414, %v9360
    %v9447 = vadd.f32 %v9415, %v9362
    %v9448 = vadd.f32 %v9416, %v9364
    %v9449 = vadd.f32 %v9417, %v9366
    %v9450 = vadd.f32 %v9418, %v9370
    %v9451 = vadd.f32 %v9419, %v9372
    %v9452 = vadd.f32 %v9420, %v9374
    %v9453 = vadd.f32 %v9421, %v9376
    %v9454 = vadd.f32 %v9422, %v9380
    %v9455 = vadd.f32 %v9423, %v9382
    %v9456 = vadd.f32 %v9424, %v9384
    %v9457 = vadd.f32 %v9425, %v9386
    %v9458 = vadd.f32 %v9426, %v9390
    %v9459 = vadd.f32 %v9427, %v9392
    %v9460 = vadd.f32 %v9428, %v9394
    %v9461 = vadd.f32 %v9429, %v9396
    %9462 = vst [vmem:[#allocation3] sm:$0xff] %v9430
    %9463 = vst [vmem:[#allocation3 + $0x8] sm:$0xff] %v9431
    %9464 = vst [vmem:[#allocation3 + $0x10] sm:$0xff] %v9432
    %9465 = vst [vmem:[#allocation3 + $0x18] sm:$0xff] %v9433
    %9466 = vst [vmem:[#allocation3 + $0x20] sm:$0xff] %v9434
    %9467 = vst [vmem:[#allocation3 + $0x28] sm:$0xff] %v9435
    %9468 = vst [vmem:[#allocation3 + $0x30] sm:$0xff] %v9436
    %9469 = vst [vmem:[#allocation3 + $0x38] sm:$0xff] %v9437
    %9470 = vst [vmem:[#allocation3 + $0x40] sm:$0xff] %v9438
    %9471 = vst [vmem:[#allocation3 + $0x48] sm:$0xff] %v9439
    %9472 = vst [vmem:[#allocation3 + $0x50] sm:$0xff] %v9440
    %9473 = vst [vmem:[#allocation3 + $0x58] sm:$0xff] %v9441
    %9474 = vst [vmem:[#allocation3 + $0x60] sm:$0xff] %v9442
    %9475 = vst [vmem:[#allocation3 + $0x68] sm:$0xff] %v9443
    %9476 = vst [vmem:[#allocation3 + $0x70] sm:$0xff] %v9444
    %9477 = vst [vmem:[#allocation3 + $0x78] sm:$0xff] %v9445
    %9478 = vst [vmem:[#allocation3 + $0x80] sm:$0xff] %v9446
    %9479 = vst [vmem:[#allocation3 + $0x88] sm:$0xff] %v9447
    %9480 = vst [vmem:[#allocation3 + $0x90] sm:$0xff] %v9448
    %9481 = vst [vmem:[#allocation3 + $0x98] sm:$0xff] %v9449
    %9482 = vst [vmem:[#allocation3 + $0xa0] sm:$0xff] %v9450
    %9483 = vst [vmem:[#allocation3 + $0xa8] sm:$0xff] %v9451
    %9484 = vst [vmem:[#allocation3 + $0xb0] sm:$0xff] %v9452
    %9485 = vst [vmem:[#allocation3 + $0xb8] sm:$0xff] %v9453
    %9486 = vst [vmem:[#allocation3 + $0xc0] sm:$0xff] %v9454
    %9487 = vst [vmem:[#allocation3 + $0xc8] sm:$0xff] %v9455
    %9488 = vst [vmem:[#allocation3 + $0xd0] sm:$0xff] %v9456
    %9489 = vst [vmem:[#allocation3 + $0xd8] sm:$0xff] %v9457
    %9490 = vst [vmem:[#allocation3 + $0xe0] sm:$0xff] %v9458
    %9491 = vst [vmem:[#allocation3 + $0xe8] sm:$0xff] %v9459
    %9492 = vst [vmem:[#allocation3 + $0xf0] sm:$0xff] %v9460
    %9493 = vst [vmem:[#allocation3 + $0xf8] sm:$0xff] %v9461
    %v9494 = vld [vmem:[%s563] sm:$0xee]
    %v9495 = vld [vmem:[%s563 + $0x8] sm:$0x11]
    %v9496 = vld [vmem:[%s563 + $0x10] sm:$0xee]
    %v9497 = vld [vmem:[%s563 + $0x18] sm:$0x11]
    %v9498 = vld [vmem:[%s563 + $0x20] sm:$0xee]
    %v9499 = vld [vmem:[%s563 + $0x28] sm:$0x11]
    %v9500 = vld [vmem:[%s563 + $0x30] sm:$0xee]
    %v9501 = vld [vmem:[%s563 + $0x38] sm:$0x11]
    %v9502 = vld [vmem:[%s563 + $0x40] sm:$0xee]
    %v9503 = vld [vmem:[%s563 + $0x48] sm:$0x11]
    %v9504 = vld [vmem:[%s563 + $0x50] sm:$0xee]
    %v9505 = vld [vmem:[%s563 + $0x58] sm:$0x11]
    %v9506 = vld [vmem:[%s563 + $0x60] sm:$0xee]
    %v9507 = vld [vmem:[%s563 + $0x68] sm:$0x11]
    %v9508 = vld [vmem:[%s563 + $0x70] sm:$0xee]
    %v9509 = vld [vmem:[%s563 + $0x78] sm:$0x11]
    %v9510 = vld [vmem:[%s563 + $0xa0] sm:$0xee]
    %v9511 = vld [vmem:[%s563 + $0xa8] sm:$0x11]
    %v9512 = vld [vmem:[%s563 + $0xb0] sm:$0xee]
    %v9513 = vld [vmem:[%s563 + $0xb8] sm:$0x11]
    %v9514 = vld [vmem:[%s563 + $0xc0] sm:$0xee]
    %v9515 = vld [vmem:[%s563 + $0xc8] sm:$0x11]
    %v9516 = vld [vmem:[%s563 + $0xd0] sm:$0xee]
    %v9517 = vld [vmem:[%s563 + $0xd8] sm:$0x11]
    %v9518 = vld [vmem:[%s563 + $0xe0] sm:$0xee]
    %v9519 = vld [vmem:[%s563 + $0xe8] sm:$0x11]
    %v9520 = vld [vmem:[%s563 + $0xf0] sm:$0xee]
    %v9521 = vld [vmem:[%s563 + $0xf8] sm:$0x11]
    %v9522 = vld [vmem:[%s563 + $0x100] sm:$0xee]
    %v9523 = vld [vmem:[%s563 + $0x108] sm:$0x11]
    %v9524 = vld [vmem:[%s563 + $0x110] sm:$0xee]
    %v9525 = vld [vmem:[%s563 + $0x118] sm:$0x11]
    %v9558 = vrot.slane %v9494, 5
    %v9559 = vrot.slane %v9558, 4
    %v9560 = vrot.slane %v9495, 5
    %v9561 = vsel %vm1889, %v9559, %v9560
    %v9562 = vrot.slane %v9496, 5
    %v9563 = vrot.slane %v9562, 4
    %v9564 = vrot.slane %v9497, 5
    %v9565 = vsel %vm1889, %v9563, %v9564
    %v9566 = vrot.slane %v9498, 5
    %v9567 = vrot.slane %v9566, 4
    %v9568 = vrot.slane %v9499, 5
    %v9569 = vsel %vm1889, %v9567, %v9568
    %v9570 = vrot.slane %v9500, 5
    %v9571 = vrot.slane %v9570, 4
    %v9572 = vrot.slane %v9501, 5
    %v9573 = vsel %vm1889, %v9571, %v9572
    %v9574 = vrot.slane %v9502, 5
    %v9575 = vrot.slane %v9574, 4
    %v9576 = vrot.slane %v9503, 5
    %v9577 = vsel %vm1889, %v9575, %v9576
    %v9578 = vrot.slane %v9504, 5
    %v9579 = vrot.slane %v9578, 4
    %v9580 = vrot.slane %v9505, 5
    %v9581 = vsel %vm1889, %v9579, %v9580
    %v9582 = vrot.slane %v9506, 5
    %v9583 = vrot.slane %v9582, 4
    %v9584 = vrot.slane %v9507, 5
    %v9585 = vsel %vm1889, %v9583, %v9584
    %v9586 = vrot.slane %v9508, 5
    %v9587 = vrot.slane %v9586, 4
    %v9588 = vrot.slane %v9509, 5
    %v9589 = vsel %vm1889, %v9587, %v9588
    %v9590 = vrot.slane %v9510, 5
    %v9591 = vrot.slane %v9590, 4
    %v9592 = vrot.slane %v9511, 5
    %v9593 = vsel %vm1889, %v9591, %v9592
    %v9594 = vrot.slane %v9512, 5
    %v9595 = vrot.slane %v9594, 4
    %v9596 = vrot.slane %v9513, 5
    %v9597 = vsel %vm1889, %v9595, %v9596
    %v9598 = vrot.slane %v9514, 5
    %v9599 = vrot.slane %v9598, 4
    %v9600 = vrot.slane %v9515, 5
    %v9601 = vsel %vm1889, %v9599, %v9600
    %v9602 = vrot.slane %v9516, 5
    %v9603 = vrot.slane %v9602, 4
    %v9604 = vrot.slane %v9517, 5
    %v9605 = vsel %vm1889, %v9603, %v9604
    %v9606 = vrot.slane %v9518, 5
    %v9607 = vrot.slane %v9606, 4
    %v9608 = vrot.slane %v9519, 5
    %v9609 = vsel %vm1889, %v9607, %v9608
    %v9610 = vrot.slane %v9520, 5
    %v9611 = vrot.slane %v9610, 4
    %v9612 = vrot.slane %v9521, 5
    %v9613 = vsel %vm1889, %v9611, %v9612
    %v9614 = vrot.slane %v9522, 5
    %v9615 = vrot.slane %v9614, 4
    %v9616 = vrot.slane %v9523, 5
    %v9617 = vsel %vm1889, %v9615, %v9616
    %v9618 = vrot.slane %v9524, 5
    %v9619 = vrot.slane %v9618, 4
    %v9620 = vrot.slane %v9525, 5
    %v9621 = vsel %vm1889, %v9619, %v9620
    %s9622 = scalar_lea.vmem [#allocation10], 1280
    %v9623 = vld [vmem:[%s9622] sm:$0xff]
    %v9624 = vld [vmem:[%s9622 + $0x8] sm:$0xff]
    %v9625 = vld [vmem:[%s9622 + $0x10] sm:$0xff]
    %v9626 = vld [vmem:[%s9622 + $0x18] sm:$0xff]
    %v9627 = vld [vmem:[%s9622 + $0x20] sm:$0xff]
    %v9628 = vld [vmem:[%s9622 + $0x28] sm:$0xff]
    %v9629 = vld [vmem:[%s9622 + $0x30] sm:$0xff]
    %v9630 = vld [vmem:[%s9622 + $0x38] sm:$0xff]
    %v9631 = vld [vmem:[%s9622 + $0x40] sm:$0xff]
    %v9632 = vld [vmem:[%s9622 + $0x48] sm:$0xff]
    %v9633 = vld [vmem:[%s9622 + $0x50] sm:$0xff]
    %v9634 = vld [vmem:[%s9622 + $0x58] sm:$0xff]
    %v9635 = vld [vmem:[%s9622 + $0x60] sm:$0xff]
    %v9636 = vld [vmem:[%s9622 + $0x68] sm:$0xff]
    %v9637 = vld [vmem:[%s9622 + $0x70] sm:$0xff]
    %v9638 = vld [vmem:[%s9622 + $0x78] sm:$0xff]
    %v9639 = vld [vmem:[%s9622 + $0x80] sm:$0xff]
    %v9640 = vld [vmem:[%s9622 + $0x88] sm:$0xff]
    %v9641 = vld [vmem:[%s9622 + $0x90] sm:$0xff]
    %v9642 = vld [vmem:[%s9622 + $0x98] sm:$0xff]
    %v9643 = vld [vmem:[%s9622 + $0xa0] sm:$0xff]
    %v9644 = vld [vmem:[%s9622 + $0xa8] sm:$0xff]
    %v9645 = vld [vmem:[%s9622 + $0xb0] sm:$0xff]
    %v9646 = vld [vmem:[%s9622 + $0xb8] sm:$0xff]
    %v9647 = vld [vmem:[%s9622 + $0xc0] sm:$0xff]
    %v9648 = vld [vmem:[%s9622 + $0xc8] sm:$0xff]
    %v9649 = vld [vmem:[%s9622 + $0xd0] sm:$0xff]
    %v9650 = vld [vmem:[%s9622 + $0xd8] sm:$0xff]
    %v9651 = vld [vmem:[%s9622 + $0xe0] sm:$0xff]
    %v9652 = vld [vmem:[%s9622 + $0xe8] sm:$0xff]
    %v9653 = vld [vmem:[%s9622 + $0xf0] sm:$0xff]
    %v9654 = vld [vmem:[%s9622 + $0xf8] sm:$0xff]
    %v9655 = vunpack.c.l.b16 %v9561
    %v9656 = vunpack.c.h.b16 %v9561
    %v9657 = vunpack.c.l.b16 %v9565
    %v9658 = vunpack.c.h.b16 %v9565
    %v9659 = vunpack.c.l.b16 %v9569
    %v9660 = vunpack.c.h.b16 %v9569
    %v9661 = vunpack.c.l.b16 %v9573
    %v9662 = vunpack.c.h.b16 %v9573
    %v9663 = vunpack.c.l.b16 %v9577
    %v9664 = vunpack.c.h.b16 %v9577
    %v9665 = vunpack.c.l.b16 %v9581
    %v9666 = vunpack.c.h.b16 %v9581
    %v9667 = vunpack.c.l.b16 %v9585
    %v9668 = vunpack.c.h.b16 %v9585
    %v9669 = vunpack.c.l.b16 %v9589
    %v9670 = vunpack.c.h.b16 %v9589
    %v9671 = vunpack.c.l.b16 %v9593
    %v9672 = vunpack.c.h.b16 %v9593
    %v9673 = vunpack.c.l.b16 %v9597
    %v9674 = vunpack.c.h.b16 %v9597
    %v9675 = vunpack.c.l.b16 %v9601
    %v9676 = vunpack.c.h.b16 %v9601
    %v9677 = vunpack.c.l.b16 %v9605
    %v9678 = vunpack.c.h.b16 %v9605
    %v9679 = vunpack.c.l.b16 %v9609
    %v9680 = vunpack.c.h.b16 %v9609
    %v9681 = vunpack.c.l.b16 %v9613
    %v9682 = vunpack.c.h.b16 %v9613
    %v9683 = vunpack.c.l.b16 %v9617
    %v9684 = vunpack.c.h.b16 %v9617
    %v9685 = vunpack.c.l.b16 %v9621
    %v9686 = vunpack.c.h.b16 %v9621
    %v9687 = vpack.c.b16 %v9657, %v9655
    %v9688 = vpack.c.b16 %v9658, %v9656
    %v9689 = vpack.c.b16 %v9661, %v9659
    %v9690 = vpack.c.b16 %v9662, %v9660
    %v9691 = vpack.c.b16 %v9665, %v9663
    %v9692 = vpack.c.b16 %v9666, %v9664
    %v9693 = vpack.c.b16 %v9669, %v9667
    %v9694 = vpack.c.b16 %v9670, %v9668
    %v9695 = vpack.c.b16 %v9673, %v9671
    %v9696 = vpack.c.b16 %v9674, %v9672
    %v9697 = vpack.c.b16 %v9677, %v9675
    %v9698 = vpack.c.b16 %v9678, %v9676
    %v9699 = vpack.c.b16 %v9681, %v9679
    %v9700 = vpack.c.b16 %v9682, %v9680
    %v9701 = vpack.c.b16 %v9685, %v9683
    %v9702 = vpack.c.b16 %v9686, %v9684
    %v9751 = vunpack.c.l.b16 %v9623
    %v9752 = vunpack.c.h.b16 %v9623
    %v9753 = vunpack.c.l.b16 %v9624
    %v9754 = vunpack.c.h.b16 %v9624
    %v9755 = vunpack.c.l.b16 %v9625
    %v9756 = vunpack.c.h.b16 %v9625
    %v9757 = vunpack.c.l.b16 %v9626
    %v9758 = vunpack.c.h.b16 %v9626
    %v9759 = vunpack.c.l.b16 %v9627
    %v9760 = vunpack.c.h.b16 %v9627
    %v9761 = vunpack.c.l.b16 %v9628
    %v9762 = vunpack.c.h.b16 %v9628
    %v9763 = vunpack.c.l.b16 %v9629
    %v9764 = vunpack.c.h.b16 %v9629
    %v9765 = vunpack.c.l.b16 %v9630
    %v9766 = vunpack.c.h.b16 %v9630
    %v9767 = vunpack.c.l.b16 %v9631
    %v9768 = vunpack.c.h.b16 %v9631
    %v9769 = vunpack.c.l.b16 %v9632
    %v9770 = vunpack.c.h.b16 %v9632
    %v9771 = vunpack.c.l.b16 %v9633
    %v9772 = vunpack.c.h.b16 %v9633
    %v9773 = vunpack.c.l.b16 %v9634
    %v9774 = vunpack.c.h.b16 %v9634
    %v9775 = vunpack.c.l.b16 %v9635
    %v9776 = vunpack.c.h.b16 %v9635
    %v9777 = vunpack.c.l.b16 %v9636
    %v9778 = vunpack.c.h.b16 %v9636
    %v9779 = vunpack.c.l.b16 %v9637
    %v9780 = vunpack.c.h.b16 %v9637
    %v9781 = vunpack.c.l.b16 %v9638
    %v9782 = vunpack.c.h.b16 %v9638
    %v9783 = vunpack.c.l.b16 %v9639
    %v9784 = vunpack.c.h.b16 %v9639
    %v9785 = vunpack.c.l.b16 %v9640
    %v9786 = vunpack.c.h.b16 %v9640
    %v9787 = vunpack.c.l.b16 %v9641
    %v9788 = vunpack.c.h.b16 %v9641
    %v9789 = vunpack.c.l.b16 %v9642
    %v9790 = vunpack.c.h.b16 %v9642
    %v9791 = vunpack.c.l.b16 %v9643
    %v9792 = vunpack.c.h.b16 %v9643
    %v9793 = vunpack.c.l.b16 %v9644
    %v9794 = vunpack.c.h.b16 %v9644
    %v9795 = vunpack.c.l.b16 %v9645
    %v9796 = vunpack.c.h.b16 %v9645
    %v9797 = vunpack.c.l.b16 %v9646
    %v9798 = vunpack.c.h.b16 %v9646
    %v9799 = vunpack.c.l.b16 %v9647
    %v9800 = vunpack.c.h.b16 %v9647
    %v9801 = vunpack.c.l.b16 %v9648
    %v9802 = vunpack.c.h.b16 %v9648
    %v9803 = vunpack.c.l.b16 %v9649
    %v9804 = vunpack.c.h.b16 %v9649
    %v9805 = vunpack.c.l.b16 %v9650
    %v9806 = vunpack.c.h.b16 %v9650
    %v9807 = vunpack.c.l.b16 %v9651
    %v9808 = vunpack.c.h.b16 %v9651
    %v9809 = vunpack.c.l.b16 %v9652
    %v9810 = vunpack.c.h.b16 %v9652
    %v9811 = vunpack.c.l.b16 %v9653
    %v9812 = vunpack.c.h.b16 %v9653
    %v9813 = vunpack.c.l.b16 %v9654
    %v9814 = vunpack.c.h.b16 %v9654
    %v9815 = vpack.c.b16 %v9753, %v9751
    %v9816 = vpack.c.b16 %v9754, %v9752
    %v9817 = vpack.c.b16 %v9757, %v9755
    %v9818 = vpack.c.b16 %v9758, %v9756
    %v9819 = vpack.c.b16 %v9761, %v9759
    %v9820 = vpack.c.b16 %v9762, %v9760
    %v9821 = vpack.c.b16 %v9765, %v9763
    %v9822 = vpack.c.b16 %v9766, %v9764
    %v9823 = vpack.c.b16 %v9769, %v9767
    %v9824 = vpack.c.b16 %v9770, %v9768
    %v9825 = vpack.c.b16 %v9773, %v9771
    %v9826 = vpack.c.b16 %v9774, %v9772
    %v9827 = vpack.c.b16 %v9777, %v9775
    %v9828 = vpack.c.b16 %v9778, %v9776
    %v9829 = vpack.c.b16 %v9781, %v9779
    %v9830 = vpack.c.b16 %v9782, %v9780
    %v9831 = vpack.c.b16 %v9785, %v9783
    %v9832 = vpack.c.b16 %v9786, %v9784
    %v9833 = vpack.c.b16 %v9789, %v9787
    %v9834 = vpack.c.b16 %v9790, %v9788
    %v9835 = vpack.c.b16 %v9793, %v9791
    %v9836 = vpack.c.b16 %v9794, %v9792
    %v9837 = vpack.c.b16 %v9797, %v9795
    %v9838 = vpack.c.b16 %v9798, %v9796
    %v9839 = vpack.c.b16 %v9801, %v9799
    %v9840 = vpack.c.b16 %v9802, %v9800
    %v9841 = vpack.c.b16 %v9805, %v9803
    %v9842 = vpack.c.b16 %v9806, %v9804
    %v9843 = vpack.c.b16 %v9809, %v9807
    %v9844 = vpack.c.b16 %v9810, %v9808
    %v9845 = vpack.c.b16 %v9813, %v9811
    %v9846 = vpack.c.b16 %v9814, %v9812
    %9879 = vmatprep.subr.bf16.mxu0 %v9830
    %9880 = vmatpush1.bf16.msra.mxu0 %v9829
    %9881 = vmatprep.subr.bf16.mxu0 %v9828
    %9882 = vmatpush1.bf16.msra.mxu0 %v9827
    %9883 = vmatprep.subr.bf16.mxu0 %v9826
    %9884 = vmatpush1.bf16.msra.mxu0 %v9825
    %9885 = vmatprep.subr.bf16.mxu0 %v9824
    %9886 = vmatpush1.bf16.msra.mxu0 %v9823
    %9887 = vmatprep.subr.bf16.mxu0 %v9822
    %9888 = vmatpush1.bf16.msra.mxu0 %v9821
    %9889 = vmatprep.subr.bf16.mxu0 %v9820
    %9890 = vmatpush1.bf16.msra.mxu0 %v9819
    %9891 = vmatprep.subr.bf16.mxu0 %v9818
    %9892 = vmatpush1.bf16.msra.mxu0 %v9817
    %9893 = vmatprep.subr.bf16.mxu0 %v9816
    %9894 = vmatpush1.bf16.msra.mxu0 %v9815
    %9895 = vmatprep.subr.bf16.mxu0 %v9846
    %9896 = vmatpush2.bf16.msra.mxu0 %v9845
    %9897 = vmatprep.subr.bf16.mxu0 %v9844
    %9898 = vmatpush2.bf16.msra.mxu0 %v9843
    %9899 = vmatprep.subr.bf16.mxu0 %v9842
    %9900 = vmatpush2.bf16.msra.mxu0 %v9841
    %9901 = vmatprep.subr.bf16.mxu0 %v9840
    %9902 = vmatpush2.bf16.msra.mxu0 %v9839
    %9903 = vmatprep.subr.bf16.mxu0 %v9838
    %9904 = vmatpush2.bf16.msra.mxu0 %v9837
    %9905 = vmatprep.subr.bf16.mxu0 %v9836
    %9906 = vmatpush2.bf16.msra.mxu0 %v9835
    %9907 = vmatprep.subr.bf16.mxu0 %v9834
    %9908 = vmatpush2.bf16.msra.mxu0 %v9833
    %9909 = vmatprep.subr.bf16.mxu0 %v9832
    %9910 = vmatpush2.bf16.msra.mxu0 %v9831
    %9911 = vmatprep.mubr.bf16.mxu0 %v9688
    %9912 = vmatmul.mubr.bf16.gmra.mxu0 %v9687
    %v9913 = vpop.f32.mrf.mxu0
    %v9914 = vadd.f32 0.0, %v9913
    %v9915 = vpop.f32.mrf.mxu0
    %v9916 = vadd.f32 0.0, %v9915
    %v9917 = vpop.f32.mrf.mxu0
    %v9918 = vadd.f32 0.0, %v9917
    %v9919 = vpop.f32.mrf.mxu0
    %v9920 = vadd.f32 0.0, %v9919
    %9921 = vmatprep.mubr.bf16.mxu0 %v9690
    %9922 = vmatmul.mubr.bf16.gmra.mxu0 %v9689
    %v9923 = vpop.f32.mrf.mxu0
    %v9924 = vadd.f32 0.0, %v9923
    %v9925 = vpop.f32.mrf.mxu0
    %v9926 = vadd.f32 0.0, %v9925
    %v9927 = vpop.f32.mrf.mxu0
    %v9928 = vadd.f32 0.0, %v9927
    %v9929 = vpop.f32.mrf.mxu0
    %v9930 = vadd.f32 0.0, %v9929
    %9931 = vmatprep.mubr.bf16.mxu0 %v9692
    %9932 = vmatmul.mubr.bf16.gmra.mxu0 %v9691
    %v9933 = vpop.f32.mrf.mxu0
    %v9934 = vadd.f32 0.0, %v9933
    %v9935 = vpop.f32.mrf.mxu0
    %v9936 = vadd.f32 0.0, %v9935
    %v9937 = vpop.f32.mrf.mxu0
    %v9938 = vadd.f32 0.0, %v9937
    %v9939 = vpop.f32.mrf.mxu0
    %v9940 = vadd.f32 0.0, %v9939
    %9941 = vmatprep.mubr.bf16.mxu0 %v9694
    %9942 = vmatmul.mubr.bf16.gmra.mxu0 %v9693
    %v9943 = vpop.f32.mrf.mxu0
    %v9944 = vadd.f32 0.0, %v9943
    %v9945 = vpop.f32.mrf.mxu0
    %v9946 = vadd.f32 0.0, %v9945
    %v9947 = vpop.f32.mrf.mxu0
    %v9948 = vadd.f32 0.0, %v9947
    %v9949 = vpop.f32.mrf.mxu0
    %v9950 = vadd.f32 0.0, %v9949
    %9951 = vmatprep.mubr.bf16.mxu0 %v9696
    %9952 = vmatmul.mubr.bf16.gmra.mxu0 %v9695
    %v9953 = vpop.f32.mrf.mxu0
    %v9954 = vadd.f32 0.0, %v9953
    %v9955 = vpop.f32.mrf.mxu0
    %v9956 = vadd.f32 0.0, %v9955
    %v9957 = vpop.f32.mrf.mxu0
    %v9958 = vadd.f32 0.0, %v9957
    %v9959 = vpop.f32.mrf.mxu0
    %v9960 = vadd.f32 0.0, %v9959
    %9961 = vmatprep.mubr.bf16.mxu0 %v9698
    %9962 = vmatmul.mubr.bf16.gmra.mxu0 %v9697
    %v9963 = vpop.f32.mrf.mxu0
    %v9964 = vadd.f32 0.0, %v9963
    %v9965 = vpop.f32.mrf.mxu0
    %v9966 = vadd.f32 0.0, %v9965
    %v9967 = vpop.f32.mrf.mxu0
    %v9968 = vadd.f32 0.0, %v9967
    %v9969 = vpop.f32.mrf.mxu0
    %v9970 = vadd.f32 0.0, %v9969
    %9971 = vmatprep.mubr.bf16.mxu0 %v9700
    %9972 = vmatmul.mubr.bf16.gmra.mxu0 %v9699
    %v9973 = vpop.f32.mrf.mxu0
    %v9974 = vadd.f32 0.0, %v9973
    %v9975 = vpop.f32.mrf.mxu0
    %v9976 = vadd.f32 0.0, %v9975
    %v9977 = vpop.f32.mrf.mxu0
    %v9978 = vadd.f32 0.0, %v9977
    %v9979 = vpop.f32.mrf.mxu0
    %v9980 = vadd.f32 0.0, %v9979
    %9981 = vmatprep.mubr.bf16.mxu0 %v9702
    %9982 = vmatmul.mubr.bf16.gmra.mxu0 %v9701
    %v9983 = vpop.f32.mrf.mxu0
    %v9984 = vadd.f32 0.0, %v9983
    %v9985 = vpop.f32.mrf.mxu0
    %v9986 = vadd.f32 0.0, %v9985
    %v9987 = vpop.f32.mrf.mxu0
    %v9988 = vadd.f32 0.0, %v9987
    %v9989 = vpop.f32.mrf.mxu0
    %v9990 = vadd.f32 0.0, %v9989
    %9991 = vdwg.mxu0
    %v9992 = vld [vmem:[#allocation3] sm:$0xff]
    %v9993 = vld [vmem:[#allocation3 + $0x8] sm:$0xff]
    %v9994 = vld [vmem:[#allocation3 + $0x10] sm:$0xff]
    %v9995 = vld [vmem:[#allocation3 + $0x18] sm:$0xff]
    %v9996 = vld [vmem:[#allocation3 + $0x20] sm:$0xff]
    %v9997 = vld [vmem:[#allocation3 + $0x28] sm:$0xff]
    %v9998 = vld [vmem:[#allocation3 + $0x30] sm:$0xff]
    %v9999 = vld [vmem:[#allocation3 + $0x38] sm:$0xff]
    %v10000 = vld [vmem:[#allocation3 + $0x40] sm:$0xff]
    %v10001 = vld [vmem:[#allocation3 + $0x48] sm:$0xff]
    %v10002 = vld [vmem:[#allocation3 + $0x50] sm:$0xff]
    %v10003 = vld [vmem:[#allocation3 + $0x58] sm:$0xff]
    %v10004 = vld [vmem:[#allocation3 + $0x60] sm:$0xff]
    %v10005 = vld [vmem:[#allocation3 + $0x68] sm:$0xff]
    %v10006 = vld [vmem:[#allocation3 + $0x70] sm:$0xff]
    %v10007 = vld [vmem:[#allocation3 + $0x78] sm:$0xff]
    %v10008 = vld [vmem:[#allocation3 + $0x80] sm:$0xff]
    %v10009 = vld [vmem:[#allocation3 + $0x88] sm:$0xff]
    %v10010 = vld [vmem:[#allocation3 + $0x90] sm:$0xff]
    %v10011 = vld [vmem:[#allocation3 + $0x98] sm:$0xff]
    %v10012 = vld [vmem:[#allocation3 + $0xa0] sm:$0xff]
    %v10013 = vld [vmem:[#allocation3 + $0xa8] sm:$0xff]
    %v10014 = vld [vmem:[#allocation3 + $0xb0] sm:$0xff]
    %v10015 = vld [vmem:[#allocation3 + $0xb8] sm:$0xff]
    %v10016 = vld [vmem:[#allocation3 + $0xc0] sm:$0xff]
    %v10017 = vld [vmem:[#allocation3 + $0xc8] sm:$0xff]
    %v10018 = vld [vmem:[#allocation3 + $0xd0] sm:$0xff]
    %v10019 = vld [vmem:[#allocation3 + $0xd8] sm:$0xff]
    %v10020 = vld [vmem:[#allocation3 + $0xe0] sm:$0xff]
    %v10021 = vld [vmem:[#allocation3 + $0xe8] sm:$0xff]
    %v10022 = vld [vmem:[#allocation3 + $0xf0] sm:$0xff]
    %v10023 = vld [vmem:[#allocation3 + $0xf8] sm:$0xff]
    %v10024 = vadd.f32 %v9992, %v9914
    %v10025 = vadd.f32 %v9993, %v9916
    %v10026 = vadd.f32 %v9994, %v9918
    %v10027 = vadd.f32 %v9995, %v9920
    %v10028 = vadd.f32 %v9996, %v9924
    %v10029 = vadd.f32 %v9997, %v9926
    %v10030 = vadd.f32 %v9998, %v9928
    %v10031 = vadd.f32 %v9999, %v9930
    %v10032 = vadd.f32 %v10000, %v9934
    %v10033 = vadd.f32 %v10001, %v9936
    %v10034 = vadd.f32 %v10002, %v9938
    %v10035 = vadd.f32 %v10003, %v9940
    %v10036 = vadd.f32 %v10004, %v9944
    %v10037 = vadd.f32 %v10005, %v9946
    %v10038 = vadd.f32 %v10006, %v9948
    %v10039 = vadd.f32 %v10007, %v9950
    %v10040 = vadd.f32 %v10008, %v9954
    %v10041 = vadd.f32 %v10009, %v9956
    %v10042 = vadd.f32 %v10010, %v9958
    %v10043 = vadd.f32 %v10011, %v9960
    %v10044 = vadd.f32 %v10012, %v9964
    %v10045 = vadd.f32 %v10013, %v9966
    %v10046 = vadd.f32 %v10014, %v9968
    %v10047 = vadd.f32 %v10015, %v9970
    %v10048 = vadd.f32 %v10016, %v9974
    %v10049 = vadd.f32 %v10017, %v9976
    %v10050 = vadd.f32 %v10018, %v9978
    %v10051 = vadd.f32 %v10019, %v9980
    %v10052 = vadd.f32 %v10020, %v9984
    %v10053 = vadd.f32 %v10021, %v9986
    %v10054 = vadd.f32 %v10022, %v9988
    %v10055 = vadd.f32 %v10023, %v9990
    %10056 = vst [vmem:[#allocation3] sm:$0xff] %v10024
    %10057 = vst [vmem:[#allocation3 + $0x8] sm:$0xff] %v10025
    %10058 = vst [vmem:[#allocation3 + $0x10] sm:$0xff] %v10026
    %10059 = vst [vmem:[#allocation3 + $0x18] sm:$0xff] %v10027
    %10060 = vst [vmem:[#allocation3 + $0x20] sm:$0xff] %v10028
    %10061 = vst [vmem:[#allocation3 + $0x28] sm:$0xff] %v10029
    %10062 = vst [vmem:[#allocation3 + $0x30] sm:$0xff] %v10030
    %10063 = vst [vmem:[#allocation3 + $0x38] sm:$0xff] %v10031
    %10064 = vst [vmem:[#allocation3 + $0x40] sm:$0xff] %v10032
    %10065 = vst [vmem:[#allocation3 + $0x48] sm:$0xff] %v10033
    %10066 = vst [vmem:[#allocation3 + $0x50] sm:$0xff] %v10034
    %10067 = vst [vmem:[#allocation3 + $0x58] sm:$0xff] %v10035
    %10068 = vst [vmem:[#allocation3 + $0x60] sm:$0xff] %v10036
    %10069 = vst [vmem:[#allocation3 + $0x68] sm:$0xff] %v10037
    %10070 = vst [vmem:[#allocation3 + $0x70] sm:$0xff] %v10038
    %10071 = vst [vmem:[#allocation3 + $0x78] sm:$0xff] %v10039
    %10072 = vst [vmem:[#allocation3 + $0x80] sm:$0xff] %v10040
    %10073 = vst [vmem:[#allocation3 + $0x88] sm:$0xff] %v10041
    %10074 = vst [vmem:[#allocation3 + $0x90] sm:$0xff] %v10042
    %10075 = vst [vmem:[#allocation3 + $0x98] sm:$0xff] %v10043
    %10076 = vst [vmem:[#allocation3 + $0xa0] sm:$0xff] %v10044
    %10077 = vst [vmem:[#allocation3 + $0xa8] sm:$0xff] %v10045
    %10078 = vst [vmem:[#allocation3 + $0xb0] sm:$0xff] %v10046
    %10079 = vst [vmem:[#allocation3 + $0xb8] sm:$0xff] %v10047
    %10080 = vst [vmem:[#allocation3 + $0xc0] sm:$0xff] %v10048
    %10081 = vst [vmem:[#allocation3 + $0xc8] sm:$0xff] %v10049
    %10082 = vst [vmem:[#allocation3 + $0xd0] sm:$0xff] %v10050
    %10083 = vst [vmem:[#allocation3 + $0xd8] sm:$0xff] %v10051
    %10084 = vst [vmem:[#allocation3 + $0xe0] sm:$0xff] %v10052
    %10085 = vst [vmem:[#allocation3 + $0xe8] sm:$0xff] %v10053
    %10086 = vst [vmem:[#allocation3 + $0xf0] sm:$0xff] %v10054
    %10087 = vst [vmem:[#allocation3 + $0xf8] sm:$0xff] %v10055
    %v10088 = vld [vmem:[%s4234] sm:$0xff]
    %v10089 = vld [vmem:[%s4234 + $0x10] sm:$0xff]
    %v10090 = vld [vmem:[%s4234 + $0x20] sm:$0xff]
    %v10091 = vld [vmem:[%s4234 + $0x30] sm:$0xff]
    %v10092 = vld [vmem:[%s4234 + $0x40] sm:$0xff]
    %v10093 = vld [vmem:[%s4234 + $0x50] sm:$0xff]
    %v10094 = vld [vmem:[%s4234 + $0x60] sm:$0xff]
    %v10095 = vld [vmem:[%s4234 + $0x70] sm:$0xff]
    %v10096 = vld [vmem:[%s4234 + $0xa0] sm:$0xff]
    %v10097 = vld [vmem:[%s4234 + $0xb0] sm:$0xff]
    %v10098 = vld [vmem:[%s4234 + $0xc0] sm:$0xff]
    %v10099 = vld [vmem:[%s4234 + $0xd0] sm:$0xff]
    %v10100 = vld [vmem:[%s4234 + $0xe0] sm:$0xff]
    %v10101 = vld [vmem:[%s4234 + $0xf0] sm:$0xff]
    %v10102 = vld [vmem:[%s4234 + $0x100] sm:$0xff]
    %v10103 = vld [vmem:[%s4234 + $0x110] sm:$0xff]
    %s10104 = scalar_lea.vmem [#allocation10], 1536
    %v10105 = vld [vmem:[%s10104] sm:$0xff]
    %v10106 = vld [vmem:[%s10104 + $0x8] sm:$0xff]
    %v10107 = vld [vmem:[%s10104 + $0x10] sm:$0xff]
    %v10108 = vld [vmem:[%s10104 + $0x18] sm:$0xff]
    %v10109 = vld [vmem:[%s10104 + $0x20] sm:$0xff]
    %v10110 = vld [vmem:[%s10104 + $0x28] sm:$0xff]
    %v10111 = vld [vmem:[%s10104 + $0x30] sm:$0xff]
    %v10112 = vld [vmem:[%s10104 + $0x38] sm:$0xff]
    %v10113 = vld [vmem:[%s10104 + $0x40] sm:$0xff]
    %v10114 = vld [vmem:[%s10104 + $0x48] sm:$0xff]
    %v10115 = vld [vmem:[%s10104 + $0x50] sm:$0xff]
    %v10116 = vld [vmem:[%s10104 + $0x58] sm:$0xff]
    %v10117 = vld [vmem:[%s10104 + $0x60] sm:$0xff]
    %v10118 = vld [vmem:[%s10104 + $0x68] sm:$0xff]
    %v10119 = vld [vmem:[%s10104 + $0x70] sm:$0xff]
    %v10120 = vld [vmem:[%s10104 + $0x78] sm:$0xff]
    %v10121 = vld [vmem:[%s10104 + $0x80] sm:$0xff]
    %v10122 = vld [vmem:[%s10104 + $0x88] sm:$0xff]
    %v10123 = vld [vmem:[%s10104 + $0x90] sm:$0xff]
    %v10124 = vld [vmem:[%s10104 + $0x98] sm:$0xff]
    %v10125 = vld [vmem:[%s10104 + $0xa0] sm:$0xff]
    %v10126 = vld [vmem:[%s10104 + $0xa8] sm:$0xff]
    %v10127 = vld [vmem:[%s10104 + $0xb0] sm:$0xff]
    %v10128 = vld [vmem:[%s10104 + $0xb8] sm:$0xff]
    %v10129 = vld [vmem:[%s10104 + $0xc0] sm:$0xff]
    %v10130 = vld [vmem:[%s10104 + $0xc8] sm:$0xff]
    %v10131 = vld [vmem:[%s10104 + $0xd0] sm:$0xff]
    %v10132 = vld [vmem:[%s10104 + $0xd8] sm:$0xff]
    %v10133 = vld [vmem:[%s10104 + $0xe0] sm:$0xff]
    %v10134 = vld [vmem:[%s10104 + $0xe8] sm:$0xff]
    %v10135 = vld [vmem:[%s10104 + $0xf0] sm:$0xff]
    %v10136 = vld [vmem:[%s10104 + $0xf8] sm:$0xff]
    %v10153 = vunpack.c.l.b16 %v10088
    %v10154 = vunpack.c.h.b16 %v10088
    %v10155 = vunpack.c.l.b16 %v10089
    %v10156 = vunpack.c.h.b16 %v10089
    %v10157 = vunpack.c.l.b16 %v10090
    %v10158 = vunpack.c.h.b16 %v10090
    %v10159 = vunpack.c.l.b16 %v10091
    %v10160 = vunpack.c.h.b16 %v10091
    %v10161 = vunpack.c.l.b16 %v10092
    %v10162 = vunpack.c.h.b16 %v10092
    %v10163 = vunpack.c.l.b16 %v10093
    %v10164 = vunpack.c.h.b16 %v10093
    %v10165 = vunpack.c.l.b16 %v10094
    %v10166 = vunpack.c.h.b16 %v10094
    %v10167 = vunpack.c.l.b16 %v10095
    %v10168 = vunpack.c.h.b16 %v10095
    %v10169 = vunpack.c.l.b16 %v10096
    %v10170 = vunpack.c.h.b16 %v10096
    %v10171 = vunpack.c.l.b16 %v10097
    %v10172 = vunpack.c.h.b16 %v10097
    %v10173 = vunpack.c.l.b16 %v10098
    %v10174 = vunpack.c.h.b16 %v10098
    %v10175 = vunpack.c.l.b16 %v10099
    %v10176 = vunpack.c.h.b16 %v10099
    %v10177 = vunpack.c.l.b16 %v10100
    %v10178 = vunpack.c.h.b16 %v10100
    %v10179 = vunpack.c.l.b16 %v10101
    %v10180 = vunpack.c.h.b16 %v10101
    %v10181 = vunpack.c.l.b16 %v10102
    %v10182 = vunpack.c.h.b16 %v10102
    %v10183 = vunpack.c.l.b16 %v10103
    %v10184 = vunpack.c.h.b16 %v10103
    %v10185 = vpack.c.b16 %v10155, %v10153
    %v10186 = vpack.c.b16 %v10156, %v10154
    %v10187 = vpack.c.b16 %v10159, %v10157
    %v10188 = vpack.c.b16 %v10160, %v10158
    %v10189 = vpack.c.b16 %v10163, %v10161
    %v10190 = vpack.c.b16 %v10164, %v10162
    %v10191 = vpack.c.b16 %v10167, %v10165
    %v10192 = vpack.c.b16 %v10168, %v10166
    %v10193 = vpack.c.b16 %v10171, %v10169
    %v10194 = vpack.c.b16 %v10172, %v10170
    %v10195 = vpack.c.b16 %v10175, %v10173
    %v10196 = vpack.c.b16 %v10176, %v10174
    %v10197 = vpack.c.b16 %v10179, %v10177
    %v10198 = vpack.c.b16 %v10180, %v10178
    %v10199 = vpack.c.b16 %v10183, %v10181
    %v10200 = vpack.c.b16 %v10184, %v10182
    %v10249 = vunpack.c.l.b16 %v10105
    %v10250 = vunpack.c.h.b16 %v10105
    %v10251 = vunpack.c.l.b16 %v10106
    %v10252 = vunpack.c.h.b16 %v10106
    %v10253 = vunpack.c.l.b16 %v10107
    %v10254 = vunpack.c.h.b16 %v10107
    %v10255 = vunpack.c.l.b16 %v10108
    %v10256 = vunpack.c.h.b16 %v10108
    %v10257 = vunpack.c.l.b16 %v10109
    %v10258 = vunpack.c.h.b16 %v10109
    %v10259 = vunpack.c.l.b16 %v10110
    %v10260 = vunpack.c.h.b16 %v10110
    %v10261 = vunpack.c.l.b16 %v10111
    %v10262 = vunpack.c.h.b16 %v10111
    %v10263 = vunpack.c.l.b16 %v10112
    %v10264 = vunpack.c.h.b16 %v10112
    %v10265 = vunpack.c.l.b16 %v10113
    %v10266 = vunpack.c.h.b16 %v10113
    %v10267 = vunpack.c.l.b16 %v10114
    %v10268 = vunpack.c.h.b16 %v10114
    %v10269 = vunpack.c.l.b16 %v10115
    %v10270 = vunpack.c.h.b16 %v10115
    %v10271 = vunpack.c.l.b16 %v10116
    %v10272 = vunpack.c.h.b16 %v10116
    %v10273 = vunpack.c.l.b16 %v10117
    %v10274 = vunpack.c.h.b16 %v10117
    %v10275 = vunpack.c.l.b16 %v10118
    %v10276 = vunpack.c.h.b16 %v10118
    %v10277 = vunpack.c.l.b16 %v10119
    %v10278 = vunpack.c.h.b16 %v10119
    %v10279 = vunpack.c.l.b16 %v10120
    %v10280 = vunpack.c.h.b16 %v10120
    %v10281 = vunpack.c.l.b16 %v10121
    %v10282 = vunpack.c.h.b16 %v10121
    %v10283 = vunpack.c.l.b16 %v10122
    %v10284 = vunpack.c.h.b16 %v10122
    %v10285 = vunpack.c.l.b16 %v10123
    %v10286 = vunpack.c.h.b16 %v10123
    %v10287 = vunpack.c.l.b16 %v10124
    %v10288 = vunpack.c.h.b16 %v10124
    %v10289 = vunpack.c.l.b16 %v10125
    %v10290 = vunpack.c.h.b16 %v10125
    %v10291 = vunpack.c.l.b16 %v10126
    %v10292 = vunpack.c.h.b16 %v10126
    %v10293 = vunpack.c.l.b16 %v10127
    %v10294 = vunpack.c.h.b16 %v10127
    %v10295 = vunpack.c.l.b16 %v10128
    %v10296 = vunpack.c.h.b16 %v10128
    %v10297 = vunpack.c.l.b16 %v10129
    %v10298 = vunpack.c.h.b16 %v10129
    %v10299 = vunpack.c.l.b16 %v10130
    %v10300 = vunpack.c.h.b16 %v10130
    %v10301 = vunpack.c.l.b16 %v10131
    %v10302 = vunpack.c.h.b16 %v10131
    %v10303 = vunpack.c.l.b16 %v10132
    %v10304 = vunpack.c.h.b16 %v10132
    %v10305 = vunpack.c.l.b16 %v10133
    %v10306 = vunpack.c.h.b16 %v10133
    %v10307 = vunpack.c.l.b16 %v10134
    %v10308 = vunpack.c.h.b16 %v10134
    %v10309 = vunpack.c.l.b16 %v10135
    %v10310 = vunpack.c.h.b16 %v10135
    %v10311 = vunpack.c.l.b16 %v10136
    %v10312 = vunpack.c.h.b16 %v10136
    %v10313 = vpack.c.b16 %v10251, %v10249
    %v10314 = vpack.c.b16 %v10252, %v10250
    %v10315 = vpack.c.b16 %v10255, %v10253
    %v10316 = vpack.c.b16 %v10256, %v10254
    %v10317 = vpack.c.b16 %v10259, %v10257
    %v10318 = vpack.c.b16 %v10260, %v10258
    %v10319 = vpack.c.b16 %v10263, %v10261
    %v10320 = vpack.c.b16 %v10264, %v10262
    %v10321 = vpack.c.b16 %v10267, %v10265
    %v10322 = vpack.c.b16 %v10268, %v10266
    %v10323 = vpack.c.b16 %v10271, %v10269
    %v10324 = vpack.c.b16 %v10272, %v10270
    %v10325 = vpack.c.b16 %v10275, %v10273
    %v10326 = vpack.c.b16 %v10276, %v10274
    %v10327 = vpack.c.b16 %v10279, %v10277
    %v10328 = vpack.c.b16 %v10280, %v10278
    %v10329 = vpack.c.b16 %v10283, %v10281
    %v10330 = vpack.c.b16 %v10284, %v10282
    %v10331 = vpack.c.b16 %v10287, %v10285
    %v10332 = vpack.c.b16 %v10288, %v10286
    %v10333 = vpack.c.b16 %v10291, %v10289
    %v10334 = vpack.c.b16 %v10292, %v10290
    %v10335 = vpack.c.b16 %v10295, %v10293
    %v10336 = vpack.c.b16 %v10296, %v10294
    %v10337 = vpack.c.b16 %v10299, %v10297
    %v10338 = vpack.c.b16 %v10300, %v10298
    %v10339 = vpack.c.b16 %v10303, %v10301
    %v10340 = vpack.c.b16 %v10304, %v10302
    %v10341 = vpack.c.b16 %v10307, %v10305
    %v10342 = vpack.c.b16 %v10308, %v10306
    %v10343 = vpack.c.b16 %v10311, %v10309
    %v10344 = vpack.c.b16 %v10312, %v10310
    %10377 = vmatprep.subr.bf16.mxu0 %v10328
    %10378 = vmatpush1.bf16.msra.mxu0 %v10327
    %10379 = vmatprep.subr.bf16.mxu0 %v10326
    %10380 = vmatpush1.bf16.msra.mxu0 %v10325
    %10381 = vmatprep.subr.bf16.mxu0 %v10324
    %10382 = vmatpush1.bf16.msra.mxu0 %v10323
    %10383 = vmatprep.subr.bf16.mxu0 %v10322
    %10384 = vmatpush1.bf16.msra.mxu0 %v10321
    %10385 = vmatprep.subr.bf16.mxu0 %v10320
    %10386 = vmatpush1.bf16.msra.mxu0 %v10319
    %10387 = vmatprep.subr.bf16.mxu0 %v10318
    %10388 = vmatpush1.bf16.msra.mxu0 %v10317
    %10389 = vmatprep.subr.bf16.mxu0 %v10316
    %10390 = vmatpush1.bf16.msra.mxu0 %v10315
    %10391 = vmatprep.subr.bf16.mxu0 %v10314
    %10392 = vmatpush1.bf16.msra.mxu0 %v10313
    %10393 = vmatprep.subr.bf16.mxu0 %v10344
    %10394 = vmatpush2.bf16.msra.mxu0 %v10343
    %10395 = vmatprep.subr.bf16.mxu0 %v10342
    %10396 = vmatpush2.bf16.msra.mxu0 %v10341
    %10397 = vmatprep.subr.bf16.mxu0 %v10340
    %10398 = vmatpush2.bf16.msra.mxu0 %v10339
    %10399 = vmatprep.subr.bf16.mxu0 %v10338
    %10400 = vmatpush2.bf16.msra.mxu0 %v10337
    %10401 = vmatprep.subr.bf16.mxu0 %v10336
    %10402 = vmatpush2.bf16.msra.mxu0 %v10335
    %10403 = vmatprep.subr.bf16.mxu0 %v10334
    %10404 = vmatpush2.bf16.msra.mxu0 %v10333
    %10405 = vmatprep.subr.bf16.mxu0 %v10332
    %10406 = vmatpush2.bf16.msra.mxu0 %v10331
    %10407 = vmatprep.subr.bf16.mxu0 %v10330
    %10408 = vmatpush2.bf16.msra.mxu0 %v10329
    %10409 = vmatprep.mubr.bf16.mxu0 %v10186
    %10410 = vmatmul.mubr.bf16.gmra.mxu0 %v10185
    %v10411 = vpop.f32.mrf.mxu0
    %v10412 = vadd.f32 0.0, %v10411
    %v10413 = vpop.f32.mrf.mxu0
    %v10414 = vadd.f32 0.0, %v10413
    %v10415 = vpop.f32.mrf.mxu0
    %v10416 = vadd.f32 0.0, %v10415
    %v10417 = vpop.f32.mrf.mxu0
    %v10418 = vadd.f32 0.0, %v10417
    %10419 = vmatprep.mubr.bf16.mxu0 %v10188
    %10420 = vmatmul.mubr.bf16.gmra.mxu0 %v10187
    %v10421 = vpop.f32.mrf.mxu0
    %v10422 = vadd.f32 0.0, %v10421
    %v10423 = vpop.f32.mrf.mxu0
    %v10424 = vadd.f32 0.0, %v10423
    %v10425 = vpop.f32.mrf.mxu0
    %v10426 = vadd.f32 0.0, %v10425
    %v10427 = vpop.f32.mrf.mxu0
    %v10428 = vadd.f32 0.0, %v10427
    %10429 = vmatprep.mubr.bf16.mxu0 %v10190
    %10430 = vmatmul.mubr.bf16.gmra.mxu0 %v10189
    %v10431 = vpop.f32.mrf.mxu0
    %v10432 = vadd.f32 0.0, %v10431
    %v10433 = vpop.f32.mrf.mxu0
    %v10434 = vadd.f32 0.0, %v10433
    %v10435 = vpop.f32.mrf.mxu0
    %v10436 = vadd.f32 0.0, %v10435
    %v10437 = vpop.f32.mrf.mxu0
    %v10438 = vadd.f32 0.0, %v10437
    %10439 = vmatprep.mubr.bf16.mxu0 %v10192
    %10440 = vmatmul.mubr.bf16.gmra.mxu0 %v10191
    %v10441 = vpop.f32.mrf.mxu0
    %v10442 = vadd.f32 0.0, %v10441
    %v10443 = vpop.f32.mrf.mxu0
    %v10444 = vadd.f32 0.0, %v10443
    %v10445 = vpop.f32.mrf.mxu0
    %v10446 = vadd.f32 0.0, %v10445
    %v10447 = vpop.f32.mrf.mxu0
    %v10448 = vadd.f32 0.0, %v10447
    %10449 = vmatprep.mubr.bf16.mxu0 %v10194
    %10450 = vmatmul.mubr.bf16.gmra.mxu0 %v10193
    %v10451 = vpop.f32.mrf.mxu0
    %v10452 = vadd.f32 0.0, %v10451
    %v10453 = vpop.f32.mrf.mxu0
    %v10454 = vadd.f32 0.0, %v10453
    %v10455 = vpop.f32.mrf.mxu0
    %v10456 = vadd.f32 0.0, %v10455
    %v10457 = vpop.f32.mrf.mxu0
    %v10458 = vadd.f32 0.0, %v10457
    %10459 = vmatprep.mubr.bf16.mxu0 %v10196
    %10460 = vmatmul.mubr.bf16.gmra.mxu0 %v10195
    %v10461 = vpop.f32.mrf.mxu0
    %v10462 = vadd.f32 0.0, %v10461
    %v10463 = vpop.f32.mrf.mxu0
    %v10464 = vadd.f32 0.0, %v10463
    %v10465 = vpop.f32.mrf.mxu0
    %v10466 = vadd.f32 0.0, %v10465
    %v10467 = vpop.f32.mrf.mxu0
    %v10468 = vadd.f32 0.0, %v10467
    %10469 = vmatprep.mubr.bf16.mxu0 %v10198
    %10470 = vmatmul.mubr.bf16.gmra.mxu0 %v10197
    %v10471 = vpop.f32.mrf.mxu0
    %v10472 = vadd.f32 0.0, %v10471
    %v10473 = vpop.f32.mrf.mxu0
    %v10474 = vadd.f32 0.0, %v10473
    %v10475 = vpop.f32.mrf.mxu0
    %v10476 = vadd.f32 0.0, %v10475
    %v10477 = vpop.f32.mrf.mxu0
    %v10478 = vadd.f32 0.0, %v10477
    %10479 = vmatprep.mubr.bf16.mxu0 %v10200
    %10480 = vmatmul.mubr.bf16.gmra.mxu0 %v10199
    %v10481 = vpop.f32.mrf.mxu0
    %v10482 = vadd.f32 0.0, %v10481
    %v10483 = vpop.f32.mrf.mxu0
    %v10484 = vadd.f32 0.0, %v10483
    %v10485 = vpop.f32.mrf.mxu0
    %v10486 = vadd.f32 0.0, %v10485
    %v10487 = vpop.f32.mrf.mxu0
    %v10488 = vadd.f32 0.0, %v10487
    %10489 = vdwg.mxu0
    %v10490 = vld [vmem:[#allocation3] sm:$0xff]
    %v10491 = vld [vmem:[#allocation3 + $0x8] sm:$0xff]
    %v10492 = vld [vmem:[#allocation3 + $0x10] sm:$0xff]
    %v10493 = vld [vmem:[#allocation3 + $0x18] sm:$0xff]
    %v10494 = vld [vmem:[#allocation3 + $0x20] sm:$0xff]
    %v10495 = vld [vmem:[#allocation3 + $0x28] sm:$0xff]
    %v10496 = vld [vmem:[#allocation3 + $0x30] sm:$0xff]
    %v10497 = vld [vmem:[#allocation3 + $0x38] sm:$0xff]
    %v10498 = vld [vmem:[#allocation3 + $0x40] sm:$0xff]
    %v10499 = vld [vmem:[#allocation3 + $0x48] sm:$0xff]
    %v10500 = vld [vmem:[#allocation3 + $0x50] sm:$0xff]
    %v10501 = vld [vmem:[#allocation3 + $0x58] sm:$0xff]
    %v10502 = vld [vmem:[#allocation3 + $0x60] sm:$0xff]
    %v10503 = vld [vmem:[#allocation3 + $0x68] sm:$0xff]
    %v10504 = vld [vmem:[#allocation3 + $0x70] sm:$0xff]
    %v10505 = vld [vmem:[#allocation3 + $0x78] sm:$0xff]
    %v10506 = vld [vmem:[#allocation3 + $0x80] sm:$0xff]
    %v10507 = vld [vmem:[#allocation3 + $0x88] sm:$0xff]
    %v10508 = vld [vmem:[#allocation3 + $0x90] sm:$0xff]
    %v10509 = vld [vmem:[#allocation3 + $0x98] sm:$0xff]
    %v10510 = vld [vmem:[#allocation3 + $0xa0] sm:$0xff]
    %v10511 = vld [vmem:[#allocation3 + $0xa8] sm:$0xff]
    %v10512 = vld [vmem:[#allocation3 + $0xb0] sm:$0xff]
    %v10513 = vld [vmem:[#allocation3 + $0xb8] sm:$0xff]
    %v10514 = vld [vmem:[#allocation3 + $0xc0] sm:$0xff]
    %v10515 = vld [vmem:[#allocation3 + $0xc8] sm:$0xff]
    %v10516 = vld [vmem:[#allocation3 + $0xd0] sm:$0xff]
    %v10517 = vld [vmem:[#allocation3 + $0xd8] sm:$0xff]
    %v10518 = vld [vmem:[#allocation3 + $0xe0] sm:$0xff]
    %v10519 = vld [vmem:[#allocation3 + $0xe8] sm:$0xff]
    %v10520 = vld [vmem:[#allocation3 + $0xf0] sm:$0xff]
    %v10521 = vld [vmem:[#allocation3 + $0xf8] sm:$0xff]
    %v10522 = vadd.f32 %v10490, %v10412
    %v10523 = vadd.f32 %v10491, %v10414
    %v10524 = vadd.f32 %v10492, %v10416
    %v10525 = vadd.f32 %v10493, %v10418
    %v10526 = vadd.f32 %v10494, %v10422
    %v10527 = vadd.f32 %v10495, %v10424
    %v10528 = vadd.f32 %v10496, %v10426
    %v10529 = vadd.f32 %v10497, %v10428
    %v10530 = vadd.f32 %v10498, %v10432
    %v10531 = vadd.f32 %v10499, %v10434
    %v10532 = vadd.f32 %v10500, %v10436
    %v10533 = vadd.f32 %v10501, %v10438
    %v10534 = vadd.f32 %v10502, %v10442
    %v10535 = vadd.f32 %v10503, %v10444
    %v10536 = vadd.f32 %v10504, %v10446
    %v10537 = vadd.f32 %v10505, %v10448
    %v10538 = vadd.f32 %v10506, %v10452
    %v10539 = vadd.f32 %v10507, %v10454
    %v10540 = vadd.f32 %v10508, %v10456
    %v10541 = vadd.f32 %v10509, %v10458
    %v10542 = vadd.f32 %v10510, %v10462
    %v10543 = vadd.f32 %v10511, %v10464
    %v10544 = vadd.f32 %v10512, %v10466
    %v10545 = vadd.f32 %v10513, %v10468
    %v10546 = vadd.f32 %v10514, %v10472
    %v10547 = vadd.f32 %v10515, %v10474
    %v10548 = vadd.f32 %v10516, %v10476
    %v10549 = vadd.f32 %v10517, %v10478
    %v10550 = vadd.f32 %v10518, %v10482
    %v10551 = vadd.f32 %v10519, %v10484
    %v10552 = vadd.f32 %v10520, %v10486
    %v10553 = vadd.f32 %v10521, %v10488
    %10554 = vst [vmem:[#allocation3] sm:$0xff] %v10522
    %10555 = vst [vmem:[#allocation3 + $0x8] sm:$0xff] %v10523
    %10556 = vst [vmem:[#allocation3 + $0x10] sm:$0xff] %v10524
    %10557 = vst [vmem:[#allocation3 + $0x18] sm:$0xff] %v10525
    %10558 = vst [vmem:[#allocation3 + $0x20] sm:$0xff] %v10526
    %10559 = vst [vmem:[#allocation3 + $0x28] sm:$0xff] %v10527
    %10560 = vst [vmem:[#allocation3 + $0x30] sm:$0xff] %v10528
    %10561 = vst [vmem:[#allocation3 + $0x38] sm:$0xff] %v10529
    %10562 = vst [vmem:[#allocation3 + $0x40] sm:$0xff] %v10530
    %10563 = vst [vmem:[#allocation3 + $0x48] sm:$0xff] %v10531
    %10564 = vst [vmem:[#allocation3 + $0x50] sm:$0xff] %v10532
    %10565 = vst [vmem:[#allocation3 + $0x58] sm:$0xff] %v10533
    %10566 = vst [vmem:[#allocation3 + $0x60] sm:$0xff] %v10534
    %10567 = vst [vmem:[#allocation3 + $0x68] sm:$0xff] %v10535
    %10568 = vst [vmem:[#allocation3 + $0x70] sm:$0xff] %v10536
    %10569 = vst [vmem:[#allocation3 + $0x78] sm:$0xff] %v10537
    %10570 = vst [vmem:[#allocation3 + $0x80] sm:$0xff] %v10538
    %10571 = vst [vmem:[#allocation3 + $0x88] sm:$0xff] %v10539
    %10572 = vst [vmem:[#allocation3 + $0x90] sm:$0xff] %v10540
    %10573 = vst [vmem:[#allocation3 + $0x98] sm:$0xff] %v10541
    %10574 = vst [vmem:[#allocation3 + $0xa0] sm:$0xff] %v10542
    %10575 = vst [vmem:[#allocation3 + $0xa8] sm:$0xff] %v10543
    %10576 = vst [vmem:[#allocation3 + $0xb0] sm:$0xff] %v10544
    %10577 = vst [vmem:[#allocation3 + $0xb8] sm:$0xff] %v10545
    %10578 = vst [vmem:[#allocation3 + $0xc0] sm:$0xff] %v10546
    %10579 = vst [vmem:[#allocation3 + $0xc8] sm:$0xff] %v10547
    %10580 = vst [vmem:[#allocation3 + $0xd0] sm:$0xff] %v10548
    %10581 = vst [vmem:[#allocation3 + $0xd8] sm:$0xff] %v10549
    %10582 = vst [vmem:[#allocation3 + $0xe0] sm:$0xff] %v10550
    %10583 = vst [vmem:[#allocation3 + $0xe8] sm:$0xff] %v10551
    %10584 = vst [vmem:[#allocation3 + $0xf0] sm:$0xff] %v10552
    %10585 = vst [vmem:[#allocation3 + $0xf8] sm:$0xff] %v10553
    %v10586 = vld [vmem:[%s4234] sm:$0xff]
    %v10587 = vld [vmem:[%s4234 + $0x8] sm:$0x11]
    %v10588 = vld [vmem:[%s4234 + $0x10] sm:$0xff]
    %v10589 = vld [vmem:[%s4234 + $0x18] sm:$0x11]
    %v10590 = vld [vmem:[%s4234 + $0x20] sm:$0xff]
    %v10591 = vld [vmem:[%s4234 + $0x28] sm:$0x11]
    %v10592 = vld [vmem:[%s4234 + $0x30] sm:$0xff]
    %v10593 = vld [vmem:[%s4234 + $0x38] sm:$0x11]
    %v10594 = vld [vmem:[%s4234 + $0x40] sm:$0xff]
    %v10595 = vld [vmem:[%s4234 + $0x48] sm:$0x11]
    %v10596 = vld [vmem:[%s4234 + $0x50] sm:$0xff]
    %v10597 = vld [vmem:[%s4234 + $0x58] sm:$0x11]
    %v10598 = vld [vmem:[%s4234 + $0x60] sm:$0xff]
    %v10599 = vld [vmem:[%s4234 + $0x68] sm:$0x11]
    %v10600 = vld [vmem:[%s4234 + $0x70] sm:$0xff]
    %v10601 = vld [vmem:[%s4234 + $0x78] sm:$0x11]
    %v10602 = vld [vmem:[%s4234 + $0xa0] sm:$0xff]
    %v10603 = vld [vmem:[%s4234 + $0xa8] sm:$0x11]
    %v10604 = vld [vmem:[%s4234 + $0xb0] sm:$0xff]
    %v10605 = vld [vmem:[%s4234 + $0xb8] sm:$0x11]
    %v10606 = vld [vmem:[%s4234 + $0xc0] sm:$0xff]
    %v10607 = vld [vmem:[%s4234 + $0xc8] sm:$0x11]
    %v10608 = vld [vmem:[%s4234 + $0xd0] sm:$0xff]
    %v10609 = vld [vmem:[%s4234 + $0xd8] sm:$0x11]
    %v10610 = vld [vmem:[%s4234 + $0xe0] sm:$0xff]
    %v10611 = vld [vmem:[%s4234 + $0xe8] sm:$0x11]
    %v10612 = vld [vmem:[%s4234 + $0xf0] sm:$0xff]
    %v10613 = vld [vmem:[%s4234 + $0xf8] sm:$0x11]
    %v10614 = vld [vmem:[%s4234 + $0x100] sm:$0xff]
    %v10615 = vld [vmem:[%s4234 + $0x108] sm:$0x11]
    %v10616 = vld [vmem:[%s4234 + $0x110] sm:$0xff]
    %v10617 = vld [vmem:[%s4234 + $0x118] sm:$0x11]
    %v10619 = vshrl.u32 %v10586, 16
    %v10621 = vrot.slane %v10619, 4
    %v10622 = vshll.u32 %v10586, 16
    %v10624 = vrot.slane %v10622, 5
    %v10625 = vor.u32 %v10621, %v10624
    %v10626 = vrot.slane %v10625, 4
    %v10628 = vshll.u32 %v10587, 16
    %v10630 = vrot.slane %v10628, 5
    %v10631 = vsel %vm1132, %v10626, %v10630
    %v10633 = vshrl.u32 %v10588, 16
    %v10635 = vrot.slane %v10633, 4
    %v10636 = vshll.u32 %v10588, 16
    %v10638 = vrot.slane %v10636, 5
    %v10639 = vor.u32 %v10635, %v10638
    %v10640 = vrot.slane %v10639, 4
    %v10642 = vshll.u32 %v10589, 16
    %v10644 = vrot.slane %v10642, 5
    %v10645 = vsel %vm1132, %v10640, %v10644
    %v10647 = vshrl.u32 %v10590, 16
    %v10649 = vrot.slane %v10647, 4
    %v10650 = vshll.u32 %v10590, 16
    %v10652 = vrot.slane %v10650, 5
    %v10653 = vor.u32 %v10649, %v10652
    %v10654 = vrot.slane %v10653, 4
    %v10656 = vshll.u32 %v10591, 16
    %v10658 = vrot.slane %v10656, 5
    %v10659 = vsel %vm1132, %v10654, %v10658
    %v10661 = vshrl.u32 %v10592, 16
    %v10663 = vrot.slane %v10661, 4
    %v10664 = vshll.u32 %v10592, 16
    %v10666 = vrot.slane %v10664, 5
    %v10667 = vor.u32 %v10663, %v10666
    %v10668 = vrot.slane %v10667, 4
    %v10670 = vshll.u32 %v10593, 16
    %v10672 = vrot.slane %v10670, 5
    %v10673 = vsel %vm1132, %v10668, %v10672
    %v10675 = vshrl.u32 %v10594, 16
    %v10677 = vrot.slane %v10675, 4
    %v10678 = vshll.u32 %v10594, 16
    %v10680 = vrot.slane %v10678, 5
    %v10681 = vor.u32 %v10677, %v10680
    %v10682 = vrot.slane %v10681, 4
    %v10684 = vshll.u32 %v10595, 16
    %v10686 = vrot.slane %v10684, 5
    %v10687 = vsel %vm1132, %v10682, %v10686
    %v10689 = vshrl.u32 %v10596, 16
    %v10691 = vrot.slane %v10689, 4
    %v10692 = vshll.u32 %v10596, 16
    %v10694 = vrot.slane %v10692, 5
    %v10695 = vor.u32 %v10691, %v10694
    %v10696 = vrot.slane %v10695, 4
    %v10698 = vshll.u32 %v10597, 16
    %v10700 = vrot.slane %v10698, 5
    %v10701 = vsel %vm1132, %v10696, %v10700
    %v10703 = vshrl.u32 %v10598, 16
    %v10705 = vrot.slane %v10703, 4
    %v10706 = vshll.u32 %v10598, 16
    %v10708 = vrot.slane %v10706, 5
    %v10709 = vor.u32 %v10705, %v10708
    %v10710 = vrot.slane %v10709, 4
    %v10712 = vshll.u32 %v10599, 16
    %v10714 = vrot.slane %v10712, 5
    %v10715 = vsel %vm1132, %v10710, %v10714
    %v10717 = vshrl.u32 %v10600, 16
    %v10719 = vrot.slane %v10717, 4
    %v10720 = vshll.u32 %v10600, 16
    %v10722 = vrot.slane %v10720, 5
    %v10723 = vor.u32 %v10719, %v10722
    %v10724 = vrot.slane %v10723, 4
    %v10726 = vshll.u32 %v10601, 16
    %v10728 = vrot.slane %v10726, 5
    %v10729 = vsel %vm1132, %v10724, %v10728
    %v10731 = vshrl.u32 %v10602, 16
    %v10733 = vrot.slane %v10731, 4
    %v10734 = vshll.u32 %v10602, 16
    %v10736 = vrot.slane %v10734, 5
    %v10737 = vor.u32 %v10733, %v10736
    %v10738 = vrot.slane %v10737, 4
    %v10740 = vshll.u32 %v10603, 16
    %v10742 = vrot.slane %v10740, 5
    %v10743 = vsel %vm1132, %v10738, %v10742
    %v10745 = vshrl.u32 %v10604, 16
    %v10747 = vrot.slane %v10745, 4
    %v10748 = vshll.u32 %v10604, 16
    %v10750 = vrot.slane %v10748, 5
    %v10751 = vor.u32 %v10747, %v10750
    %v10752 = vrot.slane %v10751, 4
    %v10754 = vshll.u32 %v10605, 16
    %v10756 = vrot.slane %v10754, 5
    %v10757 = vsel %vm1132, %v10752, %v10756
    %v10759 = vshrl.u32 %v10606, 16
    %v10761 = vrot.slane %v10759, 4
    %v10762 = vshll.u32 %v10606, 16
    %v10764 = vrot.slane %v10762, 5
    %v10765 = vor.u32 %v10761, %v10764
    %v10766 = vrot.slane %v10765, 4
    %v10768 = vshll.u32 %v10607, 16
    %v10770 = vrot.slane %v10768, 5
    %v10771 = vsel %vm1132, %v10766, %v10770
    %v10773 = vshrl.u32 %v10608, 16
    %v10775 = vrot.slane %v10773, 4
    %v10776 = vshll.u32 %v10608, 16
    %v10778 = vrot.slane %v10776, 5
    %v10779 = vor.u32 %v10775, %v10778
    %v10780 = vrot.slane %v10779, 4
    %v10782 = vshll.u32 %v10609, 16
    %v10784 = vrot.slane %v10782, 5
    %v10785 = vsel %vm1132, %v10780, %v10784
    %v10787 = vshrl.u32 %v10610, 16
    %v10789 = vrot.slane %v10787, 4
    %v10790 = vshll.u32 %v10610, 16
    %v10792 = vrot.slane %v10790, 5
    %v10793 = vor.u32 %v10789, %v10792
    %v10794 = vrot.slane %v10793, 4
    %v10796 = vshll.u32 %v10611, 16
    %v10798 = vrot.slane %v10796, 5
    %v10799 = vsel %vm1132, %v10794, %v10798
    %v10801 = vshrl.u32 %v10612, 16
    %v10803 = vrot.slane %v10801, 4
    %v10804 = vshll.u32 %v10612, 16
    %v10806 = vrot.slane %v10804, 5
    %v10807 = vor.u32 %v10803, %v10806
    %v10808 = vrot.slane %v10807, 4
    %v10810 = vshll.u32 %v10613, 16
    %v10812 = vrot.slane %v10810, 5
    %v10813 = vsel %vm1132, %v10808, %v10812
    %v10815 = vshrl.u32 %v10614, 16
    %v10817 = vrot.slane %v10815, 4
    %v10818 = vshll.u32 %v10614, 16
    %v10820 = vrot.slane %v10818, 5
    %v10821 = vor.u32 %v10817, %v10820
    %v10822 = vrot.slane %v10821, 4
    %v10824 = vshll.u32 %v10615, 16
    %v10826 = vrot.slane %v10824, 5
    %v10827 = vsel %vm1132, %v10822, %v10826
    %v10829 = vshrl.u32 %v10616, 16
    %v10831 = vrot.slane %v10829, 4
    %v10832 = vshll.u32 %v10616, 16
    %v10834 = vrot.slane %v10832, 5
    %v10835 = vor.u32 %v10831, %v10834
    %v10836 = vrot.slane %v10835, 4
    %v10838 = vshll.u32 %v10617, 16
    %v10840 = vrot.slane %v10838, 5
    %v10841 = vsel %vm1132, %v10836, %v10840
    %s10842 = scalar_lea.vmem [#allocation10], 1792
    %v10843 = vld [vmem:[%s10842] sm:$0xff]
    %v10844 = vld [vmem:[%s10842 + $0x8] sm:$0xff]
    %v10845 = vld [vmem:[%s10842 + $0x10] sm:$0xff]
    %v10846 = vld [vmem:[%s10842 + $0x18] sm:$0xff]
    %v10847 = vld [vmem:[%s10842 + $0x20] sm:$0xff]
    %v10848 = vld [vmem:[%s10842 + $0x28] sm:$0xff]
    %v10849 = vld [vmem:[%s10842 + $0x30] sm:$0xff]
    %v10850 = vld [vmem:[%s10842 + $0x38] sm:$0xff]
    %v10851 = vld [vmem:[%s10842 + $0x40] sm:$0xff]
    %v10852 = vld [vmem:[%s10842 + $0x48] sm:$0xff]
    %v10853 = vld [vmem:[%s10842 + $0x50] sm:$0xff]
    %v10854 = vld [vmem:[%s10842 + $0x58] sm:$0xff]
    %v10855 = vld [vmem:[%s10842 + $0x60] sm:$0xff]
    %v10856 = vld [vmem:[%s10842 + $0x68] sm:$0xff]
    %v10857 = vld [vmem:[%s10842 + $0x70] sm:$0xff]
    %v10858 = vld [vmem:[%s10842 + $0x78] sm:$0xff]
    %v10859 = vld [vmem:[%s10842 + $0x80] sm:$0xff]
    %v10860 = vld [vmem:[%s10842 + $0x88] sm:$0xff]
    %v10861 = vld [vmem:[%s10842 + $0x90] sm:$0xff]
    %v10862 = vld [vmem:[%s10842 + $0x98] sm:$0xff]
    %v10863 = vld [vmem:[%s10842 + $0xa0] sm:$0xff]
    %v10864 = vld [vmem:[%s10842 + $0xa8] sm:$0xff]
    %v10865 = vld [vmem:[%s10842 + $0xb0] sm:$0xff]
    %v10866 = vld [vmem:[%s10842 + $0xb8] sm:$0xff]
    %v10867 = vld [vmem:[%s10842 + $0xc0] sm:$0xff]
    %v10868 = vld [vmem:[%s10842 + $0xc8] sm:$0xff]
    %v10869 = vld [vmem:[%s10842 + $0xd0] sm:$0xff]
    %v10870 = vld [vmem:[%s10842 + $0xd8] sm:$0xff]
    %v10871 = vld [vmem:[%s10842 + $0xe0] sm:$0xff]
    %v10872 = vld [vmem:[%s10842 + $0xe8] sm:$0xff]
    %v10873 = vld [vmem:[%s10842 + $0xf0] sm:$0xff]
    %v10874 = vld [vmem:[%s10842 + $0xf8] sm:$0xff]
    %v10875 = vunpack.c.l.b16 %v10631
    %v10876 = vunpack.c.h.b16 %v10631
    %v10877 = vunpack.c.l.b16 %v10645
    %v10878 = vunpack.c.h.b16 %v10645
    %v10879 = vunpack.c.l.b16 %v10659
    %v10880 = vunpack.c.h.b16 %v10659
    %v10881 = vunpack.c.l.b16 %v10673
    %v10882 = vunpack.c.h.b16 %v10673
    %v10883 = vunpack.c.l.b16 %v10687
    %v10884 = vunpack.c.h.b16 %v10687
    %v10885 = vunpack.c.l.b16 %v10701
    %v10886 = vunpack.c.h.b16 %v10701
    %v10887 = vunpack.c.l.b16 %v10715
    %v10888 = vunpack.c.h.b16 %v10715
    %v10889 = vunpack.c.l.b16 %v10729
    %v10890 = vunpack.c.h.b16 %v10729
    %v10891 = vunpack.c.l.b16 %v10743
    %v10892 = vunpack.c.h.b16 %v10743
    %v10893 = vunpack.c.l.b16 %v10757
    %v10894 = vunpack.c.h.b16 %v10757
    %v10895 = vunpack.c.l.b16 %v10771
    %v10896 = vunpack.c.h.b16 %v10771
    %v10897 = vunpack.c.l.b16 %v10785
    %v10898 = vunpack.c.h.b16 %v10785
    %v10899 = vunpack.c.l.b16 %v10799
    %v10900 = vunpack.c.h.b16 %v10799
    %v10901 = vunpack.c.l.b16 %v10813
    %v10902 = vunpack.c.h.b16 %v10813
    %v10903 = vunpack.c.l.b16 %v10827
    %v10904 = vunpack.c.h.b16 %v10827
    %v10905 = vunpack.c.l.b16 %v10841
    %v10906 = vunpack.c.h.b16 %v10841
    %v10907 = vpack.c.b16 %v10877, %v10875
    %v10908 = vpack.c.b16 %v10878, %v10876
    %v10909 = vpack.c.b16 %v10881, %v10879
    %v10910 = vpack.c.b16 %v10882, %v10880
    %v10911 = vpack.c.b16 %v10885, %v10883
    %v10912 = vpack.c.b16 %v10886, %v10884
    %v10913 = vpack.c.b16 %v10889, %v10887
    %v10914 = vpack.c.b16 %v10890, %v10888
    %v10915 = vpack.c.b16 %v10893, %v10891
    %v10916 = vpack.c.b16 %v10894, %v10892
    %v10917 = vpack.c.b16 %v10897, %v10895
    %v10918 = vpack.c.b16 %v10898, %v10896
    %v10919 = vpack.c.b16 %v10901, %v10899
    %v10920 = vpack.c.b16 %v10902, %v10900
    %v10921 = vpack.c.b16 %v10905, %v10903
    %v10922 = vpack.c.b16 %v10906, %v10904
    %v10971 = vunpack.c.l.b16 %v10843
    %v10972 = vunpack.c.h.b16 %v10843
    %v10973 = vunpack.c.l.b16 %v10844
    %v10974 = vunpack.c.h.b16 %v10844
    %v10975 = vunpack.c.l.b16 %v10845
    %v10976 = vunpack.c.h.b16 %v10845
    %v10977 = vunpack.c.l.b16 %v10846
    %v10978 = vunpack.c.h.b16 %v10846
    %v10979 = vunpack.c.l.b16 %v10847
    %v10980 = vunpack.c.h.b16 %v10847
    %v10981 = vunpack.c.l.b16 %v10848
    %v10982 = vunpack.c.h.b16 %v10848
    %v10983 = vunpack.c.l.b16 %v10849
    %v10984 = vunpack.c.h.b16 %v10849
    %v10985 = vunpack.c.l.b16 %v10850
    %v10986 = vunpack.c.h.b16 %v10850
    %v10987 = vunpack.c.l.b16 %v10851
    %v10988 = vunpack.c.h.b16 %v10851
    %v10989 = vunpack.c.l.b16 %v10852
    %v10990 = vunpack.c.h.b16 %v10852
    %v10991 = vunpack.c.l.b16 %v10853
    %v10992 = vunpack.c.h.b16 %v10853
    %v10993 = vunpack.c.l.b16 %v10854
    %v10994 = vunpack.c.h.b16 %v10854
    %v10995 = vunpack.c.l.b16 %v10855
    %v10996 = vunpack.c.h.b16 %v10855
    %v10997 = vunpack.c.l.b16 %v10856
    %v10998 = vunpack.c.h.b16 %v10856
    %v10999 = vunpack.c.l.b16 %v10857
    %v11000 = vunpack.c.h.b16 %v10857
    %v11001 = vunpack.c.l.b16 %v10858
    %v11002 = vunpack.c.h.b16 %v10858
    %v11003 = vunpack.c.l.b16 %v10859
    %v11004 = vunpack.c.h.b16 %v10859
    %v11005 = vunpack.c.l.b16 %v10860
    %v11006 = vunpack.c.h.b16 %v10860
    %v11007 = vunpack.c.l.b16 %v10861
    %v11008 = vunpack.c.h.b16 %v10861
    %v11009 = vunpack.c.l.b16 %v10862
    %v11010 = vunpack.c.h.b16 %v10862
    %v11011 = vunpack.c.l.b16 %v10863
    %v11012 = vunpack.c.h.b16 %v10863
    %v11013 = vunpack.c.l.b16 %v10864
    %v11014 = vunpack.c.h.b16 %v10864
    %v11015 = vunpack.c.l.b16 %v10865
    %v11016 = vunpack.c.h.b16 %v10865
    %v11017 = vunpack.c.l.b16 %v10866
    %v11018 = vunpack.c.h.b16 %v10866
    %v11019 = vunpack.c.l.b16 %v10867
    %v11020 = vunpack.c.h.b16 %v10867
    %v11021 = vunpack.c.l.b16 %v10868
    %v11022 = vunpack.c.h.b16 %v10868
    %v11023 = vunpack.c.l.b16 %v10869
    %v11024 = vunpack.c.h.b16 %v10869
    %v11025 = vunpack.c.l.b16 %v10870
    %v11026 = vunpack.c.h.b16 %v10870
    %v11027 = vunpack.c.l.b16 %v10871
    %v11028 = vunpack.c.h.b16 %v10871
    %v11029 = vunpack.c.l.b16 %v10872
    %v11030 = vunpack.c.h.b16 %v10872
    %v11031 = vunpack.c.l.b16 %v10873
    %v11032 = vunpack.c.h.b16 %v10873
    %v11033 = vunpack.c.l.b16 %v10874
    %v11034 = vunpack.c.h.b16 %v10874
    %v11035 = vpack.c.b16 %v10973, %v10971
    %v11036 = vpack.c.b16 %v10974, %v10972
    %v11037 = vpack.c.b16 %v10977, %v10975
    %v11038 = vpack.c.b16 %v10978, %v10976
    %v11039 = vpack.c.b16 %v10981, %v10979
    %v11040 = vpack.c.b16 %v10982, %v10980
    %v11041 = vpack.c.b16 %v10985, %v10983
    %v11042 = vpack.c.b16 %v10986, %v10984
    %v11043 = vpack.c.b16 %v10989, %v10987
    %v11044 = vpack.c.b16 %v10990, %v10988
    %v11045 = vpack.c.b16 %v10993, %v10991
    %v11046 = vpack.c.b16 %v10994, %v10992
    %v11047 = vpack.c.b16 %v10997, %v10995
    %v11048 = vpack.c.b16 %v10998, %v10996
    %v11049 = vpack.c.b16 %v11001, %v10999
    %v11050 = vpack.c.b16 %v11002, %v11000
    %v11051 = vpack.c.b16 %v11005, %v11003
    %v11052 = vpack.c.b16 %v11006, %v11004
    %v11053 = vpack.c.b16 %v11009, %v11007
    %v11054 = vpack.c.b16 %v11010, %v11008
    %v11055 = vpack.c.b16 %v11013, %v11011
    %v11056 = vpack.c.b16 %v11014, %v11012
    %v11057 = vpack.c.b16 %v11017, %v11015
    %v11058 = vpack.c.b16 %v11018, %v11016
    %v11059 = vpack.c.b16 %v11021, %v11019
    %v11060 = vpack.c.b16 %v11022, %v11020
    %v11061 = vpack.c.b16 %v11025, %v11023
    %v11062 = vpack.c.b16 %v11026, %v11024
    %v11063 = vpack.c.b16 %v11029, %v11027
    %v11064 = vpack.c.b16 %v11030, %v11028
    %v11065 = vpack.c.b16 %v11033, %v11031
    %v11066 = vpack.c.b16 %v11034, %v11032
    %11099 = vmatprep.subr.bf16.mxu0 %v11050
    %11100 = vmatpush1.bf16.msra.mxu0 %v11049
    %11101 = vmatprep.subr.bf16.mxu0 %v11048
    %11102 = vmatpush1.bf16.msra.mxu0 %v11047
    %11103 = vmatprep.subr.bf16.mxu0 %v11046
    %11104 = vmatpush1.bf16.msra.mxu0 %v11045
    %11105 = vmatprep.subr.bf16.mxu0 %v11044
    %11106 = vmatpush1.bf16.msra.mxu0 %v11043
    %11107 = vmatprep.subr.bf16.mxu0 %v11042
    %11108 = vmatpush1.bf16.msra.mxu0 %v11041
    %11109 = vmatprep.subr.bf16.mxu0 %v11040
    %11110 = vmatpush1.bf16.msra.mxu0 %v11039
    %11111 = vmatprep.subr.bf16.mxu0 %v11038
    %11112 = vmatpush1.bf16.msra.mxu0 %v11037
    %11113 = vmatprep.subr.bf16.mxu0 %v11036
    %11114 = vmatpush1.bf16.msra.mxu0 %v11035
    %11115 = vmatprep.subr.bf16.mxu0 %v11066
    %11116 = vmatpush2.bf16.msra.mxu0 %v11065
    %11117 = vmatprep.subr.bf16.mxu0 %v11064
    %11118 = vmatpush2.bf16.msra.mxu0 %v11063
    %11119 = vmatprep.subr.bf16.mxu0 %v11062
    %11120 = vmatpush2.bf16.msra.mxu0 %v11061
    %11121 = vmatprep.subr.bf16.mxu0 %v11060
    %11122 = vmatpush2.bf16.msra.mxu0 %v11059
    %11123 = vmatprep.subr.bf16.mxu0 %v11058
    %11124 = vmatpush2.bf16.msra.mxu0 %v11057
    %11125 = vmatprep.subr.bf16.mxu0 %v11056
    %11126 = vmatpush2.bf16.msra.mxu0 %v11055
    %11127 = vmatprep.subr.bf16.mxu0 %v11054
    %11128 = vmatpush2.bf16.msra.mxu0 %v11053
    %11129 = vmatprep.subr.bf16.mxu0 %v11052
    %11130 = vmatpush2.bf16.msra.mxu0 %v11051
    %11131 = vmatprep.mubr.bf16.mxu0 %v10908
    %11132 = vmatmul.mubr.bf16.gmra.mxu0 %v10907
    %v11133 = vpop.f32.mrf.mxu0
    %v11134 = vadd.f32 0.0, %v11133
    %v11135 = vpop.f32.mrf.mxu0
    %v11136 = vadd.f32 0.0, %v11135
    %v11137 = vpop.f32.mrf.mxu0
    %v11138 = vadd.f32 0.0, %v11137
    %v11139 = vpop.f32.mrf.mxu0
    %v11140 = vadd.f32 0.0, %v11139
    %11141 = vmatprep.mubr.bf16.mxu0 %v10910
    %11142 = vmatmul.mubr.bf16.gmra.mxu0 %v10909
    %v11143 = vpop.f32.mrf.mxu0
    %v11144 = vadd.f32 0.0, %v11143
    %v11145 = vpop.f32.mrf.mxu0
    %v11146 = vadd.f32 0.0, %v11145
    %v11147 = vpop.f32.mrf.mxu0
    %v11148 = vadd.f32 0.0, %v11147
    %v11149 = vpop.f32.mrf.mxu0
    %v11150 = vadd.f32 0.0, %v11149
    %11151 = vmatprep.mubr.bf16.mxu0 %v10912
    %11152 = vmatmul.mubr.bf16.gmra.mxu0 %v10911
    %v11153 = vpop.f32.mrf.mxu0
    %v11154 = vadd.f32 0.0, %v11153
    %v11155 = vpop.f32.mrf.mxu0
    %v11156 = vadd.f32 0.0, %v11155
    %v11157 = vpop.f32.mrf.mxu0
    %v11158 = vadd.f32 0.0, %v11157
    %v11159 = vpop.f32.mrf.mxu0
    %v11160 = vadd.f32 0.0, %v11159
    %11161 = vmatprep.mubr.bf16.mxu0 %v10914
    %11162 = vmatmul.mubr.bf16.gmra.mxu0 %v10913
    %v11163 = vpop.f32.mrf.mxu0
    %v11164 = vadd.f32 0.0, %v11163
    %v11165 = vpop.f32.mrf.mxu0
    %v11166 = vadd.f32 0.0, %v11165
    %v11167 = vpop.f32.mrf.mxu0
    %v11168 = vadd.f32 0.0, %v11167
    %v11169 = vpop.f32.mrf.mxu0
    %v11170 = vadd.f32 0.0, %v11169
    %11171 = vmatprep.mubr.bf16.mxu0 %v10916
    %11172 = vmatmul.mubr.bf16.gmra.mxu0 %v10915
    %v11173 = vpop.f32.mrf.mxu0
    %v11174 = vadd.f32 0.0, %v11173
    %v11175 = vpop.f32.mrf.mxu0
    %v11176 = vadd.f32 0.0, %v11175
    %v11177 = vpop.f32.mrf.mxu0
    %v11178 = vadd.f32 0.0, %v11177
    %v11179 = vpop.f32.mrf.mxu0
    %v11180 = vadd.f32 0.0, %v11179
    %11181 = vmatprep.mubr.bf16.mxu0 %v10918
    %11182 = vmatmul.mubr.bf16.gmra.mxu0 %v10917
    %v11183 = vpop.f32.mrf.mxu0
    %v11184 = vadd.f32 0.0, %v11183
    %v11185 = vpop.f32.mrf.mxu0
    %v11186 = vadd.f32 0.0, %v11185
    %v11187 = vpop.f32.mrf.mxu0
    %v11188 = vadd.f32 0.0, %v11187
    %v11189 = vpop.f32.mrf.mxu0
    %v11190 = vadd.f32 0.0, %v11189
    %11191 = vmatprep.mubr.bf16.mxu0 %v10920
    %11192 = vmatmul.mubr.bf16.gmra.mxu0 %v10919
    %v11193 = vpop.f32.mrf.mxu0
    %v11194 = vadd.f32 0.0, %v11193
    %v11195 = vpop.f32.mrf.mxu0
    %v11196 = vadd.f32 0.0, %v11195
    %v11197 = vpop.f32.mrf.mxu0
    %v11198 = vadd.f32 0.0, %v11197
    %v11199 = vpop.f32.mrf.mxu0
    %v11200 = vadd.f32 0.0, %v11199
    %11201 = vmatprep.mubr.bf16.mxu0 %v10922
    %11202 = vmatmul.mubr.bf16.gmra.mxu0 %v10921
    %v11203 = vpop.f32.mrf.mxu0
    %v11204 = vadd.f32 0.0, %v11203
    %v11205 = vpop.f32.mrf.mxu0
    %v11206 = vadd.f32 0.0, %v11205
    %v11207 = vpop.f32.mrf.mxu0
    %v11208 = vadd.f32 0.0, %v11207
    %v11209 = vpop.f32.mrf.mxu0
    %v11210 = vadd.f32 0.0, %v11209
    %11211 = vdwg.mxu0
    %v11212 = vld [vmem:[#allocation3] sm:$0xff]
    %v11213 = vld [vmem:[#allocation3 + $0x8] sm:$0xff]
    %v11214 = vld [vmem:[#allocation3 + $0x10] sm:$0xff]
    %v11215 = vld [vmem:[#allocation3 + $0x18] sm:$0xff]
    %v11216 = vld [vmem:[#allocation3 + $0x20] sm:$0xff]
    %v11217 = vld [vmem:[#allocation3 + $0x28] sm:$0xff]
    %v11218 = vld [vmem:[#allocation3 + $0x30] sm:$0xff]
    %v11219 = vld [vmem:[#allocation3 + $0x38] sm:$0xff]
    %v11220 = vld [vmem:[#allocation3 + $0x40] sm:$0xff]
    %v11221 = vld [vmem:[#allocation3 + $0x48] sm:$0xff]
    %v11222 = vld [vmem:[#allocation3 + $0x50] sm:$0xff]
    %v11223 = vld [vmem:[#allocation3 + $0x58] sm:$0xff]
    %v11224 = vld [vmem:[#allocation3 + $0x60] sm:$0xff]
    %v11225 = vld [vmem:[#allocation3 + $0x68] sm:$0xff]
    %v11226 = vld [vmem:[#allocation3 + $0x70] sm:$0xff]
    %v11227 = vld [vmem:[#allocation3 + $0x78] sm:$0xff]
    %v11228 = vld [vmem:[#allocation3 + $0x80] sm:$0xff]
    %v11229 = vld [vmem:[#allocation3 + $0x88] sm:$0xff]
    %v11230 = vld [vmem:[#allocation3 + $0x90] sm:$0xff]
    %v11231 = vld [vmem:[#allocation3 + $0x98] sm:$0xff]
    %v11232 = vld [vmem:[#allocation3 + $0xa0] sm:$0xff]
    %v11233 = vld [vmem:[#allocation3 + $0xa8] sm:$0xff]
    %v11234 = vld [vmem:[#allocation3 + $0xb0] sm:$0xff]
    %v11235 = vld [vmem:[#allocation3 + $0xb8] sm:$0xff]
    %v11236 = vld [vmem:[#allocation3 + $0xc0] sm:$0xff]
    %v11237 = vld [vmem:[#allocation3 + $0xc8] sm:$0xff]
    %v11238 = vld [vmem:[#allocation3 + $0xd0] sm:$0xff]
    %v11239 = vld [vmem:[#allocation3 + $0xd8] sm:$0xff]
    %v11240 = vld [vmem:[#allocation3 + $0xe0] sm:$0xff]
    %v11241 = vld [vmem:[#allocation3 + $0xe8] sm:$0xff]
    %v11242 = vld [vmem:[#allocation3 + $0xf0] sm:$0xff]
    %v11243 = vld [vmem:[#allocation3 + $0xf8] sm:$0xff]
    %v11244 = vadd.f32 %v11212, %v11134
    %v11245 = vadd.f32 %v11213, %v11136
    %v11246 = vadd.f32 %v11214, %v11138
    %v11247 = vadd.f32 %v11215, %v11140
    %v11248 = vadd.f32 %v11216, %v11144
    %v11249 = vadd.f32 %v11217, %v11146
    %v11250 = vadd.f32 %v11218, %v11148
    %v11251 = vadd.f32 %v11219, %v11150
    %v11252 = vadd.f32 %v11220, %v11154
    %v11253 = vadd.f32 %v11221, %v11156
    %v11254 = vadd.f32 %v11222, %v11158
    %v11255 = vadd.f32 %v11223, %v11160
    %v11256 = vadd.f32 %v11224, %v11164
    %v11257 = vadd.f32 %v11225, %v11166
    %v11258 = vadd.f32 %v11226, %v11168
    %v11259 = vadd.f32 %v11227, %v11170
    %v11260 = vadd.f32 %v11228, %v11174
    %v11261 = vadd.f32 %v11229, %v11176
    %v11262 = vadd.f32 %v11230, %v11178
    %v11263 = vadd.f32 %v11231, %v11180
    %v11264 = vadd.f32 %v11232, %v11184
    %v11265 = vadd.f32 %v11233, %v11186
    %v11266 = vadd.f32 %v11234, %v11188
    %v11267 = vadd.f32 %v11235, %v11190
    %v11268 = vadd.f32 %v11236, %v11194
    %v11269 = vadd.f32 %v11237, %v11196
    %v11270 = vadd.f32 %v11238, %v11198
    %v11271 = vadd.f32 %v11239, %v11200
    %v11272 = vadd.f32 %v11240, %v11204
    %v11273 = vadd.f32 %v11241, %v11206
    %v11274 = vadd.f32 %v11242, %v11208
    %v11275 = vadd.f32 %v11243, %v11210
    %11276 = vst [vmem:[#allocation3] sm:$0xff] %v11244
    %11277 = vst [vmem:[#allocation3 + $0x8] sm:$0xff] %v11245
    %11278 = vst [vmem:[#allocation3 + $0x10] sm:$0xff] %v11246
    %11279 = vst [vmem:[#allocation3 + $0x18] sm:$0xff] %v11247
    %11280 = vst [vmem:[#allocation3 + $0x20] sm:$0xff] %v11248
    %11281 = vst [vmem:[#allocation3 + $0x28] sm:$0xff] %v11249
    %11282 = vst [vmem:[#allocation3 + $0x30] sm:$0xff] %v11250
    %11283 = vst [vmem:[#allocation3 + $0x38] sm:$0xff] %v11251
    %11284 = vst [vmem:[#allocation3 + $0x40] sm:$0xff] %v11252
    %11285 = vst [vmem:[#allocation3 + $0x48] sm:$0xff] %v11253
    %11286 = vst [vmem:[#allocation3 + $0x50] sm:$0xff] %v11254
    %11287 = vst [vmem:[#allocation3 + $0x58] sm:$0xff] %v11255
    %11288 = vst [vmem:[#allocation3 + $0x60] sm:$0xff] %v11256
    %11289 = vst [vmem:[#allocation3 + $0x68] sm:$0xff] %v11257
    %11290 = vst [vmem:[#allocation3 + $0x70] sm:$0xff] %v11258
    %11291 = vst [vmem:[#allocation3 + $0x78] sm:$0xff] %v11259
    %11292 = vst [vmem:[#allocation3 + $0x80] sm:$0xff] %v11260
    %11293 = vst [vmem:[#allocation3 + $0x88] sm:$0xff] %v11261
    %11294 = vst [vmem:[#allocation3 + $0x90] sm:$0xff] %v11262
    %11295 = vst [vmem:[#allocation3 + $0x98] sm:$0xff] %v11263
    %11296 = vst [vmem:[#allocation3 + $0xa0] sm:$0xff] %v11264
    %11297 = vst [vmem:[#allocation3 + $0xa8] sm:$0xff] %v11265
    %11298 = vst [vmem:[#allocation3 + $0xb0] sm:$0xff] %v11266
    %11299 = vst [vmem:[#allocation3 + $0xb8] sm:$0xff] %v11267
    %11300 = vst [vmem:[#allocation3 + $0xc0] sm:$0xff] %v11268
    %11301 = vst [vmem:[#allocation3 + $0xc8] sm:$0xff] %v11269
    %11302 = vst [vmem:[#allocation3 + $0xd0] sm:$0xff] %v11270
    %11303 = vst [vmem:[#allocation3 + $0xd8] sm:$0xff] %v11271
    %11304 = vst [vmem:[#allocation3 + $0xe0] sm:$0xff] %v11272
    %11305 = vst [vmem:[#allocation3 + $0xe8] sm:$0xff] %v11273
    %11306 = vst [vmem:[#allocation3 + $0xf0] sm:$0xff] %v11274
    %11307 = vst [vmem:[#allocation3 + $0xf8] sm:$0xff] %v11275
    %v11308 = vld [vmem:[%s4234] sm:$0xee]
    %v11309 = vld [vmem:[%s4234 + $0x8] sm:$0x11]
    %v11310 = vld [vmem:[%s4234 + $0x10] sm:$0xee]
    %v11311 = vld [vmem:[%s4234 + $0x18] sm:$0x11]
    %v11312 = vld [vmem:[%s4234 + $0x20] sm:$0xee]
    %v11313 = vld [vmem:[%s4234 + $0x28] sm:$0x11]
    %v11314 = vld [vmem:[%s4234 + $0x30] sm:$0xee]
    %v11315 = vld [vmem:[%s4234 + $0x38] sm:$0x11]
    %v11316 = vld [vmem:[%s4234 + $0x40] sm:$0xee]
    %v11317 = vld [vmem:[%s4234 + $0x48] sm:$0x11]
    %v11318 = vld [vmem:[%s4234 + $0x50] sm:$0xee]
    %v11319 = vld [vmem:[%s4234 + $0x58] sm:$0x11]
    %v11320 = vld [vmem:[%s4234 + $0x60] sm:$0xee]
    %v11321 = vld [vmem:[%s4234 + $0x68] sm:$0x11]
    %v11322 = vld [vmem:[%s4234 + $0x70] sm:$0xee]
    %v11323 = vld [vmem:[%s4234 + $0x78] sm:$0x11]
    %v11324 = vld [vmem:[%s4234 + $0xa0] sm:$0xee]
    %v11325 = vld [vmem:[%s4234 + $0xa8] sm:$0x11]
    %v11326 = vld [vmem:[%s4234 + $0xb0] sm:$0xee]
    %v11327 = vld [vmem:[%s4234 + $0xb8] sm:$0x11]
    %v11328 = vld [vmem:[%s4234 + $0xc0] sm:$0xee]
    %v11329 = vld [vmem:[%s4234 + $0xc8] sm:$0x11]
    %v11330 = vld [vmem:[%s4234 + $0xd0] sm:$0xee]
    %v11331 = vld [vmem:[%s4234 + $0xd8] sm:$0x11]
    %v11332 = vld [vmem:[%s4234 + $0xe0] sm:$0xee]
    %v11333 = vld [vmem:[%s4234 + $0xe8] sm:$0x11]
    %v11334 = vld [vmem:[%s4234 + $0xf0] sm:$0xee]
    %v11335 = vld [vmem:[%s4234 + $0xf8] sm:$0x11]
    %v11336 = vld [vmem:[%s4234 + $0x100] sm:$0xee]
    %v11337 = vld [vmem:[%s4234 + $0x108] sm:$0x11]
    %v11338 = vld [vmem:[%s4234 + $0x110] sm:$0xee]
    %v11339 = vld [vmem:[%s4234 + $0x118] sm:$0x11]
    %v11372 = vrot.slane %v11308, 5
    %v11373 = vrot.slane %v11372, 4
    %v11374 = vrot.slane %v11309, 5
    %v11375 = vsel %vm1889, %v11373, %v11374
    %v11376 = vrot.slane %v11310, 5
    %v11377 = vrot.slane %v11376, 4
    %v11378 = vrot.slane %v11311, 5
    %v11379 = vsel %vm1889, %v11377, %v11378
    %v11380 = vrot.slane %v11312, 5
    %v11381 = vrot.slane %v11380, 4
    %v11382 = vrot.slane %v11313, 5
    %v11383 = vsel %vm1889, %v11381, %v11382
    %v11384 = vrot.slane %v11314, 5
    %v11385 = vrot.slane %v11384, 4
    %v11386 = vrot.slane %v11315, 5
    %v11387 = vsel %vm1889, %v11385, %v11386
    %v11388 = vrot.slane %v11316, 5
    %v11389 = vrot.slane %v11388, 4
    %v11390 = vrot.slane %v11317, 5
    %v11391 = vsel %vm1889, %v11389, %v11390
    %v11392 = vrot.slane %v11318, 5
    %v11393 = vrot.slane %v11392, 4
    %v11394 = vrot.slane %v11319, 5
    %v11395 = vsel %vm1889, %v11393, %v11394
    %v11396 = vrot.slane %v11320, 5
    %v11397 = vrot.slane %v11396, 4
    %v11398 = vrot.slane %v11321, 5
    %v11399 = vsel %vm1889, %v11397, %v11398
    %v11400 = vrot.slane %v11322, 5
    %v11401 = vrot.slane %v11400, 4
    %v11402 = vrot.slane %v11323, 5
    %v11403 = vsel %vm1889, %v11401, %v11402
    %v11404 = vrot.slane %v11324, 5
    %v11405 = vrot.slane %v11404, 4
    %v11406 = vrot.slane %v11325, 5
    %v11407 = vsel %vm1889, %v11405, %v11406
    %v11408 = vrot.slane %v11326, 5
    %v11409 = vrot.slane %v11408, 4
    %v11410 = vrot.slane %v11327, 5
    %v11411 = vsel %vm1889, %v11409, %v11410
    %v11412 = vrot.slane %v11328, 5
    %v11413 = vrot.slane %v11412, 4
    %v11414 = vrot.slane %v11329, 5
    %v11415 = vsel %vm1889, %v11413, %v11414
    %v11416 = vrot.slane %v11330, 5
    %v11417 = vrot.slane %v11416, 4
    %v11418 = vrot.slane %v11331, 5
    %v11419 = vsel %vm1889, %v11417, %v11418
    %v11420 = vrot.slane %v11332, 5
    %v11421 = vrot.slane %v11420, 4
    %v11422 = vrot.slane %v11333, 5
    %v11423 = vsel %vm1889, %v11421, %v11422
    %v11424 = vrot.slane %v11334, 5
    %v11425 = vrot.slane %v11424, 4
    %v11426 = vrot.slane %v11335, 5
    %v11427 = vsel %vm1889, %v11425, %v11426
    %v11428 = vrot.slane %v11336, 5
    %v11429 = vrot.slane %v11428, 4
    %v11430 = vrot.slane %v11337, 5
    %v11431 = vsel %vm1889, %v11429, %v11430
    %v11432 = vrot.slane %v11338, 5
    %v11433 = vrot.slane %v11432, 4
    %v11434 = vrot.slane %v11339, 5
    %v11435 = vsel %vm1889, %v11433, %v11434
    %s11436 = scalar_lea.vmem [#allocation10], 2048
    %v11437 = vld [vmem:[%s11436] sm:$0xff]
    %v11438 = vld [vmem:[%s11436 + $0x8] sm:$0xff]
    %v11439 = vld [vmem:[%s11436 + $0x10] sm:$0xff]
    %v11440 = vld [vmem:[%s11436 + $0x18] sm:$0xff]
    %v11441 = vld [vmem:[%s11436 + $0x20] sm:$0xff]
    %v11442 = vld [vmem:[%s11436 + $0x28] sm:$0xff]
    %v11443 = vld [vmem:[%s11436 + $0x30] sm:$0xff]
    %v11444 = vld [vmem:[%s11436 + $0x38] sm:$0xff]
    %v11445 = vld [vmem:[%s11436 + $0x40] sm:$0xff]
    %v11446 = vld [vmem:[%s11436 + $0x48] sm:$0xff]
    %v11447 = vld [vmem:[%s11436 + $0x50] sm:$0xff]
    %v11448 = vld [vmem:[%s11436 + $0x58] sm:$0xff]
    %v11449 = vld [vmem:[%s11436 + $0x60] sm:$0xff]
    %v11450 = vld [vmem:[%s11436 + $0x68] sm:$0xff]
    %v11451 = vld [vmem:[%s11436 + $0x70] sm:$0xff]
    %v11452 = vld [vmem:[%s11436 + $0x78] sm:$0xff]
    %v11453 = vld [vmem:[%s11436 + $0x80] sm:$0xff]
    %v11454 = vld [vmem:[%s11436 + $0x88] sm:$0xff]
    %v11455 = vld [vmem:[%s11436 + $0x90] sm:$0xff]
    %v11456 = vld [vmem:[%s11436 + $0x98] sm:$0xff]
    %v11457 = vld [vmem:[%s11436 + $0xa0] sm:$0xff]
    %v11458 = vld [vmem:[%s11436 + $0xa8] sm:$0xff]
    %v11459 = vld [vmem:[%s11436 + $0xb0] sm:$0xff]
    %v11460 = vld [vmem:[%s11436 + $0xb8] sm:$0xff]
    %v11461 = vld [vmem:[%s11436 + $0xc0] sm:$0xff]
    %v11462 = vld [vmem:[%s11436 + $0xc8] sm:$0xff]
    %v11463 = vld [vmem:[%s11436 + $0xd0] sm:$0xff]
    %v11464 = vld [vmem:[%s11436 + $0xd8] sm:$0xff]
    %v11465 = vld [vmem:[%s11436 + $0xe0] sm:$0xff]
    %v11466 = vld [vmem:[%s11436 + $0xe8] sm:$0xff]
    %v11467 = vld [vmem:[%s11436 + $0xf0] sm:$0xff]
    %v11468 = vld [vmem:[%s11436 + $0xf8] sm:$0xff]
    %v11469 = vunpack.c.l.b16 %v11375
    %v11470 = vunpack.c.h.b16 %v11375
    %v11471 = vunpack.c.l.b16 %v11379
    %v11472 = vunpack.c.h.b16 %v11379
    %v11473 = vunpack.c.l.b16 %v11383
    %v11474 = vunpack.c.h.b16 %v11383
    %v11475 = vunpack.c.l.b16 %v11387
    %v11476 = vunpack.c.h.b16 %v11387
    %v11477 = vunpack.c.l.b16 %v11391
    %v11478 = vunpack.c.h.b16 %v11391
    %v11479 = vunpack.c.l.b16 %v11395
    %v11480 = vunpack.c.h.b16 %v11395
    %v11481 = vunpack.c.l.b16 %v11399
    %v11482 = vunpack.c.h.b16 %v11399
    %v11483 = vunpack.c.l.b16 %v11403
    %v11484 = vunpack.c.h.b16 %v11403
    %v11485 = vunpack.c.l.b16 %v11407
    %v11486 = vunpack.c.h.b16 %v11407
    %v11487 = vunpack.c.l.b16 %v11411
    %v11488 = vunpack.c.h.b16 %v11411
    %v11489 = vunpack.c.l.b16 %v11415
    %v11490 = vunpack.c.h.b16 %v11415
    %v11491 = vunpack.c.l.b16 %v11419
    %v11492 = vunpack.c.h.b16 %v11419
    %v11493 = vunpack.c.l.b16 %v11423
    %v11494 = vunpack.c.h.b16 %v11423
    %v11495 = vunpack.c.l.b16 %v11427
    %v11496 = vunpack.c.h.b16 %v11427
    %v11497 = vunpack.c.l.b16 %v11431
    %v11498 = vunpack.c.h.b16 %v11431
    %v11499 = vunpack.c.l.b16 %v11435
    %v11500 = vunpack.c.h.b16 %v11435
    %v11501 = vpack.c.b16 %v11471, %v11469
    %v11502 = vpack.c.b16 %v11472, %v11470
    %v11503 = vpack.c.b16 %v11475, %v11473
    %v11504 = vpack.c.b16 %v11476, %v11474
    %v11505 = vpack.c.b16 %v11479, %v11477
    %v11506 = vpack.c.b16 %v11480, %v11478
    %v11507 = vpack.c.b16 %v11483, %v11481
    %v11508 = vpack.c.b16 %v11484, %v11482
    %v11509 = vpack.c.b16 %v11487, %v11485
    %v11510 = vpack.c.b16 %v11488, %v11486
    %v11511 = vpack.c.b16 %v11491, %v11489
    %v11512 = vpack.c.b16 %v11492, %v11490
    %v11513 = vpack.c.b16 %v11495, %v11493
    %v11514 = vpack.c.b16 %v11496, %v11494
    %v11515 = vpack.c.b16 %v11499, %v11497
    %v11516 = vpack.c.b16 %v11500, %v11498
    %v11565 = vunpack.c.l.b16 %v11437
    %v11566 = vunpack.c.h.b16 %v11437
    %v11567 = vunpack.c.l.b16 %v11438
    %v11568 = vunpack.c.h.b16 %v11438
    %v11569 = vunpack.c.l.b16 %v11439
    %v11570 = vunpack.c.h.b16 %v11439
    %v11571 = vunpack.c.l.b16 %v11440
    %v11572 = vunpack.c.h.b16 %v11440
    %v11573 = vunpack.c.l.b16 %v11441
    %v11574 = vunpack.c.h.b16 %v11441
    %v11575 = vunpack.c.l.b16 %v11442
    %v11576 = vunpack.c.h.b16 %v11442
    %v11577 = vunpack.c.l.b16 %v11443
    %v11578 = vunpack.c.h.b16 %v11443
    %v11579 = vunpack.c.l.b16 %v11444
    %v11580 = vunpack.c.h.b16 %v11444
    %v11581 = vunpack.c.l.b16 %v11445
    %v11582 = vunpack.c.h.b16 %v11445
    %v11583 = vunpack.c.l.b16 %v11446
    %v11584 = vunpack.c.h.b16 %v11446
    %v11585 = vunpack.c.l.b16 %v11447
    %v11586 = vunpack.c.h.b16 %v11447
    %v11587 = vunpack.c.l.b16 %v11448
    %v11588 = vunpack.c.h.b16 %v11448
    %v11589 = vunpack.c.l.b16 %v11449
    %v11590 = vunpack.c.h.b16 %v11449
    %v11591 = vunpack.c.l.b16 %v11450
    %v11592 = vunpack.c.h.b16 %v11450
    %v11593 = vunpack.c.l.b16 %v11451
    %v11594 = vunpack.c.h.b16 %v11451
    %v11595 = vunpack.c.l.b16 %v11452
    %v11596 = vunpack.c.h.b16 %v11452
    %v11597 = vunpack.c.l.b16 %v11453
    %v11598 = vunpack.c.h.b16 %v11453
    %v11599 = vunpack.c.l.b16 %v11454
    %v11600 = vunpack.c.h.b16 %v11454
    %v11601 = vunpack.c.l.b16 %v11455
    %v11602 = vunpack.c.h.b16 %v11455
    %v11603 = vunpack.c.l.b16 %v11456
    %v11604 = vunpack.c.h.b16 %v11456
    %v11605 = vunpack.c.l.b16 %v11457
    %v11606 = vunpack.c.h.b16 %v11457
    %v11607 = vunpack.c.l.b16 %v11458
    %v11608 = vunpack.c.h.b16 %v11458
    %v11609 = vunpack.c.l.b16 %v11459
    %v11610 = vunpack.c.h.b16 %v11459
    %v11611 = vunpack.c.l.b16 %v11460
    %v11612 = vunpack.c.h.b16 %v11460
    %v11613 = vunpack.c.l.b16 %v11461
    %v11614 = vunpack.c.h.b16 %v11461
    %v11615 = vunpack.c.l.b16 %v11462
    %v11616 = vunpack.c.h.b16 %v11462
    %v11617 = vunpack.c.l.b16 %v11463
    %v11618 = vunpack.c.h.b16 %v11463
    %v11619 = vunpack.c.l.b16 %v11464
    %v11620 = vunpack.c.h.b16 %v11464
    %v11621 = vunpack.c.l.b16 %v11465
    %v11622 = vunpack.c.h.b16 %v11465
    %v11623 = vunpack.c.l.b16 %v11466
    %v11624 = vunpack.c.h.b16 %v11466
    %v11625 = vunpack.c.l.b16 %v11467
    %v11626 = vunpack.c.h.b16 %v11467
    %v11627 = vunpack.c.l.b16 %v11468
    %v11628 = vunpack.c.h.b16 %v11468
    %v11629 = vpack.c.b16 %v11567, %v11565
    %v11630 = vpack.c.b16 %v11568, %v11566
    %v11631 = vpack.c.b16 %v11571, %v11569
    %v11632 = vpack.c.b16 %v11572, %v11570
    %v11633 = vpack.c.b16 %v11575, %v11573
    %v11634 = vpack.c.b16 %v11576, %v11574
    %v11635 = vpack.c.b16 %v11579, %v11577
    %v11636 = vpack.c.b16 %v11580, %v11578
    %v11637 = vpack.c.b16 %v11583, %v11581
    %v11638 = vpack.c.b16 %v11584, %v11582
    %v11639 = vpack.c.b16 %v11587, %v11585
    %v11640 = vpack.c.b16 %v11588, %v11586
    %v11641 = vpack.c.b16 %v11591, %v11589
    %v11642 = vpack.c.b16 %v11592, %v11590
    %v11643 = vpack.c.b16 %v11595, %v11593
    %v11644 = vpack.c.b16 %v11596, %v11594
    %v11645 = vpack.c.b16 %v11599, %v11597
    %v11646 = vpack.c.b16 %v11600, %v11598
    %v11647 = vpack.c.b16 %v11603, %v11601
    %v11648 = vpack.c.b16 %v11604, %v11602
    %v11649 = vpack.c.b16 %v11607, %v11605
    %v11650 = vpack.c.b16 %v11608, %v11606
    %v11651 = vpack.c.b16 %v11611, %v11609
    %v11652 = vpack.c.b16 %v11612, %v11610
    %v11653 = vpack.c.b16 %v11615, %v11613
    %v11654 = vpack.c.b16 %v11616, %v11614
    %v11655 = vpack.c.b16 %v11619, %v11617
    %v11656 = vpack.c.b16 %v11620, %v11618
    %v11657 = vpack.c.b16 %v11623, %v11621
    %v11658 = vpack.c.b16 %v11624, %v11622
    %v11659 = vpack.c.b16 %v11627, %v11625
    %v11660 = vpack.c.b16 %v11628, %v11626
    %11693 = vmatprep.subr.bf16.mxu0 %v11644
    %11694 = vmatpush1.bf16.msra.mxu0 %v11643
    %11695 = vmatprep.subr.bf16.mxu0 %v11642
    %11696 = vmatpush1.bf16.msra.mxu0 %v11641
    %11697 = vmatprep.subr.bf16.mxu0 %v11640
    %11698 = vmatpush1.bf16.msra.mxu0 %v11639
    %11699 = vmatprep.subr.bf16.mxu0 %v11638
    %11700 = vmatpush1.bf16.msra.mxu0 %v11637
    %11701 = vmatprep.subr.bf16.mxu0 %v11636
    %11702 = vmatpush1.bf16.msra.mxu0 %v11635
    %11703 = vmatprep.subr.bf16.mxu0 %v11634
    %11704 = vmatpush1.bf16.msra.mxu0 %v11633
    %11705 = vmatprep.subr.bf16.mxu0 %v11632
    %11706 = vmatpush1.bf16.msra.mxu0 %v11631
    %11707 = vmatprep.subr.bf16.mxu0 %v11630
    %11708 = vmatpush1.bf16.msra.mxu0 %v11629
    %11709 = vmatprep.subr.bf16.mxu0 %v11660
    %11710 = vmatpush2.bf16.msra.mxu0 %v11659
    %11711 = vmatprep.subr.bf16.mxu0 %v11658
    %11712 = vmatpush2.bf16.msra.mxu0 %v11657
    %11713 = vmatprep.subr.bf16.mxu0 %v11656
    %11714 = vmatpush2.bf16.msra.mxu0 %v11655
    %11715 = vmatprep.subr.bf16.mxu0 %v11654
    %11716 = vmatpush2.bf16.msra.mxu0 %v11653
    %11717 = vmatprep.subr.bf16.mxu0 %v11652
    %11718 = vmatpush2.bf16.msra.mxu0 %v11651
    %11719 = vmatprep.subr.bf16.mxu0 %v11650
    %11720 = vmatpush2.bf16.msra.mxu0 %v11649
    %11721 = vmatprep.subr.bf16.mxu0 %v11648
    %11722 = vmatpush2.bf16.msra.mxu0 %v11647
    %11723 = vmatprep.subr.bf16.mxu0 %v11646
    %11724 = vmatpush2.bf16.msra.mxu0 %v11645
    %11725 = vmatprep.mubr.bf16.mxu0 %v11502
    %11726 = vmatmul.mubr.bf16.gmra.mxu0 %v11501
    %v11727 = vpop.f32.mrf.mxu0
    %v11728 = vadd.f32 0.0, %v11727
    %v11729 = vpop.f32.mrf.mxu0
    %v11730 = vadd.f32 0.0, %v11729
    %v11731 = vpop.f32.mrf.mxu0
    %v11732 = vadd.f32 0.0, %v11731
    %v11733 = vpop.f32.mrf.mxu0
    %v11734 = vadd.f32 0.0, %v11733
    %11735 = vmatprep.mubr.bf16.mxu0 %v11504
    %11736 = vmatmul.mubr.bf16.gmra.mxu0 %v11503
    %v11737 = vpop.f32.mrf.mxu0
    %v11738 = vadd.f32 0.0, %v11737
    %v11739 = vpop.f32.mrf.mxu0
    %v11740 = vadd.f32 0.0, %v11739
    %v11741 = vpop.f32.mrf.mxu0
    %v11742 = vadd.f32 0.0, %v11741
    %v11743 = vpop.f32.mrf.mxu0
    %v11744 = vadd.f32 0.0, %v11743
    %11745 = vmatprep.mubr.bf16.mxu0 %v11506
    %11746 = vmatmul.mubr.bf16.gmra.mxu0 %v11505
    %v11747 = vpop.f32.mrf.mxu0
    %v11748 = vadd.f32 0.0, %v11747
    %v11749 = vpop.f32.mrf.mxu0
    %v11750 = vadd.f32 0.0, %v11749
    %v11751 = vpop.f32.mrf.mxu0
    %v11752 = vadd.f32 0.0, %v11751
    %v11753 = vpop.f32.mrf.mxu0
    %v11754 = vadd.f32 0.0, %v11753
    %11755 = vmatprep.mubr.bf16.mxu0 %v11508
    %11756 = vmatmul.mubr.bf16.gmra.mxu0 %v11507
    %v11757 = vpop.f32.mrf.mxu0
    %v11758 = vadd.f32 0.0, %v11757
    %v11759 = vpop.f32.mrf.mxu0
    %v11760 = vadd.f32 0.0, %v11759
    %v11761 = vpop.f32.mrf.mxu0
    %v11762 = vadd.f32 0.0, %v11761
    %v11763 = vpop.f32.mrf.mxu0
    %v11764 = vadd.f32 0.0, %v11763
    %11765 = vmatprep.mubr.bf16.mxu0 %v11510
    %11766 = vmatmul.mubr.bf16.gmra.mxu0 %v11509
    %v11767 = vpop.f32.mrf.mxu0
    %v11768 = vadd.f32 0.0, %v11767
    %v11769 = vpop.f32.mrf.mxu0
    %v11770 = vadd.f32 0.0, %v11769
    %v11771 = vpop.f32.mrf.mxu0
    %v11772 = vadd.f32 0.0, %v11771
    %v11773 = vpop.f32.mrf.mxu0
    %v11774 = vadd.f32 0.0, %v11773
    %11775 = vmatprep.mubr.bf16.mxu0 %v11512
    %11776 = vmatmul.mubr.bf16.gmra.mxu0 %v11511
    %v11777 = vpop.f32.mrf.mxu0
    %v11778 = vadd.f32 0.0, %v11777
    %v11779 = vpop.f32.mrf.mxu0
    %v11780 = vadd.f32 0.0, %v11779
    %v11781 = vpop.f32.mrf.mxu0
    %v11782 = vadd.f32 0.0, %v11781
    %v11783 = vpop.f32.mrf.mxu0
    %v11784 = vadd.f32 0.0, %v11783
    %11785 = vmatprep.mubr.bf16.mxu0 %v11514
    %11786 = vmatmul.mubr.bf16.gmra.mxu0 %v11513
    %v11787 = vpop.f32.mrf.mxu0
    %v11788 = vadd.f32 0.0, %v11787
    %v11789 = vpop.f32.mrf.mxu0
    %v11790 = vadd.f32 0.0, %v11789
    %v11791 = vpop.f32.mrf.mxu0
    %v11792 = vadd.f32 0.0, %v11791
    %v11793 = vpop.f32.mrf.mxu0
    %v11794 = vadd.f32 0.0, %v11793
    %11795 = vmatprep.mubr.bf16.mxu0 %v11516
    %11796 = vmatmul.mubr.bf16.gmra.mxu0 %v11515
    %v11797 = vpop.f32.mrf.mxu0
    %v11798 = vadd.f32 0.0, %v11797
    %v11799 = vpop.f32.mrf.mxu0
    %v11800 = vadd.f32 0.0, %v11799
    %v11801 = vpop.f32.mrf.mxu0
    %v11802 = vadd.f32 0.0, %v11801
    %v11803 = vpop.f32.mrf.mxu0
    %v11804 = vadd.f32 0.0, %v11803
    %11805 = vdwg.mxu0
    %v11806 = vld [vmem:[#allocation3] sm:$0xff]
    %v11807 = vld [vmem:[#allocation3 + $0x8] sm:$0xff]
    %v11808 = vld [vmem:[#allocation3 + $0x10] sm:$0xff]
    %v11809 = vld [vmem:[#allocation3 + $0x18] sm:$0xff]
    %v11810 = vld [vmem:[#allocation3 + $0x20] sm:$0xff]
    %v11811 = vld [vmem:[#allocation3 + $0x28] sm:$0xff]
    %v11812 = vld [vmem:[#allocation3 + $0x30] sm:$0xff]
    %v11813 = vld [vmem:[#allocation3 + $0x38] sm:$0xff]
    %v11814 = vld [vmem:[#allocation3 + $0x40] sm:$0xff]
    %v11815 = vld [vmem:[#allocation3 + $0x48] sm:$0xff]
    %v11816 = vld [vmem:[#allocation3 + $0x50] sm:$0xff]
    %v11817 = vld [vmem:[#allocation3 + $0x58] sm:$0xff]
    %v11818 = vld [vmem:[#allocation3 + $0x60] sm:$0xff]
    %v11819 = vld [vmem:[#allocation3 + $0x68] sm:$0xff]
    %v11820 = vld [vmem:[#allocation3 + $0x70] sm:$0xff]
    %v11821 = vld [vmem:[#allocation3 + $0x78] sm:$0xff]
    %v11822 = vld [vmem:[#allocation3 + $0x80] sm:$0xff]
    %v11823 = vld [vmem:[#allocation3 + $0x88] sm:$0xff]
    %v11824 = vld [vmem:[#allocation3 + $0x90] sm:$0xff]
    %v11825 = vld [vmem:[#allocation3 + $0x98] sm:$0xff]
    %v11826 = vld [vmem:[#allocation3 + $0xa0] sm:$0xff]
    %v11827 = vld [vmem:[#allocation3 + $0xa8] sm:$0xff]
    %v11828 = vld [vmem:[#allocation3 + $0xb0] sm:$0xff]
    %v11829 = vld [vmem:[#allocation3 + $0xb8] sm:$0xff]
    %v11830 = vld [vmem:[#allocation3 + $0xc0] sm:$0xff]
    %v11831 = vld [vmem:[#allocation3 + $0xc8] sm:$0xff]
    %v11832 = vld [vmem:[#allocation3 + $0xd0] sm:$0xff]
    %v11833 = vld [vmem:[#allocation3 + $0xd8] sm:$0xff]
    %v11834 = vld [vmem:[#allocation3 + $0xe0] sm:$0xff]
    %v11835 = vld [vmem:[#allocation3 + $0xe8] sm:$0xff]
    %v11836 = vld [vmem:[#allocation3 + $0xf0] sm:$0xff]
    %v11837 = vld [vmem:[#allocation3 + $0xf8] sm:$0xff]
    %v11838 = vadd.f32 %v11806, %v11728
    %v11839 = vadd.f32 %v11807, %v11730
    %v11840 = vadd.f32 %v11808, %v11732
    %v11841 = vadd.f32 %v11809, %v11734
    %v11842 = vadd.f32 %v11810, %v11738
    %v11843 = vadd.f32 %v11811, %v11740
    %v11844 = vadd.f32 %v11812, %v11742
    %v11845 = vadd.f32 %v11813, %v11744
    %v11846 = vadd.f32 %v11814, %v11748
    %v11847 = vadd.f32 %v11815, %v11750
    %v11848 = vadd.f32 %v11816, %v11752
    %v11849 = vadd.f32 %v11817, %v11754
    %v11850 = vadd.f32 %v11818, %v11758
    %v11851 = vadd.f32 %v11819, %v11760
    %v11852 = vadd.f32 %v11820, %v11762
    %v11853 = vadd.f32 %v11821, %v11764
    %v11854 = vadd.f32 %v11822, %v11768
    %v11855 = vadd.f32 %v11823, %v11770
    %v11856 = vadd.f32 %v11824, %v11772
    %v11857 = vadd.f32 %v11825, %v11774
    %v11858 = vadd.f32 %v11826, %v11778
    %v11859 = vadd.f32 %v11827, %v11780
    %v11860 = vadd.f32 %v11828, %v11782
    %v11861 = vadd.f32 %v11829, %v11784
    %v11862 = vadd.f32 %v11830, %v11788
    %v11863 = vadd.f32 %v11831, %v11790
    %v11864 = vadd.f32 %v11832, %v11792
    %v11865 = vadd.f32 %v11833, %v11794
    %v11866 = vadd.f32 %v11834, %v11798
    %v11867 = vadd.f32 %v11835, %v11800
    %v11868 = vadd.f32 %v11836, %v11802
    %v11869 = vadd.f32 %v11837, %v11804
    %11870 = vst [vmem:[#allocation3] sm:$0xff] %v11838
    %11871 = vst [vmem:[#allocation3 + $0x8] sm:$0xff] %v11839
    %11872 = vst [vmem:[#allocation3 + $0x10] sm:$0xff] %v11840
    %11873 = vst [vmem:[#allocation3 + $0x18] sm:$0xff] %v11841
    %11874 = vst [vmem:[#allocation3 + $0x20] sm:$0xff] %v11842
    %11875 = vst [vmem:[#allocation3 + $0x28] sm:$0xff] %v11843
    %11876 = vst [vmem:[#allocation3 + $0x30] sm:$0xff] %v11844
    %11877 = vst [vmem:[#allocation3 + $0x38] sm:$0xff] %v11845
    %11878 = vst [vmem:[#allocation3 + $0x40] sm:$0xff] %v11846
    %11879 = vst [vmem:[#allocation3 + $0x48] sm:$0xff] %v11847
    %11880 = vst [vmem:[#allocation3 + $0x50] sm:$0xff] %v11848
    %11881 = vst [vmem:[#allocation3 + $0x58] sm:$0xff] %v11849
    %11882 = vst [vmem:[#allocation3 + $0x60] sm:$0xff] %v11850
    %11883 = vst [vmem:[#allocation3 + $0x68] sm:$0xff] %v11851
    %11884 = vst [vmem:[#allocation3 + $0x70] sm:$0xff] %v11852
    %11885 = vst [vmem:[#allocation3 + $0x78] sm:$0xff] %v11853
    %11886 = vst [vmem:[#allocation3 + $0x80] sm:$0xff] %v11854
    %11887 = vst [vmem:[#allocation3 + $0x88] sm:$0xff] %v11855
    %11888 = vst [vmem:[#allocation3 + $0x90] sm:$0xff] %v11856
    %11889 = vst [vmem:[#allocation3 + $0x98] sm:$0xff] %v11857
    %11890 = vst [vmem:[#allocation3 + $0xa0] sm:$0xff] %v11858
    %11891 = vst [vmem:[#allocation3 + $0xa8] sm:$0xff] %v11859
    %11892 = vst [vmem:[#allocation3 + $0xb0] sm:$0xff] %v11860
    %11893 = vst [vmem:[#allocation3 + $0xb8] sm:$0xff] %v11861
    %11894 = vst [vmem:[#allocation3 + $0xc0] sm:$0xff] %v11862
    %11895 = vst [vmem:[#allocation3 + $0xc8] sm:$0xff] %v11863
    %11896 = vst [vmem:[#allocation3 + $0xd0] sm:$0xff] %v11864
    %11897 = vst [vmem:[#allocation3 + $0xd8] sm:$0xff] %v11865
    %11898 = vst [vmem:[#allocation3 + $0xe0] sm:$0xff] %v11866
    %11899 = vst [vmem:[#allocation3 + $0xe8] sm:$0xff] %v11867
    %11900 = vst [vmem:[#allocation3 + $0xf0] sm:$0xff] %v11868
    %11901 = vst [vmem:[#allocation3 + $0xf8] sm:$0xff] %v11869
    %v11902 = vld [vmem:[#allocation3] sm:$0xff]
    %v11903 = vld [vmem:[#allocation3 + $0x8] sm:$0xff]
    %v11904 = vld [vmem:[#allocation3 + $0x10] sm:$0xff]
    %v11905 = vld [vmem:[#allocation3 + $0x18] sm:$0xff]
    %v11906 = vld [vmem:[#allocation3 + $0x20] sm:$0xff]
    %v11907 = vld [vmem:[#allocation3 + $0x28] sm:$0xff]
    %v11908 = vld [vmem:[#allocation3 + $0x30] sm:$0xff]
    %v11909 = vld [vmem:[#allocation3 + $0x38] sm:$0xff]
    %v11910 = vld [vmem:[#allocation3 + $0x40] sm:$0xff]
    %v11911 = vld [vmem:[#allocation3 + $0x48] sm:$0xff]
    %v11912 = vld [vmem:[#allocation3 + $0x50] sm:$0xff]
    %v11913 = vld [vmem:[#allocation3 + $0x58] sm:$0xff]
    %v11914 = vld [vmem:[#allocation3 + $0x60] sm:$0xff]
    %v11915 = vld [vmem:[#allocation3 + $0x68] sm:$0xff]
    %v11916 = vld [vmem:[#allocation3 + $0x70] sm:$0xff]
    %v11917 = vld [vmem:[#allocation3 + $0x78] sm:$0xff]
    %v11918 = vld [vmem:[#allocation3 + $0x80] sm:$0xff]
    %v11919 = vld [vmem:[#allocation3 + $0x88] sm:$0xff]
    %v11920 = vld [vmem:[#allocation3 + $0x90] sm:$0xff]
    %v11921 = vld [vmem:[#allocation3 + $0x98] sm:$0xff]
    %v11922 = vld [vmem:[#allocation3 + $0xa0] sm:$0xff]
    %v11923 = vld [vmem:[#allocation3 + $0xa8] sm:$0xff]
    %v11924 = vld [vmem:[#allocation3 + $0xb0] sm:$0xff]
    %v11925 = vld [vmem:[#allocation3 + $0xb8] sm:$0xff]
    %v11926 = vld [vmem:[#allocation3 + $0xc0] sm:$0xff]
    %v11927 = vld [vmem:[#allocation3 + $0xc8] sm:$0xff]
    %v11928 = vld [vmem:[#allocation3 + $0xd0] sm:$0xff]
    %v11929 = vld [vmem:[#allocation3 + $0xd8] sm:$0xff]
    %v11930 = vld [vmem:[#allocation3 + $0xe0] sm:$0xff]
    %v11931 = vld [vmem:[#allocation3 + $0xe8] sm:$0xff]
    %v11932 = vld [vmem:[#allocation3 + $0xf0] sm:$0xff]
    %v11933 = vld [vmem:[#allocation3 + $0xf8] sm:$0xff]
    %v11934 = vld [vmem:[#allocation12] sm:$0x3]
    %v11936 = vlaneseq
    %v11937 = vshrl.u32 %v11936, 7
    %v11938 = vsub.s32 0, %v11937
    %v11939 = vrot.slane %v11934, %v11938
    %v11940 = vlaneseq
    %v11941 = vshrl.u32 %v11940, 7
    %v11942 = vsub.s32 1, %v11941
    %v11943 = vrot.slane %v11934, %v11942
    %v11946 = vadd.f32 %v11902, %v11939
    %v11947 = vadd.f32 %v11903, %v11943
    %v11948 = vadd.f32 %v11904, %v11939
    %v11949 = vadd.f32 %v11905, %v11943
    %v11950 = vadd.f32 %v11906, %v11939
    %v11951 = vadd.f32 %v11907, %v11943
    %v11952 = vadd.f32 %v11908, %v11939
    %v11953 = vadd.f32 %v11909, %v11943
    %v11954 = vadd.f32 %v11910, %v11939
    %v11955 = vadd.f32 %v11911, %v11943
    %v11956 = vadd.f32 %v11912, %v11939
    %v11957 = vadd.f32 %v11913, %v11943
    %v11958 = vadd.f32 %v11914, %v11939
    %v11959 = vadd.f32 %v11915, %v11943
    %v11960 = vadd.f32 %v11916, %v11939
    %v11961 = vadd.f32 %v11917, %v11943
    %v11962 = vadd.f32 %v11918, %v11939
    %v11963 = vadd.f32 %v11919, %v11943
    %v11964 = vadd.f32 %v11920, %v11939
    %v11965 = vadd.f32 %v11921, %v11943
    %v11966 = vadd.f32 %v11922, %v11939
    %v11967 = vadd.f32 %v11923, %v11943
    %v11968 = vadd.f32 %v11924, %v11939
    %v11969 = vadd.f32 %v11925, %v11943
    %v11970 = vadd.f32 %v11926, %v11939
    %v11971 = vadd.f32 %v11927, %v11943
    %v11972 = vadd.f32 %v11928, %v11939
    %v11973 = vadd.f32 %v11929, %v11943
    %v11974 = vadd.f32 %v11930, %v11939
    %v11975 = vadd.f32 %v11931, %v11943
    %v11976 = vadd.f32 %v11932, %v11939
    %v11977 = vadd.f32 %v11933, %v11943
    %v11978 = vadd.f32 %v11946, %v227
    %v11979 = vadd.f32 %v11947, %v228
    %v11980 = vadd.f32 %v11948, %v229
    %v11981 = vadd.f32 %v11949, %v230
    %v11982 = vadd.f32 %v11950, %v231
    %v11983 = vadd.f32 %v11951, %v232
    %v11984 = vadd.f32 %v11952, %v233
    %v11985 = vadd.f32 %v11953, %v234
    %v11986 = vadd.f32 %v11954, %v235
    %v11987 = vadd.f32 %v11955, %v236
    %v11988 = vadd.f32 %v11956, %v237
    %v11989 = vadd.f32 %v11957, %v238
    %v11990 = vadd.f32 %v11958, %v239
    %v11991 = vadd.f32 %v11959, %v240
    %v11992 = vadd.f32 %v11960, %v241
    %v11993 = vadd.f32 %v11961, %v242
    %v11994 = vadd.f32 %v11962, %v243
    %v11995 = vadd.f32 %v11963, %v244
    %v11996 = vadd.f32 %v11964, %v245
    %v11997 = vadd.f32 %v11965, %v246
    %v11998 = vadd.f32 %v11966, %v247
    %v11999 = vadd.f32 %v11967, %v248
    %v12000 = vadd.f32 %v11968, %v249
    %v12001 = vadd.f32 %v11969, %v250
    %v12002 = vadd.f32 %v11970, %v251
    %v12003 = vadd.f32 %v11971, %v252
    %v12004 = vadd.f32 %v11972, %v253
    %v12005 = vadd.f32 %v11973, %v254
    %v12006 = vadd.f32 %v11974, %v255
    %v12007 = vadd.f32 %v11975, %v256
    %v12008 = vadd.f32 %v11976, %v257
    %v12009 = vadd.f32 %v11977, %v258
    %12010 = vst [vmem:[#allocation13] sm:$0xff] %v11978
    %12011 = vst [vmem:[#allocation13 + $0x8] sm:$0xff] %v11979
    %12012 = vst [vmem:[#allocation13 + $0x10] sm:$0xff] %v11980
    %12013 = vst [vmem:[#allocation13 + $0x18] sm:$0xff] %v11981
    %12014 = vst [vmem:[#allocation13 + $0x20] sm:$0xff] %v11982
    %12015 = vst [vmem:[#allocation13 + $0x28] sm:$0xff] %v11983
    %12016 = vst [vmem:[#allocation13 + $0x30] sm:$0xff] %v11984
    %12017 = vst [vmem:[#allocation13 + $0x38] sm:$0xff] %v11985
    %12018 = vst [vmem:[#allocation13 + $0x40] sm:$0xff] %v11986
    %12019 = vst [vmem:[#allocation13 + $0x48] sm:$0xff] %v11987
    %12020 = vst [vmem:[#allocation13 + $0x50] sm:$0xff] %v11988
    %12021 = vst [vmem:[#allocation13 + $0x58] sm:$0xff] %v11989
    %12022 = vst [vmem:[#allocation13 + $0x60] sm:$0xff] %v11990
    %12023 = vst [vmem:[#allocation13 + $0x68] sm:$0xff] %v11991
    %12024 = vst [vmem:[#allocation13 + $0x70] sm:$0xff] %v11992
    %12025 = vst [vmem:[#allocation13 + $0x78] sm:$0xff] %v11993
    %12026 = vst [vmem:[#allocation13 + $0x80] sm:$0xff] %v11994
    %12027 = vst [vmem:[#allocation13 + $0x88] sm:$0xff] %v11995
    %12028 = vst [vmem:[#allocation13 + $0x90] sm:$0xff] %v11996
    %12029 = vst [vmem:[#allocation13 + $0x98] sm:$0xff] %v11997
    %12030 = vst [vmem:[#allocation13 + $0xa0] sm:$0xff] %v11998
    %12031 = vst [vmem:[#allocation13 + $0xa8] sm:$0xff] %v11999
    %12032 = vst [vmem:[#allocation13 + $0xb0] sm:$0xff] %v12000
    %12033 = vst [vmem:[#allocation13 + $0xb8] sm:$0xff] %v12001
    %12034 = vst [vmem:[#allocation13 + $0xc0] sm:$0xff] %v12002
    %12035 = vst [vmem:[#allocation13 + $0xc8] sm:$0xff] %v12003
    %12036 = vst [vmem:[#allocation13 + $0xd0] sm:$0xff] %v12004
    %12037 = vst [vmem:[#allocation13 + $0xd8] sm:$0xff] %v12005
    %12038 = vst [vmem:[#allocation13 + $0xe0] sm:$0xff] %v12006
    %12039 = vst [vmem:[#allocation13 + $0xe8] sm:$0xff] %v12007
    %12040 = vst [vmem:[#allocation13 + $0xf0] sm:$0xff] %v12008
    %12041 = vst [vmem:[#allocation13 + $0xf8] sm:$0xff] %v12009
    // Predicated region
    $region42: #{tpu_custom_call.1} parent=1 // pred_check
      _
    $region43: #{tpu_custom_call.1} parent=1 // pred_check_branch
      %12043 = sbr.rel (0) target = $region45
    $region44: #{tpu_custom_call.1} parent=1 // pred_region
      %s12045 = ssub.s32 4096, 4096
      %12046 = vsyncadd [#allocation6], %s12045
      %s12047 = sshll.u32 [#allocation13], 4
      %s12048 = int_to_ptr.vmem [resolvable:$true] %s12047
      %12053 = dma.vmem_to_hbm [thread:$0]  %s12048, 4096, %s5, [#allocation6], 256, 256, 16
    $region45: #{tpu_custom_call.1} parent=1 // pred_fallthru
      _
    // Predicated region
    $region46: #{tpu_custom_call.1} parent=1 // pred_check
      _
    $region47: #{tpu_custom_call.1} parent=1 // pred_check_branch
      %12055 = sbr.rel (0) target = $region49
    $region48: #{tpu_custom_call.1} parent=1 // pred_region
      %12056 = dma.done [#allocation6], 4096
    $region49: #{tpu_custom_call.1} parent=1 // pred_fallthru
      _
    %12057 = vsyncpa [#allocation5], 1
    %12058 = vsyncpa [#allocation8], 1
    %12059 = vsyncpa [#allocation11], 1
    %12060 = vsyncpa [#allocation6], 1

</llo_original>
